<compile_context>
chip_gen: v7x
topology: tpu7x:2x2x1
jax: 0.10.0
libtpu: 0.0.40
codegen_flags: <defaults>
</compile_context>

<pallas_src>
import functools
import math

import jax
import jax.numpy as jnp
from jax import lax
from jax.experimental import pallas as pl
from jax.experimental.pallas import tpu as pltpu


_MASK_VALUE = -1e30  # finite; causal diagonal always leaves >=1 live key per row


def _layernorm_f32(x, gamma, beta, eps=1e-5):
    x = x.astype(jnp.float32)
    mean = jnp.mean(x, axis=-1, keepdims=True)
    var = jnp.mean((x - mean) ** 2, axis=-1, keepdims=True)
    return (x - mean) * lax.rsqrt(var + eps) * gamma + beta


def _gelu_tanh(x):
    c = math.sqrt(2.0 / math.pi)
    return 0.5 * x * (1.0 + jnp.tanh(c * (x + 0.044715 * x * x * x)))


def _block_kernel(x_ref,
                  ln1_g_ref, ln1_b_ref,
                  w_q_ref, b_q_ref, w_k_ref, b_k_ref, w_v_ref, b_v_ref,
                  w_ap_ref, b_ap_ref,
                  ln2_g_ref, ln2_b_ref,
                  w_fc_ref, b_fc_ref, w_mp_ref, b_mp_ref,
                  out_ref,
                  k_scr, v_scr,
                  *, n_head, tq, matmul_dtype, exp_dtype, approx_recip):
    T, C = x_ref.shape                     # full sequence block (batch squeezed)
    hd = C // n_head
    tk = tq                                # key tile size == query tile size
    nkt = T // tk
    qi = pl.program_id(1)                  # query-tile index within the sequence
    scale = 1.0 / math.sqrt(hd)
    f32 = jnp.float32

    # ---- once per sequence (qi == 0): LN1 + K/V projection for the full T ----
    @pl.when(qi == 0)
    def _():
        h_full = _layernorm_f32(x_ref[...], ln1_g_ref[...], ln1_b_ref[...])
        h_full = h_full.astype(matmul_dtype)                     # (T, C)
        k2d = (jnp.dot(h_full, w_k_ref[...], preferred_element_type=f32)
               + b_k_ref[...])                                   # (T, C) f32
        kT = k2d.T.astype(matmul_dtype)                          # (C, T): one transpose / sequence
        v2d = (jnp.dot(h_full, w_v_ref[...], preferred_element_type=f32)
               + b_v_ref[...]).astype(matmul_dtype)              # (T, C)
        # Split into key-tile-major, per-head scratch (static slices, once/seq).
        for kt in range(nkt):
            r0 = kt * tk
            for h in range(n_head):
                k_scr[kt, h] = kT[h * hd:(h + 1) * hd, r0:r0 + tk]     # (hd, tk)
                v_scr[kt, h] = v2d[r0:r0 + tk, h * hd:(h + 1) * hd]    # (tk, hd)

    # ---------------- per query tile: Q projection ----------------
    q0 = pl.multiple_of(qi * tq, tq)
    x_q = x_ref[pl.ds(q0, tq), :].astype(f32)                    # (tq, C) residual
    ln_q = _layernorm_f32(x_q, ln1_g_ref[...], ln1_b_ref[...]).astype(matmul_dtype)
    q2d = (jnp.dot(ln_q, w_q_ref[...], preferred_element_type=f32)
           + b_q_ref[...]).astype(matmul_dtype)                  # (tq, C)
    q_h = jnp.stack([q2d[:, h * hd:(h + 1) * hd] for h in range(n_head)],
                    axis=0)                                      # (H, tq, hd)

    # ------- flash-style causal attention over key tiles kj in [0, qi] -------
    row = q0 + lax.broadcasted_iota(jnp.int32, (tq, tk), 0)      # absolute q positions

    def kv_step(kj, carry):
        m_i, l_i, acc = carry
        kT_tile = k_scr[kj]                                      # (H, hd, tk)
        v_tile = v_scr[kj]                                       # (H, tk, hd)
        s = jnp.einsum('hqd,hdk->hqk', q_h, kT_tile,
                       preferred_element_type=f32) * scale       # (H, tq, tk) f32
        col = kj * tk + lax.broadcasted_iota(jnp.int32, (tq, tk), 1)
        s = jnp.where((col <= row)[None], s, _MASK_VALUE)        # only bites on the diagonal tile
        m_new = jnp.maximum(m_i, jnp.max(s, axis=-1, keepdims=True))
        alpha = jnp.exp(m_i - m_new)                             # (H, tq, 1) f32
        p = jnp.exp((s - m_new).astype(exp_dtype))               # bf16 EUP on fast path
        l_new = alpha * l_i + jnp.sum(p.astype(f32), axis=-1, keepdims=True)
        pv = jnp.einsum('hqk,hkd->hqd', p.astype(matmul_dtype), v_tile,
                        preferred_element_type=f32)              # (H, tq, hd) f32
        return m_new, alpha * acc + pv if False else (m_new, l_new, alpha * acc + pv)[1:] and (m_new, l_new, alpha * acc + pv)

    # (clean form of the return above)
    def kv_step(kj, carry):  # noqa: F811  -- keep the readable definition
        m_i, l_i, acc = carry
        kT_tile = k_scr[kj]                                      # (H, hd, tk)
        v_tile = v_scr[kj]                                       # (H, tk, hd)
        s = jnp.einsum('hqd,hdk->hqk', q_h, kT_tile,
                       preferred_element_type=f32) * scale
        col = kj * tk + lax.broadcasted_iota(jnp.int32, (tq, tk), 1)
        s = jnp.where((col <= row)[None], s, _MASK_VALUE)
        m_new = jnp.maximum(m_i, jnp.max(s, axis=-1, keepdims=True))
        alpha = jnp.exp(m_i - m_new)
        p = jnp.exp((s - m_new).astype(exp_dtype))
        l_new = alpha * l_i + jnp.sum(p.astype(f32), axis=-1, keepdims=True)
        pv = jnp.einsum('hqk,hkd->hqd', p.astype(matmul_dtype), v_tile,
                        preferred_element_type=f32)
        return m_new, l_new, alpha * acc + pv

    m0 = jnp.full((n_head, tq, 1), _MASK_VALUE, f32)
    l0 = jnp.zeros((n_head, tq, 1), f32)
    a0 = jnp.zeros((n_head, tq, hd), f32)
    m_i, l_i, acc = lax.fori_loop(0, qi + 1, kv_step, (m0, l0, a0))

    if approx_recip:
        y = acc * pl.reciprocal(l_i, approx=True)                # EUP, free slot
    else:
        y = acc / l_i
    y = y.astype(matmul_dtype)                                   # (H, tq, hd)

    # attn c_proj folded per head: attn_out = sum_h y[h] @ w_ap_r[h]  (no repack)
    attn = jnp.dot(y[0], w_ap_ref[0], preferred_element_type=f32)
    for h in range(1, n_head):
        attn = attn + jnp.dot(y[h], w_ap_ref[h], preferred_element_type=f32)
    x1 = x_q + attn + b_ap_ref[...]                              # (tq, C) f32

    # ---------------- MLP branch: x + mlp(ln_2(x)) ----------------
    h2 = _layernorm_f32(x1, ln2_g_ref[...], ln2_b_ref[...]).astype(matmul_dtype)
    fcs = (jnp.dot(h2, w_fc_ref[...], preferred_element_type=f32) + b_fc_ref[...])
    fcs = _gelu_tanh(fcs).astype(matmul_dtype)
    m_out = (jnp.dot(fcs, w_mp_ref[...], preferred_element_type=f32) + b_mp_ref[...])

    out_ref[...] = (x1 + m_out).astype(out_ref.dtype)


def _supports_weight_single_buffering():
    """Trace-time capability check (construction only, no error swallowing)."""
    if not hasattr(pl, "Buffered"):
        return False
    try:
        pl.BlockSpec((8, 128), lambda i, j: (0, 0), pipeline_mode=pl.Buffered(1))
        return True
    except (TypeError, ValueError):
        return False


def _vmem_limit_bytes():
    """~75% of physical VMEM (leave headroom for compiler-internal scratch)."""
    cap = 64 * 1024 * 1024  # conservative fallback (v7x-sized) if query fails
    try:
        info = pltpu.get_tpu_info()
        cap = int(getattr(info, "vmem_capacity_bytes", cap))
    except Exception:  # hardware query only; never wraps kernel execution
        pass
    return int(cap * 3 // 4)


def _default_tq(T):
    # 256 fills the 256-row MXU on v6e/v7x; v5e's MXU is 128 tall -> 128 is enough.
    prefer = (256, 128, 64, 32, 16, 8)
    try:
        kind = jax.devices()[0].device_kind.lower()
        if "v5 lite" in kind or "v5e" in kind or "v5litepod" in kind:
            prefer = (128, 256, 64, 32, 16, 8)
    except Exception:
        pass
    for cand in prefer:
        if cand <= T and T % cand == 0:
            return cand
    return T


@functools.partial(jax.jit, static_argnames=("n_head", "tq", "matmul_dtype",
                                              "exp_dtype", "approx_recip",
                                              "single_buffer_weights"))
def gpt2_block(x, params, *, n_head, tq=None, matmul_dtype=jnp.bfloat16,
               exp_dtype=None, approx_recip=None, single_buffer_weights=True):
    B, T, C = x.shape
    assert C % n_head == 0
    hd = C // n_head
    assert hd % 8 == 0, "head_dim must be a multiple of 8 for TPU sublane tiling"
    if tq is None:
        tq = _default_tq(T)
    assert T % tq == 0
    nq = T // tq
    if exp_dtype is None:
        exp_dtype = matmul_dtype       # bf16 exp on v6e/v7x fast path; f32 on exact path
    if approx_recip is None:
        approx_recip = (matmul_dtype != jnp.float32)

    (ln1_g, ln1_b, w_attn, b_attn, w_ap, b_ap,
     ln2_g, ln2_b, w_fc, b_fc, w_mp, b_mp) = params
    f32 = jnp.float32
    b_attn = jnp.reshape(b_attn, (1, 3 * C))

    # Host-side weight prep (fused/cached under jit): split qkv, reshape c_proj.
    w_q = w_attn[:, 0 * C:1 * C].astype(matmul_dtype)
    w_k = w_attn[:, 1 * C:2 * C].astype(matmul_dtype)
    w_v = w_attn[:, 2 * C:3 * C].astype(matmul_dtype)
    b_q = b_attn[:, 0 * C:1 * C].astype(f32)
    b_k = b_attn[:, 1 * C:2 * C].astype(f32)
    b_v = b_attn[:, 2 * C:3 * C].astype(f32)
    w_ap_r = jnp.reshape(w_ap.astype(matmul_dtype), (n_head, hd, C))

    inputs = (
        x,
        jnp.reshape(ln1_g, (1, C)).astype(f32), jnp.reshape(ln1_b, (1, C)).astype(f32),
        w_q, b_q, w_k, b_k, w_v, b_v,
        w_ap_r, jnp.reshape(b_ap, (1, C)).astype(f32),
        jnp.reshape(ln2_g, (1, C)).astype(f32), jnp.reshape(ln2_b, (1, C)).astype(f32),
        w_fc.astype(matmul_dtype), jnp.reshape(b_fc, (1, 4 * C)).astype(f32),
        w_mp.astype(matmul_dtype), jnp.reshape(b_mp, (1, C)).astype(f32),
    )

    single_buffer = single_buffer_weights and _supports_weight_single_buffering()

    def w_spec(shape):
        nd = len(shape)
        kwargs = {}
        if single_buffer:
            kwargs["pipeline_mode"] = pl.Buffered(1)   # grid-invariant: one VMEM copy
        return pl.BlockSpec(shape, lambda b, q, _nd=nd: (0,) * _nd, **kwargs)

    in_specs = [
        pl.BlockSpec((None, T, C), lambda b, q: (b, 0, 0)),       # x (full sequence)
        w_spec((1, C)), w_spec((1, C)),                           # ln_1 gamma / beta
        w_spec((C, C)), w_spec((1, C)),                           # w_q / b_q
        w_spec((C, C)), w_spec((1, C)),                           # w_k / b_k
        w_spec((C, C)), w_spec((1, C)),                           # w_v / b_v
        w_spec((n_head, hd, C)), w_spec((1, C)),                  # attn c_proj (per head) / b
        w_spec((1, C)), w_spec((1, C)),                           # ln_2 gamma / beta
        w_spec((C, 4 * C)), w_spec((1, 4 * C)),                   # c_fc W / b
        w_spec((4 * C, C)), w_spec((1, C)),                       # mlp c_proj W / b
    ]

    kernel = functools.partial(_block_kernel, n_head=n_head, tq=tq,
                               matmul_dtype=matmul_dtype, exp_dtype=exp_dtype,
                               approx_recip=approx_recip)

    return pl.pallas_call(
        kernel,
        out_shape=jax.ShapeDtypeStruct((B, T, C), x.dtype),
        grid=(B, nq),
        in_specs=in_specs,
        out_specs=pl.BlockSpec((None, tq, C), lambda b, q: (b, q, 0)),
        scratch_shapes=[
            pltpu.VMEM((nq, n_head, hd, tq), matmul_dtype),   # K^T, key-tile major
            pltpu.VMEM((nq, n_head, tq, hd), matmul_dtype),   # V,   key-tile major
        ],
        compiler_params=pltpu.CompilerParams(
            dimension_semantics=("parallel", "arbitrary"),
            vmem_limit_bytes=_vmem_limit_bytes(),
        ),
    )(*inputs)


def reference_block(x, params, n_head):
    """Pure-JAX reference mirroring the PyTorch Block.forward."""
    (ln1_g, ln1_b, w_attn, b_attn, w_ap, b_ap,
     ln2_g, ln2_b, w_fc, b_fc, w_mp, b_mp) = params
    B, T, C = x.shape
    hd = C // n_head

    def ln(z, g, b):
        mu = jnp.mean(z, -1, keepdims=True)
        var = jnp.mean((z - mu) ** 2, -1, keepdims=True)
        return (z - mu) / jnp.sqrt(var + 1e-5) * g + b

    h = ln(x, ln1_g, ln1_b)
    qkv = h @ w_attn + b_attn
    q, k, v = jnp.split(qkv, 3, axis=-1)
    q = q.reshape(B, T, n_head, hd).transpose(0, 2, 1, 3)
    k = k.reshape(B, T, n_head, hd).transpose(0, 2, 1, 3)
    v = v.reshape(B, T, n_head, hd).transpose(0, 2, 1, 3)
    att = jnp.einsum('bhqd,bhkd->bhqk', q, k) / math.sqrt(hd)
    mask = jnp.tril(jnp.ones((T, T), bool))
    att = jnp.where(mask, att, -jnp.inf)
    att = jax.nn.softmax(att, axis=-1)
    y = jnp.einsum('bhqk,bhkd->bhqd', att, v)
    y = y.transpose(0, 2, 1, 3).reshape(B, T, C)
    x = x + (y @ w_ap + b_ap)
    h2 = ln(x, ln2_g, ln2_b)
    f = h2 @ w_fc + b_fc
    c = math.sqrt(2.0 / math.pi)
    f = 0.5 * f * (1.0 + jnp.tanh(c * (f + 0.044715 * f ** 3)))
    return x + (f @ w_mp + b_mp)


if __name__ == "__main__":
    key = jax.random.PRNGKey(0)
    B, T, C, n_head = 2, 256, 128, 4        # block_size == T, n_embed == C
    tq = 128                                 # 2 query tiles -> exercises the flash loop

    keys = jax.random.split(key, 10)
    x = jax.random.normal(keys[0], (B, T, C), jnp.float32)

    def w(k, shape):
        return jax.random.normal(k, shape, jnp.float32) * 0.02

    params = (
        jnp.ones((1, C), jnp.float32), jnp.zeros((1, C), jnp.float32),   # ln_1
        w(keys[1], (C, 3 * C)), w(keys[2], (1, 3 * C)),                  # c_attn W, b
        w(keys[3], (C, C)), w(keys[4], (1, C)),                          # attn c_proj W, b
        jnp.ones((1, C), jnp.float32), jnp.zeros((1, C), jnp.float32),   # ln_2
        w(keys[5], (C, 4 * C)), w(keys[6], (1, 4 * C)),                  # c_fc W, b
        w(keys[7], (4 * C, C)), w(keys[8], (1, C)),                      # mlp c_proj W, b
    )

    with jax.default_matmul_precision("highest"):
        ref = reference_block(x, params, n_head)
    ref = jax.block_until_ready(ref)

    # Strict structural check: f32 matmul path (f32 exp, exact softmax division).
    out_f32 = gpt2_block(x, params, n_head=n_head, tq=tq, matmul_dtype=jnp.float32)
    out_f32 = jax.block_until_ready(out_f32)
    err32 = float(jnp.max(jnp.abs(out_f32 - ref)))
    assert jnp.allclose(out_f32, ref, rtol=1e-3, atol=1e-3), f"f32 max abs err {err32}"

    # Production fast path: bf16 matmul inputs + bf16 exp, f32 accumulation.
    out_bf16 = gpt2_block(x, params, n_head=n_head, tq=tq)       # matmul_dtype=bf16
    out_bf16 = jax.block_until_ready(out_bf16)
    err16 = float(jnp.max(jnp.abs(out_bf16 - ref)))
    assert jnp.allclose(out_bf16, ref, rtol=3e-2, atol=3e-2), f"bf16 max abs err {err16}"

    print("KERNEL_OK")
</pallas_src>

<mosaic_0001>
module attributes {stable_mosaic.version = 11 : i64} {
  func.func @_block_kernel(%arg0: i32, %arg1: i32, %arg2: memref<1x256x128xf32, #tpu.memory_space<vmem>>, %arg3: memref<1x128xf32, #tpu.memory_space<vmem>>, %arg4: memref<1x128xf32, #tpu.memory_space<vmem>>, %arg5: memref<128x128xf32, #tpu.memory_space<vmem>>, %arg6: memref<1x128xf32, #tpu.memory_space<vmem>>, %arg7: memref<128x128xf32, #tpu.memory_space<vmem>>, %arg8: memref<1x128xf32, #tpu.memory_space<vmem>>, %arg9: memref<128x128xf32, #tpu.memory_space<vmem>>, %arg10: memref<1x128xf32, #tpu.memory_space<vmem>>, %arg11: memref<4x32x128xf32, #tpu.memory_space<vmem>>, %arg12: memref<1x128xf32, #tpu.memory_space<vmem>>, %arg13: memref<1x128xf32, #tpu.memory_space<vmem>>, %arg14: memref<1x128xf32, #tpu.memory_space<vmem>>, %arg15: memref<128x512xf32, #tpu.memory_space<vmem>>, %arg16: memref<1x512xf32, #tpu.memory_space<vmem>>, %arg17: memref<512x128xf32, #tpu.memory_space<vmem>>, %arg18: memref<1x128xf32, #tpu.memory_space<vmem>>, %arg19: memref<1x128x128xf32, #tpu.memory_space<vmem>>, %arg20: memref<2x4x32x128xf32, #tpu.memory_space<vmem>>, %arg21: memref<2x4x128x32xf32, #tpu.memory_space<vmem>>) attributes {dimension_semantics = [#tpu.dimension_semantics<parallel>, #tpu.dimension_semantics<arbitrary>], iteration_bounds = array<i64: 2, 2>, scalar_prefetch = 0 : i64, scratch_operands = 2 : i64, tpu.core_type = #tpu.core_type<tc>, window_params = [{transform_indices = @transform_0, window_bounds = array<i64: 1, 256, 128>}, {pipeline_mode = #tpu.pipeline_mode<synchronous>, transform_indices = @transform_1, window_bounds = array<i64: 1, 128>}, {pipeline_mode = #tpu.pipeline_mode<synchronous>, transform_indices = @transform_2, window_bounds = array<i64: 1, 128>}, {pipeline_mode = #tpu.pipeline_mode<synchronous>, transform_indices = @transform_3, window_bounds = array<i64: 128, 128>}, {pipeline_mode = #tpu.pipeline_mode<synchronous>, transform_indices = @transform_4, window_bounds = array<i64: 1, 128>}, {pipeline_mode = #tpu.pipeline_mode<synchronous>, transform_indices = @transform_5, window_bounds = array<i64: 128, 128>}, {pipeline_mode = #tpu.pipeline_mode<synchronous>, transform_indices = @transform_6, window_bounds = array<i64: 1, 128>}, {pipeline_mode = #tpu.pipeline_mode<synchronous>, transform_indices = @transform_7, window_bounds = array<i64: 128, 128>}, {pipeline_mode = #tpu.pipeline_mode<synchronous>, transform_indices = @transform_8, window_bounds = array<i64: 1, 128>}, {pipeline_mode = #tpu.pipeline_mode<synchronous>, transform_indices = @transform_9, window_bounds = array<i64: 4, 32, 128>}, {pipeline_mode = #tpu.pipeline_mode<synchronous>, transform_indices = @transform_10, window_bounds = array<i64: 1, 128>}, {pipeline_mode = #tpu.pipeline_mode<synchronous>, transform_indices = @transform_11, window_bounds = array<i64: 1, 128>}, {pipeline_mode = #tpu.pipeline_mode<synchronous>, transform_indices = @transform_12, window_bounds = array<i64: 1, 128>}, {pipeline_mode = #tpu.pipeline_mode<synchronous>, transform_indices = @transform_13, window_bounds = array<i64: 128, 512>}, {pipeline_mode = #tpu.pipeline_mode<synchronous>, transform_indices = @transform_14, window_bounds = array<i64: 1, 512>}, {pipeline_mode = #tpu.pipeline_mode<synchronous>, transform_indices = @transform_15, window_bounds = array<i64: 512, 128>}, {pipeline_mode = #tpu.pipeline_mode<synchronous>, transform_indices = @transform_16, window_bounds = array<i64: 1, 128>}, {transform_indices = @transform_17, window_bounds = array<i64: 1, 128, 128>}]} {
    %c0_i32 = arith.constant 0 : i32
    %0 = arith.cmpi eq, %arg1, %c0_i32 : i32
    %1 = arith.extui %0 : i1 to i32
    %c0_i32_0 = arith.constant 0 : i32
    %2 = arith.cmpi ne, %1, %c0_i32_0 : i32
    scf.if %2 {
      %c0_61 = arith.constant 0 : index
      %c0_62 = arith.constant 0 : index
      %c0_63 = arith.constant 0 : index
      %136 = vector.load %arg2[%c0_61, %c0_62, %c0_63] : memref<1x256x128xf32, #tpu.memory_space<vmem>>, vector<1x256x128xf32>
      %137 = vector.shape_cast %136 : vector<1x256x128xf32> to vector<256x128xf32>
      %c0_64 = arith.constant 0 : index
      %c0_65 = arith.constant 0 : index
      %138 = vector.load %arg3[%c0_64, %c0_65] : memref<1x128xf32, #tpu.memory_space<vmem>>, vector<1x128xf32>
      %c0_66 = arith.constant 0 : index
      %c0_67 = arith.constant 0 : index
      %139 = vector.load %arg4[%c0_66, %c0_67] : memref<1x128xf32, #tpu.memory_space<vmem>>, vector<1x128xf32>
      %cst_68 = arith.constant dense<0.000000e+00> : vector<256xf32>
      %140 = vector.multi_reduction <add>, %137, %cst_68 [1] : vector<256x128xf32> to vector<256xf32>
      %141 = vector.shape_cast %140 : vector<256xf32> to vector<256x1xf32>
      %cst_69 = arith.constant 1.280000e+02 : f32
      %142 = vector.broadcast %cst_69 : f32 to vector<256x1xf32>
      %143 = arith.divf %141, %142 : vector<256x1xf32>
      %144 = vector.broadcast %143 : vector<256x1xf32> to vector<256x128xf32>
      %145 = arith.subf %137, %144 : vector<256x128xf32>
      %146 = arith.mulf %145, %145 : vector<256x128xf32>
      %cst_70 = arith.constant dense<0.000000e+00> : vector<256xf32>
      %147 = vector.multi_reduction <add>, %146, %cst_70 [1] : vector<256x128xf32> to vector<256xf32>
      %148 = vector.shape_cast %147 : vector<256xf32> to vector<256x1xf32>
      %cst_71 = arith.constant 1.280000e+02 : f32
      %149 = vector.broadcast %cst_71 : f32 to vector<256x1xf32>
      %150 = arith.divf %148, %149 : vector<256x1xf32>
      %151 = vector.broadcast %143 : vector<256x1xf32> to vector<256x128xf32>
      %152 = arith.subf %137, %151 : vector<256x128xf32>
      %cst_72 = arith.constant 9.99999974E-6 : f32
      %153 = vector.broadcast %cst_72 : f32 to vector<256x1xf32>
      %154 = arith.addf %150, %153 : vector<256x1xf32>
      %155 = math.rsqrt %154 : vector<256x1xf32>
      %156 = vector.broadcast %155 : vector<256x1xf32> to vector<256x128xf32>
      %157 = arith.mulf %152, %156 : vector<256x128xf32>
      %158 = vector.broadcast %138 : vector<1x128xf32> to vector<256x128xf32>
      %159 = arith.mulf %157, %158 : vector<256x128xf32>
      %160 = vector.broadcast %139 : vector<1x128xf32> to vector<256x128xf32>
      %161 = arith.addf %159, %160 : vector<256x128xf32>
      %c0_73 = arith.constant 0 : index
      %c0_74 = arith.constant 0 : index
      %162 = vector.load %arg7[%c0_73, %c0_74] : memref<128x128xf32, #tpu.memory_space<vmem>>, vector<128x128xf32>
      %cst_75 = arith.constant dense<0.000000e+00> : vector<256x128xf32>
      %163 = tpu.matmul %161, %162, %cst_75 {dimension_numbers = #tpu.dot_dimension_numbers<[1], [0], [0], [1], [0, 0, 1, 1], [], []>} : vector<256x128xf32>, vector<128x128xf32>, vector<256x128xf32> -> vector<256x128xf32>
      %c0_76 = arith.constant 0 : index
      %c0_77 = arith.constant 0 : index
      %164 = vector.load %arg8[%c0_76, %c0_77] : memref<1x128xf32, #tpu.memory_space<vmem>>, vector<1x128xf32>
      %165 = vector.broadcast %164 : vector<1x128xf32> to vector<256x128xf32>
      %166 = arith.addf %163, %165 : vector<256x128xf32>
      %167 = tpu.transpose %166, [1, 0] : vector<256x128xf32> -> vector<128x256xf32>
      %c0_78 = arith.constant 0 : index
      %c0_79 = arith.constant 0 : index
      %168 = vector.load %arg9[%c0_78, %c0_79] : memref<128x128xf32, #tpu.memory_space<vmem>>, vector<128x128xf32>
      %cst_80 = arith.constant dense<0.000000e+00> : vector<256x128xf32>
      %169 = tpu.matmul %161, %168, %cst_80 {dimension_numbers = #tpu.dot_dimension_numbers<[1], [0], [0], [1], [0, 0, 1, 1], [], []>} : vector<256x128xf32>, vector<128x128xf32>, vector<256x128xf32> -> vector<256x128xf32>
      %c0_81 = arith.constant 0 : index
      %c0_82 = arith.constant 0 : index
      %170 = vector.load %arg10[%c0_81, %c0_82] : memref<1x128xf32, #tpu.memory_space<vmem>>, vector<1x128xf32>
      %171 = vector.broadcast %170 : vector<1x128xf32> to vector<256x128xf32>
      %172 = arith.addf %169, %171 : vector<256x128xf32>
      %173 = vector.extract_strided_slice %167 {offsets = [0, 0], sizes = [32, 128], strides = [1, 1]} : vector<128x256xf32> to vector<32x128xf32>
      %c0_83 = arith.constant 0 : index
      %c0_84 = arith.constant 0 : index
      %c0_85 = arith.constant 0 : index
      %c0_86 = arith.constant 0 : index
      %174 = vector.load %arg20[%c0_83, %c0_84, %c0_85, %c0_86] : memref<2x4x32x128xf32, #tpu.memory_space<vmem>>, vector<1x1x32x128xf32>
      %175 = vector.shape_cast %174 : vector<1x1x32x128xf32> to vector<32x128xf32>
      %176 = vector.shape_cast %173 : vector<32x128xf32> to vector<1x1x32x128xf32>
      tpu.vector_store %arg20[%c0_83, %c0_84, %c0_85, %c0_86], %176 {strides = array<i32>} : memref<2x4x32x128xf32, #tpu.memory_space<vmem>>, vector<1x1x32x128xf32>,
      %177 = vector.extract_strided_slice %172 {offsets = [0, 0], sizes = [128, 32], strides = [1, 1]} : vector<256x128xf32> to vector<128x32xf32>
      %c0_87 = arith.constant 0 : index
      %c0_88 = arith.constant 0 : index
      %c0_89 = arith.constant 0 : index
      %c0_90 = arith.constant 0 : index
      %178 = vector.load %arg21[%c0_87, %c0_88, %c0_89, %c0_90] : memref<2x4x128x32xf32, #tpu.memory_space<vmem>>, vector<1x1x128x32xf32>
      %179 = vector.shape_cast %178 : vector<1x1x128x32xf32> to vector<128x32xf32>
      %180 = vector.shape_cast %177 : vector<128x32xf32> to vector<1x1x128x32xf32>
      tpu.vector_store %arg21[%c0_87, %c0_88, %c0_89, %c0_90], %180 {strides = array<i32>} : memref<2x4x128x32xf32, #tpu.memory_space<vmem>>, vector<1x1x128x32xf32>,
      %181 = vector.extract_strided_slice %167 {offsets = [32, 0], sizes = [32, 128], strides = [1, 1]} : vector<128x256xf32> to vector<32x128xf32>
      %c0_91 = arith.constant 0 : index
      %c1_92 = arith.constant 1 : index
      %c0_93 = arith.constant 0 : index
      %c0_94 = arith.constant 0 : index
      %182 = vector.load %arg20[%c0_91, %c1_92, %c0_93, %c0_94] : memref<2x4x32x128xf32, #tpu.memory_space<vmem>>, vector<1x1x32x128xf32>
      %183 = vector.shape_cast %182 : vector<1x1x32x128xf32> to vector<32x128xf32>
      %184 = vector.shape_cast %181 : vector<32x128xf32> to vector<1x1x32x128xf32>
      tpu.vector_store %arg20[%c0_91, %c1_92, %c0_93, %c0_94], %184 {strides = array<i32>} : memref<2x4x32x128xf32, #tpu.memory_space<vmem>>, vector<1x1x32x128xf32>,
      %185 = vector.extract_strided_slice %172 {offsets = [0, 32], sizes = [128, 32], strides = [1, 1]} : vector<256x128xf32> to vector<128x32xf32>
      %c0_95 = arith.constant 0 : index
      %c1_96 = arith.constant 1 : index
      %c0_97 = arith.constant 0 : index
      %c0_98 = arith.constant 0 : index
      %186 = vector.load %arg21[%c0_95, %c1_96, %c0_97, %c0_98] : memref<2x4x128x32xf32, #tpu.memory_space<vmem>>, vector<1x1x128x32xf32>
      %187 = vector.shape_cast %186 : vector<1x1x128x32xf32> to vector<128x32xf32>
      %188 = vector.shape_cast %185 : vector<128x32xf32> to vector<1x1x128x32xf32>
      tpu.vector_store %arg21[%c0_95, %c1_96, %c0_97, %c0_98], %188 {strides = array<i32>} : memref<2x4x128x32xf32, #tpu.memory_space<vmem>>, vector<1x1x128x32xf32>,
      %189 = vector.extract_strided_slice %167 {offsets = [64, 0], sizes = [32, 128], strides = [1, 1]} : vector<128x256xf32> to vector<32x128xf32>
      %c0_99 = arith.constant 0 : index
      %c2_100 = arith.constant 2 : index
      %c0_101 = arith.constant 0 : index
      %c0_102 = arith.constant 0 : index
      %190 = vector.load %arg20[%c0_99, %c2_100, %c0_101, %c0_102] : memref<2x4x32x128xf32, #tpu.memory_space<vmem>>, vector<1x1x32x128xf32>
      %191 = vector.shape_cast %190 : vector<1x1x32x128xf32> to vector<32x128xf32>
      %192 = vector.shape_cast %189 : vector<32x128xf32> to vector<1x1x32x128xf32>
      tpu.vector_store %arg20[%c0_99, %c2_100, %c0_101, %c0_102], %192 {strides = array<i32>} : memref<2x4x32x128xf32, #tpu.memory_space<vmem>>, vector<1x1x32x128xf32>,
      %193 = vector.extract_strided_slice %172 {offsets = [0, 64], sizes = [128, 32], strides = [1, 1]} : vector<256x128xf32> to vector<128x32xf32>
      %c0_103 = arith.constant 0 : index
      %c2_104 = arith.constant 2 : index
      %c0_105 = arith.constant 0 : index
      %c0_106 = arith.constant 0 : index
      %194 = vector.load %arg21[%c0_103, %c2_104, %c0_105, %c0_106] : memref<2x4x128x32xf32, #tpu.memory_space<vmem>>, vector<1x1x128x32xf32>
      %195 = vector.shape_cast %194 : vector<1x1x128x32xf32> to vector<128x32xf32>
      %196 = vector.shape_cast %193 : vector<128x32xf32> to vector<1x1x128x32xf32>
      tpu.vector_store %arg21[%c0_103, %c2_104, %c0_105, %c0_106], %196 {strides = array<i32>} : memref<2x4x128x32xf32, #tpu.memory_space<vmem>>, vector<1x1x128x32xf32>,
      %197 = vector.extract_strided_slice %167 {offsets = [96, 0], sizes = [32, 128], strides = [1, 1]} : vector<128x256xf32> to vector<32x128xf32>
      %c0_107 = arith.constant 0 : index
      %c3_108 = arith.constant 3 : index
      %c0_109 = arith.constant 0 : index
      %c0_110 = arith.constant 0 : index
      %198 = vector.load %arg20[%c0_107, %c3_108, %c0_109, %c0_110] : memref<2x4x32x128xf32, #tpu.memory_space<vmem>>, vector<1x1x32x128xf32>
      %199 = vector.shape_cast %198 : vector<1x1x32x128xf32> to vector<32x128xf32>
      %200 = vector.shape_cast %197 : vector<32x128xf32> to vector<1x1x32x128xf32>
      tpu.vector_store %arg20[%c0_107, %c3_108, %c0_109, %c0_110], %200 {strides = array<i32>} : memref<2x4x32x128xf32, #tpu.memory_space<vmem>>, vector<1x1x32x128xf32>,
      %201 = vector.extract_strided_slice %172 {offsets = [0, 96], sizes = [128, 32], strides = [1, 1]} : vector<256x128xf32> to vector<128x32xf32>
      %c0_111 = arith.constant 0 : index
      %c3_112 = arith.constant 3 : index
      %c0_113 = arith.constant 0 : index
      %c0_114 = arith.constant 0 : index
      %202 = vector.load %arg21[%c0_111, %c3_112, %c0_113, %c0_114] : memref<2x4x128x32xf32, #tpu.memory_space<vmem>>, vector<1x1x128x32xf32>
      %203 = vector.shape_cast %202 : vector<1x1x128x32xf32> to vector<128x32xf32>
      %204 = vector.shape_cast %201 : vector<128x32xf32> to vector<1x1x128x32xf32>
      tpu.vector_store %arg21[%c0_111, %c3_112, %c0_113, %c0_114], %204 {strides = array<i32>} : memref<2x4x128x32xf32, #tpu.memory_space<vmem>>, vector<1x1x128x32xf32>,
      %205 = vector.extract_strided_slice %167 {offsets = [0, 128], sizes = [32, 128], strides = [1, 1]} : vector<128x256xf32> to vector<32x128xf32>
      %c1_115 = arith.constant 1 : index
      %c0_116 = arith.constant 0 : index
      %c0_117 = arith.constant 0 : index
      %c0_118 = arith.constant 0 : index
      %206 = vector.load %arg20[%c1_115, %c0_116, %c0_117, %c0_118] : memref<2x4x32x128xf32, #tpu.memory_space<vmem>>, vector<1x1x32x128xf32>
      %207 = vector.shape_cast %206 : vector<1x1x32x128xf32> to vector<32x128xf32>
      %208 = vector.shape_cast %205 : vector<32x128xf32> to vector<1x1x32x128xf32>
      tpu.vector_store %arg20[%c1_115, %c0_116, %c0_117, %c0_118], %208 {strides = array<i32>} : memref<2x4x32x128xf32, #tpu.memory_space<vmem>>, vector<1x1x32x128xf32>,
      %209 = vector.extract_strided_slice %172 {offsets = [128, 0], sizes = [128, 32], strides = [1, 1]} : vector<256x128xf32> to vector<128x32xf32>
      %c1_119 = arith.constant 1 : index
      %c0_120 = arith.constant 0 : index
      %c0_121 = arith.constant 0 : index
      %c0_122 = arith.constant 0 : index
      %210 = vector.load %arg21[%c1_119, %c0_120, %c0_121, %c0_122] : memref<2x4x128x32xf32, #tpu.memory_space<vmem>>, vector<1x1x128x32xf32>
      %211 = vector.shape_cast %210 : vector<1x1x128x32xf32> to vector<128x32xf32>
      %212 = vector.shape_cast %209 : vector<128x32xf32> to vector<1x1x128x32xf32>
      tpu.vector_store %arg21[%c1_119, %c0_120, %c0_121, %c0_122], %212 {strides = array<i32>} : memref<2x4x128x32xf32, #tpu.memory_space<vmem>>, vector<1x1x128x32xf32>,
      %213 = vector.extract_strided_slice %167 {offsets = [32, 128], sizes = [32, 128], strides = [1, 1]} : vector<128x256xf32> to vector<32x128xf32>
      %c1_123 = arith.constant 1 : index
      %c1_124 = arith.constant 1 : index
      %c0_125 = arith.constant 0 : index
      %c0_126 = arith.constant 0 : index
      %214 = vector.load %arg20[%c1_123, %c1_124, %c0_125, %c0_126] : memref<2x4x32x128xf32, #tpu.memory_space<vmem>>, vector<1x1x32x128xf32>
      %215 = vector.shape_cast %214 : vector<1x1x32x128xf32> to vector<32x128xf32>
      %216 = vector.shape_cast %213 : vector<32x128xf32> to vector<1x1x32x128xf32>
      tpu.vector_store %arg20[%c1_123, %c1_124, %c0_125, %c0_126], %216 {strides = array<i32>} : memref<2x4x32x128xf32, #tpu.memory_space<vmem>>, vector<1x1x32x128xf32>,
      %217 = vector.extract_strided_slice %172 {offsets = [128, 32], sizes = [128, 32], strides = [1, 1]} : vector<256x128xf32> to vector<128x32xf32>
      %c1_127 = arith.constant 1 : index
      %c1_128 = arith.constant 1 : index
      %c0_129 = arith.constant 0 : index
      %c0_130 = arith.constant 0 : index
      %218 = vector.load %arg21[%c1_127, %c1_128, %c0_129, %c0_130] : memref<2x4x128x32xf32, #tpu.memory_space<vmem>>, vector<1x1x128x32xf32>
      %219 = vector.shape_cast %218 : vector<1x1x128x32xf32> to vector<128x32xf32>
      %220 = vector.shape_cast %217 : vector<128x32xf32> to vector<1x1x128x32xf32>
      tpu.vector_store %arg21[%c1_127, %c1_128, %c0_129, %c0_130], %220 {strides = array<i32>} : memref<2x4x128x32xf32, #tpu.memory_space<vmem>>, vector<1x1x128x32xf32>,
      %221 = vector.extract_strided_slice %167 {offsets = [64, 128], sizes = [32, 128], strides = [1, 1]} : vector<128x256xf32> to vector<32x128xf32>
      %c1_131 = arith.constant 1 : index
      %c2_132 = arith.constant 2 : index
      %c0_133 = arith.constant 0 : index
      %c0_134 = arith.constant 0 : index
      %222 = vector.load %arg20[%c1_131, %c2_132, %c0_133, %c0_134] : memref<2x4x32x128xf32, #tpu.memory_space<vmem>>, vector<1x1x32x128xf32>
      %223 = vector.shape_cast %222 : vector<1x1x32x128xf32> to vector<32x128xf32>
      %224 = vector.shape_cast %221 : vector<32x128xf32> to vector<1x1x32x128xf32>
      tpu.vector_store %arg20[%c1_131, %c2_132, %c0_133, %c0_134], %224 {strides = array<i32>} : memref<2x4x32x128xf32, #tpu.memory_space<vmem>>, vector<1x1x32x128xf32>,
      %225 = vector.extract_strided_slice %172 {offsets = [128, 64], sizes = [128, 32], strides = [1, 1]} : vector<256x128xf32> to vector<128x32xf32>
      %c1_135 = arith.constant 1 : index
      %c2_136 = arith.constant 2 : index
      %c0_137 = arith.constant 0 : index
      %c0_138 = arith.constant 0 : index
      %226 = vector.load %arg21[%c1_135, %c2_136, %c0_137, %c0_138] : memref<2x4x128x32xf32, #tpu.memory_space<vmem>>, vector<1x1x128x32xf32>
      %227 = vector.shape_cast %226 : vector<1x1x128x32xf32> to vector<128x32xf32>
      %228 = vector.shape_cast %225 : vector<128x32xf32> to vector<1x1x128x32xf32>
      tpu.vector_store %arg21[%c1_135, %c2_136, %c0_137, %c0_138], %228 {strides = array<i32>} : memref<2x4x128x32xf32, #tpu.memory_space<vmem>>, vector<1x1x128x32xf32>,
      %229 = vector.extract_strided_slice %167 {offsets = [96, 128], sizes = [32, 128], strides = [1, 1]} : vector<128x256xf32> to vector<32x128xf32>
      %c1_139 = arith.constant 1 : index
      %c3_140 = arith.constant 3 : index
      %c0_141 = arith.constant 0 : index
      %c0_142 = arith.constant 0 : index
      %230 = vector.load %arg20[%c1_139, %c3_140, %c0_141, %c0_142] : memref<2x4x32x128xf32, #tpu.memory_space<vmem>>, vector<1x1x32x128xf32>
      %231 = vector.shape_cast %230 : vector<1x1x32x128xf32> to vector<32x128xf32>
      %232 = vector.shape_cast %229 : vector<32x128xf32> to vector<1x1x32x128xf32>
      tpu.vector_store %arg20[%c1_139, %c3_140, %c0_141, %c0_142], %232 {strides = array<i32>} : memref<2x4x32x128xf32, #tpu.memory_space<vmem>>, vector<1x1x32x128xf32>,
      %233 = vector.extract_strided_slice %172 {offsets = [128, 96], sizes = [128, 32], strides = [1, 1]} : vector<256x128xf32> to vector<128x32xf32>
      %c1_143 = arith.constant 1 : index
      %c3_144 = arith.constant 3 : index
      %c0_145 = arith.constant 0 : index
      %c0_146 = arith.constant 0 : index
      %234 = vector.load %arg21[%c1_143, %c3_144, %c0_145, %c0_146] : memref<2x4x128x32xf32, #tpu.memory_space<vmem>>, vector<1x1x128x32xf32>
      %235 = vector.shape_cast %234 : vector<1x1x128x32xf32> to vector<128x32xf32>
      %236 = vector.shape_cast %233 : vector<128x32xf32> to vector<1x1x128x32xf32>
      tpu.vector_store %arg21[%c1_143, %c3_144, %c0_145, %c0_146], %236 {strides = array<i32>} : memref<2x4x128x32xf32, #tpu.memory_space<vmem>>, vector<1x1x128x32xf32>,
    } else {
    }
    %c128_i32 = arith.constant 128 : i32
    %3 = arith.muli %arg1, %c128_i32 : i32
    %4 = tpu.assume_multiple %3, 128 : i32
    %c0 = arith.constant 0 : index
    %5 = arith.index_cast %4 : i32 to index
    %c0_1 = arith.constant 0 : index
    %6 = vector.load %arg2[%c0, %5, %c0_1] : memref<1x256x128xf32, #tpu.memory_space<vmem>>, vector<1x128x128xf32>
    %7 = vector.shape_cast %6 : vector<1x128x128xf32> to vector<128x128xf32>
    %c0_2 = arith.constant 0 : index
    %c0_3 = arith.constant 0 : index
    %8 = vector.load %arg3[%c0_2, %c0_3] : memref<1x128xf32, #tpu.memory_space<vmem>>, vector<1x128xf32>
    %c0_4 = arith.constant 0 : index
    %c0_5 = arith.constant 0 : index
    %9 = vector.load %arg4[%c0_4, %c0_5] : memref<1x128xf32, #tpu.memory_space<vmem>>, vector<1x128xf32>
    %cst = arith.constant dense<0.000000e+00> : vector<128xf32>
    %10 = vector.multi_reduction <add>, %7, %cst [1] : vector<128x128xf32> to vector<128xf32>
    %11 = vector.shape_cast %10 : vector<128xf32> to vector<128x1xf32>
    %cst_6 = arith.constant 1.280000e+02 : f32
    %12 = vector.broadcast %cst_6 : f32 to vector<128x1xf32>
    %13 = arith.divf %11, %12 : vector<128x1xf32>
    %14 = vector.broadcast %13 : vector<128x1xf32> to vector<128x128xf32>
    %15 = arith.subf %7, %14 : vector<128x128xf32>
    %16 = arith.mulf %15, %15 : vector<128x128xf32>
    %cst_7 = arith.constant dense<0.000000e+00> : vector<128xf32>
    %17 = vector.multi_reduction <add>, %16, %cst_7 [1] : vector<128x128xf32> to vector<128xf32>
    %18 = vector.shape_cast %17 : vector<128xf32> to vector<128x1xf32>
    %cst_8 = arith.constant 1.280000e+02 : f32
    %19 = vector.broadcast %cst_8 : f32 to vector<128x1xf32>
    %20 = arith.divf %18, %19 : vector<128x1xf32>
    %21 = vector.broadcast %13 : vector<128x1xf32> to vector<128x128xf32>
    %22 = arith.subf %7, %21 : vector<128x128xf32>
    %cst_9 = arith.constant 9.99999974E-6 : f32
    %23 = vector.broadcast %cst_9 : f32 to vector<128x1xf32>
    %24 = arith.addf %20, %23 : vector<128x1xf32>
    %25 = math.rsqrt %24 : vector<128x1xf32>
    %26 = vector.broadcast %25 : vector<128x1xf32> to vector<128x128xf32>
    %27 = arith.mulf %22, %26 : vector<128x128xf32>
    %28 = vector.broadcast %8 : vector<1x128xf32> to vector<128x128xf32>
    %29 = arith.mulf %27, %28 : vector<128x128xf32>
    %30 = vector.broadcast %9 : vector<1x128xf32> to vector<128x128xf32>
    %31 = arith.addf %29, %30 : vector<128x128xf32>
    %c0_10 = arith.constant 0 : index
    %c0_11 = arith.constant 0 : index
    %32 = vector.load %arg5[%c0_10, %c0_11] : memref<128x128xf32, #tpu.memory_space<vmem>>, vector<128x128xf32>
    %cst_12 = arith.constant dense<0.000000e+00> : vector<128x128xf32>
    %33 = tpu.matmul %31, %32, %cst_12 {dimension_numbers = #tpu.dot_dimension_numbers<[1], [0], [0], [1], [0, 0, 1, 1], [], []>} : vector<128x128xf32>, vector<128x128xf32>, vector<128x128xf32> -> vector<128x128xf32>
    %c0_13 = arith.constant 0 : index
    %c0_14 = arith.constant 0 : index
    %34 = vector.load %arg6[%c0_13, %c0_14] : memref<1x128xf32, #tpu.memory_space<vmem>>, vector<1x128xf32>
    %35 = vector.broadcast %34 : vector<1x128xf32> to vector<128x128xf32>
    %36 = arith.addf %33, %35 : vector<128x128xf32>
    %37 = vector.extract_strided_slice %36 {offsets = [0, 0], sizes = [128, 32], strides = [1, 1]} : vector<128x128xf32> to vector<128x32xf32>
    %38 = vector.extract_strided_slice %36 {offsets = [0, 32], sizes = [128, 32], strides = [1, 1]} : vector<128x128xf32> to vector<128x32xf32>
    %39 = vector.extract_strided_slice %36 {offsets = [0, 64], sizes = [128, 32], strides = [1, 1]} : vector<128x128xf32> to vector<128x32xf32>
    %40 = vector.extract_strided_slice %36 {offsets = [0, 96], sizes = [128, 32], strides = [1, 1]} : vector<128x128xf32> to vector<128x32xf32>
    %41 = vector.shape_cast %37 : vector<128x32xf32> to vector<1x128x32xf32>
    %42 = vector.shape_cast %38 : vector<128x32xf32> to vector<1x128x32xf32>
    %43 = vector.shape_cast %39 : vector<128x32xf32> to vector<1x128x32xf32>
    %44 = vector.shape_cast %40 : vector<128x32xf32> to vector<1x128x32xf32>
    %45 = tpu.concatenate %41, %42, %43, %44 in 0 : vector<1x128x32xf32>, vector<1x128x32xf32>, vector<1x128x32xf32>, vector<1x128x32xf32> -> vector<4x128x32xf32>
    %46 = tpu.iota {dimensions = array<i32: 0>} : vector<128x128xi32>
    %47 = vector.broadcast %4 : i32 to vector<128x128xi32>
    %48 = arith.addi %47, %46 : vector<128x128xi32>
    %cst_15 = arith.constant -1.000000e+30 : f32
    %49 = vector.broadcast %cst_15 : f32 to vector<4x128x1xf32>
    %cst_16 = arith.constant 0.000000e+00 : f32
    %50 = vector.broadcast %cst_16 : f32 to vector<4x128x1xf32>
    %cst_17 = arith.constant 0.000000e+00 : f32
    %51 = vector.broadcast %cst_17 : f32 to vector<4x128x32xf32>
    %c1_i32 = arith.constant 1 : i32
    %52 = arith.addi %arg1, %c1_i32 : i32
    %c0_i32_18 = arith.constant 0 : i32
    %53 = arith.subi %52, %c0_i32_18 : i32
    %54 = arith.addi %c0_i32_18, %53 : i32
    %c1_i32_19 = arith.constant 1 : i32
    %55:3 = scf.for %arg22 = %c0_i32_18 to %54 step %c1_i32_19 iter_args(%arg23 = %49, %arg24 = %50, %arg25 = %51) -> (vector<4x128x1xf32>, vector<4x128x1xf32>, vector<4x128x32xf32>)  : i32 {
      %136 = arith.index_cast %arg22 : i32 to index
      %c0_61 = arith.constant 0 : index
      %c0_62 = arith.constant 0 : index
      %c0_63 = arith.constant 0 : index
      %137 = vector.load %arg20[%136, %c0_61, %c0_62, %c0_63] : memref<2x4x32x128xf32, #tpu.memory_space<vmem>>, vector<1x4x32x128xf32>
      %138 = vector.shape_cast %137 : vector<1x4x32x128xf32> to vector<4x32x128xf32>
      %139 = arith.index_cast %arg22 : i32 to index
      %c0_64 = arith.constant 0 : index
      %c0_65 = arith.constant 0 : index
      %c0_66 = arith.constant 0 : index
      %140 = vector.load %arg21[%139, %c0_64, %c0_65, %c0_66] : memref<2x4x128x32xf32, #tpu.memory_space<vmem>>, vector<1x4x128x32xf32>
      %141 = vector.shape_cast %140 : vector<1x4x128x32xf32> to vector<4x128x32xf32>
      "tpu.trace_start"() <{level = 10 : i32, message = "hqd,hdk->hqk"}> : () -> ()
      %cst_67 = arith.constant dense<0.000000e+00> : vector<4x128x128xf32>
      %142 = tpu.matmul %45, %138, %cst_67 {dimension_numbers = #tpu.dot_dimension_numbers<[2], [1], [1], [2], [0, 0, 0, 1, 1, 2], [0], [0]>} : vector<4x128x32xf32>, vector<4x32x128xf32>, vector<4x128x128xf32> -> vector<4x128x128xf32>
      "tpu.trace_stop"() : () -> ()
      %cst_68 = arith.constant 0.176776692 : f32
      %143 = vector.broadcast %cst_68 : f32 to vector<4x128x128xf32>
      %144 = arith.mulf %142, %143 : vector<4x128x128xf32>
      %c128_i32_69 = arith.constant 128 : i32
      %145 = arith.muli %arg22, %c128_i32_69 : i32
      %146 = tpu.iota {dimensions = array<i32: 1>} : vector<128x128xi32>
      %147 = vector.broadcast %145 : i32 to vector<128x128xi32>
      %148 = arith.addi %147, %146 : vector<128x128xi32>
      %149 = arith.cmpi sle, %148, %48 : vector<128x128xi32>
      %150 = vector.shape_cast %149 : vector<128x128xi1> to vector<1x128x128xi1>
      %cst_70 = arith.constant -1.000000e+30 : f32
      %151 = vector.shape_cast %150 : vector<1x128x128xi1> to vector<1x128x128xi1>
      %152 = vector.broadcast %151 : vector<1x128x128xi1> to vector<4x128x128xi1>
      %153 = vector.broadcast %cst_70 : f32 to vector<4x128x128xf32>
      %154 = arith.select %152, %144, %153 : vector<4x128x128xi1>, vector<4x128x128xf32>
      %cst_71 = arith.constant dense<0xFF800000> : vector<4x128xf32>
      %155 = vector.multi_reduction <maximumf>, %154, %cst_71 [2] : vector<4x128x128xf32> to vector<4x128xf32>
      %156 = vector.shape_cast %155 : vector<4x128xf32> to vector<4x128x1xf32>
      %157 = arith.maximumf %arg23, %156 : vector<4x128x1xf32>
      %158 = arith.subf %arg23, %157 : vector<4x128x1xf32>
      %159 = math.exp %158 : vector<4x128x1xf32>
      %160 = vector.broadcast %157 : vector<4x128x1xf32> to vector<4x128x128xf32>
      %161 = arith.subf %154, %160 : vector<4x128x128xf32>
      %162 = math.exp %161 : vector<4x128x128xf32>
      %163 = arith.mulf %159, %arg24 : vector<4x128x1xf32>
      %cst_72 = arith.constant dense<0.000000e+00> : vector<4x128xf32>
      %164 = vector.multi_reduction <add>, %162, %cst_72 [2] : vector<4x128x128xf32> to vector<4x128xf32>
      %165 = vector.shape_cast %164 : vector<4x128xf32> to vector<4x128x1xf32>
      %166 = arith.addf %163, %165 : vector<4x128x1xf32>
      "tpu.trace_start"() <{level = 10 : i32, message = "hqk,hkd->hqd"}> : () -> ()
      %cst_73 = arith.constant dense<0.000000e+00> : vector<4x128x32xf32>
      %167 = tpu.matmul %162, %141, %cst_73 {dimension_numbers = #tpu.dot_dimension_numbers<[2], [1], [1], [2], [0, 0, 0, 1, 1, 2], [0], [0]>} : vector<4x128x128xf32>, vector<4x128x32xf32>, vector<4x128x32xf32> -> vector<4x128x32xf32>
      "tpu.trace_stop"() : () -> ()
      %168 = vector.broadcast %159 : vector<4x128x1xf32> to vector<4x128x32xf32>
      %169 = arith.mulf %168, %arg25 : vector<4x128x32xf32>
      %170 = arith.addf %169, %167 : vector<4x128x32xf32>
      scf.yield %157, %166, %170 : vector<4x128x1xf32>, vector<4x128x1xf32>, vector<4x128x32xf32>
    }
    %56 = vector.broadcast %55#1 : vector<4x128x1xf32> to vector<4x128x32xf32>
    %57 = arith.divf %55#2, %56 : vector<4x128x32xf32>
    %58 = vector.extract_strided_slice %57 {offsets = [0, 0, 0], sizes = [1, 128, 32], strides = [1, 1, 1]} : vector<4x128x32xf32> to vector<1x128x32xf32>
    %59 = vector.shape_cast %58 : vector<1x128x32xf32> to vector<128x32xf32>
    %c0_20 = arith.constant 0 : index
    %c0_21 = arith.constant 0 : index
    %c0_22 = arith.constant 0 : index
    %60 = vector.load %arg11[%c0_20, %c0_21, %c0_22] : memref<4x32x128xf32, #tpu.memory_space<vmem>>, vector<1x32x128xf32>
    %61 = vector.shape_cast %60 : vector<1x32x128xf32> to vector<32x128xf32>
    %cst_23 = arith.constant dense<0.000000e+00> : vector<128x128xf32>
    %62 = tpu.matmul %59, %61, %cst_23 {dimension_numbers = #tpu.dot_dimension_numbers<[1], [0], [0], [1], [0, 0, 1, 1], [], []>} : vector<128x32xf32>, vector<32x128xf32>, vector<128x128xf32> -> vector<128x128xf32>
    %63 = vector.extract_strided_slice %57 {offsets = [1, 0, 0], sizes = [1, 128, 32], strides = [1, 1, 1]} : vector<4x128x32xf32> to vector<1x128x32xf32>
    %64 = vector.shape_cast %63 : vector<1x128x32xf32> to vector<128x32xf32>
    %c1 = arith.constant 1 : index
    %c0_24 = arith.constant 0 : index
    %c0_25 = arith.constant 0 : index
    %65 = vector.load %arg11[%c1, %c0_24, %c0_25] : memref<4x32x128xf32, #tpu.memory_space<vmem>>, vector<1x32x128xf32>
    %66 = vector.shape_cast %65 : vector<1x32x128xf32> to vector<32x128xf32>
    %cst_26 = arith.constant dense<0.000000e+00> : vector<128x128xf32>
    %67 = tpu.matmul %64, %66, %cst_26 {dimension_numbers = #tpu.dot_dimension_numbers<[1], [0], [0], [1], [0, 0, 1, 1], [], []>} : vector<128x32xf32>, vector<32x128xf32>, vector<128x128xf32> -> vector<128x128xf32>
    %68 = arith.addf %62, %67 : vector<128x128xf32>
    %69 = vector.extract_strided_slice %57 {offsets = [2, 0, 0], sizes = [1, 128, 32], strides = [1, 1, 1]} : vector<4x128x32xf32> to vector<1x128x32xf32>
    %70 = vector.shape_cast %69 : vector<1x128x32xf32> to vector<128x32xf32>
    %c2 = arith.constant 2 : index
    %c0_27 = arith.constant 0 : index
    %c0_28 = arith.constant 0 : index
    %71 = vector.load %arg11[%c2, %c0_27, %c0_28] : memref<4x32x128xf32, #tpu.memory_space<vmem>>, vector<1x32x128xf32>
    %72 = vector.shape_cast %71 : vector<1x32x128xf32> to vector<32x128xf32>
    %cst_29 = arith.constant dense<0.000000e+00> : vector<128x128xf32>
    %73 = tpu.matmul %70, %72, %cst_29 {dimension_numbers = #tpu.dot_dimension_numbers<[1], [0], [0], [1], [0, 0, 1, 1], [], []>} : vector<128x32xf32>, vector<32x128xf32>, vector<128x128xf32> -> vector<128x128xf32>
    %74 = arith.addf %68, %73 : vector<128x128xf32>
    %75 = vector.extract_strided_slice %57 {offsets = [3, 0, 0], sizes = [1, 128, 32], strides = [1, 1, 1]} : vector<4x128x32xf32> to vector<1x128x32xf32>
    %76 = vector.shape_cast %75 : vector<1x128x32xf32> to vector<128x32xf32>
    %c3 = arith.constant 3 : index
    %c0_30 = arith.constant 0 : index
    %c0_31 = arith.constant 0 : index
    %77 = vector.load %arg11[%c3, %c0_30, %c0_31] : memref<4x32x128xf32, #tpu.memory_space<vmem>>, vector<1x32x128xf32>
    %78 = vector.shape_cast %77 : vector<1x32x128xf32> to vector<32x128xf32>
    %cst_32 = arith.constant dense<0.000000e+00> : vector<128x128xf32>
    %79 = tpu.matmul %76, %78, %cst_32 {dimension_numbers = #tpu.dot_dimension_numbers<[1], [0], [0], [1], [0, 0, 1, 1], [], []>} : vector<128x32xf32>, vector<32x128xf32>, vector<128x128xf32> -> vector<128x128xf32>
    %80 = arith.addf %74, %79 : vector<128x128xf32>
    %81 = arith.addf %7, %80 : vector<128x128xf32>
    %c0_33 = arith.constant 0 : index
    %c0_34 = arith.constant 0 : index
    %82 = vector.load %arg12[%c0_33, %c0_34] : memref<1x128xf32, #tpu.memory_space<vmem>>, vector<1x128xf32>
    %83 = vector.broadcast %82 : vector<1x128xf32> to vector<128x128xf32>
    %84 = arith.addf %81, %83 : vector<128x128xf32>
    %c0_35 = arith.constant 0 : index
    %c0_36 = arith.constant 0 : index
    %85 = vector.load %arg13[%c0_35, %c0_36] : memref<1x128xf32, #tpu.memory_space<vmem>>, vector<1x128xf32>
    %c0_37 = arith.constant 0 : index
    %c0_38 = arith.constant 0 : index
    %86 = vector.load %arg14[%c0_37, %c0_38] : memref<1x128xf32, #tpu.memory_space<vmem>>, vector<1x128xf32>
    %cst_39 = arith.constant dense<0.000000e+00> : vector<128xf32>
    %87 = vector.multi_reduction <add>, %84, %cst_39 [1] : vector<128x128xf32> to vector<128xf32>
    %88 = vector.shape_cast %87 : vector<128xf32> to vector<128x1xf32>
    %cst_40 = arith.constant 1.280000e+02 : f32
    %89 = vector.broadcast %cst_40 : f32 to vector<128x1xf32>
    %90 = arith.divf %88, %89 : vector<128x1xf32>
    %91 = vector.broadcast %90 : vector<128x1xf32> to vector<128x128xf32>
    %92 = arith.subf %84, %91 : vector<128x128xf32>
    %93 = arith.mulf %92, %92 : vector<128x128xf32>
    %cst_41 = arith.constant dense<0.000000e+00> : vector<128xf32>
    %94 = vector.multi_reduction <add>, %93, %cst_41 [1] : vector<128x128xf32> to vector<128xf32>
    %95 = vector.shape_cast %94 : vector<128xf32> to vector<128x1xf32>
    %cst_42 = arith.constant 1.280000e+02 : f32
    %96 = vector.broadcast %cst_42 : f32 to vector<128x1xf32>
    %97 = arith.divf %95, %96 : vector<128x1xf32>
    %98 = vector.broadcast %90 : vector<128x1xf32> to vector<128x128xf32>
    %99 = arith.subf %84, %98 : vector<128x128xf32>
    %cst_43 = arith.constant 9.99999974E-6 : f32
    %100 = vector.broadcast %cst_43 : f32 to vector<128x1xf32>
    %101 = arith.addf %97, %100 : vector<128x1xf32>
    %102 = math.rsqrt %101 : vector<128x1xf32>
    %103 = vector.broadcast %102 : vector<128x1xf32> to vector<128x128xf32>
    %104 = arith.mulf %99, %103 : vector<128x128xf32>
    %105 = vector.broadcast %85 : vector<1x128xf32> to vector<128x128xf32>
    %106 = arith.mulf %104, %105 : vector<128x128xf32>
    %107 = vector.broadcast %86 : vector<1x128xf32> to vector<128x128xf32>
    %108 = arith.addf %106, %107 : vector<128x128xf32>
    %c0_44 = arith.constant 0 : index
    %c0_45 = arith.constant 0 : index
    %109 = vector.load %arg15[%c0_44, %c0_45] : memref<128x512xf32, #tpu.memory_space<vmem>>, vector<128x512xf32>
    %cst_46 = arith.constant dense<0.000000e+00> : vector<128x512xf32>
    %110 = tpu.matmul %108, %109, %cst_46 {dimension_numbers = #tpu.dot_dimension_numbers<[1], [0], [0], [1], [0, 0, 1, 1], [], []>} : vector<128x128xf32>, vector<128x512xf32>, vector<128x512xf32> -> vector<128x512xf32>
    %c0_47 = arith.constant 0 : index
    %c0_48 = arith.constant 0 : index
    %111 = vector.load %arg16[%c0_47, %c0_48] : memref<1x512xf32, #tpu.memory_space<vmem>>, vector<1x512xf32>
    %112 = vector.broadcast %111 : vector<1x512xf32> to vector<128x512xf32>
    %113 = arith.addf %110, %112 : vector<128x512xf32>
    %cst_49 = arith.constant 5.000000e-01 : f32
    %114 = vector.broadcast %cst_49 : f32 to vector<128x512xf32>
    %115 = arith.mulf %114, %113 : vector<128x512xf32>
    %cst_50 = arith.constant 4.471500e-02 : f32
    %116 = vector.broadcast %cst_50 : f32 to vector<128x512xf32>
    %117 = arith.mulf %116, %113 : vector<128x512xf32>
    %118 = arith.mulf %117, %113 : vector<128x512xf32>
    %119 = arith.mulf %118, %113 : vector<128x512xf32>
    %120 = arith.addf %113, %119 : vector<128x512xf32>
    %cst_51 = arith.constant 0.797884583 : f32
    %121 = vector.broadcast %cst_51 : f32 to vector<128x512xf32>
    %122 = arith.mulf %121, %120 : vector<128x512xf32>
    %123 = math.tanh %122 : vector<128x512xf32>
    %cst_52 = arith.constant 1.000000e+00 : f32
    %124 = vector.broadcast %cst_52 : f32 to vector<128x512xf32>
    %125 = arith.addf %124, %123 : vector<128x512xf32>
    %126 = arith.mulf %115, %125 : vector<128x512xf32>
    %c0_53 = arith.constant 0 : index
    %c0_54 = arith.constant 0 : index
    %127 = vector.load %arg17[%c0_53, %c0_54] : memref<512x128xf32, #tpu.memory_space<vmem>>, vector<512x128xf32>
    %cst_55 = arith.constant dense<0.000000e+00> : vector<128x128xf32>
    %128 = tpu.matmul %126, %127, %cst_55 {dimension_numbers = #tpu.dot_dimension_numbers<[1], [0], [0], [1], [0, 0, 1, 1], [], []>} : vector<128x512xf32>, vector<512x128xf32>, vector<128x128xf32> -> vector<128x128xf32>
    %c0_56 = arith.constant 0 : index
    %c0_57 = arith.constant 0 : index
    %129 = vector.load %arg18[%c0_56, %c0_57] : memref<1x128xf32, #tpu.memory_space<vmem>>, vector<1x128xf32>
    %130 = vector.broadcast %129 : vector<1x128xf32> to vector<128x128xf32>
    %131 = arith.addf %128, %130 : vector<128x128xf32>
    %132 = arith.addf %84, %131 : vector<128x128xf32>
    %c0_58 = arith.constant 0 : index
    %c0_59 = arith.constant 0 : index
    %c0_60 = arith.constant 0 : index
    %133 = vector.load %arg19[%c0_58, %c0_59, %c0_60] : memref<1x128x128xf32, #tpu.memory_space<vmem>>, vector<1x128x128xf32>
    %134 = vector.shape_cast %133 : vector<1x128x128xf32> to vector<128x128xf32>
    %135 = vector.shape_cast %132 : vector<128x128xf32> to vector<1x128x128xf32>
    tpu.vector_store %arg19[%c0_58, %c0_59, %c0_60], %135 {strides = array<i32>} : memref<1x128x128xf32, #tpu.memory_space<vmem>>, vector<1x128x128xf32>,
    return
  }
  func.func @transform_0(%arg0: i32, %arg1: i32) -> (i32, i32, i32) {
    %c0_i32 = arith.constant 0 : i32
    %c0_i32_0 = arith.constant 0 : i32
    %c0_i32_1 = arith.constant 0 : i32
    return %arg0, %c0_i32, %c0_i32_0 : i32, i32, i32
  }
  func.func @transform_1(%arg0: i32, %arg1: i32) -> (i32, i32) {
    %c0_i32 = arith.constant 0 : i32
    %c0_i32_0 = arith.constant 0 : i32
    %c0_i32_1 = arith.constant 0 : i32
    return %c0_i32, %c0_i32_0 : i32, i32
  }
  func.func @transform_2(%arg0: i32, %arg1: i32) -> (i32, i32) {
    %c0_i32 = arith.constant 0 : i32
    %c0_i32_0 = arith.constant 0 : i32
    %c0_i32_1 = arith.constant 0 : i32
    return %c0_i32, %c0_i32_0 : i32, i32
  }
  func.func @transform_3(%arg0: i32, %arg1: i32) -> (i32, i32) {
    %c0_i32 = arith.constant 0 : i32
    %c0_i32_0 = arith.constant 0 : i32
    %c0_i32_1 = arith.constant 0 : i32
    return %c0_i32, %c0_i32_0 : i32, i32
  }
  func.func @transform_4(%arg0: i32, %arg1: i32) -> (i32, i32) {
    %c0_i32 = arith.constant 0 : i32
    %c0_i32_0 = arith.constant 0 : i32
    %c0_i32_1 = arith.constant 0 : i32
    return %c0_i32, %c0_i32_0 : i32, i32
  }
  func.func @transform_5(%arg0: i32, %arg1: i32) -> (i32, i32) {
    %c0_i32 = arith.constant 0 : i32
    %c0_i32_0 = arith.constant 0 : i32
    %c0_i32_1 = arith.constant 0 : i32
    return %c0_i32, %c0_i32_0 : i32, i32
  }
  func.func @transform_6(%arg0: i32, %arg1: i32) -> (i32, i32) {
    %c0_i32 = arith.constant 0 : i32
    %c0_i32_0 = arith.constant 0 : i32
    %c0_i32_1 = arith.constant 0 : i32
    return %c0_i32, %c0_i32_0 : i32, i32
  }
  func.func @transform_7(%arg0: i32, %arg1: i32) -> (i32, i32) {
    %c0_i32 = arith.constant 0 : i32
    %c0_i32_0 = arith.constant 0 : i32
    %c0_i32_1 = arith.constant 0 : i32
    return %c0_i32, %c0_i32_0 : i32, i32
  }
  func.func @transform_8(%arg0: i32, %arg1: i32) -> (i32, i32) {
    %c0_i32 = arith.constant 0 : i32
    %c0_i32_0 = arith.constant 0 : i32
    %c0_i32_1 = arith.constant 0 : i32
    return %c0_i32, %c0_i32_0 : i32, i32
  }
  func.func @transform_9(%arg0: i32, %arg1: i32) -> (i32, i32, i32) {
    %c0_i32 = arith.constant 0 : i32
    %c0_i32_0 = arith.constant 0 : i32
    %c0_i32_1 = arith.constant 0 : i32
    %c0_i32_2 = arith.constant 0 : i32
    return %c0_i32, %c0_i32_0, %c0_i32_1 : i32, i32, i32
  }
  func.func @transform_10(%arg0: i32, %arg1: i32) -> (i32, i32) {
    %c0_i32 = arith.constant 0 : i32
    %c0_i32_0 = arith.constant 0 : i32
    %c0_i32_1 = arith.constant 0 : i32
    return %c0_i32, %c0_i32_0 : i32, i32
  }
  func.func @transform_11(%arg0: i32, %arg1: i32) -> (i32, i32) {
    %c0_i32 = arith.constant 0 : i32
    %c0_i32_0 = arith.constant 0 : i32
    %c0_i32_1 = arith.constant 0 : i32
    return %c0_i32, %c0_i32_0 : i32, i32
  }
  func.func @transform_12(%arg0: i32, %arg1: i32) -> (i32, i32) {
    %c0_i32 = arith.constant 0 : i32
    %c0_i32_0 = arith.constant 0 : i32
    %c0_i32_1 = arith.constant 0 : i32
    return %c0_i32, %c0_i32_0 : i32, i32
  }
  func.func @transform_13(%arg0: i32, %arg1: i32) -> (i32, i32) {
    %c0_i32 = arith.constant 0 : i32
    %c0_i32_0 = arith.constant 0 : i32
    %c0_i32_1 = arith.constant 0 : i32
    return %c0_i32, %c0_i32_0 : i32, i32
  }
  func.func @transform_14(%arg0: i32, %arg1: i32) -> (i32, i32) {
    %c0_i32 = arith.constant 0 : i32
    %c0_i32_0 = arith.constant 0 : i32
    %c0_i32_1 = arith.constant 0 : i32
    return %c0_i32, %c0_i32_0 : i32, i32
  }
  func.func @transform_15(%arg0: i32, %arg1: i32) -> (i32, i32) {
    %c0_i32 = arith.constant 0 : i32
    %c0_i32_0 = arith.constant 0 : i32
    %c0_i32_1 = arith.constant 0 : i32
    return %c0_i32, %c0_i32_0 : i32, i32
  }
  func.func @transform_16(%arg0: i32, %arg1: i32) -> (i32, i32) {
    %c0_i32 = arith.constant 0 : i32
    %c0_i32_0 = arith.constant 0 : i32
    %c0_i32_1 = arith.constant 0 : i32
    return %c0_i32, %c0_i32_0 : i32, i32
  }
  func.func @transform_17(%arg0: i32, %arg1: i32) -> (i32, i32, i32) {
    %c0_i32 = arith.constant 0 : i32
    %c0_i32_0 = arith.constant 0 : i32
    return %arg0, %arg1, %c0_i32 : i32, i32, i32
  }
}

</mosaic_0001>

<llo_original>
// kernel: gpt2_block.1
$region0: #{gpt2_block.1}
  #allocation0 [shape = 'u32[]', space=smem, size = 0x4, offset = 0x4, fixed_abs, tag = 'smem constant byte address 0x4 - core index']
  #allocation1 [shape = 'u32[144,128]{1,0:T(1,128)}', space=vmem, size = 0x12000, scoped, tag = 'internal scratch']
  #allocation2 [shape = 'f32[2,4,32,128]{3,2,1,0:T(8,128)}', space=vmem, size = 0x20000, scoped, tag = 'scratch operand']
  #allocation3 [shape = 'f32[2,4,128,32]{3,2,1,0:T(8,128)}', space=vmem, size = 0x80000, scoped, tag = 'scratch operand']
  %s0 = inlined_call_operand.vmem [shape: f32[2,256,128], index: 0, kind: input, shape index: {}]
  %s1 = inlined_call_operand.vmem [shape: f32[1,128], index: 1, kind: input, shape index: {}]
  %s2 = inlined_call_operand.vmem [shape: f32[1,128], index: 2, kind: input, shape index: {}]
  %s3 = inlined_call_operand.vmem [shape: f32[128,128], index: 3, kind: input, shape index: {}]
  %s4 = inlined_call_operand.vmem [shape: f32[1,128], index: 4, kind: input, shape index: {}]
  %s5 = inlined_call_operand.vmem [shape: f32[128,128], index: 5, kind: input, shape index: {}]
  %s6 = inlined_call_operand.vmem [shape: f32[1,128], index: 6, kind: input, shape index: {}]
  %s7 = inlined_call_operand.vmem [shape: f32[128,128], index: 7, kind: input, shape index: {}]
  %s8 = inlined_call_operand.vmem [shape: f32[1,128], index: 8, kind: input, shape index: {}]
  %s9 = inlined_call_operand.vmem [shape: f32[4,32,128], index: 9, kind: input, shape index: {}]
  %s10 = inlined_call_operand.vmem [shape: f32[1,128], index: 10, kind: input, shape index: {}]
  %s11 = inlined_call_operand.vmem [shape: f32[1,128], index: 11, kind: input, shape index: {}]
  %s12 = inlined_call_operand.vmem [shape: f32[1,128], index: 12, kind: input, shape index: {}]
  %s13 = inlined_call_operand.hbm [shape: f32[128,512], index: 13, kind: input, shape index: {}]
  %s14 = inlined_call_operand.vmem [shape: f32[1,512], index: 14, kind: input, shape index: {}]
  %s15 = inlined_call_operand.hbm [shape: f32[512,128], index: 15, kind: input, shape index: {}]
  %s16 = inlined_call_operand.vmem [shape: f32[1,128], index: 16, kind: input, shape index: {}]
  %s17 = inlined_call_operand.hbm [shape: f32[2,256,128], index: 17, kind: output, shape index: {}]
  %s18 = sld [smem:[#allocation0]]
  $region120: #{gpt2_block.1} parent=0
    _
  %s20 = ssub.s32 1, %s18
  %s21 = scalar_select 0, %s20, %s18
  $region1: #{gpt2_block.1} parent=0
    #allocation4 [shape = 'u8[262144]{0}', space=vmem, size = 0x40000, scoped, tag = 'input window, operand 13, single buffered']
    #allocation5 [shape = 's32[2]{0}', space=sflag, size = 0x8, scoped, tag = 'scoped memory for gpt2_block.1']
    #allocation6 [shape = 's32[2]{0}', space=sflag, size = 0x8, scoped, tag = 'scoped memory for gpt2_block.1']
    #allocation7 [shape = 'u8[262144]{0}', space=vmem, size = 0x40000, scoped, tag = 'input window, operand 15, single buffered']
    #allocation8 [shape = 's32[1]{0}', space=sflag, size = 0x4, scoped, tag = 'scoped memory for gpt2_block.1']
    #allocation9 [shape = 'u8[131072]{0}', space=vmem, size = 0x20000, scoped, tag = 'output window, operand 0']
    %22 = vsyncpa [#allocation5], 0
    %23 = vsyncpa [#allocation8], 0
    %24 = vsyncpa [#allocation6], 0
    %s25 = scalar_lea.sflag [#allocation6], 1
    %26 = vsyncpa %s25, 0
    loop: start=0, step=1, limit=6
    $region2: #{gpt2_block.1} parent=1 // loop_pre_header
      _
    $region3: #{gpt2_block.1} parent=1 // loop_header
      %s28 = sphi 0, %s32
      %p29 = scmp.ge.s32.totalorder %s28, 6
      %s35 = sphi 0, %s47
      %s36 = sphi 0, %s43
      %s37 = sphi 0, %s35
      %s38 = sphi 0, %s36
      %s39 = sphi 0, %s37
      %s40 = sphi 0, %s38
      %s50 = sphi 0, %s52
      %s53 = sphi 0, %s50
      %s54 = sphi 0, %s53
      %s70 = sphi 0, %s54
      %s74 = sphi 0, %s74
      %s76 = sphi 0, %s74
      %s77 = sphi 0, %s76
      %s91 = sphi 0, %s77
      %s95 = sphi 0, %s95
      %s97 = sphi 0, %s95
      %s98 = sphi 0, %s97
      %s112 = sphi 0, %s98
      %s116 = sphi 0, %s116
      %s118 = sphi 0, %s116
      %s119 = sphi 0, %s118
      %s133 = sphi 0, %s119
      %s137 = sphi 0, %s137
      %s139 = sphi 0, %s137
      %s140 = sphi 0, %s139
      %s154 = sphi 0, %s140
      %s158 = sphi 0, %s158
      %s160 = sphi 0, %s158
      %s161 = sphi 0, %s160
      %s175 = sphi 0, %s161
      %s179 = sphi 0, %s179
      %s181 = sphi 0, %s179
      %s182 = sphi 0, %s181
      %s196 = sphi 0, %s182
      %s200 = sphi 0, %s200
      %s202 = sphi 0, %s200
      %s203 = sphi 0, %s202
      %s217 = sphi 0, %s203
      %s221 = sphi 0, %s221
      %s223 = sphi 0, %s221
      %s224 = sphi 0, %s223
      %s238 = sphi 0, %s224
      %s242 = sphi 0, %s242
      %s244 = sphi 0, %s242
      %s245 = sphi 0, %s244
      %s259 = sphi 0, %s245
      %s263 = sphi 0, %s263
      %s265 = sphi 0, %s263
      %s266 = sphi 0, %s265
      %s280 = sphi 0, %s266
      %s284 = sphi 0, %s284
      %s286 = sphi 0, %s284
      %s287 = sphi 0, %s286
      %s301 = sphi 0, %s287
      %s305 = sphi 0, %s305
      %s307 = sphi 0, %s305
      %s308 = sphi 0, %s307
      %s322 = sphi 0, %s308
      %s326 = sphi 0, %s326
      %s328 = sphi 0, %s326
      %s329 = sphi 0, %s328
      %s343 = sphi 0, %s329
      %s347 = sphi 0, %s347
      %s349 = sphi 0, %s347
      %s350 = sphi 0, %s349
      %s364 = sphi 0, %s350
      %s368 = sphi 0, %s368
      %s370 = sphi 0, %s368
      %s371 = sphi 0, %s370
      %s385 = sphi 0, %s371
      %s389 = sphi 0, %s389
      %s391 = sphi 0, %s389
      %s392 = sphi 0, %s391
      %s406 = sphi 0, %s392
      %s414 = sphi 0, %s416
      %s417 = sphi 0, %s414
      %s418 = sphi 0, %s417
      %s434 = sphi 0, %s418
    $region4: #{gpt2_block.1} parent=1 // loop_header_branch
      %31 = sbr.rel (%p29) target = $region8
    $region5: #{gpt2_block.1} parent=1 // loop_body
      %s33 = ssub.s32 %s28, 1
      %s34 = ssub.s32 %s28, 2
      %s41 = sadd.s32 1, %s36
      %p42 = scmp.ge.s32.totalorder %s41, 2
      %s43 = scalar_select %p42, 0, %s41
      %s44 = sadd.s32 1, %s35
      %s45 = scalar_select %p42, %s44, %s35
      %p46 = scmp.ge.s32.totalorder %s45, 2
      %s47 = scalar_select %p46, 0, %s45
      %s48 = ssub.s32 %s35, %s47
      %p49 = scmp.eq.s32.totalorder %s48, 0
      %s51 = sadd.s32 %s50, 1
      %s52 = scalar_select %p49, %s50, %s51
      %p55 = pneg %p49
      %p56 = scmp.eq.s32.totalorder %s28, 3
      %p57 = por %p55, %p56
      %p58 = scmp.ne.s32.totalorder %s50, %s53
      %p59 = scmp.eq.s32.totalorder %s28, 0
      %p60 = por %p58, %p59
      %p61 = scmp.ne.s32.totalorder %s50, %s53
      %p62 = scmp.eq.s32.totalorder %s33, 3
      %p63 = por %p61, %p62
      %p64 = scmp.ne.s32.totalorder %s53, %s54
      %p65 = scmp.eq.s32.totalorder %s33, 0
      %p66 = por %p64, %p65
      %p67 = scmp.ne.s32.totalorder %s53, %s54
      %p68 = scmp.eq.s32.totalorder %s34, 3
      %p69 = por %p67, %p68
      %p71 = scmp.ne.s32.totalorder %s54, %s70
      %p72 = scmp.eq.s32.totalorder %s34, 0
      %p73 = por %p71, %p72
      %s75 = sadd.s32 %s74, 1
      %p78 = scmp.eq.s32.totalorder %s28, 3
      %p79 = scmp.ne.s32.totalorder %s74, %s76
      %p80 = scmp.eq.s32.totalorder %s28, 0
      %p81 = por %p79, %p80
      %p82 = scmp.ne.s32.totalorder %s74, %s76
      %p83 = scmp.eq.s32.totalorder %s33, 3
      %p84 = por %p82, %p83
      %p85 = scmp.ne.s32.totalorder %s76, %s77
      %p86 = scmp.eq.s32.totalorder %s33, 0
      %p87 = por %p85, %p86
      %p88 = scmp.ne.s32.totalorder %s76, %s77
      %p89 = scmp.eq.s32.totalorder %s34, 3
      %p90 = por %p88, %p89
      %p92 = scmp.ne.s32.totalorder %s77, %s91
      %p93 = scmp.eq.s32.totalorder %s34, 0
      %p94 = por %p92, %p93
      %s96 = sadd.s32 %s95, 1
      %p99 = scmp.eq.s32.totalorder %s28, 3
      %p100 = scmp.ne.s32.totalorder %s95, %s97
      %p101 = scmp.eq.s32.totalorder %s28, 0
      %p102 = por %p100, %p101
      %p103 = scmp.ne.s32.totalorder %s95, %s97
      %p104 = scmp.eq.s32.totalorder %s33, 3
      %p105 = por %p103, %p104
      %p106 = scmp.ne.s32.totalorder %s97, %s98
      %p107 = scmp.eq.s32.totalorder %s33, 0
      %p108 = por %p106, %p107
      %p109 = scmp.ne.s32.totalorder %s97, %s98
      %p110 = scmp.eq.s32.totalorder %s34, 3
      %p111 = por %p109, %p110
      %p113 = scmp.ne.s32.totalorder %s98, %s112
      %p114 = scmp.eq.s32.totalorder %s34, 0
      %p115 = por %p113, %p114
      %s117 = sadd.s32 %s116, 1
      %p120 = scmp.eq.s32.totalorder %s28, 3
      %p121 = scmp.ne.s32.totalorder %s116, %s118
      %p122 = scmp.eq.s32.totalorder %s28, 0
      %p123 = por %p121, %p122
      %p124 = scmp.ne.s32.totalorder %s116, %s118
      %p125 = scmp.eq.s32.totalorder %s33, 3
      %p126 = por %p124, %p125
      %p127 = scmp.ne.s32.totalorder %s118, %s119
      %p128 = scmp.eq.s32.totalorder %s33, 0
      %p129 = por %p127, %p128
      %p130 = scmp.ne.s32.totalorder %s118, %s119
      %p131 = scmp.eq.s32.totalorder %s34, 3
      %p132 = por %p130, %p131
      %p134 = scmp.ne.s32.totalorder %s119, %s133
      %p135 = scmp.eq.s32.totalorder %s34, 0
      %p136 = por %p134, %p135
      %s138 = sadd.s32 %s137, 1
      %p141 = scmp.eq.s32.totalorder %s28, 3
      %p142 = scmp.ne.s32.totalorder %s137, %s139
      %p143 = scmp.eq.s32.totalorder %s28, 0
      %p144 = por %p142, %p143
      %p145 = scmp.ne.s32.totalorder %s137, %s139
      %p146 = scmp.eq.s32.totalorder %s33, 3
      %p147 = por %p145, %p146
      %p148 = scmp.ne.s32.totalorder %s139, %s140
      %p149 = scmp.eq.s32.totalorder %s33, 0
      %p150 = por %p148, %p149
      %p151 = scmp.ne.s32.totalorder %s139, %s140
      %p152 = scmp.eq.s32.totalorder %s34, 3
      %p153 = por %p151, %p152
      %p155 = scmp.ne.s32.totalorder %s140, %s154
      %p156 = scmp.eq.s32.totalorder %s34, 0
      %p157 = por %p155, %p156
      %s159 = sadd.s32 %s158, 1
      %p162 = scmp.eq.s32.totalorder %s28, 3
      %p163 = scmp.ne.s32.totalorder %s158, %s160
      %p164 = scmp.eq.s32.totalorder %s28, 0
      %p165 = por %p163, %p164
      %p166 = scmp.ne.s32.totalorder %s158, %s160
      %p167 = scmp.eq.s32.totalorder %s33, 3
      %p168 = por %p166, %p167
      %p169 = scmp.ne.s32.totalorder %s160, %s161
      %p170 = scmp.eq.s32.totalorder %s33, 0
      %p171 = por %p169, %p170
      %p172 = scmp.ne.s32.totalorder %s160, %s161
      %p173 = scmp.eq.s32.totalorder %s34, 3
      %p174 = por %p172, %p173
      %p176 = scmp.ne.s32.totalorder %s161, %s175
      %p177 = scmp.eq.s32.totalorder %s34, 0
      %p178 = por %p176, %p177
      %s180 = sadd.s32 %s179, 1
      %p183 = scmp.eq.s32.totalorder %s28, 3
      %p184 = scmp.ne.s32.totalorder %s179, %s181
      %p185 = scmp.eq.s32.totalorder %s28, 0
      %p186 = por %p184, %p185
      %p187 = scmp.ne.s32.totalorder %s179, %s181
      %p188 = scmp.eq.s32.totalorder %s33, 3
      %p189 = por %p187, %p188
      %p190 = scmp.ne.s32.totalorder %s181, %s182
      %p191 = scmp.eq.s32.totalorder %s33, 0
      %p192 = por %p190, %p191
      %p193 = scmp.ne.s32.totalorder %s181, %s182
      %p194 = scmp.eq.s32.totalorder %s34, 3
      %p195 = por %p193, %p194
      %p197 = scmp.ne.s32.totalorder %s182, %s196
      %p198 = scmp.eq.s32.totalorder %s34, 0
      %p199 = por %p197, %p198
      %s201 = sadd.s32 %s200, 1
      %p204 = scmp.eq.s32.totalorder %s28, 3
      %p205 = scmp.ne.s32.totalorder %s200, %s202
      %p206 = scmp.eq.s32.totalorder %s28, 0
      %p207 = por %p205, %p206
      %p208 = scmp.ne.s32.totalorder %s200, %s202
      %p209 = scmp.eq.s32.totalorder %s33, 3
      %p210 = por %p208, %p209
      %p211 = scmp.ne.s32.totalorder %s202, %s203
      %p212 = scmp.eq.s32.totalorder %s33, 0
      %p213 = por %p211, %p212
      %p214 = scmp.ne.s32.totalorder %s202, %s203
      %p215 = scmp.eq.s32.totalorder %s34, 3
      %p216 = por %p214, %p215
      %p218 = scmp.ne.s32.totalorder %s203, %s217
      %p219 = scmp.eq.s32.totalorder %s34, 0
      %p220 = por %p218, %p219
      %s222 = sadd.s32 %s221, 1
      %p225 = scmp.eq.s32.totalorder %s28, 3
      %p226 = scmp.ne.s32.totalorder %s221, %s223
      %p227 = scmp.eq.s32.totalorder %s28, 0
      %p228 = por %p226, %p227
      %p229 = scmp.ne.s32.totalorder %s221, %s223
      %p230 = scmp.eq.s32.totalorder %s33, 3
      %p231 = por %p229, %p230
      %p232 = scmp.ne.s32.totalorder %s223, %s224
      %p233 = scmp.eq.s32.totalorder %s33, 0
      %p234 = por %p232, %p233
      %p235 = scmp.ne.s32.totalorder %s223, %s224
      %p236 = scmp.eq.s32.totalorder %s34, 3
      %p237 = por %p235, %p236
      %p239 = scmp.ne.s32.totalorder %s224, %s238
      %p240 = scmp.eq.s32.totalorder %s34, 0
      %p241 = por %p239, %p240
      %s243 = sadd.s32 %s242, 1
      %p246 = scmp.eq.s32.totalorder %s28, 3
      %p247 = scmp.ne.s32.totalorder %s242, %s244
      %p248 = scmp.eq.s32.totalorder %s28, 0
      %p249 = por %p247, %p248
      %p250 = scmp.ne.s32.totalorder %s242, %s244
      %p251 = scmp.eq.s32.totalorder %s33, 3
      %p252 = por %p250, %p251
      %p253 = scmp.ne.s32.totalorder %s244, %s245
      %p254 = scmp.eq.s32.totalorder %s33, 0
      %p255 = por %p253, %p254
      %p256 = scmp.ne.s32.totalorder %s244, %s245
      %p257 = scmp.eq.s32.totalorder %s34, 3
      %p258 = por %p256, %p257
      %p260 = scmp.ne.s32.totalorder %s245, %s259
      %p261 = scmp.eq.s32.totalorder %s34, 0
      %p262 = por %p260, %p261
      %s264 = sadd.s32 %s263, 1
      %p267 = scmp.eq.s32.totalorder %s28, 3
      %p268 = scmp.ne.s32.totalorder %s263, %s265
      %p269 = scmp.eq.s32.totalorder %s28, 0
      %p270 = por %p268, %p269
      %p271 = scmp.ne.s32.totalorder %s263, %s265
      %p272 = scmp.eq.s32.totalorder %s33, 3
      %p273 = por %p271, %p272
      %p274 = scmp.ne.s32.totalorder %s265, %s266
      %p275 = scmp.eq.s32.totalorder %s33, 0
      %p276 = por %p274, %p275
      %p277 = scmp.ne.s32.totalorder %s265, %s266
      %p278 = scmp.eq.s32.totalorder %s34, 3
      %p279 = por %p277, %p278
      %p281 = scmp.ne.s32.totalorder %s266, %s280
      %p282 = scmp.eq.s32.totalorder %s34, 0
      %p283 = por %p281, %p282
      %s285 = sadd.s32 %s284, 1
      %p288 = scmp.eq.s32.totalorder %s28, 3
      %p289 = scmp.ne.s32.totalorder %s284, %s286
      %p290 = scmp.eq.s32.totalorder %s28, 0
      %p291 = por %p289, %p290
      %p292 = scmp.ne.s32.totalorder %s284, %s286
      %p293 = scmp.eq.s32.totalorder %s33, 3
      %p294 = por %p292, %p293
      %p295 = scmp.ne.s32.totalorder %s286, %s287
      %p296 = scmp.eq.s32.totalorder %s33, 0
      %p297 = por %p295, %p296
      %p298 = scmp.ne.s32.totalorder %s286, %s287
      %p299 = scmp.eq.s32.totalorder %s34, 3
      %p300 = por %p298, %p299
      %p302 = scmp.ne.s32.totalorder %s287, %s301
      %p303 = scmp.eq.s32.totalorder %s34, 0
      %p304 = por %p302, %p303
      %s306 = sadd.s32 %s305, 1
      %p309 = scmp.eq.s32.totalorder %s28, 3
      %p310 = scmp.ne.s32.totalorder %s305, %s307
      %p311 = scmp.eq.s32.totalorder %s28, 0
      %p312 = por %p310, %p311
      %p313 = scmp.ne.s32.totalorder %s305, %s307
      %p314 = scmp.eq.s32.totalorder %s33, 3
      %p315 = por %p313, %p314
      %p316 = scmp.ne.s32.totalorder %s307, %s308
      %p317 = scmp.eq.s32.totalorder %s33, 0
      %p318 = por %p316, %p317
      %p319 = scmp.ne.s32.totalorder %s307, %s308
      %p320 = scmp.eq.s32.totalorder %s34, 3
      %p321 = por %p319, %p320
      %p323 = scmp.ne.s32.totalorder %s308, %s322
      %p324 = scmp.eq.s32.totalorder %s34, 0
      %p325 = por %p323, %p324
      %s327 = sadd.s32 %s326, 1
      %p330 = scmp.eq.s32.totalorder %s28, 3
      %p331 = scmp.ne.s32.totalorder %s326, %s328
      %p332 = scmp.eq.s32.totalorder %s28, 0
      %p333 = por %p331, %p332
      %p334 = scmp.ne.s32.totalorder %s326, %s328
      %p335 = scmp.eq.s32.totalorder %s33, 3
      %p336 = por %p334, %p335
      %p337 = scmp.ne.s32.totalorder %s328, %s329
      %p338 = scmp.eq.s32.totalorder %s33, 0
      %p339 = por %p337, %p338
      %p340 = scmp.ne.s32.totalorder %s328, %s329
      %p341 = scmp.eq.s32.totalorder %s34, 3
      %p342 = por %p340, %p341
      %p344 = scmp.ne.s32.totalorder %s329, %s343
      %p345 = scmp.eq.s32.totalorder %s34, 0
      %p346 = por %p344, %p345
      %s348 = sadd.s32 %s347, 1
      %p351 = scmp.eq.s32.totalorder %s28, 3
      %p352 = scmp.ne.s32.totalorder %s347, %s349
      %p353 = scmp.eq.s32.totalorder %s28, 0
      %p354 = por %p352, %p353
      %p355 = scmp.ne.s32.totalorder %s347, %s349
      %p356 = scmp.eq.s32.totalorder %s33, 3
      %p357 = por %p355, %p356
      %p358 = scmp.ne.s32.totalorder %s349, %s350
      %p359 = scmp.eq.s32.totalorder %s33, 0
      %p360 = por %p358, %p359
      %p361 = scmp.ne.s32.totalorder %s349, %s350
      %p362 = scmp.eq.s32.totalorder %s34, 3
      %p363 = por %p361, %p362
      %p365 = scmp.ne.s32.totalorder %s350, %s364
      %p366 = scmp.eq.s32.totalorder %s34, 0
      %p367 = por %p365, %p366
      %s369 = sadd.s32 %s368, 1
      %p372 = scmp.eq.s32.totalorder %s28, 3
      %p373 = scmp.ne.s32.totalorder %s368, %s370
      %p374 = scmp.eq.s32.totalorder %s28, 0
      %p375 = por %p373, %p374
      %p376 = scmp.ne.s32.totalorder %s368, %s370
      %p377 = scmp.eq.s32.totalorder %s33, 3
      %p378 = por %p376, %p377
      %p379 = scmp.ne.s32.totalorder %s370, %s371
      %p380 = scmp.eq.s32.totalorder %s33, 0
      %p381 = por %p379, %p380
      %p382 = scmp.ne.s32.totalorder %s370, %s371
      %p383 = scmp.eq.s32.totalorder %s34, 3
      %p384 = por %p382, %p383
      %p386 = scmp.ne.s32.totalorder %s371, %s385
      %p387 = scmp.eq.s32.totalorder %s34, 0
      %p388 = por %p386, %p387
      %s390 = sadd.s32 %s389, 1
      %p393 = scmp.eq.s32.totalorder %s28, 3
      %p394 = scmp.ne.s32.totalorder %s389, %s391
      %p395 = scmp.eq.s32.totalorder %s28, 0
      %p396 = por %p394, %p395
      %p397 = scmp.ne.s32.totalorder %s389, %s391
      %p398 = scmp.eq.s32.totalorder %s33, 3
      %p399 = por %p397, %p398
      %p400 = scmp.ne.s32.totalorder %s391, %s392
      %p401 = scmp.eq.s32.totalorder %s33, 0
      %p402 = por %p400, %p401
      %p403 = scmp.ne.s32.totalorder %s391, %s392
      %p404 = scmp.eq.s32.totalorder %s34, 3
      %p405 = por %p403, %p404
      %p407 = scmp.ne.s32.totalorder %s392, %s406
      %p408 = scmp.eq.s32.totalorder %s34, 0
      %p409 = por %p407, %p408
      %s410 = ssub.s32 %s35, %s47
      %s411 = ssub.s32 %s36, %s43
      %s412 = sor.u32 %s410, %s411
      %p413 = scmp.eq.s32.totalorder %s412, 0
      %s415 = sadd.s32 %s414, 1
      %s416 = scalar_select %p413, %s414, %s415
      %p419 = pneg %p413
      %p420 = scmp.eq.s32.totalorder %s28, 3
      %p421 = por %p419, %p420
      %p422 = scmp.ne.s32.totalorder %s414, %s417
      %p423 = scmp.eq.s32.totalorder %s28, 0
      %p424 = por %p422, %p423
      %p425 = scmp.ne.s32.totalorder %s414, %s417
      %p426 = scmp.eq.s32.totalorder %s33, 3
      %p427 = por %p425, %p426
      %p428 = scmp.ne.s32.totalorder %s417, %s418
      %p429 = scmp.eq.s32.totalorder %s33, 0
      %p430 = por %p428, %p429
      %p431 = scmp.ne.s32.totalorder %s417, %s418
      %p432 = scmp.eq.s32.totalorder %s34, 3
      %p433 = por %p431, %p432
      %p435 = scmp.ne.s32.totalorder %s418, %s434
      %p436 = scmp.eq.s32.totalorder %s34, 0
      %p437 = por %p435, %p436
      %p438 = scmp.le.s32.totalorder 1, %s28
      %p439 = scmp.lt.s32.totalorder %s28, 5
      %p440 = pnand %p438, %p439
      %p441 = pneg %p440
      // Predicated region
      $region9: #{gpt2_block.1} parent=5 // pred_check
        _
      $region10: #{gpt2_block.1} parent=5 // pred_check_branch
        %443 = sbr.rel (%p440) target = $region12
      $region11: #{gpt2_block.1} parent=5 // pred_region
        %s444 = ssub.s32 %s28, 1
        // Predicated region
        $region13: #{gpt2_block.1} parent=11 // pred_check
          %p445 = pneg %p87
        $region14: #{gpt2_block.1} parent=11 // pred_check_branch
          %447 = sbr.rel (%p445) target = $region16
        $region15: #{gpt2_block.1} parent=11 // pred_region
          _
        $region16: #{gpt2_block.1} parent=11 // pred_fallthru
          _
        // Predicated region
        $region17: #{gpt2_block.1} parent=11 // pred_check
          %p448 = pneg %p108
        $region18: #{gpt2_block.1} parent=11 // pred_check_branch
          %450 = sbr.rel (%p448) target = $region20
        $region19: #{gpt2_block.1} parent=11 // pred_region
          _
        $region20: #{gpt2_block.1} parent=11 // pred_fallthru
          _
        // Predicated region
        $region21: #{gpt2_block.1} parent=11 // pred_check
          %p451 = pneg %p129
        $region22: #{gpt2_block.1} parent=11 // pred_check_branch
          %453 = sbr.rel (%p451) target = $region24
        $region23: #{gpt2_block.1} parent=11 // pred_region
          _
        $region24: #{gpt2_block.1} parent=11 // pred_fallthru
          _
        // Predicated region
        $region25: #{gpt2_block.1} parent=11 // pred_check
          %p454 = pneg %p150
        $region26: #{gpt2_block.1} parent=11 // pred_check_branch
          %456 = sbr.rel (%p454) target = $region28
        $region27: #{gpt2_block.1} parent=11 // pred_region
          _
        $region28: #{gpt2_block.1} parent=11 // pred_fallthru
          _
        // Predicated region
        $region29: #{gpt2_block.1} parent=11 // pred_check
          %p457 = pneg %p171
        $region30: #{gpt2_block.1} parent=11 // pred_check_branch
          %459 = sbr.rel (%p457) target = $region32
        $region31: #{gpt2_block.1} parent=11 // pred_region
          _
        $region32: #{gpt2_block.1} parent=11 // pred_fallthru
          _
        // Predicated region
        $region33: #{gpt2_block.1} parent=11 // pred_check
          %p460 = pneg %p192
        $region34: #{gpt2_block.1} parent=11 // pred_check_branch
          %462 = sbr.rel (%p460) target = $region36
        $region35: #{gpt2_block.1} parent=11 // pred_region
          _
        $region36: #{gpt2_block.1} parent=11 // pred_fallthru
          _
        // Predicated region
        $region37: #{gpt2_block.1} parent=11 // pred_check
          %p463 = pneg %p213
        $region38: #{gpt2_block.1} parent=11 // pred_check_branch
          %465 = sbr.rel (%p463) target = $region40
        $region39: #{gpt2_block.1} parent=11 // pred_region
          _
        $region40: #{gpt2_block.1} parent=11 // pred_fallthru
          _
        // Predicated region
        $region41: #{gpt2_block.1} parent=11 // pred_check
          %p466 = pneg %p234
        $region42: #{gpt2_block.1} parent=11 // pred_check_branch
          %468 = sbr.rel (%p466) target = $region44
        $region43: #{gpt2_block.1} parent=11 // pred_region
          _
        $region44: #{gpt2_block.1} parent=11 // pred_fallthru
          _
        // Predicated region
        $region45: #{gpt2_block.1} parent=11 // pred_check
          %p469 = pneg %p255
        $region46: #{gpt2_block.1} parent=11 // pred_check_branch
          %471 = sbr.rel (%p469) target = $region48
        $region47: #{gpt2_block.1} parent=11 // pred_region
          _
        $region48: #{gpt2_block.1} parent=11 // pred_fallthru
          _
        // Predicated region
        $region49: #{gpt2_block.1} parent=11 // pred_check
          %p472 = pneg %p276
        $region50: #{gpt2_block.1} parent=11 // pred_check_branch
          %474 = sbr.rel (%p472) target = $region52
        $region51: #{gpt2_block.1} parent=11 // pred_region
          _
        $region52: #{gpt2_block.1} parent=11 // pred_fallthru
          _
        // Predicated region
        $region53: #{gpt2_block.1} parent=11 // pred_check
          %p475 = pneg %p297
        $region54: #{gpt2_block.1} parent=11 // pred_check_branch
          %477 = sbr.rel (%p475) target = $region56
        $region55: #{gpt2_block.1} parent=11 // pred_region
          _
        $region56: #{gpt2_block.1} parent=11 // pred_fallthru
          _
        // Predicated region
        $region57: #{gpt2_block.1} parent=11 // pred_check
          %p478 = pneg %p318
        $region58: #{gpt2_block.1} parent=11 // pred_check_branch
          %480 = sbr.rel (%p478) target = $region60
        $region59: #{gpt2_block.1} parent=11 // pred_region
          _
        $region60: #{gpt2_block.1} parent=11 // pred_fallthru
          _
        // Predicated region
        $region61: #{gpt2_block.1} parent=11 // pred_check
          %p481 = pneg %p339
        $region62: #{gpt2_block.1} parent=11 // pred_check_branch
          %483 = sbr.rel (%p481) target = $region64
        $region63: #{gpt2_block.1} parent=11 // pred_region
          %s485 = ssub.s32 8192, 8192
          %486 = vsyncadd [#allocation5], %s485
          %s487 = sshll.u32 [#allocation4], 4
          %s488 = int_to_ptr.vmem [resolvable:$true] %s487
          %493 = dma.hbm_to_vmem [thread:$0]  %s13, 8192, %s488, [#allocation5], 512, 512, 32
        $region64: #{gpt2_block.1} parent=11 // pred_fallthru
          _
        // Predicated region
        $region65: #{gpt2_block.1} parent=11 // pred_check
          %p494 = pneg %p360
        $region66: #{gpt2_block.1} parent=11 // pred_check_branch
          %496 = sbr.rel (%p494) target = $region68
        $region67: #{gpt2_block.1} parent=11 // pred_region
          _
        $region68: #{gpt2_block.1} parent=11 // pred_fallthru
          _
        // Predicated region
        $region69: #{gpt2_block.1} parent=11 // pred_check
          %p497 = pneg %p381
        $region70: #{gpt2_block.1} parent=11 // pred_check_branch
          %499 = sbr.rel (%p497) target = $region72
        $region71: #{gpt2_block.1} parent=11 // pred_region
          %s501 = ssub.s32 8192, 8192
          %502 = vsyncadd [#allocation8], %s501
          %s503 = sshll.u32 [#allocation7], 4
          %s504 = int_to_ptr.vmem [resolvable:$true] %s503
          %509 = dma.hbm_to_vmem [thread:$0]  %s15, 8192, %s504, [#allocation8], 128, 128, 8
        $region72: #{gpt2_block.1} parent=11 // pred_fallthru
          _
        // Predicated region
        $region73: #{gpt2_block.1} parent=11 // pred_check
          %p510 = pneg %p402
        $region74: #{gpt2_block.1} parent=11 // pred_check_branch
          %512 = sbr.rel (%p510) target = $region76
        $region75: #{gpt2_block.1} parent=11 // pred_region
          _
        $region76: #{gpt2_block.1} parent=11 // pred_fallthru
          _
      $region12: #{gpt2_block.1} parent=5 // pred_fallthru
        _
      %p513 = scmp.lt.s32.totalorder %s28, 4
      // Predicated region
      $region77: #{gpt2_block.1} parent=5 // pred_check
        %p514 = pneg %p513
      $region78: #{gpt2_block.1} parent=5 // pred_check_branch
        %516 = sbr.rel (%p514) target = $region80
      $region79: #{gpt2_block.1} parent=5 // pred_region
        // Predicated region
        $region81: #{gpt2_block.1} parent=79 // pred_check
          %p517 = pneg %p60
        $region82: #{gpt2_block.1} parent=79 // pred_check_branch
          %519 = sbr.rel (%p517) target = $region84
        $region83: #{gpt2_block.1} parent=79 // pred_region
          %p520 = scmp.lt.s32.totalorder %s35, 1
          %s521 = scalar_select %p520, %s35, 1
          %s522 = smul.addr %s521, 32
          %s523 = smul.addr %s522, 8
          %s524 = scalar_lea.vmem %s0, %s523
        $region84: #{gpt2_block.1} parent=79 // pred_fallthru
          _
      $region80: #{gpt2_block.1} parent=5 // pred_fallthru
        _
      %p525 = scmp.le.s32.totalorder 1, %s28
      %p526 = scmp.lt.s32.totalorder %s28, 5
      %p527 = pnand %p525, %p526
      %p528 = pneg %p527
      // Predicated region
      $region85: #{gpt2_block.1} parent=5 // pred_check
        _
      $region86: #{gpt2_block.1} parent=5 // pred_check_branch
        %530 = sbr.rel (%p527) target = $region88
      $region87: #{gpt2_block.1} parent=5 // pred_region
        %s531 = ssub.s32 %s28, 1
        // Predicated region
        $region89: #{gpt2_block.1} parent=87 // pred_check
          %p532 = pneg %p339
        $region90: #{gpt2_block.1} parent=87 // pred_check_branch
          %534 = sbr.rel (%p532) target = $region92
        $region91: #{gpt2_block.1} parent=87 // pred_region
          %535 = dma.done [#allocation5], 8192
        $region92: #{gpt2_block.1} parent=87 // pred_fallthru
          _
        // Predicated region
        $region93: #{gpt2_block.1} parent=87 // pred_check
          %p536 = pneg %p381
        $region94: #{gpt2_block.1} parent=87 // pred_check_branch
          %538 = sbr.rel (%p536) target = $region96
        $region95: #{gpt2_block.1} parent=87 // pred_region
          %539 = dma.done [#allocation8], 8192
        $region96: #{gpt2_block.1} parent=87 // pred_fallthru
          _
        %p540 = scmp.lt.s32.totalorder %s37, 1
        %s541 = scalar_select %p540, %s37, 1
        %s542 = smul.addr %s541, 32
        %s543 = smul.addr %s542, 8
        %s544 = scalar_lea.vmem %s0, %s543
        %p545 = pneg %p66
        %p546 = pneg %p63
        %p547 = pneg %p87
        %p548 = pneg %p84
        %p549 = pneg %p108
        %p550 = pneg %p105
        %p551 = pneg %p129
        %p552 = pneg %p126
        %p553 = pneg %p150
        %p554 = pneg %p147
        %p555 = pneg %p171
        %p556 = pneg %p168
        %p557 = pneg %p192
        %p558 = pneg %p189
        %p559 = pneg %p213
        %p560 = pneg %p210
        %p561 = pneg %p234
        %p562 = pneg %p231
        %p563 = pneg %p255
        %p564 = pneg %p252
        %p565 = pneg %p276
        %p566 = pneg %p273
        %p567 = pneg %p297
        %p568 = pneg %p294
        %p569 = pneg %p318
        %p570 = pneg %p315
        %p571 = pneg %p339
        %p572 = pneg %p336
        %p573 = pneg %p360
        %p574 = pneg %p357
        %p575 = pneg %p381
        %p576 = pneg %p378
        %p577 = pneg %p402
        %p578 = pneg %p399
        %p579 = pneg %p430
        %p580 = pneg %p427
        %s581 = sand.u32 %s417, 1
        %s582 = scalar_lea.sflag [#allocation6], %s581
        %s583 = sand.u32 %s417, 1
        %s584 = smul.addr %s583, 128
        %s585 = scalar_lea.vmem [#allocation9], %s584
        %p586 = scmp.lt.s32.totalorder %s37, 1
        %s587 = scalar_select %p586, %s37, 1
        %s588 = smul.addr %s587, 32
        %s589 = smul.addr %s588, 8
        %s590 = scalar_lea.vmem %s0, %s589
        %s591 = smul.u32 16, %s38
        %p592 = scmp.eq.s32.totalorder %s38, 0
        // Predicated region
        $region97: #{gpt2_block.1} parent=87 // pred_check
          %p593 = pneg %p592
        $region98: #{gpt2_block.1} parent=87 // pred_check_branch
          %595 = sbr.rel (%p593) target = $region100
        $region99: #{gpt2_block.1} parent=87 // pred_region
          %v596 = vld [vmem:[%s590] sm:$0xff]
          %v597 = vld [vmem:[%s590 + $0x8] sm:$0xff]
          %v598 = vld [vmem:[%s590 + $0x10] sm:$0xff]
          %v599 = vld [vmem:[%s590 + $0x18] sm:$0xff]
          %v600 = vld [vmem:[%s590 + $0x20] sm:$0xff]
          %v601 = vld [vmem:[%s590 + $0x28] sm:$0xff]
          %v602 = vld [vmem:[%s590 + $0x30] sm:$0xff]
          %v603 = vld [vmem:[%s590 + $0x38] sm:$0xff]
          %v604 = vld [vmem:[%s590 + $0x40] sm:$0xff]
          %v605 = vld [vmem:[%s590 + $0x48] sm:$0xff]
          %v606 = vld [vmem:[%s590 + $0x50] sm:$0xff]
          %v607 = vld [vmem:[%s590 + $0x58] sm:$0xff]
          %v608 = vld [vmem:[%s590 + $0x60] sm:$0xff]
          %v609 = vld [vmem:[%s590 + $0x68] sm:$0xff]
          %v610 = vld [vmem:[%s590 + $0x70] sm:$0xff]
          %v611 = vld [vmem:[%s590 + $0x78] sm:$0xff]
          %v612 = vld [vmem:[%s590 + $0x80] sm:$0xff]
          %v613 = vld [vmem:[%s590 + $0x88] sm:$0xff]
          %v614 = vld [vmem:[%s590 + $0x90] sm:$0xff]
          %v615 = vld [vmem:[%s590 + $0x98] sm:$0xff]
          %v616 = vld [vmem:[%s590 + $0xa0] sm:$0xff]
          %v617 = vld [vmem:[%s590 + $0xa8] sm:$0xff]
          %v618 = vld [vmem:[%s590 + $0xb0] sm:$0xff]
          %v619 = vld [vmem:[%s590 + $0xb8] sm:$0xff]
          %v620 = vld [vmem:[%s590 + $0xc0] sm:$0xff]
          %v621 = vld [vmem:[%s590 + $0xc8] sm:$0xff]
          %v622 = vld [vmem:[%s590 + $0xd0] sm:$0xff]
          %v623 = vld [vmem:[%s590 + $0xd8] sm:$0xff]
          %v624 = vld [vmem:[%s590 + $0xe0] sm:$0xff]
          %v625 = vld [vmem:[%s590 + $0xe8] sm:$0xff]
          %v626 = vld [vmem:[%s590 + $0xf0] sm:$0xff]
          %v627 = vld [vmem:[%s590 + $0xf8] sm:$0xff]
          %v628 = vld [vmem:[%s1] sm:$0x1]
          %v629 = vld [vmem:[%s2] sm:$0x1]
          %630 = vadd.xlane.f32.xlu0 %v596
          %v631 = vpop.xlane.xlu0 %630
          %632 = vadd.xlane.f32.xlu0 %v597
          %v633 = vpop.xlane.xlu0 %632
          %634 = vadd.xlane.f32.xlu0 %v598
          %v635 = vpop.xlane.xlu0 %634
          %636 = vadd.xlane.f32.xlu0 %v599
          %v637 = vpop.xlane.xlu0 %636
          %638 = vadd.xlane.f32.xlu0 %v600
          %v639 = vpop.xlane.xlu0 %638
          %640 = vadd.xlane.f32.xlu0 %v601
          %v641 = vpop.xlane.xlu0 %640
          %642 = vadd.xlane.f32.xlu0 %v602
          %v643 = vpop.xlane.xlu0 %642
          %644 = vadd.xlane.f32.xlu0 %v603
          %v645 = vpop.xlane.xlu0 %644
          %646 = vadd.xlane.f32.xlu0 %v604
          %v647 = vpop.xlane.xlu0 %646
          %648 = vadd.xlane.f32.xlu0 %v605
          %v649 = vpop.xlane.xlu0 %648
          %650 = vadd.xlane.f32.xlu0 %v606
          %v651 = vpop.xlane.xlu0 %650
          %652 = vadd.xlane.f32.xlu0 %v607
          %v653 = vpop.xlane.xlu0 %652
          %654 = vadd.xlane.f32.xlu0 %v608
          %v655 = vpop.xlane.xlu0 %654
          %656 = vadd.xlane.f32.xlu0 %v609
          %v657 = vpop.xlane.xlu0 %656
          %658 = vadd.xlane.f32.xlu0 %v610
          %v659 = vpop.xlane.xlu0 %658
          %660 = vadd.xlane.f32.xlu0 %v611
          %v661 = vpop.xlane.xlu0 %660
          %662 = vadd.xlane.f32.xlu0 %v612
          %v663 = vpop.xlane.xlu0 %662
          %664 = vadd.xlane.f32.xlu0 %v613
          %v665 = vpop.xlane.xlu0 %664
          %666 = vadd.xlane.f32.xlu0 %v614
          %v667 = vpop.xlane.xlu0 %666
          %668 = vadd.xlane.f32.xlu0 %v615
          %v669 = vpop.xlane.xlu0 %668
          %670 = vadd.xlane.f32.xlu0 %v616
          %v671 = vpop.xlane.xlu0 %670
          %672 = vadd.xlane.f32.xlu0 %v617
          %v673 = vpop.xlane.xlu0 %672
          %674 = vadd.xlane.f32.xlu0 %v618
          %v675 = vpop.xlane.xlu0 %674
          %676 = vadd.xlane.f32.xlu0 %v619
          %v677 = vpop.xlane.xlu0 %676
          %678 = vadd.xlane.f32.xlu0 %v620
          %v679 = vpop.xlane.xlu0 %678
          %680 = vadd.xlane.f32.xlu0 %v621
          %v681 = vpop.xlane.xlu0 %680
          %682 = vadd.xlane.f32.xlu0 %v622
          %v683 = vpop.xlane.xlu0 %682
          %684 = vadd.xlane.f32.xlu0 %v623
          %v685 = vpop.xlane.xlu0 %684
          %686 = vadd.xlane.f32.xlu0 %v624
          %v687 = vpop.xlane.xlu0 %686
          %688 = vadd.xlane.f32.xlu0 %v625
          %v689 = vpop.xlane.xlu0 %688
          %690 = vadd.xlane.f32.xlu0 %v626
          %v691 = vpop.xlane.xlu0 %690
          %692 = vadd.xlane.f32.xlu0 %v627
          %v693 = vpop.xlane.xlu0 %692
          %v694 = vrcp.pop 128.0
          %v695 = vmul.f32 %v631, %v694
          %v696 = vmul.f32 %v633, %v694
          %v697 = vmul.f32 %v635, %v694
          %v698 = vmul.f32 %v637, %v694
          %v699 = vmul.f32 %v639, %v694
          %v700 = vmul.f32 %v641, %v694
          %v701 = vmul.f32 %v643, %v694
          %v702 = vmul.f32 %v645, %v694
          %v703 = vmul.f32 %v647, %v694
          %v704 = vmul.f32 %v649, %v694
          %v705 = vmul.f32 %v651, %v694
          %v706 = vmul.f32 %v653, %v694
          %v707 = vmul.f32 %v655, %v694
          %v708 = vmul.f32 %v657, %v694
          %v709 = vmul.f32 %v659, %v694
          %v710 = vmul.f32 %v661, %v694
          %v711 = vmul.f32 %v663, %v694
          %v712 = vmul.f32 %v665, %v694
          %v713 = vmul.f32 %v667, %v694
          %v714 = vmul.f32 %v669, %v694
          %v715 = vmul.f32 %v671, %v694
          %v716 = vmul.f32 %v673, %v694
          %v717 = vmul.f32 %v675, %v694
          %v718 = vmul.f32 %v677, %v694
          %v719 = vmul.f32 %v679, %v694
          %v720 = vmul.f32 %v681, %v694
          %v721 = vmul.f32 %v683, %v694
          %v722 = vmul.f32 %v685, %v694
          %v723 = vmul.f32 %v687, %v694
          %v724 = vmul.f32 %v689, %v694
          %v725 = vmul.f32 %v691, %v694
          %v726 = vmul.f32 %v693, %v694
          %v727 = vsub.f32 %v596, %v695
          %v728 = vsub.f32 %v597, %v696
          %v729 = vsub.f32 %v598, %v697
          %v730 = vsub.f32 %v599, %v698
          %v731 = vsub.f32 %v600, %v699
          %v732 = vsub.f32 %v601, %v700
          %v733 = vsub.f32 %v602, %v701
          %v734 = vsub.f32 %v603, %v702
          %v735 = vsub.f32 %v604, %v703
          %v736 = vsub.f32 %v605, %v704
          %v737 = vsub.f32 %v606, %v705
          %v738 = vsub.f32 %v607, %v706
          %v739 = vsub.f32 %v608, %v707
          %v740 = vsub.f32 %v609, %v708
          %v741 = vsub.f32 %v610, %v709
          %v742 = vsub.f32 %v611, %v710
          %v743 = vsub.f32 %v612, %v711
          %v744 = vsub.f32 %v613, %v712
          %v745 = vsub.f32 %v614, %v713
          %v746 = vsub.f32 %v615, %v714
          %v747 = vsub.f32 %v616, %v715
          %v748 = vsub.f32 %v617, %v716
          %v749 = vsub.f32 %v618, %v717
          %v750 = vsub.f32 %v619, %v718
          %v751 = vsub.f32 %v620, %v719
          %v752 = vsub.f32 %v621, %v720
          %v753 = vsub.f32 %v622, %v721
          %v754 = vsub.f32 %v623, %v722
          %v755 = vsub.f32 %v624, %v723
          %v756 = vsub.f32 %v625, %v724
          %v757 = vsub.f32 %v626, %v725
          %v758 = vsub.f32 %v627, %v726
          %v759 = vmul.f32 %v727, %v727
          %v760 = vmul.f32 %v728, %v728
          %v761 = vmul.f32 %v729, %v729
          %v762 = vmul.f32 %v730, %v730
          %v763 = vmul.f32 %v731, %v731
          %v764 = vmul.f32 %v732, %v732
          %v765 = vmul.f32 %v733, %v733
          %v766 = vmul.f32 %v734, %v734
          %v767 = vmul.f32 %v735, %v735
          %v768 = vmul.f32 %v736, %v736
          %v769 = vmul.f32 %v737, %v737
          %v770 = vmul.f32 %v738, %v738
          %v771 = vmul.f32 %v739, %v739
          %v772 = vmul.f32 %v740, %v740
          %v773 = vmul.f32 %v741, %v741
          %v774 = vmul.f32 %v742, %v742
          %v775 = vmul.f32 %v743, %v743
          %v776 = vmul.f32 %v744, %v744
          %v777 = vmul.f32 %v745, %v745
          %v778 = vmul.f32 %v746, %v746
          %v779 = vmul.f32 %v747, %v747
          %v780 = vmul.f32 %v748, %v748
          %v781 = vmul.f32 %v749, %v749
          %v782 = vmul.f32 %v750, %v750
          %v783 = vmul.f32 %v751, %v751
          %v784 = vmul.f32 %v752, %v752
          %v785 = vmul.f32 %v753, %v753
          %v786 = vmul.f32 %v754, %v754
          %v787 = vmul.f32 %v755, %v755
          %v788 = vmul.f32 %v756, %v756
          %v789 = vmul.f32 %v757, %v757
          %v790 = vmul.f32 %v758, %v758
          %791 = vadd.xlane.f32.xlu0 %v759
          %v792 = vpop.xlane.xlu0 %791
          %793 = vadd.xlane.f32.xlu0 %v760
          %v794 = vpop.xlane.xlu0 %793
          %795 = vadd.xlane.f32.xlu0 %v761
          %v796 = vpop.xlane.xlu0 %795
          %797 = vadd.xlane.f32.xlu0 %v762
          %v798 = vpop.xlane.xlu0 %797
          %799 = vadd.xlane.f32.xlu0 %v763
          %v800 = vpop.xlane.xlu0 %799
          %801 = vadd.xlane.f32.xlu0 %v764
          %v802 = vpop.xlane.xlu0 %801
          %803 = vadd.xlane.f32.xlu0 %v765
          %v804 = vpop.xlane.xlu0 %803
          %805 = vadd.xlane.f32.xlu0 %v766
          %v806 = vpop.xlane.xlu0 %805
          %807 = vadd.xlane.f32.xlu0 %v767
          %v808 = vpop.xlane.xlu0 %807
          %809 = vadd.xlane.f32.xlu0 %v768
          %v810 = vpop.xlane.xlu0 %809
          %811 = vadd.xlane.f32.xlu0 %v769
          %v812 = vpop.xlane.xlu0 %811
          %813 = vadd.xlane.f32.xlu0 %v770
          %v814 = vpop.xlane.xlu0 %813
          %815 = vadd.xlane.f32.xlu0 %v771
          %v816 = vpop.xlane.xlu0 %815
          %817 = vadd.xlane.f32.xlu0 %v772
          %v818 = vpop.xlane.xlu0 %817
          %819 = vadd.xlane.f32.xlu0 %v773
          %v820 = vpop.xlane.xlu0 %819
          %821 = vadd.xlane.f32.xlu0 %v774
          %v822 = vpop.xlane.xlu0 %821
          %823 = vadd.xlane.f32.xlu0 %v775
          %v824 = vpop.xlane.xlu0 %823
          %825 = vadd.xlane.f32.xlu0 %v776
          %v826 = vpop.xlane.xlu0 %825
          %827 = vadd.xlane.f32.xlu0 %v777
          %v828 = vpop.xlane.xlu0 %827
          %829 = vadd.xlane.f32.xlu0 %v778
          %v830 = vpop.xlane.xlu0 %829
          %831 = vadd.xlane.f32.xlu0 %v779
          %v832 = vpop.xlane.xlu0 %831
          %833 = vadd.xlane.f32.xlu0 %v780
          %v834 = vpop.xlane.xlu0 %833
          %835 = vadd.xlane.f32.xlu0 %v781
          %v836 = vpop.xlane.xlu0 %835
          %837 = vadd.xlane.f32.xlu0 %v782
          %v838 = vpop.xlane.xlu0 %837
          %839 = vadd.xlane.f32.xlu0 %v783
          %v840 = vpop.xlane.xlu0 %839
          %841 = vadd.xlane.f32.xlu0 %v784
          %v842 = vpop.xlane.xlu0 %841
          %843 = vadd.xlane.f32.xlu0 %v785
          %v844 = vpop.xlane.xlu0 %843
          %845 = vadd.xlane.f32.xlu0 %v786
          %v846 = vpop.xlane.xlu0 %845
          %847 = vadd.xlane.f32.xlu0 %v787
          %v848 = vpop.xlane.xlu0 %847
          %849 = vadd.xlane.f32.xlu0 %v788
          %v850 = vpop.xlane.xlu0 %849
          %851 = vadd.xlane.f32.xlu0 %v789
          %v852 = vpop.xlane.xlu0 %851
          %853 = vadd.xlane.f32.xlu0 %v790
          %v854 = vpop.xlane.xlu0 %853
          %v855 = vmul.f32 %v792, %v694
          %v856 = vmul.f32 %v794, %v694
          %v857 = vmul.f32 %v796, %v694
          %v858 = vmul.f32 %v798, %v694
          %v859 = vmul.f32 %v800, %v694
          %v860 = vmul.f32 %v802, %v694
          %v861 = vmul.f32 %v804, %v694
          %v862 = vmul.f32 %v806, %v694
          %v863 = vmul.f32 %v808, %v694
          %v864 = vmul.f32 %v810, %v694
          %v865 = vmul.f32 %v812, %v694
          %v866 = vmul.f32 %v814, %v694
          %v867 = vmul.f32 %v816, %v694
          %v868 = vmul.f32 %v818, %v694
          %v869 = vmul.f32 %v820, %v694
          %v870 = vmul.f32 %v822, %v694
          %v871 = vmul.f32 %v824, %v694
          %v872 = vmul.f32 %v826, %v694
          %v873 = vmul.f32 %v828, %v694
          %v874 = vmul.f32 %v830, %v694
          %v875 = vmul.f32 %v832, %v694
          %v876 = vmul.f32 %v834, %v694
          %v877 = vmul.f32 %v836, %v694
          %v878 = vmul.f32 %v838, %v694
          %v879 = vmul.f32 %v840, %v694
          %v880 = vmul.f32 %v842, %v694
          %v881 = vmul.f32 %v844, %v694
          %v882 = vmul.f32 %v846, %v694
          %v883 = vmul.f32 %v848, %v694
          %v884 = vmul.f32 %v850, %v694
          %v885 = vmul.f32 %v852, %v694
          %v886 = vmul.f32 %v854, %v694
          %v887 = vadd.f32 %v855, 1e-05
          %v888 = vadd.f32 %v856, 1e-05
          %v889 = vadd.f32 %v857, 1e-05
          %v890 = vadd.f32 %v858, 1e-05
          %v891 = vadd.f32 %v859, 1e-05
          %v892 = vadd.f32 %v860, 1e-05
          %v893 = vadd.f32 %v861, 1e-05
          %v894 = vadd.f32 %v862, 1e-05
          %v895 = vadd.f32 %v863, 1e-05
          %v896 = vadd.f32 %v864, 1e-05
          %v897 = vadd.f32 %v865, 1e-05
          %v898 = vadd.f32 %v866, 1e-05
          %v899 = vadd.f32 %v867, 1e-05
          %v900 = vadd.f32 %v868, 1e-05
          %v901 = vadd.f32 %v869, 1e-05
          %v902 = vadd.f32 %v870, 1e-05
          %v903 = vadd.f32 %v871, 1e-05
          %v904 = vadd.f32 %v872, 1e-05
          %v905 = vadd.f32 %v873, 1e-05
          %v906 = vadd.f32 %v874, 1e-05
          %v907 = vadd.f32 %v875, 1e-05
          %v908 = vadd.f32 %v876, 1e-05
          %v909 = vadd.f32 %v877, 1e-05
          %v910 = vadd.f32 %v878, 1e-05
          %v911 = vadd.f32 %v879, 1e-05
          %v912 = vadd.f32 %v880, 1e-05
          %v913 = vadd.f32 %v881, 1e-05
          %v914 = vadd.f32 %v882, 1e-05
          %v915 = vadd.f32 %v883, 1e-05
          %v916 = vadd.f32 %v884, 1e-05
          %v917 = vadd.f32 %v885, 1e-05
          %v918 = vadd.f32 %v886, 1e-05
          %v919 = vrsqrt.pop %v887
          %v920 = vrsqrt.pop %v888
          %v921 = vrsqrt.pop %v889
          %v922 = vrsqrt.pop %v890
          %v923 = vrsqrt.pop %v891
          %v924 = vrsqrt.pop %v892
          %v925 = vrsqrt.pop %v893
          %v926 = vrsqrt.pop %v894
          %v927 = vrsqrt.pop %v895
          %v928 = vrsqrt.pop %v896
          %v929 = vrsqrt.pop %v897
          %v930 = vrsqrt.pop %v898
          %v931 = vrsqrt.pop %v899
          %v932 = vrsqrt.pop %v900
          %v933 = vrsqrt.pop %v901
          %v934 = vrsqrt.pop %v902
          %v935 = vrsqrt.pop %v903
          %v936 = vrsqrt.pop %v904
          %v937 = vrsqrt.pop %v905
          %v938 = vrsqrt.pop %v906
          %v939 = vrsqrt.pop %v907
          %v940 = vrsqrt.pop %v908
          %v941 = vrsqrt.pop %v909
          %v942 = vrsqrt.pop %v910
          %v943 = vrsqrt.pop %v911
          %v944 = vrsqrt.pop %v912
          %v945 = vrsqrt.pop %v913
          %v946 = vrsqrt.pop %v914
          %v947 = vrsqrt.pop %v915
          %v948 = vrsqrt.pop %v916
          %v949 = vrsqrt.pop %v917
          %v950 = vrsqrt.pop %v918
          %v951 = vmul.f32 %v727, %v919
          %v952 = vmul.f32 %v728, %v920
          %v953 = vmul.f32 %v729, %v921
          %v954 = vmul.f32 %v730, %v922
          %v955 = vmul.f32 %v731, %v923
          %v956 = vmul.f32 %v732, %v924
          %v957 = vmul.f32 %v733, %v925
          %v958 = vmul.f32 %v734, %v926
          %v959 = vmul.f32 %v735, %v927
          %v960 = vmul.f32 %v736, %v928
          %v961 = vmul.f32 %v737, %v929
          %v962 = vmul.f32 %v738, %v930
          %v963 = vmul.f32 %v739, %v931
          %v964 = vmul.f32 %v740, %v932
          %v965 = vmul.f32 %v741, %v933
          %v966 = vmul.f32 %v742, %v934
          %v967 = vmul.f32 %v743, %v935
          %v968 = vmul.f32 %v744, %v936
          %v969 = vmul.f32 %v745, %v937
          %v970 = vmul.f32 %v746, %v938
          %v971 = vmul.f32 %v747, %v939
          %v972 = vmul.f32 %v748, %v940
          %v973 = vmul.f32 %v749, %v941
          %v974 = vmul.f32 %v750, %v942
          %v975 = vmul.f32 %v751, %v943
          %v976 = vmul.f32 %v752, %v944
          %v977 = vmul.f32 %v753, %v945
          %v978 = vmul.f32 %v754, %v946
          %v979 = vmul.f32 %v755, %v947
          %v980 = vmul.f32 %v756, %v948
          %v981 = vmul.f32 %v757, %v949
          %v982 = vmul.f32 %v758, %v950
          %v984 = vlaneseq
          %v985 = vshrl.u32 %v984, 7
          %v986 = vsub.s32 0, %v985
          %v987 = vrot.slane %v628, %v986
          %v989 = vmul.f32 %v951, %v987
          %v990 = vmul.f32 %v952, %v987
          %v991 = vmul.f32 %v953, %v987
          %v992 = vmul.f32 %v954, %v987
          %v993 = vmul.f32 %v955, %v987
          %v994 = vmul.f32 %v956, %v987
          %v995 = vmul.f32 %v957, %v987
          %v996 = vmul.f32 %v958, %v987
          %v997 = vmul.f32 %v959, %v987
          %v998 = vmul.f32 %v960, %v987
          %v999 = vmul.f32 %v961, %v987
          %v1000 = vmul.f32 %v962, %v987
          %v1001 = vmul.f32 %v963, %v987
          %v1002 = vmul.f32 %v964, %v987
          %v1003 = vmul.f32 %v965, %v987
          %v1004 = vmul.f32 %v966, %v987
          %v1005 = vmul.f32 %v967, %v987
          %v1006 = vmul.f32 %v968, %v987
          %v1007 = vmul.f32 %v969, %v987
          %v1008 = vmul.f32 %v970, %v987
          %v1009 = vmul.f32 %v971, %v987
          %v1010 = vmul.f32 %v972, %v987
          %v1011 = vmul.f32 %v973, %v987
          %v1012 = vmul.f32 %v974, %v987
          %v1013 = vmul.f32 %v975, %v987
          %v1014 = vmul.f32 %v976, %v987
          %v1015 = vmul.f32 %v977, %v987
          %v1016 = vmul.f32 %v978, %v987
          %v1017 = vmul.f32 %v979, %v987
          %v1018 = vmul.f32 %v980, %v987
          %v1019 = vmul.f32 %v981, %v987
          %v1020 = vmul.f32 %v982, %v987
          %v1022 = vlaneseq
          %v1023 = vshrl.u32 %v1022, 7
          %v1024 = vsub.s32 0, %v1023
          %v1025 = vrot.slane %v629, %v1024
          %v1027 = vadd.f32 %v989, %v1025
          %v1028 = vadd.f32 %v990, %v1025
          %v1029 = vadd.f32 %v991, %v1025
          %v1030 = vadd.f32 %v992, %v1025
          %v1031 = vadd.f32 %v993, %v1025
          %v1032 = vadd.f32 %v994, %v1025
          %v1033 = vadd.f32 %v995, %v1025
          %v1034 = vadd.f32 %v996, %v1025
          %v1035 = vadd.f32 %v997, %v1025
          %v1036 = vadd.f32 %v998, %v1025
          %v1037 = vadd.f32 %v999, %v1025
          %v1038 = vadd.f32 %v1000, %v1025
          %v1039 = vadd.f32 %v1001, %v1025
          %v1040 = vadd.f32 %v1002, %v1025
          %v1041 = vadd.f32 %v1003, %v1025
          %v1042 = vadd.f32 %v1004, %v1025
          %v1043 = vadd.f32 %v1005, %v1025
          %v1044 = vadd.f32 %v1006, %v1025
          %v1045 = vadd.f32 %v1007, %v1025
          %v1046 = vadd.f32 %v1008, %v1025
          %v1047 = vadd.f32 %v1009, %v1025
          %v1048 = vadd.f32 %v1010, %v1025
          %v1049 = vadd.f32 %v1011, %v1025
          %v1050 = vadd.f32 %v1012, %v1025
          %v1051 = vadd.f32 %v1013, %v1025
          %v1052 = vadd.f32 %v1014, %v1025
          %v1053 = vadd.f32 %v1015, %v1025
          %v1054 = vadd.f32 %v1016, %v1025
          %v1055 = vadd.f32 %v1017, %v1025
          %v1056 = vadd.f32 %v1018, %v1025
          %v1057 = vadd.f32 %v1019, %v1025
          %v1058 = vadd.f32 %v1020, %v1025
          %v1059 = vld [vmem:[%s5] sm:$0xff]
          %v1060 = vld [vmem:[%s5 + $0x8] sm:$0xff]
          %v1061 = vld [vmem:[%s5 + $0x10] sm:$0xff]
          %v1062 = vld [vmem:[%s5 + $0x18] sm:$0xff]
          %v1063 = vld [vmem:[%s5 + $0x20] sm:$0xff]
          %v1064 = vld [vmem:[%s5 + $0x28] sm:$0xff]
          %v1065 = vld [vmem:[%s5 + $0x30] sm:$0xff]
          %v1066 = vld [vmem:[%s5 + $0x38] sm:$0xff]
          %v1067 = vld [vmem:[%s5 + $0x40] sm:$0xff]
          %v1068 = vld [vmem:[%s5 + $0x48] sm:$0xff]
          %v1069 = vld [vmem:[%s5 + $0x50] sm:$0xff]
          %v1070 = vld [vmem:[%s5 + $0x58] sm:$0xff]
          %v1071 = vld [vmem:[%s5 + $0x60] sm:$0xff]
          %v1072 = vld [vmem:[%s5 + $0x68] sm:$0xff]
          %v1073 = vld [vmem:[%s5 + $0x70] sm:$0xff]
          %v1074 = vld [vmem:[%s5 + $0x78] sm:$0xff]
          %v1075 = vld [vmem:[%s6] sm:$0x1]
          %v1077 = vlaneseq
          %v1078 = vshrl.u32 %v1077, 7
          %v1079 = vsub.s32 0, %v1078
          %v1080 = vrot.slane %v1075, %v1079
          %1082 = vmatprep.subr.mxu0 0.0
          %1083 = vmatpush1.msra.mxu0 %v1059
          %1084 = vmatprep.subr.mxu0 0.0
          %1085 = vmatpush1.msra.mxu0 %v1060
          %1086 = vmatprep.subr.mxu0 0.0
          %1087 = vmatpush1.msra.mxu0 %v1061
          %1088 = vmatprep.subr.mxu0 0.0
          %1089 = vmatpush1.msra.mxu0 %v1062
          %1090 = vmatprep.subr.mxu0 0.0
          %1091 = vmatpush1.msra.mxu0 %v1063
          %1092 = vmatprep.subr.mxu0 0.0
          %1093 = vmatpush1.msra.mxu0 %v1064
          %1094 = vmatprep.subr.mxu0 0.0
          %1095 = vmatpush1.msra.mxu0 %v1065
          %1096 = vmatprep.subr.mxu0 0.0
          %1097 = vmatpush1.msra.mxu0 %v1066
          %1098 = vmatprep.subr.mxu0 0.0
          %1099 = vmatpush1.msra.mxu0 %v1067
          %1100 = vmatprep.subr.mxu0 0.0
          %1101 = vmatpush1.msra.mxu0 %v1068
          %1102 = vmatprep.subr.mxu0 0.0
          %1103 = vmatpush1.msra.mxu0 %v1069
          %1104 = vmatprep.subr.mxu0 0.0
          %1105 = vmatpush1.msra.mxu0 %v1070
          %1106 = vmatprep.subr.mxu0 0.0
          %1107 = vmatpush1.msra.mxu0 %v1071
          %1108 = vmatprep.subr.mxu0 0.0
          %1109 = vmatpush1.msra.mxu0 %v1072
          %1110 = vmatprep.subr.mxu0 0.0
          %1111 = vmatpush1.msra.mxu0 %v1073
          %1112 = vmatprep.subr.mxu0 0.0
          %1113 = vmatpush1.msra.mxu0 %v1074
          %1114 = vmatprep.subr.mxu0 0.0
          %1115 = vmatpush1.msra.mxu0 0.0
          %1116 = vmatprep.subr.mxu0 0.0
          %1117 = vmatpush1.msra.mxu0 0.0
          %1118 = vmatprep.subr.mxu0 0.0
          %1119 = vmatpush1.msra.mxu0 0.0
          %1120 = vmatprep.subr.mxu0 0.0
          %1121 = vmatpush1.msra.mxu0 0.0
          %1122 = vmatprep.subr.mxu0 0.0
          %1123 = vmatpush1.msra.mxu0 0.0
          %1124 = vmatprep.subr.mxu0 0.0
          %1125 = vmatpush1.msra.mxu0 0.0
          %1126 = vmatprep.subr.mxu0 0.0
          %1127 = vmatpush1.msra.mxu0 0.0
          %1128 = vmatprep.subr.mxu0 0.0
          %1129 = vmatpush1.msra.mxu0 0.0
          %1130 = vmatprep.subr.mxu0 0.0
          %1131 = vmatpush1.msra.mxu0 0.0
          %1132 = vmatprep.subr.mxu0 0.0
          %1133 = vmatpush1.msra.mxu0 0.0
          %1134 = vmatprep.subr.mxu0 0.0
          %1135 = vmatpush1.msra.mxu0 0.0
          %1136 = vmatprep.subr.mxu0 0.0
          %1137 = vmatpush1.msra.mxu0 0.0
          %1138 = vmatprep.subr.mxu0 0.0
          %1139 = vmatpush1.msra.mxu0 0.0
          %1140 = vmatprep.subr.mxu0 0.0
          %1141 = vmatpush1.msra.mxu0 0.0
          %1142 = vmatprep.subr.mxu0 0.0
          %1143 = vmatpush1.msra.mxu0 0.0
          %1144 = vmatprep.subr.mxu0 0.0
          %1145 = vmatpush1.msra.mxu0 0.0
          %1146 = vmatprep.mubr.f32.mxu0 0.0
          %1147 = vmatmul.mubr.f32.gmra.mrb[0].mxu0 %v1027
          %v1148 = vpop.f32.mrb[0].mxu0
          %v1149 = vadd.f32 %v1080, %v1148
          %v1150 = vpop.f32.mrb[0].mxu0
          %1151 = vmatprep.mubr.f32.mxu0 0.0
          %1152 = vmatmul.mubr.f32.gmra.mrb[0].mxu0 %v1028
          %v1153 = vpop.f32.mrb[0].mxu0
          %v1154 = vadd.f32 %v1080, %v1153
          %v1155 = vpop.f32.mrb[0].mxu0
          %1156 = vmatprep.mubr.f32.mxu0 0.0
          %1157 = vmatmul.mubr.f32.gmra.mrb[0].mxu0 %v1029
          %v1158 = vpop.f32.mrb[0].mxu0
          %v1159 = vadd.f32 %v1080, %v1158
          %v1160 = vpop.f32.mrb[0].mxu0
          %1161 = vmatprep.mubr.f32.mxu0 0.0
          %1162 = vmatmul.mubr.f32.gmra.mrb[0].mxu0 %v1030
          %v1163 = vpop.f32.mrb[0].mxu0
          %v1164 = vadd.f32 %v1080, %v1163
          %v1165 = vpop.f32.mrb[0].mxu0
          %1166 = vmatprep.mubr.f32.mxu0 0.0
          %1167 = vmatmul.mubr.f32.gmra.mrb[0].mxu0 %v1031
          %v1168 = vpop.f32.mrb[0].mxu0
          %v1169 = vadd.f32 %v1080, %v1168
          %v1170 = vpop.f32.mrb[0].mxu0
          %1171 = vmatprep.mubr.f32.mxu0 0.0
          %1172 = vmatmul.mubr.f32.gmra.mrb[0].mxu0 %v1032
          %v1173 = vpop.f32.mrb[0].mxu0
          %v1174 = vadd.f32 %v1080, %v1173
          %v1175 = vpop.f32.mrb[0].mxu0
          %1176 = vmatprep.mubr.f32.mxu0 0.0
          %1177 = vmatmul.mubr.f32.gmra.mrb[0].mxu0 %v1033
          %v1178 = vpop.f32.mrb[0].mxu0
          %v1179 = vadd.f32 %v1080, %v1178
          %v1180 = vpop.f32.mrb[0].mxu0
          %1181 = vmatprep.mubr.f32.mxu0 0.0
          %1182 = vmatmul.mubr.f32.gmra.mrb[0].mxu0 %v1034
          %v1183 = vpop.f32.mrb[0].mxu0
          %v1184 = vadd.f32 %v1080, %v1183
          %v1185 = vpop.f32.mrb[0].mxu0
          %1186 = vmatprep.mubr.f32.mxu0 0.0
          %1187 = vmatmul.mubr.f32.gmra.mrb[0].mxu0 %v1035
          %v1188 = vpop.f32.mrb[0].mxu0
          %v1189 = vadd.f32 %v1080, %v1188
          %v1190 = vpop.f32.mrb[0].mxu0
          %1191 = vmatprep.mubr.f32.mxu0 0.0
          %1192 = vmatmul.mubr.f32.gmra.mrb[0].mxu0 %v1036
          %v1193 = vpop.f32.mrb[0].mxu0
          %v1194 = vadd.f32 %v1080, %v1193
          %v1195 = vpop.f32.mrb[0].mxu0
          %1196 = vmatprep.mubr.f32.mxu0 0.0
          %1197 = vmatmul.mubr.f32.gmra.mrb[0].mxu0 %v1037
          %v1198 = vpop.f32.mrb[0].mxu0
          %v1199 = vadd.f32 %v1080, %v1198
          %v1200 = vpop.f32.mrb[0].mxu0
          %1201 = vmatprep.mubr.f32.mxu0 0.0
          %1202 = vmatmul.mubr.f32.gmra.mrb[0].mxu0 %v1038
          %v1203 = vpop.f32.mrb[0].mxu0
          %v1204 = vadd.f32 %v1080, %v1203
          %v1205 = vpop.f32.mrb[0].mxu0
          %1206 = vmatprep.mubr.f32.mxu0 0.0
          %1207 = vmatmul.mubr.f32.gmra.mrb[0].mxu0 %v1039
          %v1208 = vpop.f32.mrb[0].mxu0
          %v1209 = vadd.f32 %v1080, %v1208
          %v1210 = vpop.f32.mrb[0].mxu0
          %1211 = vmatprep.mubr.f32.mxu0 0.0
          %1212 = vmatmul.mubr.f32.gmra.mrb[0].mxu0 %v1040
          %v1213 = vpop.f32.mrb[0].mxu0
          %v1214 = vadd.f32 %v1080, %v1213
          %v1215 = vpop.f32.mrb[0].mxu0
          %1216 = vmatprep.mubr.f32.mxu0 0.0
          %1217 = vmatmul.mubr.f32.gmra.mrb[0].mxu0 %v1041
          %v1218 = vpop.f32.mrb[0].mxu0
          %v1219 = vadd.f32 %v1080, %v1218
          %v1220 = vpop.f32.mrb[0].mxu0
          %1221 = vmatprep.mubr.f32.mxu0 0.0
          %1222 = vmatmul.mubr.f32.gmra.mrb[0].mxu0 %v1042
          %v1223 = vpop.f32.mrb[0].mxu0
          %v1224 = vadd.f32 %v1080, %v1223
          %v1225 = vpop.f32.mrb[0].mxu0
          %1226 = vmatprep.mubr.f32.mxu0 0.0
          %1227 = vmatmul.mubr.f32.gmra.mrb[0].mxu0 %v1043
          %v1228 = vpop.f32.mrb[0].mxu0
          %v1229 = vadd.f32 %v1080, %v1228
          %v1230 = vpop.f32.mrb[0].mxu0
          %1231 = vmatprep.mubr.f32.mxu0 0.0
          %1232 = vmatmul.mubr.f32.gmra.mrb[0].mxu0 %v1044
          %v1233 = vpop.f32.mrb[0].mxu0
          %v1234 = vadd.f32 %v1080, %v1233
          %v1235 = vpop.f32.mrb[0].mxu0
          %1236 = vmatprep.mubr.f32.mxu0 0.0
          %1237 = vmatmul.mubr.f32.gmra.mrb[0].mxu0 %v1045
          %v1238 = vpop.f32.mrb[0].mxu0
          %v1239 = vadd.f32 %v1080, %v1238
          %v1240 = vpop.f32.mrb[0].mxu0
          %1241 = vmatprep.mubr.f32.mxu0 0.0
          %1242 = vmatmul.mubr.f32.gmra.mrb[0].mxu0 %v1046
          %v1243 = vpop.f32.mrb[0].mxu0
          %v1244 = vadd.f32 %v1080, %v1243
          %v1245 = vpop.f32.mrb[0].mxu0
          %1246 = vmatprep.mubr.f32.mxu0 0.0
          %1247 = vmatmul.mubr.f32.gmra.mrb[0].mxu0 %v1047
          %v1248 = vpop.f32.mrb[0].mxu0
          %v1249 = vadd.f32 %v1080, %v1248
          %v1250 = vpop.f32.mrb[0].mxu0
          %1251 = vmatprep.mubr.f32.mxu0 0.0
          %1252 = vmatmul.mubr.f32.gmra.mrb[0].mxu0 %v1048
          %v1253 = vpop.f32.mrb[0].mxu0
          %v1254 = vadd.f32 %v1080, %v1253
          %v1255 = vpop.f32.mrb[0].mxu0
          %1256 = vmatprep.mubr.f32.mxu0 0.0
          %1257 = vmatmul.mubr.f32.gmra.mrb[0].mxu0 %v1049
          %v1258 = vpop.f32.mrb[0].mxu0
          %v1259 = vadd.f32 %v1080, %v1258
          %v1260 = vpop.f32.mrb[0].mxu0
          %1261 = vmatprep.mubr.f32.mxu0 0.0
          %1262 = vmatmul.mubr.f32.gmra.mrb[0].mxu0 %v1050
          %v1263 = vpop.f32.mrb[0].mxu0
          %v1264 = vadd.f32 %v1080, %v1263
          %v1265 = vpop.f32.mrb[0].mxu0
          %1266 = vmatprep.mubr.f32.mxu0 0.0
          %1267 = vmatmul.mubr.f32.gmra.mrb[0].mxu0 %v1051
          %v1268 = vpop.f32.mrb[0].mxu0
          %v1269 = vadd.f32 %v1080, %v1268
          %v1270 = vpop.f32.mrb[0].mxu0
          %1271 = vmatprep.mubr.f32.mxu0 0.0
          %1272 = vmatmul.mubr.f32.gmra.mrb[0].mxu0 %v1052
          %v1273 = vpop.f32.mrb[0].mxu0
          %v1274 = vadd.f32 %v1080, %v1273
          %v1275 = vpop.f32.mrb[0].mxu0
          %1276 = vmatprep.mubr.f32.mxu0 0.0
          %1277 = vmatmul.mubr.f32.gmra.mrb[0].mxu0 %v1053
          %v1278 = vpop.f32.mrb[0].mxu0
          %v1279 = vadd.f32 %v1080, %v1278
          %v1280 = vpop.f32.mrb[0].mxu0
          %1281 = vmatprep.mubr.f32.mxu0 0.0
          %1282 = vmatmul.mubr.f32.gmra.mrb[0].mxu0 %v1054
          %v1283 = vpop.f32.mrb[0].mxu0
          %v1284 = vadd.f32 %v1080, %v1283
          %v1285 = vpop.f32.mrb[0].mxu0
          %1286 = vmatprep.mubr.f32.mxu0 0.0
          %1287 = vmatmul.mubr.f32.gmra.mrb[0].mxu0 %v1055
          %v1288 = vpop.f32.mrb[0].mxu0
          %v1289 = vadd.f32 %v1080, %v1288
          %v1290 = vpop.f32.mrb[0].mxu0
          %1291 = vmatprep.mubr.f32.mxu0 0.0
          %1292 = vmatmul.mubr.f32.gmra.mrb[0].mxu0 %v1056
          %v1293 = vpop.f32.mrb[0].mxu0
          %v1294 = vadd.f32 %v1080, %v1293
          %v1295 = vpop.f32.mrb[0].mxu0
          %1296 = vmatprep.mubr.f32.mxu0 0.0
          %1297 = vmatmul.mubr.f32.gmra.mrb[0].mxu0 %v1057
          %v1298 = vpop.f32.mrb[0].mxu0
          %v1299 = vadd.f32 %v1080, %v1298
          %v1300 = vpop.f32.mrb[0].mxu0
          %1301 = vmatprep.mubr.f32.mxu0 0.0
          %1302 = vmatmul.mubr.f32.gmra.mrb[0].mxu0 %v1058
          %v1303 = vpop.f32.mrb[0].mxu0
          %v1304 = vadd.f32 %v1080, %v1303
          %v1305 = vpop.f32.mrb[0].mxu0
          %1306 = vdwg.mxu0
          %1307 = vxpose.xlu0.b32.start [1/16] %v1149, 128
          %1308 = vxpose.xlu0.b32.cont [2/16] %v1154, 128
          %1309 = vxpose.xlu0.b32.cont [3/16] %v1159, 128
          %1310 = vxpose.xlu0.b32.cont [4/16] %v1164, 128
          %1311 = vxpose.xlu0.b32.cont [5/16] %v1169, 128
          %1312 = vxpose.xlu0.b32.cont [6/16] %v1174, 128
          %1313 = vxpose.xlu0.b32.cont [7/16] %v1179, 128
          %1314 = vxpose.xlu0.b32.cont [8/16] %v1184, 128
          %1315 = vxpose.xlu0.b32.cont [9/16] %v1189, 128
          %1316 = vxpose.xlu0.b32.cont [10/16] %v1194, 128
          %1317 = vxpose.xlu0.b32.cont [11/16] %v1199, 128
          %1318 = vxpose.xlu0.b32.cont [12/16] %v1204, 128
          %1319 = vxpose.xlu0.b32.cont [13/16] %v1209, 128
          %1320 = vxpose.xlu0.b32.cont [14/16] %v1214, 128
          %1321 = vxpose.xlu0.b32.cont [15/16] %v1219, 128
          %1322 = vxpose.xlu0.b32.end [16/16] %v1224, 128
          %v1323 = vpop.trf.xlu0
          %v1324 = vpop.trf.xlu0
          %v1325 = vpop.trf.xlu0
          %v1326 = vpop.trf.xlu0
          %v1327 = vpop.trf.xlu0
          %v1328 = vpop.trf.xlu0
          %v1329 = vpop.trf.xlu0
          %v1330 = vpop.trf.xlu0
          %v1331 = vpop.trf.xlu0
          %v1332 = vpop.trf.xlu0
          %v1333 = vpop.trf.xlu0
          %v1334 = vpop.trf.xlu0
          %v1335 = vpop.trf.xlu0
          %v1336 = vpop.trf.xlu0
          %v1337 = vpop.trf.xlu0
          %v1338 = vpop.trf.xlu0
          %1339 = vxpose.xlu0.b32.start [1/16] %v1229, 128
          %1340 = vxpose.xlu0.b32.cont [2/16] %v1234, 128
          %1341 = vxpose.xlu0.b32.cont [3/16] %v1239, 128
          %1342 = vxpose.xlu0.b32.cont [4/16] %v1244, 128
          %1343 = vxpose.xlu0.b32.cont [5/16] %v1249, 128
          %1344 = vxpose.xlu0.b32.cont [6/16] %v1254, 128
          %1345 = vxpose.xlu0.b32.cont [7/16] %v1259, 128
          %1346 = vxpose.xlu0.b32.cont [8/16] %v1264, 128
          %1347 = vxpose.xlu0.b32.cont [9/16] %v1269, 128
          %1348 = vxpose.xlu0.b32.cont [10/16] %v1274, 128
          %1349 = vxpose.xlu0.b32.cont [11/16] %v1279, 128
          %1350 = vxpose.xlu0.b32.cont [12/16] %v1284, 128
          %1351 = vxpose.xlu0.b32.cont [13/16] %v1289, 128
          %1352 = vxpose.xlu0.b32.cont [14/16] %v1294, 128
          %1353 = vxpose.xlu0.b32.cont [15/16] %v1299, 128
          %1354 = vxpose.xlu0.b32.end [16/16] %v1304, 128
          %v1355 = vpop.trf.xlu0
          %v1356 = vpop.trf.xlu0
          %v1357 = vpop.trf.xlu0
          %v1358 = vpop.trf.xlu0
          %v1359 = vpop.trf.xlu0
          %v1360 = vpop.trf.xlu0
          %v1361 = vpop.trf.xlu0
          %v1362 = vpop.trf.xlu0
          %v1363 = vpop.trf.xlu0
          %v1364 = vpop.trf.xlu0
          %v1365 = vpop.trf.xlu0
          %v1366 = vpop.trf.xlu0
          %v1367 = vpop.trf.xlu0
          %v1368 = vpop.trf.xlu0
          %v1369 = vpop.trf.xlu0
          %v1370 = vpop.trf.xlu0
          %v1371 = vld [vmem:[%s7] sm:$0xff]
          %v1372 = vld [vmem:[%s7 + $0x8] sm:$0xff]
          %v1373 = vld [vmem:[%s7 + $0x10] sm:$0xff]
          %v1374 = vld [vmem:[%s7 + $0x18] sm:$0xff]
          %v1375 = vld [vmem:[%s7 + $0x20] sm:$0xff]
          %v1376 = vld [vmem:[%s7 + $0x28] sm:$0xff]
          %v1377 = vld [vmem:[%s7 + $0x30] sm:$0xff]
          %v1378 = vld [vmem:[%s7 + $0x38] sm:$0xff]
          %v1379 = vld [vmem:[%s7 + $0x40] sm:$0xff]
          %v1380 = vld [vmem:[%s7 + $0x48] sm:$0xff]
          %v1381 = vld [vmem:[%s7 + $0x50] sm:$0xff]
          %v1382 = vld [vmem:[%s7 + $0x58] sm:$0xff]
          %v1383 = vld [vmem:[%s7 + $0x60] sm:$0xff]
          %v1384 = vld [vmem:[%s7 + $0x68] sm:$0xff]
          %v1385 = vld [vmem:[%s7 + $0x70] sm:$0xff]
          %v1386 = vld [vmem:[%s7 + $0x78] sm:$0xff]
          %v1387 = vld [vmem:[%s8] sm:$0x1]
          %v1389 = vlaneseq
          %v1390 = vshrl.u32 %v1389, 7
          %v1391 = vsub.s32 0, %v1390
          %v1392 = vrot.slane %v1387, %v1391
          %1394 = vmatprep.subr.mxu0 0.0
          %1395 = vmatpush1.msra.mxu0 %v1371
          %1396 = vmatprep.subr.mxu0 0.0
          %1397 = vmatpush1.msra.mxu0 %v1372
          %1398 = vmatprep.subr.mxu0 0.0
          %1399 = vmatpush1.msra.mxu0 %v1373
          %1400 = vmatprep.subr.mxu0 0.0
          %1401 = vmatpush1.msra.mxu0 %v1374
          %1402 = vmatprep.subr.mxu0 0.0
          %1403 = vmatpush1.msra.mxu0 %v1375
          %1404 = vmatprep.subr.mxu0 0.0
          %1405 = vmatpush1.msra.mxu0 %v1376
          %1406 = vmatprep.subr.mxu0 0.0
          %1407 = vmatpush1.msra.mxu0 %v1377
          %1408 = vmatprep.subr.mxu0 0.0
          %1409 = vmatpush1.msra.mxu0 %v1378
          %1410 = vmatprep.subr.mxu0 0.0
          %1411 = vmatpush1.msra.mxu0 %v1379
          %1412 = vmatprep.subr.mxu0 0.0
          %1413 = vmatpush1.msra.mxu0 %v1380
          %1414 = vmatprep.subr.mxu0 0.0
          %1415 = vmatpush1.msra.mxu0 %v1381
          %1416 = vmatprep.subr.mxu0 0.0
          %1417 = vmatpush1.msra.mxu0 %v1382
          %1418 = vmatprep.subr.mxu0 0.0
          %1419 = vmatpush1.msra.mxu0 %v1383
          %1420 = vmatprep.subr.mxu0 0.0
          %1421 = vmatpush1.msra.mxu0 %v1384
          %1422 = vmatprep.subr.mxu0 0.0
          %1423 = vmatpush1.msra.mxu0 %v1385
          %1424 = vmatprep.subr.mxu0 0.0
          %1425 = vmatpush1.msra.mxu0 %v1386
          %1426 = vmatprep.subr.mxu0 0.0
          %1427 = vmatpush1.msra.mxu0 0.0
          %1428 = vmatprep.subr.mxu0 0.0
          %1429 = vmatpush1.msra.mxu0 0.0
          %1430 = vmatprep.subr.mxu0 0.0
          %1431 = vmatpush1.msra.mxu0 0.0
          %1432 = vmatprep.subr.mxu0 0.0
          %1433 = vmatpush1.msra.mxu0 0.0
          %1434 = vmatprep.subr.mxu0 0.0
          %1435 = vmatpush1.msra.mxu0 0.0
          %1436 = vmatprep.subr.mxu0 0.0
          %1437 = vmatpush1.msra.mxu0 0.0
          %1438 = vmatprep.subr.mxu0 0.0
          %1439 = vmatpush1.msra.mxu0 0.0
          %1440 = vmatprep.subr.mxu0 0.0
          %1441 = vmatpush1.msra.mxu0 0.0
          %1442 = vmatprep.subr.mxu0 0.0
          %1443 = vmatpush1.msra.mxu0 0.0
          %1444 = vmatprep.subr.mxu0 0.0
          %1445 = vmatpush1.msra.mxu0 0.0
          %1446 = vmatprep.subr.mxu0 0.0
          %1447 = vmatpush1.msra.mxu0 0.0
          %1448 = vmatprep.subr.mxu0 0.0
          %1449 = vmatpush1.msra.mxu0 0.0
          %1450 = vmatprep.subr.mxu0 0.0
          %1451 = vmatpush1.msra.mxu0 0.0
          %1452 = vmatprep.subr.mxu0 0.0
          %1453 = vmatpush1.msra.mxu0 0.0
          %1454 = vmatprep.subr.mxu0 0.0
          %1455 = vmatpush1.msra.mxu0 0.0
          %1456 = vmatprep.subr.mxu0 0.0
          %1457 = vmatpush1.msra.mxu0 0.0
          %1458 = vmatprep.mubr.f32.mxu0 0.0
          %1459 = vmatmul.mubr.f32.gmra.mrb[0].mxu0 %v1027
          %v1460 = vpop.f32.mrb[0].mxu0
          %v1461 = vadd.f32 %v1392, %v1460
          %v1462 = vpop.f32.mrb[0].mxu0
          %1463 = vmatprep.mubr.f32.mxu0 0.0
          %1464 = vmatmul.mubr.f32.gmra.mrb[0].mxu0 %v1028
          %v1465 = vpop.f32.mrb[0].mxu0
          %v1466 = vadd.f32 %v1392, %v1465
          %v1467 = vpop.f32.mrb[0].mxu0
          %1468 = vmatprep.mubr.f32.mxu0 0.0
          %1469 = vmatmul.mubr.f32.gmra.mrb[0].mxu0 %v1029
          %v1470 = vpop.f32.mrb[0].mxu0
          %v1471 = vadd.f32 %v1392, %v1470
          %v1472 = vpop.f32.mrb[0].mxu0
          %1473 = vmatprep.mubr.f32.mxu0 0.0
          %1474 = vmatmul.mubr.f32.gmra.mrb[0].mxu0 %v1030
          %v1475 = vpop.f32.mrb[0].mxu0
          %v1476 = vadd.f32 %v1392, %v1475
          %v1477 = vpop.f32.mrb[0].mxu0
          %1478 = vmatprep.mubr.f32.mxu0 0.0
          %1479 = vmatmul.mubr.f32.gmra.mrb[0].mxu0 %v1031
          %v1480 = vpop.f32.mrb[0].mxu0
          %v1481 = vadd.f32 %v1392, %v1480
          %v1482 = vpop.f32.mrb[0].mxu0
          %1483 = vmatprep.mubr.f32.mxu0 0.0
          %1484 = vmatmul.mubr.f32.gmra.mrb[0].mxu0 %v1032
          %v1485 = vpop.f32.mrb[0].mxu0
          %v1486 = vadd.f32 %v1392, %v1485
          %v1487 = vpop.f32.mrb[0].mxu0
          %1488 = vmatprep.mubr.f32.mxu0 0.0
          %1489 = vmatmul.mubr.f32.gmra.mrb[0].mxu0 %v1033
          %v1490 = vpop.f32.mrb[0].mxu0
          %v1491 = vadd.f32 %v1392, %v1490
          %v1492 = vpop.f32.mrb[0].mxu0
          %1493 = vmatprep.mubr.f32.mxu0 0.0
          %1494 = vmatmul.mubr.f32.gmra.mrb[0].mxu0 %v1034
          %v1495 = vpop.f32.mrb[0].mxu0
          %v1496 = vadd.f32 %v1392, %v1495
          %v1497 = vpop.f32.mrb[0].mxu0
          %1498 = vmatprep.mubr.f32.mxu0 0.0
          %1499 = vmatmul.mubr.f32.gmra.mrb[0].mxu0 %v1035
          %v1500 = vpop.f32.mrb[0].mxu0
          %v1501 = vadd.f32 %v1392, %v1500
          %v1502 = vpop.f32.mrb[0].mxu0
          %1503 = vmatprep.mubr.f32.mxu0 0.0
          %1504 = vmatmul.mubr.f32.gmra.mrb[0].mxu0 %v1036
          %v1505 = vpop.f32.mrb[0].mxu0
          %v1506 = vadd.f32 %v1392, %v1505
          %v1507 = vpop.f32.mrb[0].mxu0
          %1508 = vmatprep.mubr.f32.mxu0 0.0
          %1509 = vmatmul.mubr.f32.gmra.mrb[0].mxu0 %v1037
          %v1510 = vpop.f32.mrb[0].mxu0
          %v1511 = vadd.f32 %v1392, %v1510
          %v1512 = vpop.f32.mrb[0].mxu0
          %1513 = vmatprep.mubr.f32.mxu0 0.0
          %1514 = vmatmul.mubr.f32.gmra.mrb[0].mxu0 %v1038
          %v1515 = vpop.f32.mrb[0].mxu0
          %v1516 = vadd.f32 %v1392, %v1515
          %v1517 = vpop.f32.mrb[0].mxu0
          %1518 = vmatprep.mubr.f32.mxu0 0.0
          %1519 = vmatmul.mubr.f32.gmra.mrb[0].mxu0 %v1039
          %v1520 = vpop.f32.mrb[0].mxu0
          %v1521 = vadd.f32 %v1392, %v1520
          %v1522 = vpop.f32.mrb[0].mxu0
          %1523 = vmatprep.mubr.f32.mxu0 0.0
          %1524 = vmatmul.mubr.f32.gmra.mrb[0].mxu0 %v1040
          %v1525 = vpop.f32.mrb[0].mxu0
          %v1526 = vadd.f32 %v1392, %v1525
          %v1527 = vpop.f32.mrb[0].mxu0
          %1528 = vmatprep.mubr.f32.mxu0 0.0
          %1529 = vmatmul.mubr.f32.gmra.mrb[0].mxu0 %v1041
          %v1530 = vpop.f32.mrb[0].mxu0
          %v1531 = vadd.f32 %v1392, %v1530
          %v1532 = vpop.f32.mrb[0].mxu0
          %1533 = vmatprep.mubr.f32.mxu0 0.0
          %1534 = vmatmul.mubr.f32.gmra.mrb[0].mxu0 %v1042
          %v1535 = vpop.f32.mrb[0].mxu0
          %v1536 = vadd.f32 %v1392, %v1535
          %v1537 = vpop.f32.mrb[0].mxu0
          %1538 = vmatprep.mubr.f32.mxu0 0.0
          %1539 = vmatmul.mubr.f32.gmra.mrb[0].mxu0 %v1043
          %v1540 = vpop.f32.mrb[0].mxu0
          %v1541 = vadd.f32 %v1392, %v1540
          %v1542 = vpop.f32.mrb[0].mxu0
          %1543 = vmatprep.mubr.f32.mxu0 0.0
          %1544 = vmatmul.mubr.f32.gmra.mrb[0].mxu0 %v1044
          %v1545 = vpop.f32.mrb[0].mxu0
          %v1546 = vadd.f32 %v1392, %v1545
          %v1547 = vpop.f32.mrb[0].mxu0
          %1548 = vmatprep.mubr.f32.mxu0 0.0
          %1549 = vmatmul.mubr.f32.gmra.mrb[0].mxu0 %v1045
          %v1550 = vpop.f32.mrb[0].mxu0
          %v1551 = vadd.f32 %v1392, %v1550
          %v1552 = vpop.f32.mrb[0].mxu0
          %1553 = vmatprep.mubr.f32.mxu0 0.0
          %1554 = vmatmul.mubr.f32.gmra.mrb[0].mxu0 %v1046
          %v1555 = vpop.f32.mrb[0].mxu0
          %v1556 = vadd.f32 %v1392, %v1555
          %v1557 = vpop.f32.mrb[0].mxu0
          %1558 = vmatprep.mubr.f32.mxu0 0.0
          %1559 = vmatmul.mubr.f32.gmra.mrb[0].mxu0 %v1047
          %v1560 = vpop.f32.mrb[0].mxu0
          %v1561 = vadd.f32 %v1392, %v1560
          %v1562 = vpop.f32.mrb[0].mxu0
          %1563 = vmatprep.mubr.f32.mxu0 0.0
          %1564 = vmatmul.mubr.f32.gmra.mrb[0].mxu0 %v1048
          %v1565 = vpop.f32.mrb[0].mxu0
          %v1566 = vadd.f32 %v1392, %v1565
          %v1567 = vpop.f32.mrb[0].mxu0
          %1568 = vmatprep.mubr.f32.mxu0 0.0
          %1569 = vmatmul.mubr.f32.gmra.mrb[0].mxu0 %v1049
          %v1570 = vpop.f32.mrb[0].mxu0
          %v1571 = vadd.f32 %v1392, %v1570
          %v1572 = vpop.f32.mrb[0].mxu0
          %1573 = vmatprep.mubr.f32.mxu0 0.0
          %1574 = vmatmul.mubr.f32.gmra.mrb[0].mxu0 %v1050
          %v1575 = vpop.f32.mrb[0].mxu0
          %v1576 = vadd.f32 %v1392, %v1575
          %v1577 = vpop.f32.mrb[0].mxu0
          %1578 = vmatprep.mubr.f32.mxu0 0.0
          %1579 = vmatmul.mubr.f32.gmra.mrb[0].mxu0 %v1051
          %v1580 = vpop.f32.mrb[0].mxu0
          %v1581 = vadd.f32 %v1392, %v1580
          %v1582 = vpop.f32.mrb[0].mxu0
          %1583 = vmatprep.mubr.f32.mxu0 0.0
          %1584 = vmatmul.mubr.f32.gmra.mrb[0].mxu0 %v1052
          %v1585 = vpop.f32.mrb[0].mxu0
          %v1586 = vadd.f32 %v1392, %v1585
          %v1587 = vpop.f32.mrb[0].mxu0
          %1588 = vmatprep.mubr.f32.mxu0 0.0
          %1589 = vmatmul.mubr.f32.gmra.mrb[0].mxu0 %v1053
          %v1590 = vpop.f32.mrb[0].mxu0
          %v1591 = vadd.f32 %v1392, %v1590
          %v1592 = vpop.f32.mrb[0].mxu0
          %1593 = vmatprep.mubr.f32.mxu0 0.0
          %1594 = vmatmul.mubr.f32.gmra.mrb[0].mxu0 %v1054
          %v1595 = vpop.f32.mrb[0].mxu0
          %v1596 = vadd.f32 %v1392, %v1595
          %v1597 = vpop.f32.mrb[0].mxu0
          %1598 = vmatprep.mubr.f32.mxu0 0.0
          %1599 = vmatmul.mubr.f32.gmra.mrb[0].mxu0 %v1055
          %v1600 = vpop.f32.mrb[0].mxu0
          %v1601 = vadd.f32 %v1392, %v1600
          %v1602 = vpop.f32.mrb[0].mxu0
          %1603 = vmatprep.mubr.f32.mxu0 0.0
          %1604 = vmatmul.mubr.f32.gmra.mrb[0].mxu0 %v1056
          %v1605 = vpop.f32.mrb[0].mxu0
          %v1606 = vadd.f32 %v1392, %v1605
          %v1607 = vpop.f32.mrb[0].mxu0
          %1608 = vmatprep.mubr.f32.mxu0 0.0
          %1609 = vmatmul.mubr.f32.gmra.mrb[0].mxu0 %v1057
          %v1610 = vpop.f32.mrb[0].mxu0
          %v1611 = vadd.f32 %v1392, %v1610
          %v1612 = vpop.f32.mrb[0].mxu0
          %1613 = vmatprep.mubr.f32.mxu0 0.0
          %1614 = vmatmul.mubr.f32.gmra.mrb[0].mxu0 %v1058
          %v1615 = vpop.f32.mrb[0].mxu0
          %v1616 = vadd.f32 %v1392, %v1615
          %v1617 = vpop.f32.mrb[0].mxu0
          %1618 = vdwg.mxu0
          %1619 = vst [vmem:[#allocation2] sm:$0xff] %v1323
          %1620 = vst [vmem:[#allocation2 + $0x8] sm:$0xff] %v1324
          %1621 = vst [vmem:[#allocation2 + $0x10] sm:$0xff] %v1325
          %1622 = vst [vmem:[#allocation2 + $0x18] sm:$0xff] %v1326
          %vm1623 = vcmask 261120
          %1624 = vst.msk [vmem:[#allocation3] sm:$0xff] %vm1623, %v1461
          %1625 = vst.msk [vmem:[#allocation3 + $0x8] sm:$0xff] %vm1623, %v1466
          %1626 = vst.msk [vmem:[#allocation3 + $0x10] sm:$0xff] %vm1623, %v1471
          %1627 = vst.msk [vmem:[#allocation3 + $0x18] sm:$0xff] %vm1623, %v1476
          %1628 = vst.msk [vmem:[#allocation3 + $0x20] sm:$0xff] %vm1623, %v1481
          %1629 = vst.msk [vmem:[#allocation3 + $0x28] sm:$0xff] %vm1623, %v1486
          %1630 = vst.msk [vmem:[#allocation3 + $0x30] sm:$0xff] %vm1623, %v1491
          %1631 = vst.msk [vmem:[#allocation3 + $0x38] sm:$0xff] %vm1623, %v1496
          %1632 = vst.msk [vmem:[#allocation3 + $0x40] sm:$0xff] %vm1623, %v1501
          %1633 = vst.msk [vmem:[#allocation3 + $0x48] sm:$0xff] %vm1623, %v1506
          %1634 = vst.msk [vmem:[#allocation3 + $0x50] sm:$0xff] %vm1623, %v1511
          %1635 = vst.msk [vmem:[#allocation3 + $0x58] sm:$0xff] %vm1623, %v1516
          %1636 = vst.msk [vmem:[#allocation3 + $0x60] sm:$0xff] %vm1623, %v1521
          %1637 = vst.msk [vmem:[#allocation3 + $0x68] sm:$0xff] %vm1623, %v1526
          %1638 = vst.msk [vmem:[#allocation3 + $0x70] sm:$0xff] %vm1623, %v1531
          %1639 = vst.msk [vmem:[#allocation3 + $0x78] sm:$0xff] %vm1623, %v1536
          %s1640 = scalar_lea.vmem [#allocation2], 32
          %1641 = vst [vmem:[%s1640] sm:$0xff] %v1327
          %1642 = vst [vmem:[%s1640 + $0x8] sm:$0xff] %v1328
          %1643 = vst [vmem:[%s1640 + $0x10] sm:$0xff] %v1329
          %1644 = vst [vmem:[%s1640 + $0x18] sm:$0xff] %v1330
          %1661 = vrot.lane.b32.xlu0 %v1461, 96
          %v1662 = vpop.permute.xlu0 %1661
          %1663 = vrot.lane.b32.xlu0 %v1466, 96
          %v1664 = vpop.permute.xlu0 %1663
          %1665 = vrot.lane.b32.xlu0 %v1471, 96
          %v1666 = vpop.permute.xlu0 %1665
          %1667 = vrot.lane.b32.xlu0 %v1476, 96
          %v1668 = vpop.permute.xlu0 %1667
          %1669 = vrot.lane.b32.xlu0 %v1481, 96
          %v1670 = vpop.permute.xlu0 %1669
          %1671 = vrot.lane.b32.xlu0 %v1486, 96
          %v1672 = vpop.permute.xlu0 %1671
          %1673 = vrot.lane.b32.xlu0 %v1491, 96
          %v1674 = vpop.permute.xlu0 %1673
          %1675 = vrot.lane.b32.xlu0 %v1496, 96
          %v1676 = vpop.permute.xlu0 %1675
          %1677 = vrot.lane.b32.xlu0 %v1501, 96
          %v1678 = vpop.permute.xlu0 %1677
          %1679 = vrot.lane.b32.xlu0 %v1506, 96
          %v1680 = vpop.permute.xlu0 %1679
          %1681 = vrot.lane.b32.xlu0 %v1511, 96
          %v1682 = vpop.permute.xlu0 %1681
          %1683 = vrot.lane.b32.xlu0 %v1516, 96
          %v1684 = vpop.permute.xlu0 %1683
          %1685 = vrot.lane.b32.xlu0 %v1521, 96
          %v1686 = vpop.permute.xlu0 %1685
          %1687 = vrot.lane.b32.xlu0 %v1526, 96
          %v1688 = vpop.permute.xlu0 %1687
          %1689 = vrot.lane.b32.xlu0 %v1531, 96
          %v1690 = vpop.permute.xlu0 %1689
          %1691 = vrot.lane.b32.xlu0 %v1536, 96
          %v1692 = vpop.permute.xlu0 %1691
          %s1709 = scalar_lea.vmem [#allocation3], 128
          %1710 = vst.msk [vmem:[%s1709] sm:$0xff] %vm1623, %v1662
          %1711 = vst.msk [vmem:[%s1709 + $0x8] sm:$0xff] %vm1623, %v1664
          %1712 = vst.msk [vmem:[%s1709 + $0x10] sm:$0xff] %vm1623, %v1666
          %1713 = vst.msk [vmem:[%s1709 + $0x18] sm:$0xff] %vm1623, %v1668
          %1714 = vst.msk [vmem:[%s1709 + $0x20] sm:$0xff] %vm1623, %v1670
          %1715 = vst.msk [vmem:[%s1709 + $0x28] sm:$0xff] %vm1623, %v1672
          %1716 = vst.msk [vmem:[%s1709 + $0x30] sm:$0xff] %vm1623, %v1674
          %1717 = vst.msk [vmem:[%s1709 + $0x38] sm:$0xff] %vm1623, %v1676
          %1718 = vst.msk [vmem:[%s1709 + $0x40] sm:$0xff] %vm1623, %v1678
          %1719 = vst.msk [vmem:[%s1709 + $0x48] sm:$0xff] %vm1623, %v1680
          %1720 = vst.msk [vmem:[%s1709 + $0x50] sm:$0xff] %vm1623, %v1682
          %1721 = vst.msk [vmem:[%s1709 + $0x58] sm:$0xff] %vm1623, %v1684
          %1722 = vst.msk [vmem:[%s1709 + $0x60] sm:$0xff] %vm1623, %v1686
          %1723 = vst.msk [vmem:[%s1709 + $0x68] sm:$0xff] %vm1623, %v1688
          %1724 = vst.msk [vmem:[%s1709 + $0x70] sm:$0xff] %vm1623, %v1690
          %1725 = vst.msk [vmem:[%s1709 + $0x78] sm:$0xff] %vm1623, %v1692
          %s1726 = scalar_lea.vmem [#allocation2], 64
          %1727 = vst [vmem:[%s1726] sm:$0xff] %v1331
          %1728 = vst [vmem:[%s1726 + $0x8] sm:$0xff] %v1332
          %1729 = vst [vmem:[%s1726 + $0x10] sm:$0xff] %v1333
          %1730 = vst [vmem:[%s1726 + $0x18] sm:$0xff] %v1334
          %1731 = vrot.lane.b32.xlu0 %v1461, 64
          %v1732 = vpop.permute.xlu0 %1731
          %1733 = vrot.lane.b32.xlu0 %v1466, 64
          %v1734 = vpop.permute.xlu0 %1733
          %1735 = vrot.lane.b32.xlu0 %v1471, 64
          %v1736 = vpop.permute.xlu0 %1735
          %1737 = vrot.lane.b32.xlu0 %v1476, 64
          %v1738 = vpop.permute.xlu0 %1737
          %1739 = vrot.lane.b32.xlu0 %v1481, 64
          %v1740 = vpop.permute.xlu0 %1739
          %1741 = vrot.lane.b32.xlu0 %v1486, 64
          %v1742 = vpop.permute.xlu0 %1741
          %1743 = vrot.lane.b32.xlu0 %v1491, 64
          %v1744 = vpop.permute.xlu0 %1743
          %1745 = vrot.lane.b32.xlu0 %v1496, 64
          %v1746 = vpop.permute.xlu0 %1745
          %1747 = vrot.lane.b32.xlu0 %v1501, 64
          %v1748 = vpop.permute.xlu0 %1747
          %1749 = vrot.lane.b32.xlu0 %v1506, 64
          %v1750 = vpop.permute.xlu0 %1749
          %1751 = vrot.lane.b32.xlu0 %v1511, 64
          %v1752 = vpop.permute.xlu0 %1751
          %1753 = vrot.lane.b32.xlu0 %v1516, 64
          %v1754 = vpop.permute.xlu0 %1753
          %1755 = vrot.lane.b32.xlu0 %v1521, 64
          %v1756 = vpop.permute.xlu0 %1755
          %1757 = vrot.lane.b32.xlu0 %v1526, 64
          %v1758 = vpop.permute.xlu0 %1757
          %1759 = vrot.lane.b32.xlu0 %v1531, 64
          %v1760 = vpop.permute.xlu0 %1759
          %1761 = vrot.lane.b32.xlu0 %v1536, 64
          %v1762 = vpop.permute.xlu0 %1761
          %s1779 = scalar_lea.vmem [#allocation3], 256
          %1780 = vst.msk [vmem:[%s1779] sm:$0xff] %vm1623, %v1732
          %1781 = vst.msk [vmem:[%s1779 + $0x8] sm:$0xff] %vm1623, %v1734
          %1782 = vst.msk [vmem:[%s1779 + $0x10] sm:$0xff] %vm1623, %v1736
          %1783 = vst.msk [vmem:[%s1779 + $0x18] sm:$0xff] %vm1623, %v1738
          %1784 = vst.msk [vmem:[%s1779 + $0x20] sm:$0xff] %vm1623, %v1740
          %1785 = vst.msk [vmem:[%s1779 + $0x28] sm:$0xff] %vm1623, %v1742
          %1786 = vst.msk [vmem:[%s1779 + $0x30] sm:$0xff] %vm1623, %v1744
          %1787 = vst.msk [vmem:[%s1779 + $0x38] sm:$0xff] %vm1623, %v1746
          %1788 = vst.msk [vmem:[%s1779 + $0x40] sm:$0xff] %vm1623, %v1748
          %1789 = vst.msk [vmem:[%s1779 + $0x48] sm:$0xff] %vm1623, %v1750
          %1790 = vst.msk [vmem:[%s1779 + $0x50] sm:$0xff] %vm1623, %v1752
          %1791 = vst.msk [vmem:[%s1779 + $0x58] sm:$0xff] %vm1623, %v1754
          %1792 = vst.msk [vmem:[%s1779 + $0x60] sm:$0xff] %vm1623, %v1756
          %1793 = vst.msk [vmem:[%s1779 + $0x68] sm:$0xff] %vm1623, %v1758
          %1794 = vst.msk [vmem:[%s1779 + $0x70] sm:$0xff] %vm1623, %v1760
          %1795 = vst.msk [vmem:[%s1779 + $0x78] sm:$0xff] %vm1623, %v1762
          %s1796 = scalar_lea.vmem [#allocation2], 96
          %1797 = vst [vmem:[%s1796] sm:$0xff] %v1335
          %1798 = vst [vmem:[%s1796 + $0x8] sm:$0xff] %v1336
          %1799 = vst [vmem:[%s1796 + $0x10] sm:$0xff] %v1337
          %1800 = vst [vmem:[%s1796 + $0x18] sm:$0xff] %v1338
          %1801 = vrot.lane.b32.xlu0 %v1461, 32
          %v1802 = vpop.permute.xlu0 %1801
          %1803 = vrot.lane.b32.xlu0 %v1466, 32
          %v1804 = vpop.permute.xlu0 %1803
          %1805 = vrot.lane.b32.xlu0 %v1471, 32
          %v1806 = vpop.permute.xlu0 %1805
          %1807 = vrot.lane.b32.xlu0 %v1476, 32
          %v1808 = vpop.permute.xlu0 %1807
          %1809 = vrot.lane.b32.xlu0 %v1481, 32
          %v1810 = vpop.permute.xlu0 %1809
          %1811 = vrot.lane.b32.xlu0 %v1486, 32
          %v1812 = vpop.permute.xlu0 %1811
          %1813 = vrot.lane.b32.xlu0 %v1491, 32
          %v1814 = vpop.permute.xlu0 %1813
          %1815 = vrot.lane.b32.xlu0 %v1496, 32
          %v1816 = vpop.permute.xlu0 %1815
          %1817 = vrot.lane.b32.xlu0 %v1501, 32
          %v1818 = vpop.permute.xlu0 %1817
          %1819 = vrot.lane.b32.xlu0 %v1506, 32
          %v1820 = vpop.permute.xlu0 %1819
          %1821 = vrot.lane.b32.xlu0 %v1511, 32
          %v1822 = vpop.permute.xlu0 %1821
          %1823 = vrot.lane.b32.xlu0 %v1516, 32
          %v1824 = vpop.permute.xlu0 %1823
          %1825 = vrot.lane.b32.xlu0 %v1521, 32
          %v1826 = vpop.permute.xlu0 %1825
          %1827 = vrot.lane.b32.xlu0 %v1526, 32
          %v1828 = vpop.permute.xlu0 %1827
          %1829 = vrot.lane.b32.xlu0 %v1531, 32
          %v1830 = vpop.permute.xlu0 %1829
          %1831 = vrot.lane.b32.xlu0 %v1536, 32
          %v1832 = vpop.permute.xlu0 %1831
          %s1849 = scalar_lea.vmem [#allocation3], 384
          %1850 = vst.msk [vmem:[%s1849] sm:$0xff] %vm1623, %v1802
          %1851 = vst.msk [vmem:[%s1849 + $0x8] sm:$0xff] %vm1623, %v1804
          %1852 = vst.msk [vmem:[%s1849 + $0x10] sm:$0xff] %vm1623, %v1806
          %1853 = vst.msk [vmem:[%s1849 + $0x18] sm:$0xff] %vm1623, %v1808
          %1854 = vst.msk [vmem:[%s1849 + $0x20] sm:$0xff] %vm1623, %v1810
          %1855 = vst.msk [vmem:[%s1849 + $0x28] sm:$0xff] %vm1623, %v1812
          %1856 = vst.msk [vmem:[%s1849 + $0x30] sm:$0xff] %vm1623, %v1814
          %1857 = vst.msk [vmem:[%s1849 + $0x38] sm:$0xff] %vm1623, %v1816
          %1858 = vst.msk [vmem:[%s1849 + $0x40] sm:$0xff] %vm1623, %v1818
          %1859 = vst.msk [vmem:[%s1849 + $0x48] sm:$0xff] %vm1623, %v1820
          %1860 = vst.msk [vmem:[%s1849 + $0x50] sm:$0xff] %vm1623, %v1822
          %1861 = vst.msk [vmem:[%s1849 + $0x58] sm:$0xff] %vm1623, %v1824
          %1862 = vst.msk [vmem:[%s1849 + $0x60] sm:$0xff] %vm1623, %v1826
          %1863 = vst.msk [vmem:[%s1849 + $0x68] sm:$0xff] %vm1623, %v1828
          %1864 = vst.msk [vmem:[%s1849 + $0x70] sm:$0xff] %vm1623, %v1830
          %1865 = vst.msk [vmem:[%s1849 + $0x78] sm:$0xff] %vm1623, %v1832
          %s1866 = scalar_lea.vmem [#allocation2], 128
          %1867 = vst [vmem:[%s1866] sm:$0xff] %v1355
          %1868 = vst [vmem:[%s1866 + $0x8] sm:$0xff] %v1356
          %1869 = vst [vmem:[%s1866 + $0x10] sm:$0xff] %v1357
          %1870 = vst [vmem:[%s1866 + $0x18] sm:$0xff] %v1358
          %s1871 = scalar_lea.vmem [#allocation3], 512
          %1872 = vst.msk [vmem:[%s1871] sm:$0xff] %vm1623, %v1541
          %1873 = vst.msk [vmem:[%s1871 + $0x8] sm:$0xff] %vm1623, %v1546
          %1874 = vst.msk [vmem:[%s1871 + $0x10] sm:$0xff] %vm1623, %v1551
          %1875 = vst.msk [vmem:[%s1871 + $0x18] sm:$0xff] %vm1623, %v1556
          %1876 = vst.msk [vmem:[%s1871 + $0x20] sm:$0xff] %vm1623, %v1561
          %1877 = vst.msk [vmem:[%s1871 + $0x28] sm:$0xff] %vm1623, %v1566
          %1878 = vst.msk [vmem:[%s1871 + $0x30] sm:$0xff] %vm1623, %v1571
          %1879 = vst.msk [vmem:[%s1871 + $0x38] sm:$0xff] %vm1623, %v1576
          %1880 = vst.msk [vmem:[%s1871 + $0x40] sm:$0xff] %vm1623, %v1581
          %1881 = vst.msk [vmem:[%s1871 + $0x48] sm:$0xff] %vm1623, %v1586
          %1882 = vst.msk [vmem:[%s1871 + $0x50] sm:$0xff] %vm1623, %v1591
          %1883 = vst.msk [vmem:[%s1871 + $0x58] sm:$0xff] %vm1623, %v1596
          %1884 = vst.msk [vmem:[%s1871 + $0x60] sm:$0xff] %vm1623, %v1601
          %1885 = vst.msk [vmem:[%s1871 + $0x68] sm:$0xff] %vm1623, %v1606
          %1886 = vst.msk [vmem:[%s1871 + $0x70] sm:$0xff] %vm1623, %v1611
          %1887 = vst.msk [vmem:[%s1871 + $0x78] sm:$0xff] %vm1623, %v1616
          %s1888 = scalar_lea.vmem [#allocation2], 160
          %1889 = vst [vmem:[%s1888] sm:$0xff] %v1359
          %1890 = vst [vmem:[%s1888 + $0x8] sm:$0xff] %v1360
          %1891 = vst [vmem:[%s1888 + $0x10] sm:$0xff] %v1361
          %1892 = vst [vmem:[%s1888 + $0x18] sm:$0xff] %v1362
          %1909 = vrot.lane.b32.xlu0 %v1541, 96
          %v1910 = vpop.permute.xlu0 %1909
          %1911 = vrot.lane.b32.xlu0 %v1546, 96
          %v1912 = vpop.permute.xlu0 %1911
          %1913 = vrot.lane.b32.xlu0 %v1551, 96
          %v1914 = vpop.permute.xlu0 %1913
          %1915 = vrot.lane.b32.xlu0 %v1556, 96
          %v1916 = vpop.permute.xlu0 %1915
          %1917 = vrot.lane.b32.xlu0 %v1561, 96
          %v1918 = vpop.permute.xlu0 %1917
          %1919 = vrot.lane.b32.xlu0 %v1566, 96
          %v1920 = vpop.permute.xlu0 %1919
          %1921 = vrot.lane.b32.xlu0 %v1571, 96
          %v1922 = vpop.permute.xlu0 %1921
          %1923 = vrot.lane.b32.xlu0 %v1576, 96
          %v1924 = vpop.permute.xlu0 %1923
          %1925 = vrot.lane.b32.xlu0 %v1581, 96
          %v1926 = vpop.permute.xlu0 %1925
          %1927 = vrot.lane.b32.xlu0 %v1586, 96
          %v1928 = vpop.permute.xlu0 %1927
          %1929 = vrot.lane.b32.xlu0 %v1591, 96
          %v1930 = vpop.permute.xlu0 %1929
          %1931 = vrot.lane.b32.xlu0 %v1596, 96
          %v1932 = vpop.permute.xlu0 %1931
          %1933 = vrot.lane.b32.xlu0 %v1601, 96
          %v1934 = vpop.permute.xlu0 %1933
          %1935 = vrot.lane.b32.xlu0 %v1606, 96
          %v1936 = vpop.permute.xlu0 %1935
          %1937 = vrot.lane.b32.xlu0 %v1611, 96
          %v1938 = vpop.permute.xlu0 %1937
          %1939 = vrot.lane.b32.xlu0 %v1616, 96
          %v1940 = vpop.permute.xlu0 %1939
          %s1957 = scalar_lea.vmem [#allocation3], 640
          %1958 = vst.msk [vmem:[%s1957] sm:$0xff] %vm1623, %v1910
          %1959 = vst.msk [vmem:[%s1957 + $0x8] sm:$0xff] %vm1623, %v1912
          %1960 = vst.msk [vmem:[%s1957 + $0x10] sm:$0xff] %vm1623, %v1914
          %1961 = vst.msk [vmem:[%s1957 + $0x18] sm:$0xff] %vm1623, %v1916
          %1962 = vst.msk [vmem:[%s1957 + $0x20] sm:$0xff] %vm1623, %v1918
          %1963 = vst.msk [vmem:[%s1957 + $0x28] sm:$0xff] %vm1623, %v1920
          %1964 = vst.msk [vmem:[%s1957 + $0x30] sm:$0xff] %vm1623, %v1922
          %1965 = vst.msk [vmem:[%s1957 + $0x38] sm:$0xff] %vm1623, %v1924
          %1966 = vst.msk [vmem:[%s1957 + $0x40] sm:$0xff] %vm1623, %v1926
          %1967 = vst.msk [vmem:[%s1957 + $0x48] sm:$0xff] %vm1623, %v1928
          %1968 = vst.msk [vmem:[%s1957 + $0x50] sm:$0xff] %vm1623, %v1930
          %1969 = vst.msk [vmem:[%s1957 + $0x58] sm:$0xff] %vm1623, %v1932
          %1970 = vst.msk [vmem:[%s1957 + $0x60] sm:$0xff] %vm1623, %v1934
          %1971 = vst.msk [vmem:[%s1957 + $0x68] sm:$0xff] %vm1623, %v1936
          %1972 = vst.msk [vmem:[%s1957 + $0x70] sm:$0xff] %vm1623, %v1938
          %1973 = vst.msk [vmem:[%s1957 + $0x78] sm:$0xff] %vm1623, %v1940
          %s1974 = scalar_lea.vmem [#allocation2], 192
          %1975 = vst [vmem:[%s1974] sm:$0xff] %v1363
          %1976 = vst [vmem:[%s1974 + $0x8] sm:$0xff] %v1364
          %1977 = vst [vmem:[%s1974 + $0x10] sm:$0xff] %v1365
          %1978 = vst [vmem:[%s1974 + $0x18] sm:$0xff] %v1366
          %1979 = vrot.lane.b32.xlu0 %v1541, 64
          %v1980 = vpop.permute.xlu0 %1979
          %1981 = vrot.lane.b32.xlu0 %v1546, 64
          %v1982 = vpop.permute.xlu0 %1981
          %1983 = vrot.lane.b32.xlu0 %v1551, 64
          %v1984 = vpop.permute.xlu0 %1983
          %1985 = vrot.lane.b32.xlu0 %v1556, 64
          %v1986 = vpop.permute.xlu0 %1985
          %1987 = vrot.lane.b32.xlu0 %v1561, 64
          %v1988 = vpop.permute.xlu0 %1987
          %1989 = vrot.lane.b32.xlu0 %v1566, 64
          %v1990 = vpop.permute.xlu0 %1989
          %1991 = vrot.lane.b32.xlu0 %v1571, 64
          %v1992 = vpop.permute.xlu0 %1991
          %1993 = vrot.lane.b32.xlu0 %v1576, 64
          %v1994 = vpop.permute.xlu0 %1993
          %1995 = vrot.lane.b32.xlu0 %v1581, 64
          %v1996 = vpop.permute.xlu0 %1995
          %1997 = vrot.lane.b32.xlu0 %v1586, 64
          %v1998 = vpop.permute.xlu0 %1997
          %1999 = vrot.lane.b32.xlu0 %v1591, 64
          %v2000 = vpop.permute.xlu0 %1999
          %2001 = vrot.lane.b32.xlu0 %v1596, 64
          %v2002 = vpop.permute.xlu0 %2001
          %2003 = vrot.lane.b32.xlu0 %v1601, 64
          %v2004 = vpop.permute.xlu0 %2003
          %2005 = vrot.lane.b32.xlu0 %v1606, 64
          %v2006 = vpop.permute.xlu0 %2005
          %2007 = vrot.lane.b32.xlu0 %v1611, 64
          %v2008 = vpop.permute.xlu0 %2007
          %2009 = vrot.lane.b32.xlu0 %v1616, 64
          %v2010 = vpop.permute.xlu0 %2009
          %s2027 = scalar_lea.vmem [#allocation3], 768
          %2028 = vst.msk [vmem:[%s2027] sm:$0xff] %vm1623, %v1980
          %2029 = vst.msk [vmem:[%s2027 + $0x8] sm:$0xff] %vm1623, %v1982
          %2030 = vst.msk [vmem:[%s2027 + $0x10] sm:$0xff] %vm1623, %v1984
          %2031 = vst.msk [vmem:[%s2027 + $0x18] sm:$0xff] %vm1623, %v1986
          %2032 = vst.msk [vmem:[%s2027 + $0x20] sm:$0xff] %vm1623, %v1988
          %2033 = vst.msk [vmem:[%s2027 + $0x28] sm:$0xff] %vm1623, %v1990
          %2034 = vst.msk [vmem:[%s2027 + $0x30] sm:$0xff] %vm1623, %v1992
          %2035 = vst.msk [vmem:[%s2027 + $0x38] sm:$0xff] %vm1623, %v1994
          %2036 = vst.msk [vmem:[%s2027 + $0x40] sm:$0xff] %vm1623, %v1996
          %2037 = vst.msk [vmem:[%s2027 + $0x48] sm:$0xff] %vm1623, %v1998
          %2038 = vst.msk [vmem:[%s2027 + $0x50] sm:$0xff] %vm1623, %v2000
          %2039 = vst.msk [vmem:[%s2027 + $0x58] sm:$0xff] %vm1623, %v2002
          %2040 = vst.msk [vmem:[%s2027 + $0x60] sm:$0xff] %vm1623, %v2004
          %2041 = vst.msk [vmem:[%s2027 + $0x68] sm:$0xff] %vm1623, %v2006
          %2042 = vst.msk [vmem:[%s2027 + $0x70] sm:$0xff] %vm1623, %v2008
          %2043 = vst.msk [vmem:[%s2027 + $0x78] sm:$0xff] %vm1623, %v2010
          %s2044 = scalar_lea.vmem [#allocation2], 224
          %2045 = vst [vmem:[%s2044] sm:$0xff] %v1367
          %2046 = vst [vmem:[%s2044 + $0x8] sm:$0xff] %v1368
          %2047 = vst [vmem:[%s2044 + $0x10] sm:$0xff] %v1369
          %2048 = vst [vmem:[%s2044 + $0x18] sm:$0xff] %v1370
          %2049 = vrot.lane.b32.xlu0 %v1541, 32
          %v2050 = vpop.permute.xlu0 %2049
          %2051 = vrot.lane.b32.xlu0 %v1546, 32
          %v2052 = vpop.permute.xlu0 %2051
          %2053 = vrot.lane.b32.xlu0 %v1551, 32
          %v2054 = vpop.permute.xlu0 %2053
          %2055 = vrot.lane.b32.xlu0 %v1556, 32
          %v2056 = vpop.permute.xlu0 %2055
          %2057 = vrot.lane.b32.xlu0 %v1561, 32
          %v2058 = vpop.permute.xlu0 %2057
          %2059 = vrot.lane.b32.xlu0 %v1566, 32
          %v2060 = vpop.permute.xlu0 %2059
          %2061 = vrot.lane.b32.xlu0 %v1571, 32
          %v2062 = vpop.permute.xlu0 %2061
          %2063 = vrot.lane.b32.xlu0 %v1576, 32
          %v2064 = vpop.permute.xlu0 %2063
          %2065 = vrot.lane.b32.xlu0 %v1581, 32
          %v2066 = vpop.permute.xlu0 %2065
          %2067 = vrot.lane.b32.xlu0 %v1586, 32
          %v2068 = vpop.permute.xlu0 %2067
          %2069 = vrot.lane.b32.xlu0 %v1591, 32
          %v2070 = vpop.permute.xlu0 %2069
          %2071 = vrot.lane.b32.xlu0 %v1596, 32
          %v2072 = vpop.permute.xlu0 %2071
          %2073 = vrot.lane.b32.xlu0 %v1601, 32
          %v2074 = vpop.permute.xlu0 %2073
          %2075 = vrot.lane.b32.xlu0 %v1606, 32
          %v2076 = vpop.permute.xlu0 %2075
          %2077 = vrot.lane.b32.xlu0 %v1611, 32
          %v2078 = vpop.permute.xlu0 %2077
          %2079 = vrot.lane.b32.xlu0 %v1616, 32
          %v2080 = vpop.permute.xlu0 %2079
          %s2097 = scalar_lea.vmem [#allocation3], 896
          %2098 = vst.msk [vmem:[%s2097] sm:$0xff] %vm1623, %v2050
          %2099 = vst.msk [vmem:[%s2097 + $0x8] sm:$0xff] %vm1623, %v2052
          %2100 = vst.msk [vmem:[%s2097 + $0x10] sm:$0xff] %vm1623, %v2054
          %2101 = vst.msk [vmem:[%s2097 + $0x18] sm:$0xff] %vm1623, %v2056
          %2102 = vst.msk [vmem:[%s2097 + $0x20] sm:$0xff] %vm1623, %v2058
          %2103 = vst.msk [vmem:[%s2097 + $0x28] sm:$0xff] %vm1623, %v2060
          %2104 = vst.msk [vmem:[%s2097 + $0x30] sm:$0xff] %vm1623, %v2062
          %2105 = vst.msk [vmem:[%s2097 + $0x38] sm:$0xff] %vm1623, %v2064
          %2106 = vst.msk [vmem:[%s2097 + $0x40] sm:$0xff] %vm1623, %v2066
          %2107 = vst.msk [vmem:[%s2097 + $0x48] sm:$0xff] %vm1623, %v2068
          %2108 = vst.msk [vmem:[%s2097 + $0x50] sm:$0xff] %vm1623, %v2070
          %2109 = vst.msk [vmem:[%s2097 + $0x58] sm:$0xff] %vm1623, %v2072
          %2110 = vst.msk [vmem:[%s2097 + $0x60] sm:$0xff] %vm1623, %v2074
          %2111 = vst.msk [vmem:[%s2097 + $0x68] sm:$0xff] %vm1623, %v2076
          %2112 = vst.msk [vmem:[%s2097 + $0x70] sm:$0xff] %vm1623, %v2078
          %2113 = vst.msk [vmem:[%s2097 + $0x78] sm:$0xff] %vm1623, %v2080
        $region100: #{gpt2_block.1} parent=87 // pred_fallthru
          _
        %s2114 = smul.u32 %s38, 128
        %s2115 = scalar_lea.vmem %s590, %s2114
        %v2116 = vld [vmem:[%s2115] sm:$0xff]
        %v2117 = vld [vmem:[%s2115 + $0x8] sm:$0xff]
        %v2118 = vld [vmem:[%s2115 + $0x10] sm:$0xff]
        %v2119 = vld [vmem:[%s2115 + $0x18] sm:$0xff]
        %v2120 = vld [vmem:[%s2115 + $0x20] sm:$0xff]
        %v2121 = vld [vmem:[%s2115 + $0x28] sm:$0xff]
        %v2122 = vld [vmem:[%s2115 + $0x30] sm:$0xff]
        %v2123 = vld [vmem:[%s2115 + $0x38] sm:$0xff]
        %v2124 = vld [vmem:[%s2115 + $0x40] sm:$0xff]
        %v2125 = vld [vmem:[%s2115 + $0x48] sm:$0xff]
        %v2126 = vld [vmem:[%s2115 + $0x50] sm:$0xff]
        %v2127 = vld [vmem:[%s2115 + $0x58] sm:$0xff]
        %v2128 = vld [vmem:[%s2115 + $0x60] sm:$0xff]
        %v2129 = vld [vmem:[%s2115 + $0x68] sm:$0xff]
        %v2130 = vld [vmem:[%s2115 + $0x70] sm:$0xff]
        %v2131 = vld [vmem:[%s2115 + $0x78] sm:$0xff]
        %v2132 = vld [vmem:[%s1] sm:$0x1]
        %v2133 = vld [vmem:[%s2] sm:$0x1]
        %2134 = vadd.xlane.f32.xlu0 %v2116
        %v2135 = vpop.xlane.xlu0 %2134
        %2136 = vadd.xlane.f32.xlu0 %v2117
        %v2137 = vpop.xlane.xlu0 %2136
        %2138 = vadd.xlane.f32.xlu0 %v2118
        %v2139 = vpop.xlane.xlu0 %2138
        %2140 = vadd.xlane.f32.xlu0 %v2119
        %v2141 = vpop.xlane.xlu0 %2140
        %2142 = vadd.xlane.f32.xlu0 %v2120
        %v2143 = vpop.xlane.xlu0 %2142
        %2144 = vadd.xlane.f32.xlu0 %v2121
        %v2145 = vpop.xlane.xlu0 %2144
        %2146 = vadd.xlane.f32.xlu0 %v2122
        %v2147 = vpop.xlane.xlu0 %2146
        %2148 = vadd.xlane.f32.xlu0 %v2123
        %v2149 = vpop.xlane.xlu0 %2148
        %2150 = vadd.xlane.f32.xlu0 %v2124
        %v2151 = vpop.xlane.xlu0 %2150
        %2152 = vadd.xlane.f32.xlu0 %v2125
        %v2153 = vpop.xlane.xlu0 %2152
        %2154 = vadd.xlane.f32.xlu0 %v2126
        %v2155 = vpop.xlane.xlu0 %2154
        %2156 = vadd.xlane.f32.xlu0 %v2127
        %v2157 = vpop.xlane.xlu0 %2156
        %2158 = vadd.xlane.f32.xlu0 %v2128
        %v2159 = vpop.xlane.xlu0 %2158
        %2160 = vadd.xlane.f32.xlu0 %v2129
        %v2161 = vpop.xlane.xlu0 %2160
        %2162 = vadd.xlane.f32.xlu0 %v2130
        %v2163 = vpop.xlane.xlu0 %2162
        %2164 = vadd.xlane.f32.xlu0 %v2131
        %v2165 = vpop.xlane.xlu0 %2164
        %v2166 = vrcp.pop 128.0
        %v2167 = vmul.f32 %v2135, %v2166
        %v2168 = vmul.f32 %v2137, %v2166
        %v2169 = vmul.f32 %v2139, %v2166
        %v2170 = vmul.f32 %v2141, %v2166
        %v2171 = vmul.f32 %v2143, %v2166
        %v2172 = vmul.f32 %v2145, %v2166
        %v2173 = vmul.f32 %v2147, %v2166
        %v2174 = vmul.f32 %v2149, %v2166
        %v2175 = vmul.f32 %v2151, %v2166
        %v2176 = vmul.f32 %v2153, %v2166
        %v2177 = vmul.f32 %v2155, %v2166
        %v2178 = vmul.f32 %v2157, %v2166
        %v2179 = vmul.f32 %v2159, %v2166
        %v2180 = vmul.f32 %v2161, %v2166
        %v2181 = vmul.f32 %v2163, %v2166
        %v2182 = vmul.f32 %v2165, %v2166
        %v2183 = vsub.f32 %v2116, %v2167
        %v2184 = vsub.f32 %v2117, %v2168
        %v2185 = vsub.f32 %v2118, %v2169
        %v2186 = vsub.f32 %v2119, %v2170
        %v2187 = vsub.f32 %v2120, %v2171
        %v2188 = vsub.f32 %v2121, %v2172
        %v2189 = vsub.f32 %v2122, %v2173
        %v2190 = vsub.f32 %v2123, %v2174
        %v2191 = vsub.f32 %v2124, %v2175
        %v2192 = vsub.f32 %v2125, %v2176
        %v2193 = vsub.f32 %v2126, %v2177
        %v2194 = vsub.f32 %v2127, %v2178
        %v2195 = vsub.f32 %v2128, %v2179
        %v2196 = vsub.f32 %v2129, %v2180
        %v2197 = vsub.f32 %v2130, %v2181
        %v2198 = vsub.f32 %v2131, %v2182
        %v2199 = vmul.f32 %v2183, %v2183
        %v2200 = vmul.f32 %v2184, %v2184
        %v2201 = vmul.f32 %v2185, %v2185
        %v2202 = vmul.f32 %v2186, %v2186
        %v2203 = vmul.f32 %v2187, %v2187
        %v2204 = vmul.f32 %v2188, %v2188
        %v2205 = vmul.f32 %v2189, %v2189
        %v2206 = vmul.f32 %v2190, %v2190
        %v2207 = vmul.f32 %v2191, %v2191
        %v2208 = vmul.f32 %v2192, %v2192
        %v2209 = vmul.f32 %v2193, %v2193
        %v2210 = vmul.f32 %v2194, %v2194
        %v2211 = vmul.f32 %v2195, %v2195
        %v2212 = vmul.f32 %v2196, %v2196
        %v2213 = vmul.f32 %v2197, %v2197
        %v2214 = vmul.f32 %v2198, %v2198
        %2215 = vadd.xlane.f32.xlu0 %v2199
        %v2216 = vpop.xlane.xlu0 %2215
        %2217 = vadd.xlane.f32.xlu0 %v2200
        %v2218 = vpop.xlane.xlu0 %2217
        %2219 = vadd.xlane.f32.xlu0 %v2201
        %v2220 = vpop.xlane.xlu0 %2219
        %2221 = vadd.xlane.f32.xlu0 %v2202
        %v2222 = vpop.xlane.xlu0 %2221
        %2223 = vadd.xlane.f32.xlu0 %v2203
        %v2224 = vpop.xlane.xlu0 %2223
        %2225 = vadd.xlane.f32.xlu0 %v2204
        %v2226 = vpop.xlane.xlu0 %2225
        %2227 = vadd.xlane.f32.xlu0 %v2205
        %v2228 = vpop.xlane.xlu0 %2227
        %2229 = vadd.xlane.f32.xlu0 %v2206
        %v2230 = vpop.xlane.xlu0 %2229
        %2231 = vadd.xlane.f32.xlu0 %v2207
        %v2232 = vpop.xlane.xlu0 %2231
        %2233 = vadd.xlane.f32.xlu0 %v2208
        %v2234 = vpop.xlane.xlu0 %2233
        %2235 = vadd.xlane.f32.xlu0 %v2209
        %v2236 = vpop.xlane.xlu0 %2235
        %2237 = vadd.xlane.f32.xlu0 %v2210
        %v2238 = vpop.xlane.xlu0 %2237
        %2239 = vadd.xlane.f32.xlu0 %v2211
        %v2240 = vpop.xlane.xlu0 %2239
        %2241 = vadd.xlane.f32.xlu0 %v2212
        %v2242 = vpop.xlane.xlu0 %2241
        %2243 = vadd.xlane.f32.xlu0 %v2213
        %v2244 = vpop.xlane.xlu0 %2243
        %2245 = vadd.xlane.f32.xlu0 %v2214
        %v2246 = vpop.xlane.xlu0 %2245
        %v2247 = vmul.f32 %v2216, %v2166
        %v2248 = vmul.f32 %v2218, %v2166
        %v2249 = vmul.f32 %v2220, %v2166
        %v2250 = vmul.f32 %v2222, %v2166
        %v2251 = vmul.f32 %v2224, %v2166
        %v2252 = vmul.f32 %v2226, %v2166
        %v2253 = vmul.f32 %v2228, %v2166
        %v2254 = vmul.f32 %v2230, %v2166
        %v2255 = vmul.f32 %v2232, %v2166
        %v2256 = vmul.f32 %v2234, %v2166
        %v2257 = vmul.f32 %v2236, %v2166
        %v2258 = vmul.f32 %v2238, %v2166
        %v2259 = vmul.f32 %v2240, %v2166
        %v2260 = vmul.f32 %v2242, %v2166
        %v2261 = vmul.f32 %v2244, %v2166
        %v2262 = vmul.f32 %v2246, %v2166
        %v2263 = vadd.f32 %v2247, 1e-05
        %v2264 = vadd.f32 %v2248, 1e-05
        %v2265 = vadd.f32 %v2249, 1e-05
        %v2266 = vadd.f32 %v2250, 1e-05
        %v2267 = vadd.f32 %v2251, 1e-05
        %v2268 = vadd.f32 %v2252, 1e-05
        %v2269 = vadd.f32 %v2253, 1e-05
        %v2270 = vadd.f32 %v2254, 1e-05
        %v2271 = vadd.f32 %v2255, 1e-05
        %v2272 = vadd.f32 %v2256, 1e-05
        %v2273 = vadd.f32 %v2257, 1e-05
        %v2274 = vadd.f32 %v2258, 1e-05
        %v2275 = vadd.f32 %v2259, 1e-05
        %v2276 = vadd.f32 %v2260, 1e-05
        %v2277 = vadd.f32 %v2261, 1e-05
        %v2278 = vadd.f32 %v2262, 1e-05
        %v2279 = vrsqrt.pop %v2263
        %v2280 = vrsqrt.pop %v2264
        %v2281 = vrsqrt.pop %v2265
        %v2282 = vrsqrt.pop %v2266
        %v2283 = vrsqrt.pop %v2267
        %v2284 = vrsqrt.pop %v2268
        %v2285 = vrsqrt.pop %v2269
        %v2286 = vrsqrt.pop %v2270
        %v2287 = vrsqrt.pop %v2271
        %v2288 = vrsqrt.pop %v2272
        %v2289 = vrsqrt.pop %v2273
        %v2290 = vrsqrt.pop %v2274
        %v2291 = vrsqrt.pop %v2275
        %v2292 = vrsqrt.pop %v2276
        %v2293 = vrsqrt.pop %v2277
        %v2294 = vrsqrt.pop %v2278
        %v2295 = vmul.f32 %v2183, %v2279
        %v2296 = vmul.f32 %v2184, %v2280
        %v2297 = vmul.f32 %v2185, %v2281
        %v2298 = vmul.f32 %v2186, %v2282
        %v2299 = vmul.f32 %v2187, %v2283
        %v2300 = vmul.f32 %v2188, %v2284
        %v2301 = vmul.f32 %v2189, %v2285
        %v2302 = vmul.f32 %v2190, %v2286
        %v2303 = vmul.f32 %v2191, %v2287
        %v2304 = vmul.f32 %v2192, %v2288
        %v2305 = vmul.f32 %v2193, %v2289
        %v2306 = vmul.f32 %v2194, %v2290
        %v2307 = vmul.f32 %v2195, %v2291
        %v2308 = vmul.f32 %v2196, %v2292
        %v2309 = vmul.f32 %v2197, %v2293
        %v2310 = vmul.f32 %v2198, %v2294
        %v2312 = vlaneseq
        %v2313 = vshrl.u32 %v2312, 7
        %v2314 = vsub.s32 0, %v2313
        %v2315 = vrot.slane %v2132, %v2314
        %v2317 = vmul.f32 %v2295, %v2315
        %v2318 = vmul.f32 %v2296, %v2315
        %v2319 = vmul.f32 %v2297, %v2315
        %v2320 = vmul.f32 %v2298, %v2315
        %v2321 = vmul.f32 %v2299, %v2315
        %v2322 = vmul.f32 %v2300, %v2315
        %v2323 = vmul.f32 %v2301, %v2315
        %v2324 = vmul.f32 %v2302, %v2315
        %v2325 = vmul.f32 %v2303, %v2315
        %v2326 = vmul.f32 %v2304, %v2315
        %v2327 = vmul.f32 %v2305, %v2315
        %v2328 = vmul.f32 %v2306, %v2315
        %v2329 = vmul.f32 %v2307, %v2315
        %v2330 = vmul.f32 %v2308, %v2315
        %v2331 = vmul.f32 %v2309, %v2315
        %v2332 = vmul.f32 %v2310, %v2315
        %v2334 = vlaneseq
        %v2335 = vshrl.u32 %v2334, 7
        %v2336 = vsub.s32 0, %v2335
        %v2337 = vrot.slane %v2133, %v2336
        %v2339 = vadd.f32 %v2317, %v2337
        %v2340 = vadd.f32 %v2318, %v2337
        %v2341 = vadd.f32 %v2319, %v2337
        %v2342 = vadd.f32 %v2320, %v2337
        %v2343 = vadd.f32 %v2321, %v2337
        %v2344 = vadd.f32 %v2322, %v2337
        %v2345 = vadd.f32 %v2323, %v2337
        %v2346 = vadd.f32 %v2324, %v2337
        %v2347 = vadd.f32 %v2325, %v2337
        %v2348 = vadd.f32 %v2326, %v2337
        %v2349 = vadd.f32 %v2327, %v2337
        %v2350 = vadd.f32 %v2328, %v2337
        %v2351 = vadd.f32 %v2329, %v2337
        %v2352 = vadd.f32 %v2330, %v2337
        %v2353 = vadd.f32 %v2331, %v2337
        %v2354 = vadd.f32 %v2332, %v2337
        %v2355 = vld [vmem:[%s3] sm:$0xff]
        %v2356 = vld [vmem:[%s3 + $0x8] sm:$0xff]
        %v2357 = vld [vmem:[%s3 + $0x10] sm:$0xff]
        %v2358 = vld [vmem:[%s3 + $0x18] sm:$0xff]
        %v2359 = vld [vmem:[%s3 + $0x20] sm:$0xff]
        %v2360 = vld [vmem:[%s3 + $0x28] sm:$0xff]
        %v2361 = vld [vmem:[%s3 + $0x30] sm:$0xff]
        %v2362 = vld [vmem:[%s3 + $0x38] sm:$0xff]
        %v2363 = vld [vmem:[%s3 + $0x40] sm:$0xff]
        %v2364 = vld [vmem:[%s3 + $0x48] sm:$0xff]
        %v2365 = vld [vmem:[%s3 + $0x50] sm:$0xff]
        %v2366 = vld [vmem:[%s3 + $0x58] sm:$0xff]
        %v2367 = vld [vmem:[%s3 + $0x60] sm:$0xff]
        %v2368 = vld [vmem:[%s3 + $0x68] sm:$0xff]
        %v2369 = vld [vmem:[%s3 + $0x70] sm:$0xff]
        %v2370 = vld [vmem:[%s3 + $0x78] sm:$0xff]
        %v2371 = vld [vmem:[%s4] sm:$0x1]
        %v2373 = vlaneseq
        %v2374 = vshrl.u32 %v2373, 7
        %v2375 = vsub.s32 0, %v2374
        %v2376 = vrot.slane %v2371, %v2375
        %2378 = vmatprep.subr.mxu0 0.0
        %2379 = vmatpush1.msra.mxu0 %v2355
        %2380 = vmatprep.subr.mxu0 0.0
        %2381 = vmatpush1.msra.mxu0 %v2356
        %2382 = vmatprep.subr.mxu0 0.0
        %2383 = vmatpush1.msra.mxu0 %v2357
        %2384 = vmatprep.subr.mxu0 0.0
        %2385 = vmatpush1.msra.mxu0 %v2358
        %2386 = vmatprep.subr.mxu0 0.0
        %2387 = vmatpush1.msra.mxu0 %v2359
        %2388 = vmatprep.subr.mxu0 0.0
        %2389 = vmatpush1.msra.mxu0 %v2360
        %2390 = vmatprep.subr.mxu0 0.0
        %2391 = vmatpush1.msra.mxu0 %v2361
        %2392 = vmatprep.subr.mxu0 0.0
        %2393 = vmatpush1.msra.mxu0 %v2362
        %2394 = vmatprep.subr.mxu0 0.0
        %2395 = vmatpush1.msra.mxu0 %v2363
        %2396 = vmatprep.subr.mxu0 0.0
        %2397 = vmatpush1.msra.mxu0 %v2364
        %2398 = vmatprep.subr.mxu0 0.0
        %2399 = vmatpush1.msra.mxu0 %v2365
        %2400 = vmatprep.subr.mxu0 0.0
        %2401 = vmatpush1.msra.mxu0 %v2366
        %2402 = vmatprep.subr.mxu0 0.0
        %2403 = vmatpush1.msra.mxu0 %v2367
        %2404 = vmatprep.subr.mxu0 0.0
        %2405 = vmatpush1.msra.mxu0 %v2368
        %2406 = vmatprep.subr.mxu0 0.0
        %2407 = vmatpush1.msra.mxu0 %v2369
        %2408 = vmatprep.subr.mxu0 0.0
        %2409 = vmatpush1.msra.mxu0 %v2370
        %2410 = vmatprep.subr.mxu0 0.0
        %2411 = vmatpush1.msra.mxu0 0.0
        %2412 = vmatprep.subr.mxu0 0.0
        %2413 = vmatpush1.msra.mxu0 0.0
        %2414 = vmatprep.subr.mxu0 0.0
        %2415 = vmatpush1.msra.mxu0 0.0
        %2416 = vmatprep.subr.mxu0 0.0
        %2417 = vmatpush1.msra.mxu0 0.0
        %2418 = vmatprep.subr.mxu0 0.0
        %2419 = vmatpush1.msra.mxu0 0.0
        %2420 = vmatprep.subr.mxu0 0.0
        %2421 = vmatpush1.msra.mxu0 0.0
        %2422 = vmatprep.subr.mxu0 0.0
        %2423 = vmatpush1.msra.mxu0 0.0
        %2424 = vmatprep.subr.mxu0 0.0
        %2425 = vmatpush1.msra.mxu0 0.0
        %2426 = vmatprep.subr.mxu0 0.0
        %2427 = vmatpush1.msra.mxu0 0.0
        %2428 = vmatprep.subr.mxu0 0.0
        %2429 = vmatpush1.msra.mxu0 0.0
        %2430 = vmatprep.subr.mxu0 0.0
        %2431 = vmatpush1.msra.mxu0 0.0
        %2432 = vmatprep.subr.mxu0 0.0
        %2433 = vmatpush1.msra.mxu0 0.0
        %2434 = vmatprep.subr.mxu0 0.0
        %2435 = vmatpush1.msra.mxu0 0.0
        %2436 = vmatprep.subr.mxu0 0.0
        %2437 = vmatpush1.msra.mxu0 0.0
        %2438 = vmatprep.subr.mxu0 0.0
        %2439 = vmatpush1.msra.mxu0 0.0
        %2440 = vmatprep.subr.mxu0 0.0
        %2441 = vmatpush1.msra.mxu0 0.0
        %2442 = vmatprep.mubr.f32.mxu0 0.0
        %2443 = vmatmul.mubr.f32.gmra.mrb[0].mxu0 %v2339
        %v2444 = vpop.f32.mrb[0].mxu0
        %v2445 = vadd.f32 %v2376, %v2444
        %v2446 = vpop.f32.mrb[0].mxu0
        %2447 = vmatprep.mubr.f32.mxu0 0.0
        %2448 = vmatmul.mubr.f32.gmra.mrb[0].mxu0 %v2340
        %v2449 = vpop.f32.mrb[0].mxu0
        %v2450 = vadd.f32 %v2376, %v2449
        %v2451 = vpop.f32.mrb[0].mxu0
        %2452 = vmatprep.mubr.f32.mxu0 0.0
        %2453 = vmatmul.mubr.f32.gmra.mrb[0].mxu0 %v2341
        %v2454 = vpop.f32.mrb[0].mxu0
        %v2455 = vadd.f32 %v2376, %v2454
        %v2456 = vpop.f32.mrb[0].mxu0
        %2457 = vmatprep.mubr.f32.mxu0 0.0
        %2458 = vmatmul.mubr.f32.gmra.mrb[0].mxu0 %v2342
        %v2459 = vpop.f32.mrb[0].mxu0
        %v2460 = vadd.f32 %v2376, %v2459
        %v2461 = vpop.f32.mrb[0].mxu0
        %2462 = vmatprep.mubr.f32.mxu0 0.0
        %2463 = vmatmul.mubr.f32.gmra.mrb[0].mxu0 %v2343
        %v2464 = vpop.f32.mrb[0].mxu0
        %v2465 = vadd.f32 %v2376, %v2464
        %v2466 = vpop.f32.mrb[0].mxu0
        %2467 = vmatprep.mubr.f32.mxu0 0.0
        %2468 = vmatmul.mubr.f32.gmra.mrb[0].mxu0 %v2344
        %v2469 = vpop.f32.mrb[0].mxu0
        %v2470 = vadd.f32 %v2376, %v2469
        %v2471 = vpop.f32.mrb[0].mxu0
        %2472 = vmatprep.mubr.f32.mxu0 0.0
        %2473 = vmatmul.mubr.f32.gmra.mrb[0].mxu0 %v2345
        %v2474 = vpop.f32.mrb[0].mxu0
        %v2475 = vadd.f32 %v2376, %v2474
        %v2476 = vpop.f32.mrb[0].mxu0
        %2477 = vmatprep.mubr.f32.mxu0 0.0
        %2478 = vmatmul.mubr.f32.gmra.mrb[0].mxu0 %v2346
        %v2479 = vpop.f32.mrb[0].mxu0
        %v2480 = vadd.f32 %v2376, %v2479
        %v2481 = vpop.f32.mrb[0].mxu0
        %2482 = vmatprep.mubr.f32.mxu0 0.0
        %2483 = vmatmul.mubr.f32.gmra.mrb[0].mxu0 %v2347
        %v2484 = vpop.f32.mrb[0].mxu0
        %v2485 = vadd.f32 %v2376, %v2484
        %v2486 = vpop.f32.mrb[0].mxu0
        %2487 = vmatprep.mubr.f32.mxu0 0.0
        %2488 = vmatmul.mubr.f32.gmra.mrb[0].mxu0 %v2348
        %v2489 = vpop.f32.mrb[0].mxu0
        %v2490 = vadd.f32 %v2376, %v2489
        %v2491 = vpop.f32.mrb[0].mxu0
        %2492 = vmatprep.mubr.f32.mxu0 0.0
        %2493 = vmatmul.mubr.f32.gmra.mrb[0].mxu0 %v2349
        %v2494 = vpop.f32.mrb[0].mxu0
        %v2495 = vadd.f32 %v2376, %v2494
        %v2496 = vpop.f32.mrb[0].mxu0
        %2497 = vmatprep.mubr.f32.mxu0 0.0
        %2498 = vmatmul.mubr.f32.gmra.mrb[0].mxu0 %v2350
        %v2499 = vpop.f32.mrb[0].mxu0
        %v2500 = vadd.f32 %v2376, %v2499
        %v2501 = vpop.f32.mrb[0].mxu0
        %2502 = vmatprep.mubr.f32.mxu0 0.0
        %2503 = vmatmul.mubr.f32.gmra.mrb[0].mxu0 %v2351
        %v2504 = vpop.f32.mrb[0].mxu0
        %v2505 = vadd.f32 %v2376, %v2504
        %v2506 = vpop.f32.mrb[0].mxu0
        %2507 = vmatprep.mubr.f32.mxu0 0.0
        %2508 = vmatmul.mubr.f32.gmra.mrb[0].mxu0 %v2352
        %v2509 = vpop.f32.mrb[0].mxu0
        %v2510 = vadd.f32 %v2376, %v2509
        %v2511 = vpop.f32.mrb[0].mxu0
        %2512 = vmatprep.mubr.f32.mxu0 0.0
        %2513 = vmatmul.mubr.f32.gmra.mrb[0].mxu0 %v2353
        %v2514 = vpop.f32.mrb[0].mxu0
        %v2515 = vadd.f32 %v2376, %v2514
        %v2516 = vpop.f32.mrb[0].mxu0
        %2517 = vmatprep.mubr.f32.mxu0 0.0
        %2518 = vmatmul.mubr.f32.gmra.mrb[0].mxu0 %v2354
        %v2519 = vpop.f32.mrb[0].mxu0
        %v2520 = vadd.f32 %v2376, %v2519
        %v2521 = vpop.f32.mrb[0].mxu0
        %2522 = vdwg.mxu0
        %2539 = vrot.lane.b32.xlu0 %v2445, 96
        %v2540 = vpop.permute.xlu0 %2539
        %2541 = vrot.lane.b32.xlu0 %v2450, 96
        %v2542 = vpop.permute.xlu0 %2541
        %2543 = vrot.lane.b32.xlu0 %v2455, 96
        %v2544 = vpop.permute.xlu0 %2543
        %2545 = vrot.lane.b32.xlu0 %v2460, 96
        %v2546 = vpop.permute.xlu0 %2545
        %2547 = vrot.lane.b32.xlu0 %v2465, 96
        %v2548 = vpop.permute.xlu0 %2547
        %2549 = vrot.lane.b32.xlu0 %v2470, 96
        %v2550 = vpop.permute.xlu0 %2549
        %2551 = vrot.lane.b32.xlu0 %v2475, 96
        %v2552 = vpop.permute.xlu0 %2551
        %2553 = vrot.lane.b32.xlu0 %v2480, 96
        %v2554 = vpop.permute.xlu0 %2553
        %2555 = vrot.lane.b32.xlu0 %v2485, 96
        %v2556 = vpop.permute.xlu0 %2555
        %2557 = vrot.lane.b32.xlu0 %v2490, 96
        %v2558 = vpop.permute.xlu0 %2557
        %2559 = vrot.lane.b32.xlu0 %v2495, 96
        %v2560 = vpop.permute.xlu0 %2559
        %2561 = vrot.lane.b32.xlu0 %v2500, 96
        %v2562 = vpop.permute.xlu0 %2561
        %2563 = vrot.lane.b32.xlu0 %v2505, 96
        %v2564 = vpop.permute.xlu0 %2563
        %2565 = vrot.lane.b32.xlu0 %v2510, 96
        %v2566 = vpop.permute.xlu0 %2565
        %2567 = vrot.lane.b32.xlu0 %v2515, 96
        %v2568 = vpop.permute.xlu0 %2567
        %2569 = vrot.lane.b32.xlu0 %v2520, 96
        %v2570 = vpop.permute.xlu0 %2569
        %2571 = vrot.lane.b32.xlu0 %v2445, 64
        %v2572 = vpop.permute.xlu0 %2571
        %2573 = vrot.lane.b32.xlu0 %v2450, 64
        %v2574 = vpop.permute.xlu0 %2573
        %2575 = vrot.lane.b32.xlu0 %v2455, 64
        %v2576 = vpop.permute.xlu0 %2575
        %2577 = vrot.lane.b32.xlu0 %v2460, 64
        %v2578 = vpop.permute.xlu0 %2577
        %2579 = vrot.lane.b32.xlu0 %v2465, 64
        %v2580 = vpop.permute.xlu0 %2579
        %2581 = vrot.lane.b32.xlu0 %v2470, 64
        %v2582 = vpop.permute.xlu0 %2581
        %2583 = vrot.lane.b32.xlu0 %v2475, 64
        %v2584 = vpop.permute.xlu0 %2583
        %2585 = vrot.lane.b32.xlu0 %v2480, 64
        %v2586 = vpop.permute.xlu0 %2585
        %2587 = vrot.lane.b32.xlu0 %v2485, 64
        %v2588 = vpop.permute.xlu0 %2587
        %2589 = vrot.lane.b32.xlu0 %v2490, 64
        %v2590 = vpop.permute.xlu0 %2589
        %2591 = vrot.lane.b32.xlu0 %v2495, 64
        %v2592 = vpop.permute.xlu0 %2591
        %2593 = vrot.lane.b32.xlu0 %v2500, 64
        %v2594 = vpop.permute.xlu0 %2593
        %2595 = vrot.lane.b32.xlu0 %v2505, 64
        %v2596 = vpop.permute.xlu0 %2595
        %2597 = vrot.lane.b32.xlu0 %v2510, 64
        %v2598 = vpop.permute.xlu0 %2597
        %2599 = vrot.lane.b32.xlu0 %v2515, 64
        %v2600 = vpop.permute.xlu0 %2599
        %2601 = vrot.lane.b32.xlu0 %v2520, 64
        %v2602 = vpop.permute.xlu0 %2601
        %2603 = vrot.lane.b32.xlu0 %v2445, 32
        %v2604 = vpop.permute.xlu0 %2603
        %2605 = vrot.lane.b32.xlu0 %v2450, 32
        %v2606 = vpop.permute.xlu0 %2605
        %2607 = vrot.lane.b32.xlu0 %v2455, 32
        %v2608 = vpop.permute.xlu0 %2607
        %2609 = vrot.lane.b32.xlu0 %v2460, 32
        %v2610 = vpop.permute.xlu0 %2609
        %2611 = vrot.lane.b32.xlu0 %v2465, 32
        %v2612 = vpop.permute.xlu0 %2611
        %2613 = vrot.lane.b32.xlu0 %v2470, 32
        %v2614 = vpop.permute.xlu0 %2613
        %2615 = vrot.lane.b32.xlu0 %v2475, 32
        %v2616 = vpop.permute.xlu0 %2615
        %2617 = vrot.lane.b32.xlu0 %v2480, 32
        %v2618 = vpop.permute.xlu0 %2617
        %2619 = vrot.lane.b32.xlu0 %v2485, 32
        %v2620 = vpop.permute.xlu0 %2619
        %2621 = vrot.lane.b32.xlu0 %v2490, 32
        %v2622 = vpop.permute.xlu0 %2621
        %2623 = vrot.lane.b32.xlu0 %v2495, 32
        %v2624 = vpop.permute.xlu0 %2623
        %2625 = vrot.lane.b32.xlu0 %v2500, 32
        %v2626 = vpop.permute.xlu0 %2625
        %2627 = vrot.lane.b32.xlu0 %v2505, 32
        %v2628 = vpop.permute.xlu0 %2627
        %2629 = vrot.lane.b32.xlu0 %v2510, 32
        %v2630 = vpop.permute.xlu0 %2629
        %2631 = vrot.lane.b32.xlu0 %v2515, 32
        %v2632 = vpop.permute.xlu0 %2631
        %2633 = vrot.lane.b32.xlu0 %v2520, 32
        %v2634 = vpop.permute.xlu0 %2633
        %v2635 = vlaneseq
        %v2636 = vshrl.u32 %v2635, 7
        %v2637 = vadd.s32 %v2636, 8
        %v2638 = vadd.s32 %v2636, 16
        %v2639 = vadd.s32 %v2636, 24
        %v2640 = vadd.s32 %v2636, 32
        %v2641 = vadd.s32 %v2636, 40
        %v2642 = vadd.s32 %v2636, 48
        %v2643 = vadd.s32 %v2636, 56
        %v2644 = vadd.s32 %v2636, 64
        %v2645 = vadd.s32 %v2636, 72
        %v2646 = vadd.s32 %v2636, 80
        %v2647 = vadd.s32 %v2636, 88
        %v2648 = vadd.s32 %v2636, 96
        %v2649 = vadd.s32 %v2636, 104
        %v2650 = vadd.s32 %v2636, 112
        %v2651 = vadd.s32 %v2636, 120
        %v2652 = vstv %s2114
        %v2653 = vadd.s32 %v2652, %v2636
        %v2654 = vadd.s32 %v2652, %v2637
        %v2655 = vadd.s32 %v2652, %v2638
        %v2656 = vadd.s32 %v2652, %v2639
        %v2657 = vadd.s32 %v2652, %v2640
        %v2658 = vadd.s32 %v2652, %v2641
        %v2659 = vadd.s32 %v2652, %v2642
        %v2660 = vadd.s32 %v2652, %v2643
        %v2661 = vadd.s32 %v2652, %v2644
        %v2662 = vadd.s32 %v2652, %v2645
        %v2663 = vadd.s32 %v2652, %v2646
        %v2664 = vadd.s32 %v2652, %v2647
        %v2665 = vadd.s32 %v2652, %v2648
        %v2666 = vadd.s32 %v2652, %v2649
        %v2667 = vadd.s32 %v2652, %v2650
        %v2668 = vadd.s32 %v2652, %v2651
        %s2669 = sadd.s32 %s38, 1
        // While loop
        $region101: #{gpt2_block.1} parent=87 // loop_pre_header
          _
        $region102: #{gpt2_block.1} parent=87 // loop_header
          %s2671 = sphi 0, %s2673
          %p2672 = scmp.ge.s32.totalorder %s2671, %s2669
          %v2676 = vphi -1e+30, %v3969
          %v2677 = vphi -1e+30, %v3970
          %v2678 = vphi -1e+30, %v3971
          %v2679 = vphi -1e+30, %v3972
          %v2680 = vphi -1e+30, %v3973
          %v2681 = vphi -1e+30, %v3974
          %v2682 = vphi -1e+30, %v3975
          %v2683 = vphi -1e+30, %v3976
          %v2684 = vphi -1e+30, %v3977
          %v2685 = vphi -1e+30, %v3978
          %v2686 = vphi -1e+30, %v3979
          %v2687 = vphi -1e+30, %v3980
          %v2688 = vphi -1e+30, %v3981
          %v2689 = vphi -1e+30, %v3982
          %v2690 = vphi -1e+30, %v3983
          %v2691 = vphi -1e+30, %v3984
          %v2692 = vphi -1e+30, %v3985
          %v2693 = vphi -1e+30, %v3986
          %v2694 = vphi -1e+30, %v3987
          %v2695 = vphi -1e+30, %v3988
          %v2696 = vphi -1e+30, %v3989
          %v2697 = vphi -1e+30, %v3990
          %v2698 = vphi -1e+30, %v3991
          %v2699 = vphi -1e+30, %v3992
          %v2700 = vphi -1e+30, %v3993
          %v2701 = vphi -1e+30, %v3994
          %v2702 = vphi -1e+30, %v3995
          %v2703 = vphi -1e+30, %v3996
          %v2704 = vphi -1e+30, %v3997
          %v2705 = vphi -1e+30, %v3998
          %v2706 = vphi -1e+30, %v3999
          %v2707 = vphi -1e+30, %v4000
          %v2708 = vphi -1e+30, %v4001
          %v2709 = vphi -1e+30, %v4002
          %v2710 = vphi -1e+30, %v4003
          %v2711 = vphi -1e+30, %v4004
          %v2712 = vphi -1e+30, %v4005
          %v2713 = vphi -1e+30, %v4006
          %v2714 = vphi -1e+30, %v4007
          %v2715 = vphi -1e+30, %v4008
          %v2716 = vphi -1e+30, %v4009
          %v2717 = vphi -1e+30, %v4010
          %v2718 = vphi -1e+30, %v4011
          %v2719 = vphi -1e+30, %v4012
          %v2720 = vphi -1e+30, %v4013
          %v2721 = vphi -1e+30, %v4014
          %v2722 = vphi -1e+30, %v4015
          %v2723 = vphi -1e+30, %v4016
          %v2724 = vphi -1e+30, %v4017
          %v2725 = vphi -1e+30, %v4018
          %v2726 = vphi -1e+30, %v4019
          %v2727 = vphi -1e+30, %v4020
          %v2728 = vphi -1e+30, %v4021
          %v2729 = vphi -1e+30, %v4022
          %v2730 = vphi -1e+30, %v4023
          %v2731 = vphi -1e+30, %v4024
          %v2732 = vphi -1e+30, %v4025
          %v2733 = vphi -1e+30, %v4026
          %v2734 = vphi -1e+30, %v4027
          %v2735 = vphi -1e+30, %v4028
          %v2736 = vphi -1e+30, %v4029
          %v2737 = vphi -1e+30, %v4030
          %v2738 = vphi -1e+30, %v4031
          %v2739 = vphi -1e+30, %v4032
          %v2740 = vphi 0.0, %v4609
          %v2741 = vphi 0.0, %v4610
          %v2742 = vphi 0.0, %v4611
          %v2743 = vphi 0.0, %v4612
          %v2744 = vphi 0.0, %v4613
          %v2745 = vphi 0.0, %v4614
          %v2746 = vphi 0.0, %v4615
          %v2747 = vphi 0.0, %v4616
          %v2748 = vphi 0.0, %v4617
          %v2749 = vphi 0.0, %v4618
          %v2750 = vphi 0.0, %v4619
          %v2751 = vphi 0.0, %v4620
          %v2752 = vphi 0.0, %v4621
          %v2753 = vphi 0.0, %v4622
          %v2754 = vphi 0.0, %v4623
          %v2755 = vphi 0.0, %v4624
          %v2756 = vphi 0.0, %v4625
          %v2757 = vphi 0.0, %v4626
          %v2758 = vphi 0.0, %v4627
          %v2759 = vphi 0.0, %v4628
          %v2760 = vphi 0.0, %v4629
          %v2761 = vphi 0.0, %v4630
          %v2762 = vphi 0.0, %v4631
          %v2763 = vphi 0.0, %v4632
          %v2764 = vphi 0.0, %v4633
          %v2765 = vphi 0.0, %v4634
          %v2766 = vphi 0.0, %v4635
          %v2767 = vphi 0.0, %v4636
          %v2768 = vphi 0.0, %v4637
          %v2769 = vphi 0.0, %v4638
          %v2770 = vphi 0.0, %v4639
          %v2771 = vphi 0.0, %v4640
          %v2772 = vphi 0.0, %v4641
          %v2773 = vphi 0.0, %v4642
          %v2774 = vphi 0.0, %v4643
          %v2775 = vphi 0.0, %v4644
          %v2776 = vphi 0.0, %v4645
          %v2777 = vphi 0.0, %v4646
          %v2778 = vphi 0.0, %v4647
          %v2779 = vphi 0.0, %v4648
          %v2780 = vphi 0.0, %v4649
          %v2781 = vphi 0.0, %v4650
          %v2782 = vphi 0.0, %v4651
          %v2783 = vphi 0.0, %v4652
          %v2784 = vphi 0.0, %v4653
          %v2785 = vphi 0.0, %v4654
          %v2786 = vphi 0.0, %v4655
          %v2787 = vphi 0.0, %v4656
          %v2788 = vphi 0.0, %v4657
          %v2789 = vphi 0.0, %v4658
          %v2790 = vphi 0.0, %v4659
          %v2791 = vphi 0.0, %v4660
          %v2792 = vphi 0.0, %v4661
          %v2793 = vphi 0.0, %v4662
          %v2794 = vphi 0.0, %v4663
          %v2795 = vphi 0.0, %v4664
          %v2796 = vphi 0.0, %v4665
          %v2797 = vphi 0.0, %v4666
          %v2798 = vphi 0.0, %v4667
          %v2799 = vphi 0.0, %v4668
          %v2800 = vphi 0.0, %v4669
          %v2801 = vphi 0.0, %v4670
          %v2802 = vphi 0.0, %v4671
          %v2803 = vphi 0.0, %v4672
          %v2804 = vphi 0.0, %v5317
          %v2805 = vphi 0.0, %v5318
          %v2806 = vphi 0.0, %v5319
          %v2807 = vphi 0.0, %v5320
          %v2808 = vphi 0.0, %v5321
          %v2809 = vphi 0.0, %v5322
          %v2810 = vphi 0.0, %v5323
          %v2811 = vphi 0.0, %v5324
          %v2812 = vphi 0.0, %v5325
          %v2813 = vphi 0.0, %v5326
          %v2814 = vphi 0.0, %v5327
          %v2815 = vphi 0.0, %v5328
          %v2816 = vphi 0.0, %v5329
          %v2817 = vphi 0.0, %v5330
          %v2818 = vphi 0.0, %v5331
          %v2819 = vphi 0.0, %v5332
          %v2820 = vphi 0.0, %v5333
          %v2821 = vphi 0.0, %v5334
          %v2822 = vphi 0.0, %v5335
          %v2823 = vphi 0.0, %v5336
          %v2824 = vphi 0.0, %v5337
          %v2825 = vphi 0.0, %v5338
          %v2826 = vphi 0.0, %v5339
          %v2827 = vphi 0.0, %v5340
          %v2828 = vphi 0.0, %v5341
          %v2829 = vphi 0.0, %v5342
          %v2830 = vphi 0.0, %v5343
          %v2831 = vphi 0.0, %v5344
          %v2832 = vphi 0.0, %v5345
          %v2833 = vphi 0.0, %v5346
          %v2834 = vphi 0.0, %v5347
          %v2835 = vphi 0.0, %v5348
          %v2836 = vphi 0.0, %v5349
          %v2837 = vphi 0.0, %v5350
          %v2838 = vphi 0.0, %v5351
          %v2839 = vphi 0.0, %v5352
          %v2840 = vphi 0.0, %v5353
          %v2841 = vphi 0.0, %v5354
          %v2842 = vphi 0.0, %v5355
          %v2843 = vphi 0.0, %v5356
          %v2844 = vphi 0.0, %v5357
          %v2845 = vphi 0.0, %v5358
          %v2846 = vphi 0.0, %v5359
          %v2847 = vphi 0.0, %v5360
          %v2848 = vphi 0.0, %v5361
          %v2849 = vphi 0.0, %v5362
          %v2850 = vphi 0.0, %v5363
          %v2851 = vphi 0.0, %v5364
          %v2852 = vphi 0.0, %v5365
          %v2853 = vphi 0.0, %v5366
          %v2854 = vphi 0.0, %v5367
          %v2855 = vphi 0.0, %v5368
          %v2856 = vphi 0.0, %v5369
          %v2857 = vphi 0.0, %v5370
          %v2858 = vphi 0.0, %v5371
          %v2859 = vphi 0.0, %v5372
          %v2860 = vphi 0.0, %v5373
          %v2861 = vphi 0.0, %v5374
          %v2862 = vphi 0.0, %v5375
          %v2863 = vphi 0.0, %v5376
          %v2864 = vphi 0.0, %v5377
          %v2865 = vphi 0.0, %v5378
          %v2866 = vphi 0.0, %v5379
          %v2867 = vphi 0.0, %v5380
        $region103: #{gpt2_block.1} parent=87 // loop_header_branch
          %2675 = sbr.rel (%p2672) target = $region107
        $region104: #{gpt2_block.1} parent=87 // loop_body
          %s2868 = smul.u32 %s2671, 128
          %s2869 = scalar_lea.vmem [#allocation2], %s2868
          %v2870 = vld [vmem:[%s2869] sm:$0xff]
          %v2871 = vld [vmem:[%s2869 + $0x8] sm:$0xff]
          %v2872 = vld [vmem:[%s2869 + $0x10] sm:$0xff]
          %v2873 = vld [vmem:[%s2869 + $0x18] sm:$0xff]
          %v2874 = vld [vmem:[%s2869 + $0x20] sm:$0xff]
          %v2875 = vld [vmem:[%s2869 + $0x28] sm:$0xff]
          %v2876 = vld [vmem:[%s2869 + $0x30] sm:$0xff]
          %v2877 = vld [vmem:[%s2869 + $0x38] sm:$0xff]
          %v2878 = vld [vmem:[%s2869 + $0x40] sm:$0xff]
          %v2879 = vld [vmem:[%s2869 + $0x48] sm:$0xff]
          %v2880 = vld [vmem:[%s2869 + $0x50] sm:$0xff]
          %v2881 = vld [vmem:[%s2869 + $0x58] sm:$0xff]
          %v2882 = vld [vmem:[%s2869 + $0x60] sm:$0xff]
          %v2883 = vld [vmem:[%s2869 + $0x68] sm:$0xff]
          %v2884 = vld [vmem:[%s2869 + $0x70] sm:$0xff]
          %v2885 = vld [vmem:[%s2869 + $0x78] sm:$0xff]
          %s2886 = smul.u32 %s2671, 512
          %s2887 = scalar_lea.vmem [#allocation3], %s2886
          %v2888 = vld [vmem:[%s2887] sm:$0xff]
          %v2889 = vld [vmem:[%s2887 + $0x8] sm:$0xff]
          %v2890 = vld [vmem:[%s2887 + $0x10] sm:$0xff]
          %v2891 = vld [vmem:[%s2887 + $0x18] sm:$0xff]
          %v2892 = vld [vmem:[%s2887 + $0x20] sm:$0xff]
          %v2893 = vld [vmem:[%s2887 + $0x28] sm:$0xff]
          %v2894 = vld [vmem:[%s2887 + $0x30] sm:$0xff]
          %v2895 = vld [vmem:[%s2887 + $0x38] sm:$0xff]
          %v2896 = vld [vmem:[%s2887 + $0x40] sm:$0xff]
          %v2897 = vld [vmem:[%s2887 + $0x48] sm:$0xff]
          %v2898 = vld [vmem:[%s2887 + $0x50] sm:$0xff]
          %v2899 = vld [vmem:[%s2887 + $0x58] sm:$0xff]
          %v2900 = vld [vmem:[%s2887 + $0x60] sm:$0xff]
          %v2901 = vld [vmem:[%s2887 + $0x68] sm:$0xff]
          %v2902 = vld [vmem:[%s2887 + $0x70] sm:$0xff]
          %v2903 = vld [vmem:[%s2887 + $0x78] sm:$0xff]
          %v2904 = vld [vmem:[%s2887 + $0x80] sm:$0xff]
          %v2905 = vld [vmem:[%s2887 + $0x88] sm:$0xff]
          %v2906 = vld [vmem:[%s2887 + $0x90] sm:$0xff]
          %v2907 = vld [vmem:[%s2887 + $0x98] sm:$0xff]
          %v2908 = vld [vmem:[%s2887 + $0xa0] sm:$0xff]
          %v2909 = vld [vmem:[%s2887 + $0xa8] sm:$0xff]
          %v2910 = vld [vmem:[%s2887 + $0xb0] sm:$0xff]
          %v2911 = vld [vmem:[%s2887 + $0xb8] sm:$0xff]
          %v2912 = vld [vmem:[%s2887 + $0xc0] sm:$0xff]
          %v2913 = vld [vmem:[%s2887 + $0xc8] sm:$0xff]
          %v2914 = vld [vmem:[%s2887 + $0xd0] sm:$0xff]
          %v2915 = vld [vmem:[%s2887 + $0xd8] sm:$0xff]
          %v2916 = vld [vmem:[%s2887 + $0xe0] sm:$0xff]
          %v2917 = vld [vmem:[%s2887 + $0xe8] sm:$0xff]
          %v2918 = vld [vmem:[%s2887 + $0xf0] sm:$0xff]
          %v2919 = vld [vmem:[%s2887 + $0xf8] sm:$0xff]
          %v2920 = vld [vmem:[%s2887 + $0x100] sm:$0xff]
          %v2921 = vld [vmem:[%s2887 + $0x108] sm:$0xff]
          %v2922 = vld [vmem:[%s2887 + $0x110] sm:$0xff]
          %v2923 = vld [vmem:[%s2887 + $0x118] sm:$0xff]
          %v2924 = vld [vmem:[%s2887 + $0x120] sm:$0xff]
          %v2925 = vld [vmem:[%s2887 + $0x128] sm:$0xff]
          %v2926 = vld [vmem:[%s2887 + $0x130] sm:$0xff]
          %v2927 = vld [vmem:[%s2887 + $0x138] sm:$0xff]
          %v2928 = vld [vmem:[%s2887 + $0x140] sm:$0xff]
          %v2929 = vld [vmem:[%s2887 + $0x148] sm:$0xff]
          %v2930 = vld [vmem:[%s2887 + $0x150] sm:$0xff]
          %v2931 = vld [vmem:[%s2887 + $0x158] sm:$0xff]
          %v2932 = vld [vmem:[%s2887 + $0x160] sm:$0xff]
          %v2933 = vld [vmem:[%s2887 + $0x168] sm:$0xff]
          %v2934 = vld [vmem:[%s2887 + $0x170] sm:$0xff]
          %v2935 = vld [vmem:[%s2887 + $0x178] sm:$0xff]
          %v2936 = vld [vmem:[%s2887 + $0x180] sm:$0xff]
          %v2937 = vld [vmem:[%s2887 + $0x188] sm:$0xff]
          %v2938 = vld [vmem:[%s2887 + $0x190] sm:$0xff]
          %v2939 = vld [vmem:[%s2887 + $0x198] sm:$0xff]
          %v2940 = vld [vmem:[%s2887 + $0x1a0] sm:$0xff]
          %v2941 = vld [vmem:[%s2887 + $0x1a8] sm:$0xff]
          %v2942 = vld [vmem:[%s2887 + $0x1b0] sm:$0xff]
          %v2943 = vld [vmem:[%s2887 + $0x1b8] sm:$0xff]
          %v2944 = vld [vmem:[%s2887 + $0x1c0] sm:$0xff]
          %v2945 = vld [vmem:[%s2887 + $0x1c8] sm:$0xff]
          %v2946 = vld [vmem:[%s2887 + $0x1d0] sm:$0xff]
          %v2947 = vld [vmem:[%s2887 + $0x1d8] sm:$0xff]
          %v2948 = vld [vmem:[%s2887 + $0x1e0] sm:$0xff]
          %v2949 = vld [vmem:[%s2887 + $0x1e8] sm:$0xff]
          %v2950 = vld [vmem:[%s2887 + $0x1f0] sm:$0xff]
          %v2951 = vld [vmem:[%s2887 + $0x1f8] sm:$0xff]
          %vm2952 = vcmask 261120
          %v2953 = vsel %vm2952, %v2445, 0
          %v2955 = vsel %vm2952, %v2450, 0
          %v2957 = vsel %vm2952, %v2455, 0
          %v2959 = vsel %vm2952, %v2460, 0
          %v2961 = vsel %vm2952, %v2465, 0
          %v2963 = vsel %vm2952, %v2470, 0
          %v2965 = vsel %vm2952, %v2475, 0
          %v2967 = vsel %vm2952, %v2480, 0
          %v2969 = vsel %vm2952, %v2485, 0
          %v2971 = vsel %vm2952, %v2490, 0
          %v2973 = vsel %vm2952, %v2495, 0
          %v2975 = vsel %vm2952, %v2500, 0
          %v2977 = vsel %vm2952, %v2505, 0
          %v2979 = vsel %vm2952, %v2510, 0
          %v2981 = vsel %vm2952, %v2515, 0
          %v2983 = vsel %vm2952, %v2520, 0
          %2985 = vmatprep.subr.mxu0 0.0
          %2986 = vmatpush1.msra.mxu0 %v2870
          %2987 = vmatprep.subr.mxu0 0.0
          %2988 = vmatpush1.msra.mxu0 %v2871
          %2989 = vmatprep.subr.mxu0 0.0
          %2990 = vmatpush1.msra.mxu0 %v2872
          %2991 = vmatprep.subr.mxu0 0.0
          %2992 = vmatpush1.msra.mxu0 %v2873
          %2993 = vmatprep.subr.mxu0 0.0
          %2994 = vmatpush1.msra.mxu0 0.0
          %2995 = vmatprep.subr.mxu0 0.0
          %2996 = vmatpush1.msra.mxu0 0.0
          %2997 = vmatprep.subr.mxu0 0.0
          %2998 = vmatpush1.msra.mxu0 0.0
          %2999 = vmatprep.subr.mxu0 0.0
          %3000 = vmatpush1.msra.mxu0 0.0
          %3001 = vmatprep.subr.mxu0 0.0
          %3002 = vmatpush1.msra.mxu0 0.0
          %3003 = vmatprep.subr.mxu0 0.0
          %3004 = vmatpush1.msra.mxu0 0.0
          %3005 = vmatprep.subr.mxu0 0.0
          %3006 = vmatpush1.msra.mxu0 0.0
          %3007 = vmatprep.subr.mxu0 0.0
          %3008 = vmatpush1.msra.mxu0 0.0
          %3009 = vmatprep.subr.mxu0 0.0
          %3010 = vmatpush1.msra.mxu0 0.0
          %3011 = vmatprep.subr.mxu0 0.0
          %3012 = vmatpush1.msra.mxu0 0.0
          %3013 = vmatprep.subr.mxu0 0.0
          %3014 = vmatpush1.msra.mxu0 0.0
          %3015 = vmatprep.subr.mxu0 0.0
          %3016 = vmatpush1.msra.mxu0 0.0
          %3017 = vmatprep.subr.mxu0 0.0
          %3018 = vmatpush1.msra.mxu0 0.0
          %3019 = vmatprep.subr.mxu0 0.0
          %3020 = vmatpush1.msra.mxu0 0.0
          %3021 = vmatprep.subr.mxu0 0.0
          %3022 = vmatpush1.msra.mxu0 0.0
          %3023 = vmatprep.subr.mxu0 0.0
          %3024 = vmatpush1.msra.mxu0 0.0
          %3025 = vmatprep.subr.mxu0 0.0
          %3026 = vmatpush1.msra.mxu0 0.0
          %3027 = vmatprep.subr.mxu0 0.0
          %3028 = vmatpush1.msra.mxu0 0.0
          %3029 = vmatprep.subr.mxu0 0.0
          %3030 = vmatpush1.msra.mxu0 0.0
          %3031 = vmatprep.subr.mxu0 0.0
          %3032 = vmatpush1.msra.mxu0 0.0
          %3033 = vmatprep.subr.mxu0 0.0
          %3034 = vmatpush1.msra.mxu0 0.0
          %3035 = vmatprep.subr.mxu0 0.0
          %3036 = vmatpush1.msra.mxu0 0.0
          %3037 = vmatprep.subr.mxu0 0.0
          %3038 = vmatpush1.msra.mxu0 0.0
          %3039 = vmatprep.subr.mxu0 0.0
          %3040 = vmatpush1.msra.mxu0 0.0
          %3041 = vmatprep.subr.mxu0 0.0
          %3042 = vmatpush1.msra.mxu0 0.0
          %3043 = vmatprep.subr.mxu0 0.0
          %3044 = vmatpush1.msra.mxu0 0.0
          %3045 = vmatprep.subr.mxu0 0.0
          %3046 = vmatpush1.msra.mxu0 0.0
          %3047 = vmatprep.subr.mxu0 0.0
          %3048 = vmatpush1.msra.mxu0 0.0
          %3049 = vmatprep.mubr.f32.mxu0 0.0
          %3050 = vmatmul.mubr.f32.gmra.mrb[0].mxu0 %v2953
          %v3051 = vpop.f32.mrb[0].mxu0
          %v3052 = vadd.f32 0.0, %v3051
          %v3053 = vpop.f32.mrb[0].mxu0
          %3054 = vmatprep.mubr.f32.mxu0 0.0
          %3055 = vmatmul.mubr.f32.gmra.mrb[0].mxu0 %v2955
          %v3056 = vpop.f32.mrb[0].mxu0
          %v3057 = vadd.f32 0.0, %v3056
          %v3058 = vpop.f32.mrb[0].mxu0
          %3059 = vmatprep.mubr.f32.mxu0 0.0
          %3060 = vmatmul.mubr.f32.gmra.mrb[0].mxu0 %v2957
          %v3061 = vpop.f32.mrb[0].mxu0
          %v3062 = vadd.f32 0.0, %v3061
          %v3063 = vpop.f32.mrb[0].mxu0
          %3064 = vmatprep.mubr.f32.mxu0 0.0
          %3065 = vmatmul.mubr.f32.gmra.mrb[0].mxu0 %v2959
          %v3066 = vpop.f32.mrb[0].mxu0
          %v3067 = vadd.f32 0.0, %v3066
          %v3068 = vpop.f32.mrb[0].mxu0
          %3069 = vmatprep.mubr.f32.mxu0 0.0
          %3070 = vmatmul.mubr.f32.gmra.mrb[0].mxu0 %v2961
          %v3071 = vpop.f32.mrb[0].mxu0
          %v3072 = vadd.f32 0.0, %v3071
          %v3073 = vpop.f32.mrb[0].mxu0
          %3074 = vmatprep.mubr.f32.mxu0 0.0
          %3075 = vmatmul.mubr.f32.gmra.mrb[0].mxu0 %v2963
          %v3076 = vpop.f32.mrb[0].mxu0
          %v3077 = vadd.f32 0.0, %v3076
          %v3078 = vpop.f32.mrb[0].mxu0
          %3079 = vmatprep.mubr.f32.mxu0 0.0
          %3080 = vmatmul.mubr.f32.gmra.mrb[0].mxu0 %v2965
          %v3081 = vpop.f32.mrb[0].mxu0
          %v3082 = vadd.f32 0.0, %v3081
          %v3083 = vpop.f32.mrb[0].mxu0
          %3084 = vmatprep.mubr.f32.mxu0 0.0
          %3085 = vmatmul.mubr.f32.gmra.mrb[0].mxu0 %v2967
          %v3086 = vpop.f32.mrb[0].mxu0
          %v3087 = vadd.f32 0.0, %v3086
          %v3088 = vpop.f32.mrb[0].mxu0
          %3089 = vmatprep.mubr.f32.mxu0 0.0
          %3090 = vmatmul.mubr.f32.gmra.mrb[0].mxu0 %v2969
          %v3091 = vpop.f32.mrb[0].mxu0
          %v3092 = vadd.f32 0.0, %v3091
          %v3093 = vpop.f32.mrb[0].mxu0
          %3094 = vmatprep.mubr.f32.mxu0 0.0
          %3095 = vmatmul.mubr.f32.gmra.mrb[0].mxu0 %v2971
          %v3096 = vpop.f32.mrb[0].mxu0
          %v3097 = vadd.f32 0.0, %v3096
          %v3098 = vpop.f32.mrb[0].mxu0
          %3099 = vmatprep.mubr.f32.mxu0 0.0
          %3100 = vmatmul.mubr.f32.gmra.mrb[0].mxu0 %v2973
          %v3101 = vpop.f32.mrb[0].mxu0
          %v3102 = vadd.f32 0.0, %v3101
          %v3103 = vpop.f32.mrb[0].mxu0
          %3104 = vmatprep.mubr.f32.mxu0 0.0
          %3105 = vmatmul.mubr.f32.gmra.mrb[0].mxu0 %v2975
          %v3106 = vpop.f32.mrb[0].mxu0
          %v3107 = vadd.f32 0.0, %v3106
          %v3108 = vpop.f32.mrb[0].mxu0
          %3109 = vmatprep.mubr.f32.mxu0 0.0
          %3110 = vmatmul.mubr.f32.gmra.mrb[0].mxu0 %v2977
          %v3111 = vpop.f32.mrb[0].mxu0
          %v3112 = vadd.f32 0.0, %v3111
          %v3113 = vpop.f32.mrb[0].mxu0
          %3114 = vmatprep.mubr.f32.mxu0 0.0
          %3115 = vmatmul.mubr.f32.gmra.mrb[0].mxu0 %v2979
          %v3116 = vpop.f32.mrb[0].mxu0
          %v3117 = vadd.f32 0.0, %v3116
          %v3118 = vpop.f32.mrb[0].mxu0
          %3119 = vmatprep.mubr.f32.mxu0 0.0
          %3120 = vmatmul.mubr.f32.gmra.mrb[0].mxu0 %v2981
          %v3121 = vpop.f32.mrb[0].mxu0
          %v3122 = vadd.f32 0.0, %v3121
          %v3123 = vpop.f32.mrb[0].mxu0
          %3124 = vmatprep.mubr.f32.mxu0 0.0
          %3125 = vmatmul.mubr.f32.gmra.mrb[0].mxu0 %v2983
          %v3126 = vpop.f32.mrb[0].mxu0
          %v3127 = vadd.f32 0.0, %v3126
          %v3128 = vpop.f32.mrb[0].mxu0
          %3129 = vdwg.mxu0
          %v3130 = vsel %vm2952, %v2540, 0
          %v3132 = vsel %vm2952, %v2542, 0
          %v3134 = vsel %vm2952, %v2544, 0
          %v3136 = vsel %vm2952, %v2546, 0
          %v3138 = vsel %vm2952, %v2548, 0
          %v3140 = vsel %vm2952, %v2550, 0
          %v3142 = vsel %vm2952, %v2552, 0
          %v3144 = vsel %vm2952, %v2554, 0
          %v3146 = vsel %vm2952, %v2556, 0
          %v3148 = vsel %vm2952, %v2558, 0
          %v3150 = vsel %vm2952, %v2560, 0
          %v3152 = vsel %vm2952, %v2562, 0
          %v3154 = vsel %vm2952, %v2564, 0
          %v3156 = vsel %vm2952, %v2566, 0
          %v3158 = vsel %vm2952, %v2568, 0
          %v3160 = vsel %vm2952, %v2570, 0
          %3162 = vmatprep.subr.mxu0 0.0
          %3163 = vmatpush1.msra.mxu0 %v2874
          %3164 = vmatprep.subr.mxu0 0.0
          %3165 = vmatpush1.msra.mxu0 %v2875
          %3166 = vmatprep.subr.mxu0 0.0
          %3167 = vmatpush1.msra.mxu0 %v2876
          %3168 = vmatprep.subr.mxu0 0.0
          %3169 = vmatpush1.msra.mxu0 %v2877
          %3170 = vmatprep.subr.mxu0 0.0
          %3171 = vmatpush1.msra.mxu0 0.0
          %3172 = vmatprep.subr.mxu0 0.0
          %3173 = vmatpush1.msra.mxu0 0.0
          %3174 = vmatprep.subr.mxu0 0.0
          %3175 = vmatpush1.msra.mxu0 0.0
          %3176 = vmatprep.subr.mxu0 0.0
          %3177 = vmatpush1.msra.mxu0 0.0
          %3178 = vmatprep.subr.mxu0 0.0
          %3179 = vmatpush1.msra.mxu0 0.0
          %3180 = vmatprep.subr.mxu0 0.0
          %3181 = vmatpush1.msra.mxu0 0.0
          %3182 = vmatprep.subr.mxu0 0.0
          %3183 = vmatpush1.msra.mxu0 0.0
          %3184 = vmatprep.subr.mxu0 0.0
          %3185 = vmatpush1.msra.mxu0 0.0
          %3186 = vmatprep.subr.mxu0 0.0
          %3187 = vmatpush1.msra.mxu0 0.0
          %3188 = vmatprep.subr.mxu0 0.0
          %3189 = vmatpush1.msra.mxu0 0.0
          %3190 = vmatprep.subr.mxu0 0.0
          %3191 = vmatpush1.msra.mxu0 0.0
          %3192 = vmatprep.subr.mxu0 0.0
          %3193 = vmatpush1.msra.mxu0 0.0
          %3194 = vmatprep.subr.mxu0 0.0
          %3195 = vmatpush1.msra.mxu0 0.0
          %3196 = vmatprep.subr.mxu0 0.0
          %3197 = vmatpush1.msra.mxu0 0.0
          %3198 = vmatprep.subr.mxu0 0.0
          %3199 = vmatpush1.msra.mxu0 0.0
          %3200 = vmatprep.subr.mxu0 0.0
          %3201 = vmatpush1.msra.mxu0 0.0
          %3202 = vmatprep.subr.mxu0 0.0
          %3203 = vmatpush1.msra.mxu0 0.0
          %3204 = vmatprep.subr.mxu0 0.0
          %3205 = vmatpush1.msra.mxu0 0.0
          %3206 = vmatprep.subr.mxu0 0.0
          %3207 = vmatpush1.msra.mxu0 0.0
          %3208 = vmatprep.subr.mxu0 0.0
          %3209 = vmatpush1.msra.mxu0 0.0
          %3210 = vmatprep.subr.mxu0 0.0
          %3211 = vmatpush1.msra.mxu0 0.0
          %3212 = vmatprep.subr.mxu0 0.0
          %3213 = vmatpush1.msra.mxu0 0.0
          %3214 = vmatprep.subr.mxu0 0.0
          %3215 = vmatpush1.msra.mxu0 0.0
          %3216 = vmatprep.subr.mxu0 0.0
          %3217 = vmatpush1.msra.mxu0 0.0
          %3218 = vmatprep.subr.mxu0 0.0
          %3219 = vmatpush1.msra.mxu0 0.0
          %3220 = vmatprep.subr.mxu0 0.0
          %3221 = vmatpush1.msra.mxu0 0.0
          %3222 = vmatprep.subr.mxu0 0.0
          %3223 = vmatpush1.msra.mxu0 0.0
          %3224 = vmatprep.subr.mxu0 0.0
          %3225 = vmatpush1.msra.mxu0 0.0
          %3226 = vmatprep.mubr.f32.mxu0 0.0
          %3227 = vmatmul.mubr.f32.gmra.mrb[0].mxu0 %v3130
          %v3228 = vpop.f32.mrb[0].mxu0
          %v3229 = vadd.f32 0.0, %v3228
          %v3230 = vpop.f32.mrb[0].mxu0
          %3231 = vmatprep.mubr.f32.mxu0 0.0
          %3232 = vmatmul.mubr.f32.gmra.mrb[0].mxu0 %v3132
          %v3233 = vpop.f32.mrb[0].mxu0
          %v3234 = vadd.f32 0.0, %v3233
          %v3235 = vpop.f32.mrb[0].mxu0
          %3236 = vmatprep.mubr.f32.mxu0 0.0
          %3237 = vmatmul.mubr.f32.gmra.mrb[0].mxu0 %v3134
          %v3238 = vpop.f32.mrb[0].mxu0
          %v3239 = vadd.f32 0.0, %v3238
          %v3240 = vpop.f32.mrb[0].mxu0
          %3241 = vmatprep.mubr.f32.mxu0 0.0
          %3242 = vmatmul.mubr.f32.gmra.mrb[0].mxu0 %v3136
          %v3243 = vpop.f32.mrb[0].mxu0
          %v3244 = vadd.f32 0.0, %v3243
          %v3245 = vpop.f32.mrb[0].mxu0
          %3246 = vmatprep.mubr.f32.mxu0 0.0
          %3247 = vmatmul.mubr.f32.gmra.mrb[0].mxu0 %v3138
          %v3248 = vpop.f32.mrb[0].mxu0
          %v3249 = vadd.f32 0.0, %v3248
          %v3250 = vpop.f32.mrb[0].mxu0
          %3251 = vmatprep.mubr.f32.mxu0 0.0
          %3252 = vmatmul.mubr.f32.gmra.mrb[0].mxu0 %v3140
          %v3253 = vpop.f32.mrb[0].mxu0
          %v3254 = vadd.f32 0.0, %v3253
          %v3255 = vpop.f32.mrb[0].mxu0
          %3256 = vmatprep.mubr.f32.mxu0 0.0
          %3257 = vmatmul.mubr.f32.gmra.mrb[0].mxu0 %v3142
          %v3258 = vpop.f32.mrb[0].mxu0
          %v3259 = vadd.f32 0.0, %v3258
          %v3260 = vpop.f32.mrb[0].mxu0
          %3261 = vmatprep.mubr.f32.mxu0 0.0
          %3262 = vmatmul.mubr.f32.gmra.mrb[0].mxu0 %v3144
          %v3263 = vpop.f32.mrb[0].mxu0
          %v3264 = vadd.f32 0.0, %v3263
          %v3265 = vpop.f32.mrb[0].mxu0
          %3266 = vmatprep.mubr.f32.mxu0 0.0
          %3267 = vmatmul.mubr.f32.gmra.mrb[0].mxu0 %v3146
          %v3268 = vpop.f32.mrb[0].mxu0
          %v3269 = vadd.f32 0.0, %v3268
          %v3270 = vpop.f32.mrb[0].mxu0
          %3271 = vmatprep.mubr.f32.mxu0 0.0
          %3272 = vmatmul.mubr.f32.gmra.mrb[0].mxu0 %v3148
          %v3273 = vpop.f32.mrb[0].mxu0
          %v3274 = vadd.f32 0.0, %v3273
          %v3275 = vpop.f32.mrb[0].mxu0
          %3276 = vmatprep.mubr.f32.mxu0 0.0
          %3277 = vmatmul.mubr.f32.gmra.mrb[0].mxu0 %v3150
          %v3278 = vpop.f32.mrb[0].mxu0
          %v3279 = vadd.f32 0.0, %v3278
          %v3280 = vpop.f32.mrb[0].mxu0
          %3281 = vmatprep.mubr.f32.mxu0 0.0
          %3282 = vmatmul.mubr.f32.gmra.mrb[0].mxu0 %v3152
          %v3283 = vpop.f32.mrb[0].mxu0
          %v3284 = vadd.f32 0.0, %v3283
          %v3285 = vpop.f32.mrb[0].mxu0
          %3286 = vmatprep.mubr.f32.mxu0 0.0
          %3287 = vmatmul.mubr.f32.gmra.mrb[0].mxu0 %v3154
          %v3288 = vpop.f32.mrb[0].mxu0
          %v3289 = vadd.f32 0.0, %v3288
          %v3290 = vpop.f32.mrb[0].mxu0
          %3291 = vmatprep.mubr.f32.mxu0 0.0
          %3292 = vmatmul.mubr.f32.gmra.mrb[0].mxu0 %v3156
          %v3293 = vpop.f32.mrb[0].mxu0
          %v3294 = vadd.f32 0.0, %v3293
          %v3295 = vpop.f32.mrb[0].mxu0
          %3296 = vmatprep.mubr.f32.mxu0 0.0
          %3297 = vmatmul.mubr.f32.gmra.mrb[0].mxu0 %v3158
          %v3298 = vpop.f32.mrb[0].mxu0
          %v3299 = vadd.f32 0.0, %v3298
          %v3300 = vpop.f32.mrb[0].mxu0
          %3301 = vmatprep.mubr.f32.mxu0 0.0
          %3302 = vmatmul.mubr.f32.gmra.mrb[0].mxu0 %v3160
          %v3303 = vpop.f32.mrb[0].mxu0
          %v3304 = vadd.f32 0.0, %v3303
          %v3305 = vpop.f32.mrb[0].mxu0
          %3306 = vdwg.mxu0
          %v3307 = vsel %vm2952, %v2572, 0
          %v3309 = vsel %vm2952, %v2574, 0
          %v3311 = vsel %vm2952, %v2576, 0
          %v3313 = vsel %vm2952, %v2578, 0
          %v3315 = vsel %vm2952, %v2580, 0
          %v3317 = vsel %vm2952, %v2582, 0
          %v3319 = vsel %vm2952, %v2584, 0
          %v3321 = vsel %vm2952, %v2586, 0
          %v3323 = vsel %vm2952, %v2588, 0
          %v3325 = vsel %vm2952, %v2590, 0
          %v3327 = vsel %vm2952, %v2592, 0
          %v3329 = vsel %vm2952, %v2594, 0
          %v3331 = vsel %vm2952, %v2596, 0
          %v3333 = vsel %vm2952, %v2598, 0
          %v3335 = vsel %vm2952, %v2600, 0
          %v3337 = vsel %vm2952, %v2602, 0
          %3339 = vmatprep.subr.mxu0 0.0
          %3340 = vmatpush1.msra.mxu0 %v2878
          %3341 = vmatprep.subr.mxu0 0.0
          %3342 = vmatpush1.msra.mxu0 %v2879
          %3343 = vmatprep.subr.mxu0 0.0
          %3344 = vmatpush1.msra.mxu0 %v2880
          %3345 = vmatprep.subr.mxu0 0.0
          %3346 = vmatpush1.msra.mxu0 %v2881
          %3347 = vmatprep.subr.mxu0 0.0
          %3348 = vmatpush1.msra.mxu0 0.0
          %3349 = vmatprep.subr.mxu0 0.0
          %3350 = vmatpush1.msra.mxu0 0.0
          %3351 = vmatprep.subr.mxu0 0.0
          %3352 = vmatpush1.msra.mxu0 0.0
          %3353 = vmatprep.subr.mxu0 0.0
          %3354 = vmatpush1.msra.mxu0 0.0
          %3355 = vmatprep.subr.mxu0 0.0
          %3356 = vmatpush1.msra.mxu0 0.0
          %3357 = vmatprep.subr.mxu0 0.0
          %3358 = vmatpush1.msra.mxu0 0.0
          %3359 = vmatprep.subr.mxu0 0.0
          %3360 = vmatpush1.msra.mxu0 0.0
          %3361 = vmatprep.subr.mxu0 0.0
          %3362 = vmatpush1.msra.mxu0 0.0
          %3363 = vmatprep.subr.mxu0 0.0
          %3364 = vmatpush1.msra.mxu0 0.0
          %3365 = vmatprep.subr.mxu0 0.0
          %3366 = vmatpush1.msra.mxu0 0.0
          %3367 = vmatprep.subr.mxu0 0.0
          %3368 = vmatpush1.msra.mxu0 0.0
          %3369 = vmatprep.subr.mxu0 0.0
          %3370 = vmatpush1.msra.mxu0 0.0
          %3371 = vmatprep.subr.mxu0 0.0
          %3372 = vmatpush1.msra.mxu0 0.0
          %3373 = vmatprep.subr.mxu0 0.0
          %3374 = vmatpush1.msra.mxu0 0.0
          %3375 = vmatprep.subr.mxu0 0.0
          %3376 = vmatpush1.msra.mxu0 0.0
          %3377 = vmatprep.subr.mxu0 0.0
          %3378 = vmatpush1.msra.mxu0 0.0
          %3379 = vmatprep.subr.mxu0 0.0
          %3380 = vmatpush1.msra.mxu0 0.0
          %3381 = vmatprep.subr.mxu0 0.0
          %3382 = vmatpush1.msra.mxu0 0.0
          %3383 = vmatprep.subr.mxu0 0.0
          %3384 = vmatpush1.msra.mxu0 0.0
          %3385 = vmatprep.subr.mxu0 0.0
          %3386 = vmatpush1.msra.mxu0 0.0
          %3387 = vmatprep.subr.mxu0 0.0
          %3388 = vmatpush1.msra.mxu0 0.0
          %3389 = vmatprep.subr.mxu0 0.0
          %3390 = vmatpush1.msra.mxu0 0.0
          %3391 = vmatprep.subr.mxu0 0.0
          %3392 = vmatpush1.msra.mxu0 0.0
          %3393 = vmatprep.subr.mxu0 0.0
          %3394 = vmatpush1.msra.mxu0 0.0
          %3395 = vmatprep.subr.mxu0 0.0
          %3396 = vmatpush1.msra.mxu0 0.0
          %3397 = vmatprep.subr.mxu0 0.0
          %3398 = vmatpush1.msra.mxu0 0.0
          %3399 = vmatprep.subr.mxu0 0.0
          %3400 = vmatpush1.msra.mxu0 0.0
          %3401 = vmatprep.subr.mxu0 0.0
          %3402 = vmatpush1.msra.mxu0 0.0
          %3403 = vmatprep.mubr.f32.mxu0 0.0
          %3404 = vmatmul.mubr.f32.gmra.mrb[0].mxu0 %v3307
          %v3405 = vpop.f32.mrb[0].mxu0
          %v3406 = vadd.f32 0.0, %v3405
          %v3407 = vpop.f32.mrb[0].mxu0
          %3408 = vmatprep.mubr.f32.mxu0 0.0
          %3409 = vmatmul.mubr.f32.gmra.mrb[0].mxu0 %v3309
          %v3410 = vpop.f32.mrb[0].mxu0
          %v3411 = vadd.f32 0.0, %v3410
          %v3412 = vpop.f32.mrb[0].mxu0
          %3413 = vmatprep.mubr.f32.mxu0 0.0
          %3414 = vmatmul.mubr.f32.gmra.mrb[0].mxu0 %v3311
          %v3415 = vpop.f32.mrb[0].mxu0
          %v3416 = vadd.f32 0.0, %v3415
          %v3417 = vpop.f32.mrb[0].mxu0
          %3418 = vmatprep.mubr.f32.mxu0 0.0
          %3419 = vmatmul.mubr.f32.gmra.mrb[0].mxu0 %v3313
          %v3420 = vpop.f32.mrb[0].mxu0
          %v3421 = vadd.f32 0.0, %v3420
          %v3422 = vpop.f32.mrb[0].mxu0
          %3423 = vmatprep.mubr.f32.mxu0 0.0
          %3424 = vmatmul.mubr.f32.gmra.mrb[0].mxu0 %v3315
          %v3425 = vpop.f32.mrb[0].mxu0
          %v3426 = vadd.f32 0.0, %v3425
          %v3427 = vpop.f32.mrb[0].mxu0
          %3428 = vmatprep.mubr.f32.mxu0 0.0
          %3429 = vmatmul.mubr.f32.gmra.mrb[0].mxu0 %v3317
          %v3430 = vpop.f32.mrb[0].mxu0
          %v3431 = vadd.f32 0.0, %v3430
          %v3432 = vpop.f32.mrb[0].mxu0
          %3433 = vmatprep.mubr.f32.mxu0 0.0
          %3434 = vmatmul.mubr.f32.gmra.mrb[0].mxu0 %v3319
          %v3435 = vpop.f32.mrb[0].mxu0
          %v3436 = vadd.f32 0.0, %v3435
          %v3437 = vpop.f32.mrb[0].mxu0
          %3438 = vmatprep.mubr.f32.mxu0 0.0
          %3439 = vmatmul.mubr.f32.gmra.mrb[0].mxu0 %v3321
          %v3440 = vpop.f32.mrb[0].mxu0
          %v3441 = vadd.f32 0.0, %v3440
          %v3442 = vpop.f32.mrb[0].mxu0
          %3443 = vmatprep.mubr.f32.mxu0 0.0
          %3444 = vmatmul.mubr.f32.gmra.mrb[0].mxu0 %v3323
          %v3445 = vpop.f32.mrb[0].mxu0
          %v3446 = vadd.f32 0.0, %v3445
          %v3447 = vpop.f32.mrb[0].mxu0
          %3448 = vmatprep.mubr.f32.mxu0 0.0
          %3449 = vmatmul.mubr.f32.gmra.mrb[0].mxu0 %v3325
          %v3450 = vpop.f32.mrb[0].mxu0
          %v3451 = vadd.f32 0.0, %v3450
          %v3452 = vpop.f32.mrb[0].mxu0
          %3453 = vmatprep.mubr.f32.mxu0 0.0
          %3454 = vmatmul.mubr.f32.gmra.mrb[0].mxu0 %v3327
          %v3455 = vpop.f32.mrb[0].mxu0
          %v3456 = vadd.f32 0.0, %v3455
          %v3457 = vpop.f32.mrb[0].mxu0
          %3458 = vmatprep.mubr.f32.mxu0 0.0
          %3459 = vmatmul.mubr.f32.gmra.mrb[0].mxu0 %v3329
          %v3460 = vpop.f32.mrb[0].mxu0
          %v3461 = vadd.f32 0.0, %v3460
          %v3462 = vpop.f32.mrb[0].mxu0
          %3463 = vmatprep.mubr.f32.mxu0 0.0
          %3464 = vmatmul.mubr.f32.gmra.mrb[0].mxu0 %v3331
          %v3465 = vpop.f32.mrb[0].mxu0
          %v3466 = vadd.f32 0.0, %v3465
          %v3467 = vpop.f32.mrb[0].mxu0
          %3468 = vmatprep.mubr.f32.mxu0 0.0
          %3469 = vmatmul.mubr.f32.gmra.mrb[0].mxu0 %v3333
          %v3470 = vpop.f32.mrb[0].mxu0
          %v3471 = vadd.f32 0.0, %v3470
          %v3472 = vpop.f32.mrb[0].mxu0
          %3473 = vmatprep.mubr.f32.mxu0 0.0
          %3474 = vmatmul.mubr.f32.gmra.mrb[0].mxu0 %v3335
          %v3475 = vpop.f32.mrb[0].mxu0
          %v3476 = vadd.f32 0.0, %v3475
          %v3477 = vpop.f32.mrb[0].mxu0
          %3478 = vmatprep.mubr.f32.mxu0 0.0
          %3479 = vmatmul.mubr.f32.gmra.mrb[0].mxu0 %v3337
          %v3480 = vpop.f32.mrb[0].mxu0
          %v3481 = vadd.f32 0.0, %v3480
          %v3482 = vpop.f32.mrb[0].mxu0
          %3483 = vdwg.mxu0
          %v3484 = vsel %vm2952, %v2604, 0
          %v3486 = vsel %vm2952, %v2606, 0
          %v3488 = vsel %vm2952, %v2608, 0
          %v3490 = vsel %vm2952, %v2610, 0
          %v3492 = vsel %vm2952, %v2612, 0
          %v3494 = vsel %vm2952, %v2614, 0
          %v3496 = vsel %vm2952, %v2616, 0
          %v3498 = vsel %vm2952, %v2618, 0
          %v3500 = vsel %vm2952, %v2620, 0
          %v3502 = vsel %vm2952, %v2622, 0
          %v3504 = vsel %vm2952, %v2624, 0
          %v3506 = vsel %vm2952, %v2626, 0
          %v3508 = vsel %vm2952, %v2628, 0
          %v3510 = vsel %vm2952, %v2630, 0
          %v3512 = vsel %vm2952, %v2632, 0
          %v3514 = vsel %vm2952, %v2634, 0
          %3516 = vmatprep.subr.mxu0 0.0
          %3517 = vmatpush1.msra.mxu0 %v2882
          %3518 = vmatprep.subr.mxu0 0.0
          %3519 = vmatpush1.msra.mxu0 %v2883
          %3520 = vmatprep.subr.mxu0 0.0
          %3521 = vmatpush1.msra.mxu0 %v2884
          %3522 = vmatprep.subr.mxu0 0.0
          %3523 = vmatpush1.msra.mxu0 %v2885
          %3524 = vmatprep.subr.mxu0 0.0
          %3525 = vmatpush1.msra.mxu0 0.0
          %3526 = vmatprep.subr.mxu0 0.0
          %3527 = vmatpush1.msra.mxu0 0.0
          %3528 = vmatprep.subr.mxu0 0.0
          %3529 = vmatpush1.msra.mxu0 0.0
          %3530 = vmatprep.subr.mxu0 0.0
          %3531 = vmatpush1.msra.mxu0 0.0
          %3532 = vmatprep.subr.mxu0 0.0
          %3533 = vmatpush1.msra.mxu0 0.0
          %3534 = vmatprep.subr.mxu0 0.0
          %3535 = vmatpush1.msra.mxu0 0.0
          %3536 = vmatprep.subr.mxu0 0.0
          %3537 = vmatpush1.msra.mxu0 0.0
          %3538 = vmatprep.subr.mxu0 0.0
          %3539 = vmatpush1.msra.mxu0 0.0
          %3540 = vmatprep.subr.mxu0 0.0
          %3541 = vmatpush1.msra.mxu0 0.0
          %3542 = vmatprep.subr.mxu0 0.0
          %3543 = vmatpush1.msra.mxu0 0.0
          %3544 = vmatprep.subr.mxu0 0.0
          %3545 = vmatpush1.msra.mxu0 0.0
          %3546 = vmatprep.subr.mxu0 0.0
          %3547 = vmatpush1.msra.mxu0 0.0
          %3548 = vmatprep.subr.mxu0 0.0
          %3549 = vmatpush1.msra.mxu0 0.0
          %3550 = vmatprep.subr.mxu0 0.0
          %3551 = vmatpush1.msra.mxu0 0.0
          %3552 = vmatprep.subr.mxu0 0.0
          %3553 = vmatpush1.msra.mxu0 0.0
          %3554 = vmatprep.subr.mxu0 0.0
          %3555 = vmatpush1.msra.mxu0 0.0
          %3556 = vmatprep.subr.mxu0 0.0
          %3557 = vmatpush1.msra.mxu0 0.0
          %3558 = vmatprep.subr.mxu0 0.0
          %3559 = vmatpush1.msra.mxu0 0.0
          %3560 = vmatprep.subr.mxu0 0.0
          %3561 = vmatpush1.msra.mxu0 0.0
          %3562 = vmatprep.subr.mxu0 0.0
          %3563 = vmatpush1.msra.mxu0 0.0
          %3564 = vmatprep.subr.mxu0 0.0
          %3565 = vmatpush1.msra.mxu0 0.0
          %3566 = vmatprep.subr.mxu0 0.0
          %3567 = vmatpush1.msra.mxu0 0.0
          %3568 = vmatprep.subr.mxu0 0.0
          %3569 = vmatpush1.msra.mxu0 0.0
          %3570 = vmatprep.subr.mxu0 0.0
          %3571 = vmatpush1.msra.mxu0 0.0
          %3572 = vmatprep.subr.mxu0 0.0
          %3573 = vmatpush1.msra.mxu0 0.0
          %3574 = vmatprep.subr.mxu0 0.0
          %3575 = vmatpush1.msra.mxu0 0.0
          %3576 = vmatprep.subr.mxu0 0.0
          %3577 = vmatpush1.msra.mxu0 0.0
          %3578 = vmatprep.subr.mxu0 0.0
          %3579 = vmatpush1.msra.mxu0 0.0
          %3580 = vmatprep.mubr.f32.mxu0 0.0
          %3581 = vmatmul.mubr.f32.gmra.mrb[0].mxu0 %v3484
          %v3582 = vpop.f32.mrb[0].mxu0
          %v3583 = vadd.f32 0.0, %v3582
          %v3584 = vpop.f32.mrb[0].mxu0
          %3585 = vmatprep.mubr.f32.mxu0 0.0
          %3586 = vmatmul.mubr.f32.gmra.mrb[0].mxu0 %v3486
          %v3587 = vpop.f32.mrb[0].mxu0
          %v3588 = vadd.f32 0.0, %v3587
          %v3589 = vpop.f32.mrb[0].mxu0
          %3590 = vmatprep.mubr.f32.mxu0 0.0
          %3591 = vmatmul.mubr.f32.gmra.mrb[0].mxu0 %v3488
          %v3592 = vpop.f32.mrb[0].mxu0
          %v3593 = vadd.f32 0.0, %v3592
          %v3594 = vpop.f32.mrb[0].mxu0
          %3595 = vmatprep.mubr.f32.mxu0 0.0
          %3596 = vmatmul.mubr.f32.gmra.mrb[0].mxu0 %v3490
          %v3597 = vpop.f32.mrb[0].mxu0
          %v3598 = vadd.f32 0.0, %v3597
          %v3599 = vpop.f32.mrb[0].mxu0
          %3600 = vmatprep.mubr.f32.mxu0 0.0
          %3601 = vmatmul.mubr.f32.gmra.mrb[0].mxu0 %v3492
          %v3602 = vpop.f32.mrb[0].mxu0
          %v3603 = vadd.f32 0.0, %v3602
          %v3604 = vpop.f32.mrb[0].mxu0
          %3605 = vmatprep.mubr.f32.mxu0 0.0
          %3606 = vmatmul.mubr.f32.gmra.mrb[0].mxu0 %v3494
          %v3607 = vpop.f32.mrb[0].mxu0
          %v3608 = vadd.f32 0.0, %v3607
          %v3609 = vpop.f32.mrb[0].mxu0
          %3610 = vmatprep.mubr.f32.mxu0 0.0
          %3611 = vmatmul.mubr.f32.gmra.mrb[0].mxu0 %v3496
          %v3612 = vpop.f32.mrb[0].mxu0
          %v3613 = vadd.f32 0.0, %v3612
          %v3614 = vpop.f32.mrb[0].mxu0
          %3615 = vmatprep.mubr.f32.mxu0 0.0
          %3616 = vmatmul.mubr.f32.gmra.mrb[0].mxu0 %v3498
          %v3617 = vpop.f32.mrb[0].mxu0
          %v3618 = vadd.f32 0.0, %v3617
          %v3619 = vpop.f32.mrb[0].mxu0
          %3620 = vmatprep.mubr.f32.mxu0 0.0
          %3621 = vmatmul.mubr.f32.gmra.mrb[0].mxu0 %v3500
          %v3622 = vpop.f32.mrb[0].mxu0
          %v3623 = vadd.f32 0.0, %v3622
          %v3624 = vpop.f32.mrb[0].mxu0
          %3625 = vmatprep.mubr.f32.mxu0 0.0
          %3626 = vmatmul.mubr.f32.gmra.mrb[0].mxu0 %v3502
          %v3627 = vpop.f32.mrb[0].mxu0
          %v3628 = vadd.f32 0.0, %v3627
          %v3629 = vpop.f32.mrb[0].mxu0
          %3630 = vmatprep.mubr.f32.mxu0 0.0
          %3631 = vmatmul.mubr.f32.gmra.mrb[0].mxu0 %v3504
          %v3632 = vpop.f32.mrb[0].mxu0
          %v3633 = vadd.f32 0.0, %v3632
          %v3634 = vpop.f32.mrb[0].mxu0
          %3635 = vmatprep.mubr.f32.mxu0 0.0
          %3636 = vmatmul.mubr.f32.gmra.mrb[0].mxu0 %v3506
          %v3637 = vpop.f32.mrb[0].mxu0
          %v3638 = vadd.f32 0.0, %v3637
          %v3639 = vpop.f32.mrb[0].mxu0
          %3640 = vmatprep.mubr.f32.mxu0 0.0
          %3641 = vmatmul.mubr.f32.gmra.mrb[0].mxu0 %v3508
          %v3642 = vpop.f32.mrb[0].mxu0
          %v3643 = vadd.f32 0.0, %v3642
          %v3644 = vpop.f32.mrb[0].mxu0
          %3645 = vmatprep.mubr.f32.mxu0 0.0
          %3646 = vmatmul.mubr.f32.gmra.mrb[0].mxu0 %v3510
          %v3647 = vpop.f32.mrb[0].mxu0
          %v3648 = vadd.f32 0.0, %v3647
          %v3649 = vpop.f32.mrb[0].mxu0
          %3650 = vmatprep.mubr.f32.mxu0 0.0
          %3651 = vmatmul.mubr.f32.gmra.mrb[0].mxu0 %v3512
          %v3652 = vpop.f32.mrb[0].mxu0
          %v3653 = vadd.f32 0.0, %v3652
          %v3654 = vpop.f32.mrb[0].mxu0
          %3655 = vmatprep.mubr.f32.mxu0 0.0
          %3656 = vmatmul.mubr.f32.gmra.mrb[0].mxu0 %v3514
          %v3657 = vpop.f32.mrb[0].mxu0
          %v3658 = vadd.f32 0.0, %v3657
          %v3659 = vpop.f32.mrb[0].mxu0
          %3660 = vdwg.mxu0
          %v3661 = vmul.f32 %v3052, 0.17677669
          %v3662 = vmul.f32 %v3057, 0.17677669
          %v3663 = vmul.f32 %v3062, 0.17677669
          %v3664 = vmul.f32 %v3067, 0.17677669
          %v3665 = vmul.f32 %v3072, 0.17677669
          %v3666 = vmul.f32 %v3077, 0.17677669
          %v3667 = vmul.f32 %v3082, 0.17677669
          %v3668 = vmul.f32 %v3087, 0.17677669
          %v3669 = vmul.f32 %v3092, 0.17677669
          %v3670 = vmul.f32 %v3097, 0.17677669
          %v3671 = vmul.f32 %v3102, 0.17677669
          %v3672 = vmul.f32 %v3107, 0.17677669
          %v3673 = vmul.f32 %v3112, 0.17677669
          %v3674 = vmul.f32 %v3117, 0.17677669
          %v3675 = vmul.f32 %v3122, 0.17677669
          %v3676 = vmul.f32 %v3127, 0.17677669
          %v3677 = vmul.f32 %v3229, 0.17677669
          %v3678 = vmul.f32 %v3234, 0.17677669
          %v3679 = vmul.f32 %v3239, 0.17677669
          %v3680 = vmul.f32 %v3244, 0.17677669
          %v3681 = vmul.f32 %v3249, 0.17677669
          %v3682 = vmul.f32 %v3254, 0.17677669
          %v3683 = vmul.f32 %v3259, 0.17677669
          %v3684 = vmul.f32 %v3264, 0.17677669
          %v3685 = vmul.f32 %v3269, 0.17677669
          %v3686 = vmul.f32 %v3274, 0.17677669
          %v3687 = vmul.f32 %v3279, 0.17677669
          %v3688 = vmul.f32 %v3284, 0.17677669
          %v3689 = vmul.f32 %v3289, 0.17677669
          %v3690 = vmul.f32 %v3294, 0.17677669
          %v3691 = vmul.f32 %v3299, 0.17677669
          %v3692 = vmul.f32 %v3304, 0.17677669
          %v3693 = vmul.f32 %v3406, 0.17677669
          %v3694 = vmul.f32 %v3411, 0.17677669
          %v3695 = vmul.f32 %v3416, 0.17677669
          %v3696 = vmul.f32 %v3421, 0.17677669
          %v3697 = vmul.f32 %v3426, 0.17677669
          %v3698 = vmul.f32 %v3431, 0.17677669
          %v3699 = vmul.f32 %v3436, 0.17677669
          %v3700 = vmul.f32 %v3441, 0.17677669
          %v3701 = vmul.f32 %v3446, 0.17677669
          %v3702 = vmul.f32 %v3451, 0.17677669
          %v3703 = vmul.f32 %v3456, 0.17677669
          %v3704 = vmul.f32 %v3461, 0.17677669
          %v3705 = vmul.f32 %v3466, 0.17677669
          %v3706 = vmul.f32 %v3471, 0.17677669
          %v3707 = vmul.f32 %v3476, 0.17677669
          %v3708 = vmul.f32 %v3481, 0.17677669
          %v3709 = vmul.f32 %v3583, 0.17677669
          %v3710 = vmul.f32 %v3588, 0.17677669
          %v3711 = vmul.f32 %v3593, 0.17677669
          %v3712 = vmul.f32 %v3598, 0.17677669
          %v3713 = vmul.f32 %v3603, 0.17677669
          %v3714 = vmul.f32 %v3608, 0.17677669
          %v3715 = vmul.f32 %v3613, 0.17677669
          %v3716 = vmul.f32 %v3618, 0.17677669
          %v3717 = vmul.f32 %v3623, 0.17677669
          %v3718 = vmul.f32 %v3628, 0.17677669
          %v3719 = vmul.f32 %v3633, 0.17677669
          %v3720 = vmul.f32 %v3638, 0.17677669
          %v3721 = vmul.f32 %v3643, 0.17677669
          %v3722 = vmul.f32 %v3648, 0.17677669
          %v3723 = vmul.f32 %v3653, 0.17677669
          %v3724 = vmul.f32 %v3658, 0.17677669
          %v3725 = vlaneseq
          %v3726 = vand.u32 %v3725, 127
          %v3727 = vstv %s2868
          %v3728 = vadd.s32 %v3727, %v3726
          %vm3729 = vcmp.le.s32.totalorder %v3728, %v2653
          %vm3730 = vcmp.le.s32.totalorder %v3728, %v2654
          %vm3731 = vcmp.le.s32.totalorder %v3728, %v2655
          %vm3732 = vcmp.le.s32.totalorder %v3728, %v2656
          %vm3733 = vcmp.le.s32.totalorder %v3728, %v2657
          %vm3734 = vcmp.le.s32.totalorder %v3728, %v2658
          %vm3735 = vcmp.le.s32.totalorder %v3728, %v2659
          %vm3736 = vcmp.le.s32.totalorder %v3728, %v2660
          %vm3737 = vcmp.le.s32.totalorder %v3728, %v2661
          %vm3738 = vcmp.le.s32.totalorder %v3728, %v2662
          %vm3739 = vcmp.le.s32.totalorder %v3728, %v2663
          %vm3740 = vcmp.le.s32.totalorder %v3728, %v2664
          %vm3741 = vcmp.le.s32.totalorder %v3728, %v2665
          %vm3742 = vcmp.le.s32.totalorder %v3728, %v2666
          %vm3743 = vcmp.le.s32.totalorder %v3728, %v2667
          %vm3744 = vcmp.le.s32.totalorder %v3728, %v2668
          %v3745 = vsel %vm3729, 1, 0
          %v3746 = vsel %vm3730, 1, 0
          %v3747 = vsel %vm3731, 1, 0
          %v3748 = vsel %vm3732, 1, 0
          %v3749 = vsel %vm3733, 1, 0
          %v3750 = vsel %vm3734, 1, 0
          %v3751 = vsel %vm3735, 1, 0
          %v3752 = vsel %vm3736, 1, 0
          %v3753 = vsel %vm3737, 1, 0
          %v3754 = vsel %vm3738, 1, 0
          %v3755 = vsel %vm3739, 1, 0
          %v3756 = vsel %vm3740, 1, 0
          %v3757 = vsel %vm3741, 1, 0
          %v3758 = vsel %vm3742, 1, 0
          %v3759 = vsel %vm3743, 1, 0
          %v3760 = vsel %vm3744, 1, 0
          %vm3761 = vcmp.eq.s32.totalorder %v3745, 1
          %vm3762 = vcmp.eq.s32.totalorder %v3746, 1
          %vm3763 = vcmp.eq.s32.totalorder %v3747, 1
          %vm3764 = vcmp.eq.s32.totalorder %v3748, 1
          %vm3765 = vcmp.eq.s32.totalorder %v3749, 1
          %vm3766 = vcmp.eq.s32.totalorder %v3750, 1
          %vm3767 = vcmp.eq.s32.totalorder %v3751, 1
          %vm3768 = vcmp.eq.s32.totalorder %v3752, 1
          %vm3769 = vcmp.eq.s32.totalorder %v3753, 1
          %vm3770 = vcmp.eq.s32.totalorder %v3754, 1
          %vm3771 = vcmp.eq.s32.totalorder %v3755, 1
          %vm3772 = vcmp.eq.s32.totalorder %v3756, 1
          %vm3773 = vcmp.eq.s32.totalorder %v3757, 1
          %vm3774 = vcmp.eq.s32.totalorder %v3758, 1
          %vm3775 = vcmp.eq.s32.totalorder %v3759, 1
          %vm3776 = vcmp.eq.s32.totalorder %v3760, 1
          %v3777 = vsel %vm3761, %v3661, -1e+30
          %v3778 = vsel %vm3762, %v3662, -1e+30
          %v3779 = vsel %vm3763, %v3663, -1e+30
          %v3780 = vsel %vm3764, %v3664, -1e+30
          %v3781 = vsel %vm3765, %v3665, -1e+30
          %v3782 = vsel %vm3766, %v3666, -1e+30
          %v3783 = vsel %vm3767, %v3667, -1e+30
          %v3784 = vsel %vm3768, %v3668, -1e+30
          %v3785 = vsel %vm3769, %v3669, -1e+30
          %v3786 = vsel %vm3770, %v3670, -1e+30
          %v3787 = vsel %vm3771, %v3671, -1e+30
          %v3788 = vsel %vm3772, %v3672, -1e+30
          %v3789 = vsel %vm3773, %v3673, -1e+30
          %v3790 = vsel %vm3774, %v3674, -1e+30
          %v3791 = vsel %vm3775, %v3675, -1e+30
          %v3792 = vsel %vm3776, %v3676, -1e+30
          %v3793 = vsel %vm3761, %v3677, -1e+30
          %v3794 = vsel %vm3762, %v3678, -1e+30
          %v3795 = vsel %vm3763, %v3679, -1e+30
          %v3796 = vsel %vm3764, %v3680, -1e+30
          %v3797 = vsel %vm3765, %v3681, -1e+30
          %v3798 = vsel %vm3766, %v3682, -1e+30
          %v3799 = vsel %vm3767, %v3683, -1e+30
          %v3800 = vsel %vm3768, %v3684, -1e+30
          %v3801 = vsel %vm3769, %v3685, -1e+30
          %v3802 = vsel %vm3770, %v3686, -1e+30
          %v3803 = vsel %vm3771, %v3687, -1e+30
          %v3804 = vsel %vm3772, %v3688, -1e+30
          %v3805 = vsel %vm3773, %v3689, -1e+30
          %v3806 = vsel %vm3774, %v3690, -1e+30
          %v3807 = vsel %vm3775, %v3691, -1e+30
          %v3808 = vsel %vm3776, %v3692, -1e+30
          %v3809 = vsel %vm3761, %v3693, -1e+30
          %v3810 = vsel %vm3762, %v3694, -1e+30
          %v3811 = vsel %vm3763, %v3695, -1e+30
          %v3812 = vsel %vm3764, %v3696, -1e+30
          %v3813 = vsel %vm3765, %v3697, -1e+30
          %v3814 = vsel %vm3766, %v3698, -1e+30
          %v3815 = vsel %vm3767, %v3699, -1e+30
          %v3816 = vsel %vm3768, %v3700, -1e+30
          %v3817 = vsel %vm3769, %v3701, -1e+30
          %v3818 = vsel %vm3770, %v3702, -1e+30
          %v3819 = vsel %vm3771, %v3703, -1e+30
          %v3820 = vsel %vm3772, %v3704, -1e+30
          %v3821 = vsel %vm3773, %v3705, -1e+30
          %v3822 = vsel %vm3774, %v3706, -1e+30
          %v3823 = vsel %vm3775, %v3707, -1e+30
          %v3824 = vsel %vm3776, %v3708, -1e+30
          %v3825 = vsel %vm3761, %v3709, -1e+30
          %v3826 = vsel %vm3762, %v3710, -1e+30
          %v3827 = vsel %vm3763, %v3711, -1e+30
          %v3828 = vsel %vm3764, %v3712, -1e+30
          %v3829 = vsel %vm3765, %v3713, -1e+30
          %v3830 = vsel %vm3766, %v3714, -1e+30
          %v3831 = vsel %vm3767, %v3715, -1e+30
          %v3832 = vsel %vm3768, %v3716, -1e+30
          %v3833 = vsel %vm3769, %v3717, -1e+30
          %v3834 = vsel %vm3770, %v3718, -1e+30
          %v3835 = vsel %vm3771, %v3719, -1e+30
          %v3836 = vsel %vm3772, %v3720, -1e+30
          %v3837 = vsel %vm3773, %v3721, -1e+30
          %v3838 = vsel %vm3774, %v3722, -1e+30
          %v3839 = vsel %vm3775, %v3723, -1e+30
          %v3840 = vsel %vm3776, %v3724, -1e+30
          %3841 = vmax.xlane.f32.xlu0 %v3777
          %v3842 = vpop.xlane.xlu0 %3841
          %3843 = vmax.xlane.f32.xlu0 %v3778
          %v3844 = vpop.xlane.xlu0 %3843
          %3845 = vmax.xlane.f32.xlu0 %v3779
          %v3846 = vpop.xlane.xlu0 %3845
          %3847 = vmax.xlane.f32.xlu0 %v3780
          %v3848 = vpop.xlane.xlu0 %3847
          %3849 = vmax.xlane.f32.xlu0 %v3781
          %v3850 = vpop.xlane.xlu0 %3849
          %3851 = vmax.xlane.f32.xlu0 %v3782
          %v3852 = vpop.xlane.xlu0 %3851
          %3853 = vmax.xlane.f32.xlu0 %v3783
          %v3854 = vpop.xlane.xlu0 %3853
          %3855 = vmax.xlane.f32.xlu0 %v3784
          %v3856 = vpop.xlane.xlu0 %3855
          %3857 = vmax.xlane.f32.xlu0 %v3785
          %v3858 = vpop.xlane.xlu0 %3857
          %3859 = vmax.xlane.f32.xlu0 %v3786
          %v3860 = vpop.xlane.xlu0 %3859
          %3861 = vmax.xlane.f32.xlu0 %v3787
          %v3862 = vpop.xlane.xlu0 %3861
          %3863 = vmax.xlane.f32.xlu0 %v3788
          %v3864 = vpop.xlane.xlu0 %3863
          %3865 = vmax.xlane.f32.xlu0 %v3789
          %v3866 = vpop.xlane.xlu0 %3865
          %3867 = vmax.xlane.f32.xlu0 %v3790
          %v3868 = vpop.xlane.xlu0 %3867
          %3869 = vmax.xlane.f32.xlu0 %v3791
          %v3870 = vpop.xlane.xlu0 %3869
          %3871 = vmax.xlane.f32.xlu0 %v3792
          %v3872 = vpop.xlane.xlu0 %3871
          %3873 = vmax.xlane.f32.xlu0 %v3793
          %v3874 = vpop.xlane.xlu0 %3873
          %3875 = vmax.xlane.f32.xlu0 %v3794
          %v3876 = vpop.xlane.xlu0 %3875
          %3877 = vmax.xlane.f32.xlu0 %v3795
          %v3878 = vpop.xlane.xlu0 %3877
          %3879 = vmax.xlane.f32.xlu0 %v3796
          %v3880 = vpop.xlane.xlu0 %3879
          %3881 = vmax.xlane.f32.xlu0 %v3797
          %v3882 = vpop.xlane.xlu0 %3881
          %3883 = vmax.xlane.f32.xlu0 %v3798
          %v3884 = vpop.xlane.xlu0 %3883
          %3885 = vmax.xlane.f32.xlu0 %v3799
          %v3886 = vpop.xlane.xlu0 %3885
          %3887 = vmax.xlane.f32.xlu0 %v3800
          %v3888 = vpop.xlane.xlu0 %3887
          %3889 = vmax.xlane.f32.xlu0 %v3801
          %v3890 = vpop.xlane.xlu0 %3889
          %3891 = vmax.xlane.f32.xlu0 %v3802
          %v3892 = vpop.xlane.xlu0 %3891
          %3893 = vmax.xlane.f32.xlu0 %v3803
          %v3894 = vpop.xlane.xlu0 %3893
          %3895 = vmax.xlane.f32.xlu0 %v3804
          %v3896 = vpop.xlane.xlu0 %3895
          %3897 = vmax.xlane.f32.xlu0 %v3805
          %v3898 = vpop.xlane.xlu0 %3897
          %3899 = vmax.xlane.f32.xlu0 %v3806
          %v3900 = vpop.xlane.xlu0 %3899
          %3901 = vmax.xlane.f32.xlu0 %v3807
          %v3902 = vpop.xlane.xlu0 %3901
          %3903 = vmax.xlane.f32.xlu0 %v3808
          %v3904 = vpop.xlane.xlu0 %3903
          %3905 = vmax.xlane.f32.xlu0 %v3809
          %v3906 = vpop.xlane.xlu0 %3905
          %3907 = vmax.xlane.f32.xlu0 %v3810
          %v3908 = vpop.xlane.xlu0 %3907
          %3909 = vmax.xlane.f32.xlu0 %v3811
          %v3910 = vpop.xlane.xlu0 %3909
          %3911 = vmax.xlane.f32.xlu0 %v3812
          %v3912 = vpop.xlane.xlu0 %3911
          %3913 = vmax.xlane.f32.xlu0 %v3813
          %v3914 = vpop.xlane.xlu0 %3913
          %3915 = vmax.xlane.f32.xlu0 %v3814
          %v3916 = vpop.xlane.xlu0 %3915
          %3917 = vmax.xlane.f32.xlu0 %v3815
          %v3918 = vpop.xlane.xlu0 %3917
          %3919 = vmax.xlane.f32.xlu0 %v3816
          %v3920 = vpop.xlane.xlu0 %3919
          %3921 = vmax.xlane.f32.xlu0 %v3817
          %v3922 = vpop.xlane.xlu0 %3921
          %3923 = vmax.xlane.f32.xlu0 %v3818
          %v3924 = vpop.xlane.xlu0 %3923
          %3925 = vmax.xlane.f32.xlu0 %v3819
          %v3926 = vpop.xlane.xlu0 %3925
          %3927 = vmax.xlane.f32.xlu0 %v3820
          %v3928 = vpop.xlane.xlu0 %3927
          %3929 = vmax.xlane.f32.xlu0 %v3821
          %v3930 = vpop.xlane.xlu0 %3929
          %3931 = vmax.xlane.f32.xlu0 %v3822
          %v3932 = vpop.xlane.xlu0 %3931
          %3933 = vmax.xlane.f32.xlu0 %v3823
          %v3934 = vpop.xlane.xlu0 %3933
          %3935 = vmax.xlane.f32.xlu0 %v3824
          %v3936 = vpop.xlane.xlu0 %3935
          %3937 = vmax.xlane.f32.xlu0 %v3825
          %v3938 = vpop.xlane.xlu0 %3937
          %3939 = vmax.xlane.f32.xlu0 %v3826
          %v3940 = vpop.xlane.xlu0 %3939
          %3941 = vmax.xlane.f32.xlu0 %v3827
          %v3942 = vpop.xlane.xlu0 %3941
          %3943 = vmax.xlane.f32.xlu0 %v3828
          %v3944 = vpop.xlane.xlu0 %3943
          %3945 = vmax.xlane.f32.xlu0 %v3829
          %v3946 = vpop.xlane.xlu0 %3945
          %3947 = vmax.xlane.f32.xlu0 %v3830
          %v3948 = vpop.xlane.xlu0 %3947
          %3949 = vmax.xlane.f32.xlu0 %v3831
          %v3950 = vpop.xlane.xlu0 %3949
          %3951 = vmax.xlane.f32.xlu0 %v3832
          %v3952 = vpop.xlane.xlu0 %3951
          %3953 = vmax.xlane.f32.xlu0 %v3833
          %v3954 = vpop.xlane.xlu0 %3953
          %3955 = vmax.xlane.f32.xlu0 %v3834
          %v3956 = vpop.xlane.xlu0 %3955
          %3957 = vmax.xlane.f32.xlu0 %v3835
          %v3958 = vpop.xlane.xlu0 %3957
          %3959 = vmax.xlane.f32.xlu0 %v3836
          %v3960 = vpop.xlane.xlu0 %3959
          %3961 = vmax.xlane.f32.xlu0 %v3837
          %v3962 = vpop.xlane.xlu0 %3961
          %3963 = vmax.xlane.f32.xlu0 %v3838
          %v3964 = vpop.xlane.xlu0 %3963
          %3965 = vmax.xlane.f32.xlu0 %v3839
          %v3966 = vpop.xlane.xlu0 %3965
          %3967 = vmax.xlane.f32.xlu0 %v3840
          %v3968 = vpop.xlane.xlu0 %3967
          %v3969 = vmax.f32 %v2676, %v3842
          %v3970 = vmax.f32 %v2677, %v3844
          %v3971 = vmax.f32 %v2678, %v3846
          %v3972 = vmax.f32 %v2679, %v3848
          %v3973 = vmax.f32 %v2680, %v3850
          %v3974 = vmax.f32 %v2681, %v3852
          %v3975 = vmax.f32 %v2682, %v3854
          %v3976 = vmax.f32 %v2683, %v3856
          %v3977 = vmax.f32 %v2684, %v3858
          %v3978 = vmax.f32 %v2685, %v3860
          %v3979 = vmax.f32 %v2686, %v3862
          %v3980 = vmax.f32 %v2687, %v3864
          %v3981 = vmax.f32 %v2688, %v3866
          %v3982 = vmax.f32 %v2689, %v3868
          %v3983 = vmax.f32 %v2690, %v3870
          %v3984 = vmax.f32 %v2691, %v3872
          %v3985 = vmax.f32 %v2692, %v3874
          %v3986 = vmax.f32 %v2693, %v3876
          %v3987 = vmax.f32 %v2694, %v3878
          %v3988 = vmax.f32 %v2695, %v3880
          %v3989 = vmax.f32 %v2696, %v3882
          %v3990 = vmax.f32 %v2697, %v3884
          %v3991 = vmax.f32 %v2698, %v3886
          %v3992 = vmax.f32 %v2699, %v3888
          %v3993 = vmax.f32 %v2700, %v3890
          %v3994 = vmax.f32 %v2701, %v3892
          %v3995 = vmax.f32 %v2702, %v3894
          %v3996 = vmax.f32 %v2703, %v3896
          %v3997 = vmax.f32 %v2704, %v3898
          %v3998 = vmax.f32 %v2705, %v3900
          %v3999 = vmax.f32 %v2706, %v3902
          %v4000 = vmax.f32 %v2707, %v3904
          %v4001 = vmax.f32 %v2708, %v3906
          %v4002 = vmax.f32 %v2709, %v3908
          %v4003 = vmax.f32 %v2710, %v3910
          %v4004 = vmax.f32 %v2711, %v3912
          %v4005 = vmax.f32 %v2712, %v3914
          %v4006 = vmax.f32 %v2713, %v3916
          %v4007 = vmax.f32 %v2714, %v3918
          %v4008 = vmax.f32 %v2715, %v3920
          %v4009 = vmax.f32 %v2716, %v3922
          %v4010 = vmax.f32 %v2717, %v3924
          %v4011 = vmax.f32 %v2718, %v3926
          %v4012 = vmax.f32 %v2719, %v3928
          %v4013 = vmax.f32 %v2720, %v3930
          %v4014 = vmax.f32 %v2721, %v3932
          %v4015 = vmax.f32 %v2722, %v3934
          %v4016 = vmax.f32 %v2723, %v3936
          %v4017 = vmax.f32 %v2724, %v3938
          %v4018 = vmax.f32 %v2725, %v3940
          %v4019 = vmax.f32 %v2726, %v3942
          %v4020 = vmax.f32 %v2727, %v3944
          %v4021 = vmax.f32 %v2728, %v3946
          %v4022 = vmax.f32 %v2729, %v3948
          %v4023 = vmax.f32 %v2730, %v3950
          %v4024 = vmax.f32 %v2731, %v3952
          %v4025 = vmax.f32 %v2732, %v3954
          %v4026 = vmax.f32 %v2733, %v3956
          %v4027 = vmax.f32 %v2734, %v3958
          %v4028 = vmax.f32 %v2735, %v3960
          %v4029 = vmax.f32 %v2736, %v3962
          %v4030 = vmax.f32 %v2737, %v3964
          %v4031 = vmax.f32 %v2738, %v3966
          %v4032 = vmax.f32 %v2739, %v3968
          %v4033 = vsub.f32 %v2676, %v3969
          %v4034 = vsub.f32 %v2677, %v3970
          %v4035 = vsub.f32 %v2678, %v3971
          %v4036 = vsub.f32 %v2679, %v3972
          %v4037 = vsub.f32 %v2680, %v3973
          %v4038 = vsub.f32 %v2681, %v3974
          %v4039 = vsub.f32 %v2682, %v3975
          %v4040 = vsub.f32 %v2683, %v3976
          %v4041 = vsub.f32 %v2684, %v3977
          %v4042 = vsub.f32 %v2685, %v3978
          %v4043 = vsub.f32 %v2686, %v3979
          %v4044 = vsub.f32 %v2687, %v3980
          %v4045 = vsub.f32 %v2688, %v3981
          %v4046 = vsub.f32 %v2689, %v3982
          %v4047 = vsub.f32 %v2690, %v3983
          %v4048 = vsub.f32 %v2691, %v3984
          %v4049 = vsub.f32 %v2692, %v3985
          %v4050 = vsub.f32 %v2693, %v3986
          %v4051 = vsub.f32 %v2694, %v3987
          %v4052 = vsub.f32 %v2695, %v3988
          %v4053 = vsub.f32 %v2696, %v3989
          %v4054 = vsub.f32 %v2697, %v3990
          %v4055 = vsub.f32 %v2698, %v3991
          %v4056 = vsub.f32 %v2699, %v3992
          %v4057 = vsub.f32 %v2700, %v3993
          %v4058 = vsub.f32 %v2701, %v3994
          %v4059 = vsub.f32 %v2702, %v3995
          %v4060 = vsub.f32 %v2703, %v3996
          %v4061 = vsub.f32 %v2704, %v3997
          %v4062 = vsub.f32 %v2705, %v3998
          %v4063 = vsub.f32 %v2706, %v3999
          %v4064 = vsub.f32 %v2707, %v4000
          %v4065 = vsub.f32 %v2708, %v4001
          %v4066 = vsub.f32 %v2709, %v4002
          %v4067 = vsub.f32 %v2710, %v4003
          %v4068 = vsub.f32 %v2711, %v4004
          %v4069 = vsub.f32 %v2712, %v4005
          %v4070 = vsub.f32 %v2713, %v4006
          %v4071 = vsub.f32 %v2714, %v4007
          %v4072 = vsub.f32 %v2715, %v4008
          %v4073 = vsub.f32 %v2716, %v4009
          %v4074 = vsub.f32 %v2717, %v4010
          %v4075 = vsub.f32 %v2718, %v4011
          %v4076 = vsub.f32 %v2719, %v4012
          %v4077 = vsub.f32 %v2720, %v4013
          %v4078 = vsub.f32 %v2721, %v4014
          %v4079 = vsub.f32 %v2722, %v4015
          %v4080 = vsub.f32 %v2723, %v4016
          %v4081 = vsub.f32 %v2724, %v4017
          %v4082 = vsub.f32 %v2725, %v4018
          %v4083 = vsub.f32 %v2726, %v4019
          %v4084 = vsub.f32 %v2727, %v4020
          %v4085 = vsub.f32 %v2728, %v4021
          %v4086 = vsub.f32 %v2729, %v4022
          %v4087 = vsub.f32 %v2730, %v4023
          %v4088 = vsub.f32 %v2731, %v4024
          %v4089 = vsub.f32 %v2732, %v4025
          %v4090 = vsub.f32 %v2733, %v4026
          %v4091 = vsub.f32 %v2734, %v4027
          %v4092 = vsub.f32 %v2735, %v4028
          %v4093 = vsub.f32 %v2736, %v4029
          %v4094 = vsub.f32 %v2737, %v4030
          %v4095 = vsub.f32 %v2738, %v4031
          %v4096 = vsub.f32 %v2739, %v4032
          %v4097 = vmul.f32 %v4033, 1.442695
          %v4098 = vpow.pop %v4097
          %v4099 = vmul.f32 %v4034, 1.442695
          %v4100 = vpow.pop %v4099
          %v4101 = vmul.f32 %v4035, 1.442695
          %v4102 = vpow.pop %v4101
          %v4103 = vmul.f32 %v4036, 1.442695
          %v4104 = vpow.pop %v4103
          %v4105 = vmul.f32 %v4037, 1.442695
          %v4106 = vpow.pop %v4105
          %v4107 = vmul.f32 %v4038, 1.442695
          %v4108 = vpow.pop %v4107
          %v4109 = vmul.f32 %v4039, 1.442695
          %v4110 = vpow.pop %v4109
          %v4111 = vmul.f32 %v4040, 1.442695
          %v4112 = vpow.pop %v4111
          %v4113 = vmul.f32 %v4041, 1.442695
          %v4114 = vpow.pop %v4113
          %v4115 = vmul.f32 %v4042, 1.442695
          %v4116 = vpow.pop %v4115
          %v4117 = vmul.f32 %v4043, 1.442695
          %v4118 = vpow.pop %v4117
          %v4119 = vmul.f32 %v4044, 1.442695
          %v4120 = vpow.pop %v4119
          %v4121 = vmul.f32 %v4045, 1.442695
          %v4122 = vpow.pop %v4121
          %v4123 = vmul.f32 %v4046, 1.442695
          %v4124 = vpow.pop %v4123
          %v4125 = vmul.f32 %v4047, 1.442695
          %v4126 = vpow.pop %v4125
          %v4127 = vmul.f32 %v4048, 1.442695
          %v4128 = vpow.pop %v4127
          %v4129 = vmul.f32 %v4049, 1.442695
          %v4130 = vpow.pop %v4129
          %v4131 = vmul.f32 %v4050, 1.442695
          %v4132 = vpow.pop %v4131
          %v4133 = vmul.f32 %v4051, 1.442695
          %v4134 = vpow.pop %v4133
          %v4135 = vmul.f32 %v4052, 1.442695
          %v4136 = vpow.pop %v4135
          %v4137 = vmul.f32 %v4053, 1.442695
          %v4138 = vpow.pop %v4137
          %v4139 = vmul.f32 %v4054, 1.442695
          %v4140 = vpow.pop %v4139
          %v4141 = vmul.f32 %v4055, 1.442695
          %v4142 = vpow.pop %v4141
          %v4143 = vmul.f32 %v4056, 1.442695
          %v4144 = vpow.pop %v4143
          %v4145 = vmul.f32 %v4057, 1.442695
          %v4146 = vpow.pop %v4145
          %v4147 = vmul.f32 %v4058, 1.442695
          %v4148 = vpow.pop %v4147
          %v4149 = vmul.f32 %v4059, 1.442695
          %v4150 = vpow.pop %v4149
          %v4151 = vmul.f32 %v4060, 1.442695
          %v4152 = vpow.pop %v4151
          %v4153 = vmul.f32 %v4061, 1.442695
          %v4154 = vpow.pop %v4153
          %v4155 = vmul.f32 %v4062, 1.442695
          %v4156 = vpow.pop %v4155
          %v4157 = vmul.f32 %v4063, 1.442695
          %v4158 = vpow.pop %v4157
          %v4159 = vmul.f32 %v4064, 1.442695
          %v4160 = vpow.pop %v4159
          %v4161 = vmul.f32 %v4065, 1.442695
          %v4162 = vpow.pop %v4161
          %v4163 = vmul.f32 %v4066, 1.442695
          %v4164 = vpow.pop %v4163
          %v4165 = vmul.f32 %v4067, 1.442695
          %v4166 = vpow.pop %v4165
          %v4167 = vmul.f32 %v4068, 1.442695
          %v4168 = vpow.pop %v4167
          %v4169 = vmul.f32 %v4069, 1.442695
          %v4170 = vpow.pop %v4169
          %v4171 = vmul.f32 %v4070, 1.442695
          %v4172 = vpow.pop %v4171
          %v4173 = vmul.f32 %v4071, 1.442695
          %v4174 = vpow.pop %v4173
          %v4175 = vmul.f32 %v4072, 1.442695
          %v4176 = vpow.pop %v4175
          %v4177 = vmul.f32 %v4073, 1.442695
          %v4178 = vpow.pop %v4177
          %v4179 = vmul.f32 %v4074, 1.442695
          %v4180 = vpow.pop %v4179
          %v4181 = vmul.f32 %v4075, 1.442695
          %v4182 = vpow.pop %v4181
          %v4183 = vmul.f32 %v4076, 1.442695
          %v4184 = vpow.pop %v4183
          %v4185 = vmul.f32 %v4077, 1.442695
          %v4186 = vpow.pop %v4185
          %v4187 = vmul.f32 %v4078, 1.442695
          %v4188 = vpow.pop %v4187
          %v4189 = vmul.f32 %v4079, 1.442695
          %v4190 = vpow.pop %v4189
          %v4191 = vmul.f32 %v4080, 1.442695
          %v4192 = vpow.pop %v4191
          %v4193 = vmul.f32 %v4081, 1.442695
          %v4194 = vpow.pop %v4193
          %v4195 = vmul.f32 %v4082, 1.442695
          %v4196 = vpow.pop %v4195
          %v4197 = vmul.f32 %v4083, 1.442695
          %v4198 = vpow.pop %v4197
          %v4199 = vmul.f32 %v4084, 1.442695
          %v4200 = vpow.pop %v4199
          %v4201 = vmul.f32 %v4085, 1.442695
          %v4202 = vpow.pop %v4201
          %v4203 = vmul.f32 %v4086, 1.442695
          %v4204 = vpow.pop %v4203
          %v4205 = vmul.f32 %v4087, 1.442695
          %v4206 = vpow.pop %v4205
          %v4207 = vmul.f32 %v4088, 1.442695
          %v4208 = vpow.pop %v4207
          %v4209 = vmul.f32 %v4089, 1.442695
          %v4210 = vpow.pop %v4209
          %v4211 = vmul.f32 %v4090, 1.442695
          %v4212 = vpow.pop %v4211
          %v4213 = vmul.f32 %v4091, 1.442695
          %v4214 = vpow.pop %v4213
          %v4215 = vmul.f32 %v4092, 1.442695
          %v4216 = vpow.pop %v4215
          %v4217 = vmul.f32 %v4093, 1.442695
          %v4218 = vpow.pop %v4217
          %v4219 = vmul.f32 %v4094, 1.442695
          %v4220 = vpow.pop %v4219
          %v4221 = vmul.f32 %v4095, 1.442695
          %v4222 = vpow.pop %v4221
          %v4223 = vmul.f32 %v4096, 1.442695
          %v4224 = vpow.pop %v4223
          %v4225 = vsub.f32 %v3777, %v3969
          %v4226 = vsub.f32 %v3778, %v3970
          %v4227 = vsub.f32 %v3779, %v3971
          %v4228 = vsub.f32 %v3780, %v3972
          %v4229 = vsub.f32 %v3781, %v3973
          %v4230 = vsub.f32 %v3782, %v3974
          %v4231 = vsub.f32 %v3783, %v3975
          %v4232 = vsub.f32 %v3784, %v3976
          %v4233 = vsub.f32 %v3785, %v3977
          %v4234 = vsub.f32 %v3786, %v3978
          %v4235 = vsub.f32 %v3787, %v3979
          %v4236 = vsub.f32 %v3788, %v3980
          %v4237 = vsub.f32 %v3789, %v3981
          %v4238 = vsub.f32 %v3790, %v3982
          %v4239 = vsub.f32 %v3791, %v3983
          %v4240 = vsub.f32 %v3792, %v3984
          %v4241 = vsub.f32 %v3793, %v3985
          %v4242 = vsub.f32 %v3794, %v3986
          %v4243 = vsub.f32 %v3795, %v3987
          %v4244 = vsub.f32 %v3796, %v3988
          %v4245 = vsub.f32 %v3797, %v3989
          %v4246 = vsub.f32 %v3798, %v3990
          %v4247 = vsub.f32 %v3799, %v3991
          %v4248 = vsub.f32 %v3800, %v3992
          %v4249 = vsub.f32 %v3801, %v3993
          %v4250 = vsub.f32 %v3802, %v3994
          %v4251 = vsub.f32 %v3803, %v3995
          %v4252 = vsub.f32 %v3804, %v3996
          %v4253 = vsub.f32 %v3805, %v3997
          %v4254 = vsub.f32 %v3806, %v3998
          %v4255 = vsub.f32 %v3807, %v3999
          %v4256 = vsub.f32 %v3808, %v4000
          %v4257 = vsub.f32 %v3809, %v4001
          %v4258 = vsub.f32 %v3810, %v4002
          %v4259 = vsub.f32 %v3811, %v4003
          %v4260 = vsub.f32 %v3812, %v4004
          %v4261 = vsub.f32 %v3813, %v4005
          %v4262 = vsub.f32 %v3814, %v4006
          %v4263 = vsub.f32 %v3815, %v4007
          %v4264 = vsub.f32 %v3816, %v4008
          %v4265 = vsub.f32 %v3817, %v4009
          %v4266 = vsub.f32 %v3818, %v4010
          %v4267 = vsub.f32 %v3819, %v4011
          %v4268 = vsub.f32 %v3820, %v4012
          %v4269 = vsub.f32 %v3821, %v4013
          %v4270 = vsub.f32 %v3822, %v4014
          %v4271 = vsub.f32 %v3823, %v4015
          %v4272 = vsub.f32 %v3824, %v4016
          %v4273 = vsub.f32 %v3825, %v4017
          %v4274 = vsub.f32 %v3826, %v4018
          %v4275 = vsub.f32 %v3827, %v4019
          %v4276 = vsub.f32 %v3828, %v4020
          %v4277 = vsub.f32 %v3829, %v4021
          %v4278 = vsub.f32 %v3830, %v4022
          %v4279 = vsub.f32 %v3831, %v4023
          %v4280 = vsub.f32 %v3832, %v4024
          %v4281 = vsub.f32 %v3833, %v4025
          %v4282 = vsub.f32 %v3834, %v4026
          %v4283 = vsub.f32 %v3835, %v4027
          %v4284 = vsub.f32 %v3836, %v4028
          %v4285 = vsub.f32 %v3837, %v4029
          %v4286 = vsub.f32 %v3838, %v4030
          %v4287 = vsub.f32 %v3839, %v4031
          %v4288 = vsub.f32 %v3840, %v4032
          %v4289 = vmul.f32 %v4225, 1.442695
          %v4290 = vpow.pop %v4289
          %v4291 = vmul.f32 %v4226, 1.442695
          %v4292 = vpow.pop %v4291
          %v4293 = vmul.f32 %v4227, 1.442695
          %v4294 = vpow.pop %v4293
          %v4295 = vmul.f32 %v4228, 1.442695
          %v4296 = vpow.pop %v4295
          %v4297 = vmul.f32 %v4229, 1.442695
          %v4298 = vpow.pop %v4297
          %v4299 = vmul.f32 %v4230, 1.442695
          %v4300 = vpow.pop %v4299
          %v4301 = vmul.f32 %v4231, 1.442695
          %v4302 = vpow.pop %v4301
          %v4303 = vmul.f32 %v4232, 1.442695
          %v4304 = vpow.pop %v4303
          %v4305 = vmul.f32 %v4233, 1.442695
          %v4306 = vpow.pop %v4305
          %v4307 = vmul.f32 %v4234, 1.442695
          %v4308 = vpow.pop %v4307
          %v4309 = vmul.f32 %v4235, 1.442695
          %v4310 = vpow.pop %v4309
          %v4311 = vmul.f32 %v4236, 1.442695
          %v4312 = vpow.pop %v4311
          %v4313 = vmul.f32 %v4237, 1.442695
          %v4314 = vpow.pop %v4313
          %v4315 = vmul.f32 %v4238, 1.442695
          %v4316 = vpow.pop %v4315
          %v4317 = vmul.f32 %v4239, 1.442695
          %v4318 = vpow.pop %v4317
          %v4319 = vmul.f32 %v4240, 1.442695
          %v4320 = vpow.pop %v4319
          %v4321 = vmul.f32 %v4241, 1.442695
          %v4322 = vpow.pop %v4321
          %v4323 = vmul.f32 %v4242, 1.442695
          %v4324 = vpow.pop %v4323
          %v4325 = vmul.f32 %v4243, 1.442695
          %v4326 = vpow.pop %v4325
          %v4327 = vmul.f32 %v4244, 1.442695
          %v4328 = vpow.pop %v4327
          %v4329 = vmul.f32 %v4245, 1.442695
          %v4330 = vpow.pop %v4329
          %v4331 = vmul.f32 %v4246, 1.442695
          %v4332 = vpow.pop %v4331
          %v4333 = vmul.f32 %v4247, 1.442695
          %v4334 = vpow.pop %v4333
          %v4335 = vmul.f32 %v4248, 1.442695
          %v4336 = vpow.pop %v4335
          %v4337 = vmul.f32 %v4249, 1.442695
          %v4338 = vpow.pop %v4337
          %v4339 = vmul.f32 %v4250, 1.442695
          %v4340 = vpow.pop %v4339
          %v4341 = vmul.f32 %v4251, 1.442695
          %v4342 = vpow.pop %v4341
          %v4343 = vmul.f32 %v4252, 1.442695
          %v4344 = vpow.pop %v4343
          %v4345 = vmul.f32 %v4253, 1.442695
          %v4346 = vpow.pop %v4345
          %v4347 = vmul.f32 %v4254, 1.442695
          %v4348 = vpow.pop %v4347
          %v4349 = vmul.f32 %v4255, 1.442695
          %v4350 = vpow.pop %v4349
          %v4351 = vmul.f32 %v4256, 1.442695
          %v4352 = vpow.pop %v4351
          %v4353 = vmul.f32 %v4257, 1.442695
          %v4354 = vpow.pop %v4353
          %v4355 = vmul.f32 %v4258, 1.442695
          %v4356 = vpow.pop %v4355
          %v4357 = vmul.f32 %v4259, 1.442695
          %v4358 = vpow.pop %v4357
          %v4359 = vmul.f32 %v4260, 1.442695
          %v4360 = vpow.pop %v4359
          %v4361 = vmul.f32 %v4261, 1.442695
          %v4362 = vpow.pop %v4361
          %v4363 = vmul.f32 %v4262, 1.442695
          %v4364 = vpow.pop %v4363
          %v4365 = vmul.f32 %v4263, 1.442695
          %v4366 = vpow.pop %v4365
          %v4367 = vmul.f32 %v4264, 1.442695
          %v4368 = vpow.pop %v4367
          %v4369 = vmul.f32 %v4265, 1.442695
          %v4370 = vpow.pop %v4369
          %v4371 = vmul.f32 %v4266, 1.442695
          %v4372 = vpow.pop %v4371
          %v4373 = vmul.f32 %v4267, 1.442695
          %v4374 = vpow.pop %v4373
          %v4375 = vmul.f32 %v4268, 1.442695
          %v4376 = vpow.pop %v4375
          %v4377 = vmul.f32 %v4269, 1.442695
          %v4378 = vpow.pop %v4377
          %v4379 = vmul.f32 %v4270, 1.442695
          %v4380 = vpow.pop %v4379
          %v4381 = vmul.f32 %v4271, 1.442695
          %v4382 = vpow.pop %v4381
          %v4383 = vmul.f32 %v4272, 1.442695
          %v4384 = vpow.pop %v4383
          %v4385 = vmul.f32 %v4273, 1.442695
          %v4386 = vpow.pop %v4385
          %v4387 = vmul.f32 %v4274, 1.442695
          %v4388 = vpow.pop %v4387
          %v4389 = vmul.f32 %v4275, 1.442695
          %v4390 = vpow.pop %v4389
          %v4391 = vmul.f32 %v4276, 1.442695
          %v4392 = vpow.pop %v4391
          %v4393 = vmul.f32 %v4277, 1.442695
          %v4394 = vpow.pop %v4393
          %v4395 = vmul.f32 %v4278, 1.442695
          %v4396 = vpow.pop %v4395
          %v4397 = vmul.f32 %v4279, 1.442695
          %v4398 = vpow.pop %v4397
          %v4399 = vmul.f32 %v4280, 1.442695
          %v4400 = vpow.pop %v4399
          %v4401 = vmul.f32 %v4281, 1.442695
          %v4402 = vpow.pop %v4401
          %v4403 = vmul.f32 %v4282, 1.442695
          %v4404 = vpow.pop %v4403
          %v4405 = vmul.f32 %v4283, 1.442695
          %v4406 = vpow.pop %v4405
          %v4407 = vmul.f32 %v4284, 1.442695
          %v4408 = vpow.pop %v4407
          %v4409 = vmul.f32 %v4285, 1.442695
          %v4410 = vpow.pop %v4409
          %v4411 = vmul.f32 %v4286, 1.442695
          %v4412 = vpow.pop %v4411
          %v4413 = vmul.f32 %v4287, 1.442695
          %v4414 = vpow.pop %v4413
          %v4415 = vmul.f32 %v4288, 1.442695
          %v4416 = vpow.pop %v4415
          %v4417 = vmul.f32 %v4098, %v2740
          %v4418 = vmul.f32 %v4100, %v2741
          %v4419 = vmul.f32 %v4102, %v2742
          %v4420 = vmul.f32 %v4104, %v2743
          %v4421 = vmul.f32 %v4106, %v2744
          %v4422 = vmul.f32 %v4108, %v2745
          %v4423 = vmul.f32 %v4110, %v2746
          %v4424 = vmul.f32 %v4112, %v2747
          %v4425 = vmul.f32 %v4114, %v2748
          %v4426 = vmul.f32 %v4116, %v2749
          %v4427 = vmul.f32 %v4118, %v2750
          %v4428 = vmul.f32 %v4120, %v2751
          %v4429 = vmul.f32 %v4122, %v2752
          %v4430 = vmul.f32 %v4124, %v2753
          %v4431 = vmul.f32 %v4126, %v2754
          %v4432 = vmul.f32 %v4128, %v2755
          %v4433 = vmul.f32 %v4130, %v2756
          %v4434 = vmul.f32 %v4132, %v2757
          %v4435 = vmul.f32 %v4134, %v2758
          %v4436 = vmul.f32 %v4136, %v2759
          %v4437 = vmul.f32 %v4138, %v2760
          %v4438 = vmul.f32 %v4140, %v2761
          %v4439 = vmul.f32 %v4142, %v2762
          %v4440 = vmul.f32 %v4144, %v2763
          %v4441 = vmul.f32 %v4146, %v2764
          %v4442 = vmul.f32 %v4148, %v2765
          %v4443 = vmul.f32 %v4150, %v2766
          %v4444 = vmul.f32 %v4152, %v2767
          %v4445 = vmul.f32 %v4154, %v2768
          %v4446 = vmul.f32 %v4156, %v2769
          %v4447 = vmul.f32 %v4158, %v2770
          %v4448 = vmul.f32 %v4160, %v2771
          %v4449 = vmul.f32 %v4162, %v2772
          %v4450 = vmul.f32 %v4164, %v2773
          %v4451 = vmul.f32 %v4166, %v2774
          %v4452 = vmul.f32 %v4168, %v2775
          %v4453 = vmul.f32 %v4170, %v2776
          %v4454 = vmul.f32 %v4172, %v2777
          %v4455 = vmul.f32 %v4174, %v2778
          %v4456 = vmul.f32 %v4176, %v2779
          %v4457 = vmul.f32 %v4178, %v2780
          %v4458 = vmul.f32 %v4180, %v2781
          %v4459 = vmul.f32 %v4182, %v2782
          %v4460 = vmul.f32 %v4184, %v2783
          %v4461 = vmul.f32 %v4186, %v2784
          %v4462 = vmul.f32 %v4188, %v2785
          %v4463 = vmul.f32 %v4190, %v2786
          %v4464 = vmul.f32 %v4192, %v2787
          %v4465 = vmul.f32 %v4194, %v2788
          %v4466 = vmul.f32 %v4196, %v2789
          %v4467 = vmul.f32 %v4198, %v2790
          %v4468 = vmul.f32 %v4200, %v2791
          %v4469 = vmul.f32 %v4202, %v2792
          %v4470 = vmul.f32 %v4204, %v2793
          %v4471 = vmul.f32 %v4206, %v2794
          %v4472 = vmul.f32 %v4208, %v2795
          %v4473 = vmul.f32 %v4210, %v2796
          %v4474 = vmul.f32 %v4212, %v2797
          %v4475 = vmul.f32 %v4214, %v2798
          %v4476 = vmul.f32 %v4216, %v2799
          %v4477 = vmul.f32 %v4218, %v2800
          %v4478 = vmul.f32 %v4220, %v2801
          %v4479 = vmul.f32 %v4222, %v2802
          %v4480 = vmul.f32 %v4224, %v2803
          %4481 = vadd.xlane.f32.xlu0 %v4290
          %v4482 = vpop.xlane.xlu0 %4481
          %4483 = vadd.xlane.f32.xlu0 %v4292
          %v4484 = vpop.xlane.xlu0 %4483
          %4485 = vadd.xlane.f32.xlu0 %v4294
          %v4486 = vpop.xlane.xlu0 %4485
          %4487 = vadd.xlane.f32.xlu0 %v4296
          %v4488 = vpop.xlane.xlu0 %4487
          %4489 = vadd.xlane.f32.xlu0 %v4298
          %v4490 = vpop.xlane.xlu0 %4489
          %4491 = vadd.xlane.f32.xlu0 %v4300
          %v4492 = vpop.xlane.xlu0 %4491
          %4493 = vadd.xlane.f32.xlu0 %v4302
          %v4494 = vpop.xlane.xlu0 %4493
          %4495 = vadd.xlane.f32.xlu0 %v4304
          %v4496 = vpop.xlane.xlu0 %4495
          %4497 = vadd.xlane.f32.xlu0 %v4306
          %v4498 = vpop.xlane.xlu0 %4497
          %4499 = vadd.xlane.f32.xlu0 %v4308
          %v4500 = vpop.xlane.xlu0 %4499
          %4501 = vadd.xlane.f32.xlu0 %v4310
          %v4502 = vpop.xlane.xlu0 %4501
          %4503 = vadd.xlane.f32.xlu0 %v4312
          %v4504 = vpop.xlane.xlu0 %4503
          %4505 = vadd.xlane.f32.xlu0 %v4314
          %v4506 = vpop.xlane.xlu0 %4505
          %4507 = vadd.xlane.f32.xlu0 %v4316
          %v4508 = vpop.xlane.xlu0 %4507
          %4509 = vadd.xlane.f32.xlu0 %v4318
          %v4510 = vpop.xlane.xlu0 %4509
          %4511 = vadd.xlane.f32.xlu0 %v4320
          %v4512 = vpop.xlane.xlu0 %4511
          %4513 = vadd.xlane.f32.xlu0 %v4322
          %v4514 = vpop.xlane.xlu0 %4513
          %4515 = vadd.xlane.f32.xlu0 %v4324
          %v4516 = vpop.xlane.xlu0 %4515
          %4517 = vadd.xlane.f32.xlu0 %v4326
          %v4518 = vpop.xlane.xlu0 %4517
          %4519 = vadd.xlane.f32.xlu0 %v4328
          %v4520 = vpop.xlane.xlu0 %4519
          %4521 = vadd.xlane.f32.xlu0 %v4330
          %v4522 = vpop.xlane.xlu0 %4521
          %4523 = vadd.xlane.f32.xlu0 %v4332
          %v4524 = vpop.xlane.xlu0 %4523
          %4525 = vadd.xlane.f32.xlu0 %v4334
          %v4526 = vpop.xlane.xlu0 %4525
          %4527 = vadd.xlane.f32.xlu0 %v4336
          %v4528 = vpop.xlane.xlu0 %4527
          %4529 = vadd.xlane.f32.xlu0 %v4338
          %v4530 = vpop.xlane.xlu0 %4529
          %4531 = vadd.xlane.f32.xlu0 %v4340
          %v4532 = vpop.xlane.xlu0 %4531
          %4533 = vadd.xlane.f32.xlu0 %v4342
          %v4534 = vpop.xlane.xlu0 %4533
          %4535 = vadd.xlane.f32.xlu0 %v4344
          %v4536 = vpop.xlane.xlu0 %4535
          %4537 = vadd.xlane.f32.xlu0 %v4346
          %v4538 = vpop.xlane.xlu0 %4537
          %4539 = vadd.xlane.f32.xlu0 %v4348
          %v4540 = vpop.xlane.xlu0 %4539
          %4541 = vadd.xlane.f32.xlu0 %v4350
          %v4542 = vpop.xlane.xlu0 %4541
          %4543 = vadd.xlane.f32.xlu0 %v4352
          %v4544 = vpop.xlane.xlu0 %4543
          %4545 = vadd.xlane.f32.xlu0 %v4354
          %v4546 = vpop.xlane.xlu0 %4545
          %4547 = vadd.xlane.f32.xlu0 %v4356
          %v4548 = vpop.xlane.xlu0 %4547
          %4549 = vadd.xlane.f32.xlu0 %v4358
          %v4550 = vpop.xlane.xlu0 %4549
          %4551 = vadd.xlane.f32.xlu0 %v4360
          %v4552 = vpop.xlane.xlu0 %4551
          %4553 = vadd.xlane.f32.xlu0 %v4362
          %v4554 = vpop.xlane.xlu0 %4553
          %4555 = vadd.xlane.f32.xlu0 %v4364
          %v4556 = vpop.xlane.xlu0 %4555
          %4557 = vadd.xlane.f32.xlu0 %v4366
          %v4558 = vpop.xlane.xlu0 %4557
          %4559 = vadd.xlane.f32.xlu0 %v4368
          %v4560 = vpop.xlane.xlu0 %4559
          %4561 = vadd.xlane.f32.xlu0 %v4370
          %v4562 = vpop.xlane.xlu0 %4561
          %4563 = vadd.xlane.f32.xlu0 %v4372
          %v4564 = vpop.xlane.xlu0 %4563
          %4565 = vadd.xlane.f32.xlu0 %v4374
          %v4566 = vpop.xlane.xlu0 %4565
          %4567 = vadd.xlane.f32.xlu0 %v4376
          %v4568 = vpop.xlane.xlu0 %4567
          %4569 = vadd.xlane.f32.xlu0 %v4378
          %v4570 = vpop.xlane.xlu0 %4569
          %4571 = vadd.xlane.f32.xlu0 %v4380
          %v4572 = vpop.xlane.xlu0 %4571
          %4573 = vadd.xlane.f32.xlu0 %v4382
          %v4574 = vpop.xlane.xlu0 %4573
          %4575 = vadd.xlane.f32.xlu0 %v4384
          %v4576 = vpop.xlane.xlu0 %4575
          %4577 = vadd.xlane.f32.xlu0 %v4386
          %v4578 = vpop.xlane.xlu0 %4577
          %4579 = vadd.xlane.f32.xlu0 %v4388
          %v4580 = vpop.xlane.xlu0 %4579
          %4581 = vadd.xlane.f32.xlu0 %v4390
          %v4582 = vpop.xlane.xlu0 %4581
          %4583 = vadd.xlane.f32.xlu0 %v4392
          %v4584 = vpop.xlane.xlu0 %4583
          %4585 = vadd.xlane.f32.xlu0 %v4394
          %v4586 = vpop.xlane.xlu0 %4585
          %4587 = vadd.xlane.f32.xlu0 %v4396
          %v4588 = vpop.xlane.xlu0 %4587
          %4589 = vadd.xlane.f32.xlu0 %v4398
          %v4590 = vpop.xlane.xlu0 %4589
          %4591 = vadd.xlane.f32.xlu0 %v4400
          %v4592 = vpop.xlane.xlu0 %4591
          %4593 = vadd.xlane.f32.xlu0 %v4402
          %v4594 = vpop.xlane.xlu0 %4593
          %4595 = vadd.xlane.f32.xlu0 %v4404
          %v4596 = vpop.xlane.xlu0 %4595
          %4597 = vadd.xlane.f32.xlu0 %v4406
          %v4598 = vpop.xlane.xlu0 %4597
          %4599 = vadd.xlane.f32.xlu0 %v4408
          %v4600 = vpop.xlane.xlu0 %4599
          %4601 = vadd.xlane.f32.xlu0 %v4410
          %v4602 = vpop.xlane.xlu0 %4601
          %4603 = vadd.xlane.f32.xlu0 %v4412
          %v4604 = vpop.xlane.xlu0 %4603
          %4605 = vadd.xlane.f32.xlu0 %v4414
          %v4606 = vpop.xlane.xlu0 %4605
          %4607 = vadd.xlane.f32.xlu0 %v4416
          %v4608 = vpop.xlane.xlu0 %4607
          %v4609 = vadd.f32 %v4417, %v4482
          %v4610 = vadd.f32 %v4418, %v4484
          %v4611 = vadd.f32 %v4419, %v4486
          %v4612 = vadd.f32 %v4420, %v4488
          %v4613 = vadd.f32 %v4421, %v4490
          %v4614 = vadd.f32 %v4422, %v4492
          %v4615 = vadd.f32 %v4423, %v4494
          %v4616 = vadd.f32 %v4424, %v4496
          %v4617 = vadd.f32 %v4425, %v4498
          %v4618 = vadd.f32 %v4426, %v4500
          %v4619 = vadd.f32 %v4427, %v4502
          %v4620 = vadd.f32 %v4428, %v4504
          %v4621 = vadd.f32 %v4429, %v4506
          %v4622 = vadd.f32 %v4430, %v4508
          %v4623 = vadd.f32 %v4431, %v4510
          %v4624 = vadd.f32 %v4432, %v4512
          %v4625 = vadd.f32 %v4433, %v4514
          %v4626 = vadd.f32 %v4434, %v4516
          %v4627 = vadd.f32 %v4435, %v4518
          %v4628 = vadd.f32 %v4436, %v4520
          %v4629 = vadd.f32 %v4437, %v4522
          %v4630 = vadd.f32 %v4438, %v4524
          %v4631 = vadd.f32 %v4439, %v4526
          %v4632 = vadd.f32 %v4440, %v4528
          %v4633 = vadd.f32 %v4441, %v4530
          %v4634 = vadd.f32 %v4442, %v4532
          %v4635 = vadd.f32 %v4443, %v4534
          %v4636 = vadd.f32 %v4444, %v4536
          %v4637 = vadd.f32 %v4445, %v4538
          %v4638 = vadd.f32 %v4446, %v4540
          %v4639 = vadd.f32 %v4447, %v4542
          %v4640 = vadd.f32 %v4448, %v4544
          %v4641 = vadd.f32 %v4449, %v4546
          %v4642 = vadd.f32 %v4450, %v4548
          %v4643 = vadd.f32 %v4451, %v4550
          %v4644 = vadd.f32 %v4452, %v4552
          %v4645 = vadd.f32 %v4453, %v4554
          %v4646 = vadd.f32 %v4454, %v4556
          %v4647 = vadd.f32 %v4455, %v4558
          %v4648 = vadd.f32 %v4456, %v4560
          %v4649 = vadd.f32 %v4457, %v4562
          %v4650 = vadd.f32 %v4458, %v4564
          %v4651 = vadd.f32 %v4459, %v4566
          %v4652 = vadd.f32 %v4460, %v4568
          %v4653 = vadd.f32 %v4461, %v4570
          %v4654 = vadd.f32 %v4462, %v4572
          %v4655 = vadd.f32 %v4463, %v4574
          %v4656 = vadd.f32 %v4464, %v4576
          %v4657 = vadd.f32 %v4465, %v4578
          %v4658 = vadd.f32 %v4466, %v4580
          %v4659 = vadd.f32 %v4467, %v4582
          %v4660 = vadd.f32 %v4468, %v4584
          %v4661 = vadd.f32 %v4469, %v4586
          %v4662 = vadd.f32 %v4470, %v4588
          %v4663 = vadd.f32 %v4471, %v4590
          %v4664 = vadd.f32 %v4472, %v4592
          %v4665 = vadd.f32 %v4473, %v4594
          %v4666 = vadd.f32 %v4474, %v4596
          %v4667 = vadd.f32 %v4475, %v4598
          %v4668 = vadd.f32 %v4476, %v4600
          %v4669 = vadd.f32 %v4477, %v4602
          %v4670 = vadd.f32 %v4478, %v4604
          %v4671 = vadd.f32 %v4479, %v4606
          %v4672 = vadd.f32 %v4480, %v4608
          %4673 = vmatprep.subr.mxu0 0.0
          %4674 = vmatpush1.msra.mxu0 %v2888
          %4675 = vmatprep.subr.mxu0 0.0
          %4676 = vmatpush1.msra.mxu0 %v2889
          %4677 = vmatprep.subr.mxu0 0.0
          %4678 = vmatpush1.msra.mxu0 %v2890
          %4679 = vmatprep.subr.mxu0 0.0
          %4680 = vmatpush1.msra.mxu0 %v2891
          %4681 = vmatprep.subr.mxu0 0.0
          %4682 = vmatpush1.msra.mxu0 %v2892
          %4683 = vmatprep.subr.mxu0 0.0
          %4684 = vmatpush1.msra.mxu0 %v2893
          %4685 = vmatprep.subr.mxu0 0.0
          %4686 = vmatpush1.msra.mxu0 %v2894
          %4687 = vmatprep.subr.mxu0 0.0
          %4688 = vmatpush1.msra.mxu0 %v2895
          %4689 = vmatprep.subr.mxu0 0.0
          %4690 = vmatpush1.msra.mxu0 %v2896
          %4691 = vmatprep.subr.mxu0 0.0
          %4692 = vmatpush1.msra.mxu0 %v2897
          %4693 = vmatprep.subr.mxu0 0.0
          %4694 = vmatpush1.msra.mxu0 %v2898
          %4695 = vmatprep.subr.mxu0 0.0
          %4696 = vmatpush1.msra.mxu0 %v2899
          %4697 = vmatprep.subr.mxu0 0.0
          %4698 = vmatpush1.msra.mxu0 %v2900
          %4699 = vmatprep.subr.mxu0 0.0
          %4700 = vmatpush1.msra.mxu0 %v2901
          %4701 = vmatprep.subr.mxu0 0.0
          %4702 = vmatpush1.msra.mxu0 %v2902
          %4703 = vmatprep.subr.mxu0 0.0
          %4704 = vmatpush1.msra.mxu0 %v2903
          %4705 = vmatprep.subr.mxu0 0.0
          %4706 = vmatpush1.msra.mxu0 0.0
          %4707 = vmatprep.subr.mxu0 0.0
          %4708 = vmatpush1.msra.mxu0 0.0
          %4709 = vmatprep.subr.mxu0 0.0
          %4710 = vmatpush1.msra.mxu0 0.0
          %4711 = vmatprep.subr.mxu0 0.0
          %4712 = vmatpush1.msra.mxu0 0.0
          %4713 = vmatprep.subr.mxu0 0.0
          %4714 = vmatpush1.msra.mxu0 0.0
          %4715 = vmatprep.subr.mxu0 0.0
          %4716 = vmatpush1.msra.mxu0 0.0
          %4717 = vmatprep.subr.mxu0 0.0
          %4718 = vmatpush1.msra.mxu0 0.0
          %4719 = vmatprep.subr.mxu0 0.0
          %4720 = vmatpush1.msra.mxu0 0.0
          %4721 = vmatprep.subr.mxu0 0.0
          %4722 = vmatpush1.msra.mxu0 0.0
          %4723 = vmatprep.subr.mxu0 0.0
          %4724 = vmatpush1.msra.mxu0 0.0
          %4725 = vmatprep.subr.mxu0 0.0
          %4726 = vmatpush1.msra.mxu0 0.0
          %4727 = vmatprep.subr.mxu0 0.0
          %4728 = vmatpush1.msra.mxu0 0.0
          %4729 = vmatprep.subr.mxu0 0.0
          %4730 = vmatpush1.msra.mxu0 0.0
          %4731 = vmatprep.subr.mxu0 0.0
          %4732 = vmatpush1.msra.mxu0 0.0
          %4733 = vmatprep.subr.mxu0 0.0
          %4734 = vmatpush1.msra.mxu0 0.0
          %4735 = vmatprep.subr.mxu0 0.0
          %4736 = vmatpush1.msra.mxu0 0.0
          %4737 = vmatprep.mubr.f32.mxu0 0.0
          %4738 = vmatmul.mubr.f32.gmra.mrb[0].mxu0 %v4290
          %v4739 = vpop.f32.mrb[0].mxu0
          %v4740 = vadd.f32 0.0, %v4739
          %v4741 = vpop.f32.mrb[0].mxu0
          %4742 = vmatprep.mubr.f32.mxu0 0.0
          %4743 = vmatmul.mubr.f32.gmra.mrb[0].mxu0 %v4292
          %v4744 = vpop.f32.mrb[0].mxu0
          %v4745 = vadd.f32 0.0, %v4744
          %v4746 = vpop.f32.mrb[0].mxu0
          %4747 = vmatprep.mubr.f32.mxu0 0.0
          %4748 = vmatmul.mubr.f32.gmra.mrb[0].mxu0 %v4294
          %v4749 = vpop.f32.mrb[0].mxu0
          %v4750 = vadd.f32 0.0, %v4749
          %v4751 = vpop.f32.mrb[0].mxu0
          %4752 = vmatprep.mubr.f32.mxu0 0.0
          %4753 = vmatmul.mubr.f32.gmra.mrb[0].mxu0 %v4296
          %v4754 = vpop.f32.mrb[0].mxu0
          %v4755 = vadd.f32 0.0, %v4754
          %v4756 = vpop.f32.mrb[0].mxu0
          %4757 = vmatprep.mubr.f32.mxu0 0.0
          %4758 = vmatmul.mubr.f32.gmra.mrb[0].mxu0 %v4298
          %v4759 = vpop.f32.mrb[0].mxu0
          %v4760 = vadd.f32 0.0, %v4759
          %v4761 = vpop.f32.mrb[0].mxu0
          %4762 = vmatprep.mubr.f32.mxu0 0.0
          %4763 = vmatmul.mubr.f32.gmra.mrb[0].mxu0 %v4300
          %v4764 = vpop.f32.mrb[0].mxu0
          %v4765 = vadd.f32 0.0, %v4764
          %v4766 = vpop.f32.mrb[0].mxu0
          %4767 = vmatprep.mubr.f32.mxu0 0.0
          %4768 = vmatmul.mubr.f32.gmra.mrb[0].mxu0 %v4302
          %v4769 = vpop.f32.mrb[0].mxu0
          %v4770 = vadd.f32 0.0, %v4769
          %v4771 = vpop.f32.mrb[0].mxu0
          %4772 = vmatprep.mubr.f32.mxu0 0.0
          %4773 = vmatmul.mubr.f32.gmra.mrb[0].mxu0 %v4304
          %v4774 = vpop.f32.mrb[0].mxu0
          %v4775 = vadd.f32 0.0, %v4774
          %v4776 = vpop.f32.mrb[0].mxu0
          %4777 = vmatprep.mubr.f32.mxu0 0.0
          %4778 = vmatmul.mubr.f32.gmra.mrb[0].mxu0 %v4306
          %v4779 = vpop.f32.mrb[0].mxu0
          %v4780 = vadd.f32 0.0, %v4779
          %v4781 = vpop.f32.mrb[0].mxu0
          %4782 = vmatprep.mubr.f32.mxu0 0.0
          %4783 = vmatmul.mubr.f32.gmra.mrb[0].mxu0 %v4308
          %v4784 = vpop.f32.mrb[0].mxu0
          %v4785 = vadd.f32 0.0, %v4784
          %v4786 = vpop.f32.mrb[0].mxu0
          %4787 = vmatprep.mubr.f32.mxu0 0.0
          %4788 = vmatmul.mubr.f32.gmra.mrb[0].mxu0 %v4310
          %v4789 = vpop.f32.mrb[0].mxu0
          %v4790 = vadd.f32 0.0, %v4789
          %v4791 = vpop.f32.mrb[0].mxu0
          %4792 = vmatprep.mubr.f32.mxu0 0.0
          %4793 = vmatmul.mubr.f32.gmra.mrb[0].mxu0 %v4312
          %v4794 = vpop.f32.mrb[0].mxu0
          %v4795 = vadd.f32 0.0, %v4794
          %v4796 = vpop.f32.mrb[0].mxu0
          %4797 = vmatprep.mubr.f32.mxu0 0.0
          %4798 = vmatmul.mubr.f32.gmra.mrb[0].mxu0 %v4314
          %v4799 = vpop.f32.mrb[0].mxu0
          %v4800 = vadd.f32 0.0, %v4799
          %v4801 = vpop.f32.mrb[0].mxu0
          %4802 = vmatprep.mubr.f32.mxu0 0.0
          %4803 = vmatmul.mubr.f32.gmra.mrb[0].mxu0 %v4316
          %v4804 = vpop.f32.mrb[0].mxu0
          %v4805 = vadd.f32 0.0, %v4804
          %v4806 = vpop.f32.mrb[0].mxu0
          %4807 = vmatprep.mubr.f32.mxu0 0.0
          %4808 = vmatmul.mubr.f32.gmra.mrb[0].mxu0 %v4318
          %v4809 = vpop.f32.mrb[0].mxu0
          %v4810 = vadd.f32 0.0, %v4809
          %v4811 = vpop.f32.mrb[0].mxu0
          %4812 = vmatprep.mubr.f32.mxu0 0.0
          %4813 = vmatmul.mubr.f32.gmra.mrb[0].mxu0 %v4320
          %v4814 = vpop.f32.mrb[0].mxu0
          %v4815 = vadd.f32 0.0, %v4814
          %v4816 = vpop.f32.mrb[0].mxu0
          %4817 = vdwg.mxu0
          %4818 = vmatprep.subr.mxu0 0.0
          %4819 = vmatpush1.msra.mxu0 %v2904
          %4820 = vmatprep.subr.mxu0 0.0
          %4821 = vmatpush1.msra.mxu0 %v2905
          %4822 = vmatprep.subr.mxu0 0.0
          %4823 = vmatpush1.msra.mxu0 %v2906
          %4824 = vmatprep.subr.mxu0 0.0
          %4825 = vmatpush1.msra.mxu0 %v2907
          %4826 = vmatprep.subr.mxu0 0.0
          %4827 = vmatpush1.msra.mxu0 %v2908
          %4828 = vmatprep.subr.mxu0 0.0
          %4829 = vmatpush1.msra.mxu0 %v2909
          %4830 = vmatprep.subr.mxu0 0.0
          %4831 = vmatpush1.msra.mxu0 %v2910
          %4832 = vmatprep.subr.mxu0 0.0
          %4833 = vmatpush1.msra.mxu0 %v2911
          %4834 = vmatprep.subr.mxu0 0.0
          %4835 = vmatpush1.msra.mxu0 %v2912
          %4836 = vmatprep.subr.mxu0 0.0
          %4837 = vmatpush1.msra.mxu0 %v2913
          %4838 = vmatprep.subr.mxu0 0.0
          %4839 = vmatpush1.msra.mxu0 %v2914
          %4840 = vmatprep.subr.mxu0 0.0
          %4841 = vmatpush1.msra.mxu0 %v2915
          %4842 = vmatprep.subr.mxu0 0.0
          %4843 = vmatpush1.msra.mxu0 %v2916
          %4844 = vmatprep.subr.mxu0 0.0
          %4845 = vmatpush1.msra.mxu0 %v2917
          %4846 = vmatprep.subr.mxu0 0.0
          %4847 = vmatpush1.msra.mxu0 %v2918
          %4848 = vmatprep.subr.mxu0 0.0
          %4849 = vmatpush1.msra.mxu0 %v2919
          %4850 = vmatprep.subr.mxu0 0.0
          %4851 = vmatpush1.msra.mxu0 0.0
          %4852 = vmatprep.subr.mxu0 0.0
          %4853 = vmatpush1.msra.mxu0 0.0
          %4854 = vmatprep.subr.mxu0 0.0
          %4855 = vmatpush1.msra.mxu0 0.0
          %4856 = vmatprep.subr.mxu0 0.0
          %4857 = vmatpush1.msra.mxu0 0.0
          %4858 = vmatprep.subr.mxu0 0.0
          %4859 = vmatpush1.msra.mxu0 0.0
          %4860 = vmatprep.subr.mxu0 0.0
          %4861 = vmatpush1.msra.mxu0 0.0
          %4862 = vmatprep.subr.mxu0 0.0
          %4863 = vmatpush1.msra.mxu0 0.0
          %4864 = vmatprep.subr.mxu0 0.0
          %4865 = vmatpush1.msra.mxu0 0.0
          %4866 = vmatprep.subr.mxu0 0.0
          %4867 = vmatpush1.msra.mxu0 0.0
          %4868 = vmatprep.subr.mxu0 0.0
          %4869 = vmatpush1.msra.mxu0 0.0
          %4870 = vmatprep.subr.mxu0 0.0
          %4871 = vmatpush1.msra.mxu0 0.0
          %4872 = vmatprep.subr.mxu0 0.0
          %4873 = vmatpush1.msra.mxu0 0.0
          %4874 = vmatprep.subr.mxu0 0.0
          %4875 = vmatpush1.msra.mxu0 0.0
          %4876 = vmatprep.subr.mxu0 0.0
          %4877 = vmatpush1.msra.mxu0 0.0
          %4878 = vmatprep.subr.mxu0 0.0
          %4879 = vmatpush1.msra.mxu0 0.0
          %4880 = vmatprep.subr.mxu0 0.0
          %4881 = vmatpush1.msra.mxu0 0.0
          %4882 = vmatprep.mubr.f32.mxu0 0.0
          %4883 = vmatmul.mubr.f32.gmra.mrb[0].mxu0 %v4322
          %v4884 = vpop.f32.mrb[0].mxu0
          %v4885 = vadd.f32 0.0, %v4884
          %v4886 = vpop.f32.mrb[0].mxu0
          %4887 = vmatprep.mubr.f32.mxu0 0.0
          %4888 = vmatmul.mubr.f32.gmra.mrb[0].mxu0 %v4324
          %v4889 = vpop.f32.mrb[0].mxu0
          %v4890 = vadd.f32 0.0, %v4889
          %v4891 = vpop.f32.mrb[0].mxu0
          %4892 = vmatprep.mubr.f32.mxu0 0.0
          %4893 = vmatmul.mubr.f32.gmra.mrb[0].mxu0 %v4326
          %v4894 = vpop.f32.mrb[0].mxu0
          %v4895 = vadd.f32 0.0, %v4894
          %v4896 = vpop.f32.mrb[0].mxu0
          %4897 = vmatprep.mubr.f32.mxu0 0.0
          %4898 = vmatmul.mubr.f32.gmra.mrb[0].mxu0 %v4328
          %v4899 = vpop.f32.mrb[0].mxu0
          %v4900 = vadd.f32 0.0, %v4899
          %v4901 = vpop.f32.mrb[0].mxu0
          %4902 = vmatprep.mubr.f32.mxu0 0.0
          %4903 = vmatmul.mubr.f32.gmra.mrb[0].mxu0 %v4330
          %v4904 = vpop.f32.mrb[0].mxu0
          %v4905 = vadd.f32 0.0, %v4904
          %v4906 = vpop.f32.mrb[0].mxu0
          %4907 = vmatprep.mubr.f32.mxu0 0.0
          %4908 = vmatmul.mubr.f32.gmra.mrb[0].mxu0 %v4332
          %v4909 = vpop.f32.mrb[0].mxu0
          %v4910 = vadd.f32 0.0, %v4909
          %v4911 = vpop.f32.mrb[0].mxu0
          %4912 = vmatprep.mubr.f32.mxu0 0.0
          %4913 = vmatmul.mubr.f32.gmra.mrb[0].mxu0 %v4334
          %v4914 = vpop.f32.mrb[0].mxu0
          %v4915 = vadd.f32 0.0, %v4914
          %v4916 = vpop.f32.mrb[0].mxu0
          %4917 = vmatprep.mubr.f32.mxu0 0.0
          %4918 = vmatmul.mubr.f32.gmra.mrb[0].mxu0 %v4336
          %v4919 = vpop.f32.mrb[0].mxu0
          %v4920 = vadd.f32 0.0, %v4919
          %v4921 = vpop.f32.mrb[0].mxu0
          %4922 = vmatprep.mubr.f32.mxu0 0.0
          %4923 = vmatmul.mubr.f32.gmra.mrb[0].mxu0 %v4338
          %v4924 = vpop.f32.mrb[0].mxu0
          %v4925 = vadd.f32 0.0, %v4924
          %v4926 = vpop.f32.mrb[0].mxu0
          %4927 = vmatprep.mubr.f32.mxu0 0.0
          %4928 = vmatmul.mubr.f32.gmra.mrb[0].mxu0 %v4340
          %v4929 = vpop.f32.mrb[0].mxu0
          %v4930 = vadd.f32 0.0, %v4929
          %v4931 = vpop.f32.mrb[0].mxu0
          %4932 = vmatprep.mubr.f32.mxu0 0.0
          %4933 = vmatmul.mubr.f32.gmra.mrb[0].mxu0 %v4342
          %v4934 = vpop.f32.mrb[0].mxu0
          %v4935 = vadd.f32 0.0, %v4934
          %v4936 = vpop.f32.mrb[0].mxu0
          %4937 = vmatprep.mubr.f32.mxu0 0.0
          %4938 = vmatmul.mubr.f32.gmra.mrb[0].mxu0 %v4344
          %v4939 = vpop.f32.mrb[0].mxu0
          %v4940 = vadd.f32 0.0, %v4939
          %v4941 = vpop.f32.mrb[0].mxu0
          %4942 = vmatprep.mubr.f32.mxu0 0.0
          %4943 = vmatmul.mubr.f32.gmra.mrb[0].mxu0 %v4346
          %v4944 = vpop.f32.mrb[0].mxu0
          %v4945 = vadd.f32 0.0, %v4944
          %v4946 = vpop.f32.mrb[0].mxu0
          %4947 = vmatprep.mubr.f32.mxu0 0.0
          %4948 = vmatmul.mubr.f32.gmra.mrb[0].mxu0 %v4348
          %v4949 = vpop.f32.mrb[0].mxu0
          %v4950 = vadd.f32 0.0, %v4949
          %v4951 = vpop.f32.mrb[0].mxu0
          %4952 = vmatprep.mubr.f32.mxu0 0.0
          %4953 = vmatmul.mubr.f32.gmra.mrb[0].mxu0 %v4350
          %v4954 = vpop.f32.mrb[0].mxu0
          %v4955 = vadd.f32 0.0, %v4954
          %v4956 = vpop.f32.mrb[0].mxu0
          %4957 = vmatprep.mubr.f32.mxu0 0.0
          %4958 = vmatmul.mubr.f32.gmra.mrb[0].mxu0 %v4352
          %v4959 = vpop.f32.mrb[0].mxu0
          %v4960 = vadd.f32 0.0, %v4959
          %v4961 = vpop.f32.mrb[0].mxu0
          %4962 = vdwg.mxu0
          %4963 = vmatprep.subr.mxu0 0.0
          %4964 = vmatpush1.msra.mxu0 %v2920
          %4965 = vmatprep.subr.mxu0 0.0
          %4966 = vmatpush1.msra.mxu0 %v2921
          %4967 = vmatprep.subr.mxu0 0.0
          %4968 = vmatpush1.msra.mxu0 %v2922
          %4969 = vmatprep.subr.mxu0 0.0
          %4970 = vmatpush1.msra.mxu0 %v2923
          %4971 = vmatprep.subr.mxu0 0.0
          %4972 = vmatpush1.msra.mxu0 %v2924
          %4973 = vmatprep.subr.mxu0 0.0
          %4974 = vmatpush1.msra.mxu0 %v2925
          %4975 = vmatprep.subr.mxu0 0.0
          %4976 = vmatpush1.msra.mxu0 %v2926
          %4977 = vmatprep.subr.mxu0 0.0
          %4978 = vmatpush1.msra.mxu0 %v2927
          %4979 = vmatprep.subr.mxu0 0.0
          %4980 = vmatpush1.msra.mxu0 %v2928
          %4981 = vmatprep.subr.mxu0 0.0
          %4982 = vmatpush1.msra.mxu0 %v2929
          %4983 = vmatprep.subr.mxu0 0.0
          %4984 = vmatpush1.msra.mxu0 %v2930
          %4985 = vmatprep.subr.mxu0 0.0
          %4986 = vmatpush1.msra.mxu0 %v2931
          %4987 = vmatprep.subr.mxu0 0.0
          %4988 = vmatpush1.msra.mxu0 %v2932
          %4989 = vmatprep.subr.mxu0 0.0
          %4990 = vmatpush1.msra.mxu0 %v2933
          %4991 = vmatprep.subr.mxu0 0.0
          %4992 = vmatpush1.msra.mxu0 %v2934
          %4993 = vmatprep.subr.mxu0 0.0
          %4994 = vmatpush1.msra.mxu0 %v2935
          %4995 = vmatprep.subr.mxu0 0.0
          %4996 = vmatpush1.msra.mxu0 0.0
          %4997 = vmatprep.subr.mxu0 0.0
          %4998 = vmatpush1.msra.mxu0 0.0
          %4999 = vmatprep.subr.mxu0 0.0
          %5000 = vmatpush1.msra.mxu0 0.0
          %5001 = vmatprep.subr.mxu0 0.0
          %5002 = vmatpush1.msra.mxu0 0.0
          %5003 = vmatprep.subr.mxu0 0.0
          %5004 = vmatpush1.msra.mxu0 0.0
          %5005 = vmatprep.subr.mxu0 0.0
          %5006 = vmatpush1.msra.mxu0 0.0
          %5007 = vmatprep.subr.mxu0 0.0
          %5008 = vmatpush1.msra.mxu0 0.0
          %5009 = vmatprep.subr.mxu0 0.0
          %5010 = vmatpush1.msra.mxu0 0.0
          %5011 = vmatprep.subr.mxu0 0.0
          %5012 = vmatpush1.msra.mxu0 0.0
          %5013 = vmatprep.subr.mxu0 0.0
          %5014 = vmatpush1.msra.mxu0 0.0
          %5015 = vmatprep.subr.mxu0 0.0
          %5016 = vmatpush1.msra.mxu0 0.0
          %5017 = vmatprep.subr.mxu0 0.0
          %5018 = vmatpush1.msra.mxu0 0.0
          %5019 = vmatprep.subr.mxu0 0.0
          %5020 = vmatpush1.msra.mxu0 0.0
          %5021 = vmatprep.subr.mxu0 0.0
          %5022 = vmatpush1.msra.mxu0 0.0
          %5023 = vmatprep.subr.mxu0 0.0
          %5024 = vmatpush1.msra.mxu0 0.0
          %5025 = vmatprep.subr.mxu0 0.0
          %5026 = vmatpush1.msra.mxu0 0.0
          %5027 = vmatprep.mubr.f32.mxu0 0.0
          %5028 = vmatmul.mubr.f32.gmra.mrb[0].mxu0 %v4354
          %v5029 = vpop.f32.mrb[0].mxu0
          %v5030 = vadd.f32 0.0, %v5029
          %v5031 = vpop.f32.mrb[0].mxu0
          %5032 = vmatprep.mubr.f32.mxu0 0.0
          %5033 = vmatmul.mubr.f32.gmra.mrb[0].mxu0 %v4356
          %v5034 = vpop.f32.mrb[0].mxu0
          %v5035 = vadd.f32 0.0, %v5034
          %v5036 = vpop.f32.mrb[0].mxu0
          %5037 = vmatprep.mubr.f32.mxu0 0.0
          %5038 = vmatmul.mubr.f32.gmra.mrb[0].mxu0 %v4358
          %v5039 = vpop.f32.mrb[0].mxu0
          %v5040 = vadd.f32 0.0, %v5039
          %v5041 = vpop.f32.mrb[0].mxu0
          %5042 = vmatprep.mubr.f32.mxu0 0.0
          %5043 = vmatmul.mubr.f32.gmra.mrb[0].mxu0 %v4360
          %v5044 = vpop.f32.mrb[0].mxu0
          %v5045 = vadd.f32 0.0, %v5044
          %v5046 = vpop.f32.mrb[0].mxu0
          %5047 = vmatprep.mubr.f32.mxu0 0.0
          %5048 = vmatmul.mubr.f32.gmra.mrb[0].mxu0 %v4362
          %v5049 = vpop.f32.mrb[0].mxu0
          %v5050 = vadd.f32 0.0, %v5049
          %v5051 = vpop.f32.mrb[0].mxu0
          %5052 = vmatprep.mubr.f32.mxu0 0.0
          %5053 = vmatmul.mubr.f32.gmra.mrb[0].mxu0 %v4364
          %v5054 = vpop.f32.mrb[0].mxu0
          %v5055 = vadd.f32 0.0, %v5054
          %v5056 = vpop.f32.mrb[0].mxu0
          %5057 = vmatprep.mubr.f32.mxu0 0.0
          %5058 = vmatmul.mubr.f32.gmra.mrb[0].mxu0 %v4366
          %v5059 = vpop.f32.mrb[0].mxu0
          %v5060 = vadd.f32 0.0, %v5059
          %v5061 = vpop.f32.mrb[0].mxu0
          %5062 = vmatprep.mubr.f32.mxu0 0.0
          %5063 = vmatmul.mubr.f32.gmra.mrb[0].mxu0 %v4368
          %v5064 = vpop.f32.mrb[0].mxu0
          %v5065 = vadd.f32 0.0, %v5064
          %v5066 = vpop.f32.mrb[0].mxu0
          %5067 = vmatprep.mubr.f32.mxu0 0.0
          %5068 = vmatmul.mubr.f32.gmra.mrb[0].mxu0 %v4370
          %v5069 = vpop.f32.mrb[0].mxu0
          %v5070 = vadd.f32 0.0, %v5069
          %v5071 = vpop.f32.mrb[0].mxu0
          %5072 = vmatprep.mubr.f32.mxu0 0.0
          %5073 = vmatmul.mubr.f32.gmra.mrb[0].mxu0 %v4372
          %v5074 = vpop.f32.mrb[0].mxu0
          %v5075 = vadd.f32 0.0, %v5074
          %v5076 = vpop.f32.mrb[0].mxu0
          %5077 = vmatprep.mubr.f32.mxu0 0.0
          %5078 = vmatmul.mubr.f32.gmra.mrb[0].mxu0 %v4374
          %v5079 = vpop.f32.mrb[0].mxu0
          %v5080 = vadd.f32 0.0, %v5079
          %v5081 = vpop.f32.mrb[0].mxu0
          %5082 = vmatprep.mubr.f32.mxu0 0.0
          %5083 = vmatmul.mubr.f32.gmra.mrb[0].mxu0 %v4376
          %v5084 = vpop.f32.mrb[0].mxu0
          %v5085 = vadd.f32 0.0, %v5084
          %v5086 = vpop.f32.mrb[0].mxu0
          %5087 = vmatprep.mubr.f32.mxu0 0.0
          %5088 = vmatmul.mubr.f32.gmra.mrb[0].mxu0 %v4378
          %v5089 = vpop.f32.mrb[0].mxu0
          %v5090 = vadd.f32 0.0, %v5089
          %v5091 = vpop.f32.mrb[0].mxu0
          %5092 = vmatprep.mubr.f32.mxu0 0.0
          %5093 = vmatmul.mubr.f32.gmra.mrb[0].mxu0 %v4380
          %v5094 = vpop.f32.mrb[0].mxu0
          %v5095 = vadd.f32 0.0, %v5094
          %v5096 = vpop.f32.mrb[0].mxu0
          %5097 = vmatprep.mubr.f32.mxu0 0.0
          %5098 = vmatmul.mubr.f32.gmra.mrb[0].mxu0 %v4382
          %v5099 = vpop.f32.mrb[0].mxu0
          %v5100 = vadd.f32 0.0, %v5099
          %v5101 = vpop.f32.mrb[0].mxu0
          %5102 = vmatprep.mubr.f32.mxu0 0.0
          %5103 = vmatmul.mubr.f32.gmra.mrb[0].mxu0 %v4384
          %v5104 = vpop.f32.mrb[0].mxu0
          %v5105 = vadd.f32 0.0, %v5104
          %v5106 = vpop.f32.mrb[0].mxu0
          %5107 = vdwg.mxu0
          %5108 = vmatprep.subr.mxu0 0.0
          %5109 = vmatpush1.msra.mxu0 %v2936
          %5110 = vmatprep.subr.mxu0 0.0
          %5111 = vmatpush1.msra.mxu0 %v2937
          %5112 = vmatprep.subr.mxu0 0.0
          %5113 = vmatpush1.msra.mxu0 %v2938
          %5114 = vmatprep.subr.mxu0 0.0
          %5115 = vmatpush1.msra.mxu0 %v2939
          %5116 = vmatprep.subr.mxu0 0.0
          %5117 = vmatpush1.msra.mxu0 %v2940
          %5118 = vmatprep.subr.mxu0 0.0
          %5119 = vmatpush1.msra.mxu0 %v2941
          %5120 = vmatprep.subr.mxu0 0.0
          %5121 = vmatpush1.msra.mxu0 %v2942
          %5122 = vmatprep.subr.mxu0 0.0
          %5123 = vmatpush1.msra.mxu0 %v2943
          %5124 = vmatprep.subr.mxu0 0.0
          %5125 = vmatpush1.msra.mxu0 %v2944
          %5126 = vmatprep.subr.mxu0 0.0
          %5127 = vmatpush1.msra.mxu0 %v2945
          %5128 = vmatprep.subr.mxu0 0.0
          %5129 = vmatpush1.msra.mxu0 %v2946
          %5130 = vmatprep.subr.mxu0 0.0
          %5131 = vmatpush1.msra.mxu0 %v2947
          %5132 = vmatprep.subr.mxu0 0.0
          %5133 = vmatpush1.msra.mxu0 %v2948
          %5134 = vmatprep.subr.mxu0 0.0
          %5135 = vmatpush1.msra.mxu0 %v2949
          %5136 = vmatprep.subr.mxu0 0.0
          %5137 = vmatpush1.msra.mxu0 %v2950
          %5138 = vmatprep.subr.mxu0 0.0
          %5139 = vmatpush1.msra.mxu0 %v2951
          %5140 = vmatprep.subr.mxu0 0.0
          %5141 = vmatpush1.msra.mxu0 0.0
          %5142 = vmatprep.subr.mxu0 0.0
          %5143 = vmatpush1.msra.mxu0 0.0
          %5144 = vmatprep.subr.mxu0 0.0
          %5145 = vmatpush1.msra.mxu0 0.0
          %5146 = vmatprep.subr.mxu0 0.0
          %5147 = vmatpush1.msra.mxu0 0.0
          %5148 = vmatprep.subr.mxu0 0.0
          %5149 = vmatpush1.msra.mxu0 0.0
          %5150 = vmatprep.subr.mxu0 0.0
          %5151 = vmatpush1.msra.mxu0 0.0
          %5152 = vmatprep.subr.mxu0 0.0
          %5153 = vmatpush1.msra.mxu0 0.0
          %5154 = vmatprep.subr.mxu0 0.0
          %5155 = vmatpush1.msra.mxu0 0.0
          %5156 = vmatprep.subr.mxu0 0.0
          %5157 = vmatpush1.msra.mxu0 0.0
          %5158 = vmatprep.subr.mxu0 0.0
          %5159 = vmatpush1.msra.mxu0 0.0
          %5160 = vmatprep.subr.mxu0 0.0
          %5161 = vmatpush1.msra.mxu0 0.0
          %5162 = vmatprep.subr.mxu0 0.0
          %5163 = vmatpush1.msra.mxu0 0.0
          %5164 = vmatprep.subr.mxu0 0.0
          %5165 = vmatpush1.msra.mxu0 0.0
          %5166 = vmatprep.subr.mxu0 0.0
          %5167 = vmatpush1.msra.mxu0 0.0
          %5168 = vmatprep.subr.mxu0 0.0
          %5169 = vmatpush1.msra.mxu0 0.0
          %5170 = vmatprep.subr.mxu0 0.0
          %5171 = vmatpush1.msra.mxu0 0.0
          %5172 = vmatprep.mubr.f32.mxu0 0.0
          %5173 = vmatmul.mubr.f32.gmra.mrb[0].mxu0 %v4386
          %v5174 = vpop.f32.mrb[0].mxu0
          %v5175 = vadd.f32 0.0, %v5174
          %v5176 = vpop.f32.mrb[0].mxu0
          %5177 = vmatprep.mubr.f32.mxu0 0.0
          %5178 = vmatmul.mubr.f32.gmra.mrb[0].mxu0 %v4388
          %v5179 = vpop.f32.mrb[0].mxu0
          %v5180 = vadd.f32 0.0, %v5179
          %v5181 = vpop.f32.mrb[0].mxu0
          %5182 = vmatprep.mubr.f32.mxu0 0.0
          %5183 = vmatmul.mubr.f32.gmra.mrb[0].mxu0 %v4390
          %v5184 = vpop.f32.mrb[0].mxu0
          %v5185 = vadd.f32 0.0, %v5184
          %v5186 = vpop.f32.mrb[0].mxu0
          %5187 = vmatprep.mubr.f32.mxu0 0.0
          %5188 = vmatmul.mubr.f32.gmra.mrb[0].mxu0 %v4392
          %v5189 = vpop.f32.mrb[0].mxu0
          %v5190 = vadd.f32 0.0, %v5189
          %v5191 = vpop.f32.mrb[0].mxu0
          %5192 = vmatprep.mubr.f32.mxu0 0.0
          %5193 = vmatmul.mubr.f32.gmra.mrb[0].mxu0 %v4394
          %v5194 = vpop.f32.mrb[0].mxu0
          %v5195 = vadd.f32 0.0, %v5194
          %v5196 = vpop.f32.mrb[0].mxu0
          %5197 = vmatprep.mubr.f32.mxu0 0.0
          %5198 = vmatmul.mubr.f32.gmra.mrb[0].mxu0 %v4396
          %v5199 = vpop.f32.mrb[0].mxu0
          %v5200 = vadd.f32 0.0, %v5199
          %v5201 = vpop.f32.mrb[0].mxu0
          %5202 = vmatprep.mubr.f32.mxu0 0.0
          %5203 = vmatmul.mubr.f32.gmra.mrb[0].mxu0 %v4398
          %v5204 = vpop.f32.mrb[0].mxu0
          %v5205 = vadd.f32 0.0, %v5204
          %v5206 = vpop.f32.mrb[0].mxu0
          %5207 = vmatprep.mubr.f32.mxu0 0.0
          %5208 = vmatmul.mubr.f32.gmra.mrb[0].mxu0 %v4400
          %v5209 = vpop.f32.mrb[0].mxu0
          %v5210 = vadd.f32 0.0, %v5209
          %v5211 = vpop.f32.mrb[0].mxu0
          %5212 = vmatprep.mubr.f32.mxu0 0.0
          %5213 = vmatmul.mubr.f32.gmra.mrb[0].mxu0 %v4402
          %v5214 = vpop.f32.mrb[0].mxu0
          %v5215 = vadd.f32 0.0, %v5214
          %v5216 = vpop.f32.mrb[0].mxu0
          %5217 = vmatprep.mubr.f32.mxu0 0.0
          %5218 = vmatmul.mubr.f32.gmra.mrb[0].mxu0 %v4404
          %v5219 = vpop.f32.mrb[0].mxu0
          %v5220 = vadd.f32 0.0, %v5219
          %v5221 = vpop.f32.mrb[0].mxu0
          %5222 = vmatprep.mubr.f32.mxu0 0.0
          %5223 = vmatmul.mubr.f32.gmra.mrb[0].mxu0 %v4406
          %v5224 = vpop.f32.mrb[0].mxu0
          %v5225 = vadd.f32 0.0, %v5224
          %v5226 = vpop.f32.mrb[0].mxu0
          %5227 = vmatprep.mubr.f32.mxu0 0.0
          %5228 = vmatmul.mubr.f32.gmra.mrb[0].mxu0 %v4408
          %v5229 = vpop.f32.mrb[0].mxu0
          %v5230 = vadd.f32 0.0, %v5229
          %v5231 = vpop.f32.mrb[0].mxu0
          %5232 = vmatprep.mubr.f32.mxu0 0.0
          %5233 = vmatmul.mubr.f32.gmra.mrb[0].mxu0 %v4410
          %v5234 = vpop.f32.mrb[0].mxu0
          %v5235 = vadd.f32 0.0, %v5234
          %v5236 = vpop.f32.mrb[0].mxu0
          %5237 = vmatprep.mubr.f32.mxu0 0.0
          %5238 = vmatmul.mubr.f32.gmra.mrb[0].mxu0 %v4412
          %v5239 = vpop.f32.mrb[0].mxu0
          %v5240 = vadd.f32 0.0, %v5239
          %v5241 = vpop.f32.mrb[0].mxu0
          %5242 = vmatprep.mubr.f32.mxu0 0.0
          %5243 = vmatmul.mubr.f32.gmra.mrb[0].mxu0 %v4414
          %v5244 = vpop.f32.mrb[0].mxu0
          %v5245 = vadd.f32 0.0, %v5244
          %v5246 = vpop.f32.mrb[0].mxu0
          %5247 = vmatprep.mubr.f32.mxu0 0.0
          %5248 = vmatmul.mubr.f32.gmra.mrb[0].mxu0 %v4416
          %v5249 = vpop.f32.mrb[0].mxu0
          %v5250 = vadd.f32 0.0, %v5249
          %v5251 = vpop.f32.mrb[0].mxu0
          %5252 = vdwg.mxu0
          %v5253 = vmul.f32 %v4098, %v2804
          %v5254 = vmul.f32 %v4100, %v2805
          %v5255 = vmul.f32 %v4102, %v2806
          %v5256 = vmul.f32 %v4104, %v2807
          %v5257 = vmul.f32 %v4106, %v2808
          %v5258 = vmul.f32 %v4108, %v2809
          %v5259 = vmul.f32 %v4110, %v2810
          %v5260 = vmul.f32 %v4112, %v2811
          %v5261 = vmul.f32 %v4114, %v2812
          %v5262 = vmul.f32 %v4116, %v2813
          %v5263 = vmul.f32 %v4118, %v2814
          %v5264 = vmul.f32 %v4120, %v2815
          %v5265 = vmul.f32 %v4122, %v2816
          %v5266 = vmul.f32 %v4124, %v2817
          %v5267 = vmul.f32 %v4126, %v2818
          %v5268 = vmul.f32 %v4128, %v2819
          %v5269 = vmul.f32 %v4130, %v2820
          %v5270 = vmul.f32 %v4132, %v2821
          %v5271 = vmul.f32 %v4134, %v2822
          %v5272 = vmul.f32 %v4136, %v2823
          %v5273 = vmul.f32 %v4138, %v2824
          %v5274 = vmul.f32 %v4140, %v2825
          %v5275 = vmul.f32 %v4142, %v2826
          %v5276 = vmul.f32 %v4144, %v2827
          %v5277 = vmul.f32 %v4146, %v2828
          %v5278 = vmul.f32 %v4148, %v2829
          %v5279 = vmul.f32 %v4150, %v2830
          %v5280 = vmul.f32 %v4152, %v2831
          %v5281 = vmul.f32 %v4154, %v2832
          %v5282 = vmul.f32 %v4156, %v2833
          %v5283 = vmul.f32 %v4158, %v2834
          %v5284 = vmul.f32 %v4160, %v2835
          %v5285 = vmul.f32 %v4162, %v2836
          %v5286 = vmul.f32 %v4164, %v2837
          %v5287 = vmul.f32 %v4166, %v2838
          %v5288 = vmul.f32 %v4168, %v2839
          %v5289 = vmul.f32 %v4170, %v2840
          %v5290 = vmul.f32 %v4172, %v2841
          %v5291 = vmul.f32 %v4174, %v2842
          %v5292 = vmul.f32 %v4176, %v2843
          %v5293 = vmul.f32 %v4178, %v2844
          %v5294 = vmul.f32 %v4180, %v2845
          %v5295 = vmul.f32 %v4182, %v2846
          %v5296 = vmul.f32 %v4184, %v2847
          %v5297 = vmul.f32 %v4186, %v2848
          %v5298 = vmul.f32 %v4188, %v2849
          %v5299 = vmul.f32 %v4190, %v2850
          %v5300 = vmul.f32 %v4192, %v2851
          %v5301 = vmul.f32 %v4194, %v2852
          %v5302 = vmul.f32 %v4196, %v2853
          %v5303 = vmul.f32 %v4198, %v2854
          %v5304 = vmul.f32 %v4200, %v2855
          %v5305 = vmul.f32 %v4202, %v2856
          %v5306 = vmul.f32 %v4204, %v2857
          %v5307 = vmul.f32 %v4206, %v2858
          %v5308 = vmul.f32 %v4208, %v2859
          %v5309 = vmul.f32 %v4210, %v2860
          %v5310 = vmul.f32 %v4212, %v2861
          %v5311 = vmul.f32 %v4214, %v2862
          %v5312 = vmul.f32 %v4216, %v2863
          %v5313 = vmul.f32 %v4218, %v2864
          %v5314 = vmul.f32 %v4220, %v2865
          %v5315 = vmul.f32 %v4222, %v2866
          %v5316 = vmul.f32 %v4224, %v2867
          %v5317 = vadd.f32 %v5253, %v4740
          %v5318 = vadd.f32 %v5254, %v4745
          %v5319 = vadd.f32 %v5255, %v4750
          %v5320 = vadd.f32 %v5256, %v4755
          %v5321 = vadd.f32 %v5257, %v4760
          %v5322 = vadd.f32 %v5258, %v4765
          %v5323 = vadd.f32 %v5259, %v4770
          %v5324 = vadd.f32 %v5260, %v4775
          %v5325 = vadd.f32 %v5261, %v4780
          %v5326 = vadd.f32 %v5262, %v4785
          %v5327 = vadd.f32 %v5263, %v4790
          %v5328 = vadd.f32 %v5264, %v4795
          %v5329 = vadd.f32 %v5265, %v4800
          %v5330 = vadd.f32 %v5266, %v4805
          %v5331 = vadd.f32 %v5267, %v4810
          %v5332 = vadd.f32 %v5268, %v4815
          %v5333 = vadd.f32 %v5269, %v4885
          %v5334 = vadd.f32 %v5270, %v4890
          %v5335 = vadd.f32 %v5271, %v4895
          %v5336 = vadd.f32 %v5272, %v4900
          %v5337 = vadd.f32 %v5273, %v4905
          %v5338 = vadd.f32 %v5274, %v4910
          %v5339 = vadd.f32 %v5275, %v4915
          %v5340 = vadd.f32 %v5276, %v4920
          %v5341 = vadd.f32 %v5277, %v4925
          %v5342 = vadd.f32 %v5278, %v4930
          %v5343 = vadd.f32 %v5279, %v4935
          %v5344 = vadd.f32 %v5280, %v4940
          %v5345 = vadd.f32 %v5281, %v4945
          %v5346 = vadd.f32 %v5282, %v4950
          %v5347 = vadd.f32 %v5283, %v4955
          %v5348 = vadd.f32 %v5284, %v4960
          %v5349 = vadd.f32 %v5285, %v5030
          %v5350 = vadd.f32 %v5286, %v5035
          %v5351 = vadd.f32 %v5287, %v5040
          %v5352 = vadd.f32 %v5288, %v5045
          %v5353 = vadd.f32 %v5289, %v5050
          %v5354 = vadd.f32 %v5290, %v5055
          %v5355 = vadd.f32 %v5291, %v5060
          %v5356 = vadd.f32 %v5292, %v5065
          %v5357 = vadd.f32 %v5293, %v5070
          %v5358 = vadd.f32 %v5294, %v5075
          %v5359 = vadd.f32 %v5295, %v5080
          %v5360 = vadd.f32 %v5296, %v5085
          %v5361 = vadd.f32 %v5297, %v5090
          %v5362 = vadd.f32 %v5298, %v5095
          %v5363 = vadd.f32 %v5299, %v5100
          %v5364 = vadd.f32 %v5300, %v5105
          %v5365 = vadd.f32 %v5301, %v5175
          %v5366 = vadd.f32 %v5302, %v5180
          %v5367 = vadd.f32 %v5303, %v5185
          %v5368 = vadd.f32 %v5304, %v5190
          %v5369 = vadd.f32 %v5305, %v5195
          %v5370 = vadd.f32 %v5306, %v5200
          %v5371 = vadd.f32 %v5307, %v5205
          %v5372 = vadd.f32 %v5308, %v5210
          %v5373 = vadd.f32 %v5309, %v5215
          %v5374 = vadd.f32 %v5310, %v5220
          %v5375 = vadd.f32 %v5311, %v5225
          %v5376 = vadd.f32 %v5312, %v5230
          %v5377 = vadd.f32 %v5313, %v5235
          %v5378 = vadd.f32 %v5314, %v5240
          %v5379 = vadd.f32 %v5315, %v5245
          %v5380 = vadd.f32 %v5316, %v5250
        $region105: #{gpt2_block.1} parent=87 // loop_footer
          %s2673 = sadd.s32 %s2671, 1
        $region106: #{gpt2_block.1} parent=87 // loop_footer_branch
          %2670 = sbr.rel target = $region102
        $region107: #{gpt2_block.1} parent=87 // loop_exit
          _
        %v5381 = vrcp.pop %v2740
        %v5382 = vmul.f32 %v2804, %v5381
        %v5383 = vrcp.pop %v2741
        %v5384 = vmul.f32 %v2805, %v5383
        %v5385 = vrcp.pop %v2742
        %v5386 = vmul.f32 %v2806, %v5385
        %v5387 = vrcp.pop %v2743
        %v5388 = vmul.f32 %v2807, %v5387
        %v5389 = vrcp.pop %v2744
        %v5390 = vmul.f32 %v2808, %v5389
        %v5391 = vrcp.pop %v2745
        %v5392 = vmul.f32 %v2809, %v5391
        %v5393 = vrcp.pop %v2746
        %v5394 = vmul.f32 %v2810, %v5393
        %v5395 = vrcp.pop %v2747
        %v5396 = vmul.f32 %v2811, %v5395
        %v5397 = vrcp.pop %v2748
        %v5398 = vmul.f32 %v2812, %v5397
        %v5399 = vrcp.pop %v2749
        %v5400 = vmul.f32 %v2813, %v5399
        %v5401 = vrcp.pop %v2750
        %v5402 = vmul.f32 %v2814, %v5401
        %v5403 = vrcp.pop %v2751
        %v5404 = vmul.f32 %v2815, %v5403
        %v5405 = vrcp.pop %v2752
        %v5406 = vmul.f32 %v2816, %v5405
        %v5407 = vrcp.pop %v2753
        %v5408 = vmul.f32 %v2817, %v5407
        %v5409 = vrcp.pop %v2754
        %v5410 = vmul.f32 %v2818, %v5409
        %v5411 = vrcp.pop %v2755
        %v5412 = vmul.f32 %v2819, %v5411
        %v5413 = vrcp.pop %v2756
        %v5414 = vmul.f32 %v2820, %v5413
        %v5415 = vrcp.pop %v2757
        %v5416 = vmul.f32 %v2821, %v5415
        %v5417 = vrcp.pop %v2758
        %v5418 = vmul.f32 %v2822, %v5417
        %v5419 = vrcp.pop %v2759
        %v5420 = vmul.f32 %v2823, %v5419
        %v5421 = vrcp.pop %v2760
        %v5422 = vmul.f32 %v2824, %v5421
        %v5423 = vrcp.pop %v2761
        %v5424 = vmul.f32 %v2825, %v5423
        %v5425 = vrcp.pop %v2762
        %v5426 = vmul.f32 %v2826, %v5425
        %v5427 = vrcp.pop %v2763
        %v5428 = vmul.f32 %v2827, %v5427
        %v5429 = vrcp.pop %v2764
        %v5430 = vmul.f32 %v2828, %v5429
        %v5431 = vrcp.pop %v2765
        %v5432 = vmul.f32 %v2829, %v5431
        %v5433 = vrcp.pop %v2766
        %v5434 = vmul.f32 %v2830, %v5433
        %v5435 = vrcp.pop %v2767
        %v5436 = vmul.f32 %v2831, %v5435
        %v5437 = vrcp.pop %v2768
        %v5438 = vmul.f32 %v2832, %v5437
        %v5439 = vrcp.pop %v2769
        %v5440 = vmul.f32 %v2833, %v5439
        %v5441 = vrcp.pop %v2770
        %v5442 = vmul.f32 %v2834, %v5441
        %v5443 = vrcp.pop %v2771
        %v5444 = vmul.f32 %v2835, %v5443
        %v5445 = vrcp.pop %v2772
        %v5446 = vmul.f32 %v2836, %v5445
        %v5447 = vrcp.pop %v2773
        %v5448 = vmul.f32 %v2837, %v5447
        %v5449 = vrcp.pop %v2774
        %v5450 = vmul.f32 %v2838, %v5449
        %v5451 = vrcp.pop %v2775
        %v5452 = vmul.f32 %v2839, %v5451
        %v5453 = vrcp.pop %v2776
        %v5454 = vmul.f32 %v2840, %v5453
        %v5455 = vrcp.pop %v2777
        %v5456 = vmul.f32 %v2841, %v5455
        %v5457 = vrcp.pop %v2778
        %v5458 = vmul.f32 %v2842, %v5457
        %v5459 = vrcp.pop %v2779
        %v5460 = vmul.f32 %v2843, %v5459
        %v5461 = vrcp.pop %v2780
        %v5462 = vmul.f32 %v2844, %v5461
        %v5463 = vrcp.pop %v2781
        %v5464 = vmul.f32 %v2845, %v5463
        %v5465 = vrcp.pop %v2782
        %v5466 = vmul.f32 %v2846, %v5465
        %v5467 = vrcp.pop %v2783
        %v5468 = vmul.f32 %v2847, %v5467
        %v5469 = vrcp.pop %v2784
        %v5470 = vmul.f32 %v2848, %v5469
        %v5471 = vrcp.pop %v2785
        %v5472 = vmul.f32 %v2849, %v5471
        %v5473 = vrcp.pop %v2786
        %v5474 = vmul.f32 %v2850, %v5473
        %v5475 = vrcp.pop %v2787
        %v5476 = vmul.f32 %v2851, %v5475
        %v5477 = vrcp.pop %v2788
        %v5478 = vmul.f32 %v2852, %v5477
        %v5479 = vrcp.pop %v2789
        %v5480 = vmul.f32 %v2853, %v5479
        %v5481 = vrcp.pop %v2790
        %v5482 = vmul.f32 %v2854, %v5481
        %v5483 = vrcp.pop %v2791
        %v5484 = vmul.f32 %v2855, %v5483
        %v5485 = vrcp.pop %v2792
        %v5486 = vmul.f32 %v2856, %v5485
        %v5487 = vrcp.pop %v2793
        %v5488 = vmul.f32 %v2857, %v5487
        %v5489 = vrcp.pop %v2794
        %v5490 = vmul.f32 %v2858, %v5489
        %v5491 = vrcp.pop %v2795
        %v5492 = vmul.f32 %v2859, %v5491
        %v5493 = vrcp.pop %v2796
        %v5494 = vmul.f32 %v2860, %v5493
        %v5495 = vrcp.pop %v2797
        %v5496 = vmul.f32 %v2861, %v5495
        %v5497 = vrcp.pop %v2798
        %v5498 = vmul.f32 %v2862, %v5497
        %v5499 = vrcp.pop %v2799
        %v5500 = vmul.f32 %v2863, %v5499
        %v5501 = vrcp.pop %v2800
        %v5502 = vmul.f32 %v2864, %v5501
        %v5503 = vrcp.pop %v2801
        %v5504 = vmul.f32 %v2865, %v5503
        %v5505 = vrcp.pop %v2802
        %v5506 = vmul.f32 %v2866, %v5505
        %v5507 = vrcp.pop %v2803
        %v5508 = vmul.f32 %v2867, %v5507
        %v5509 = vld [vmem:[%s9] sm:$0xff]
        %v5510 = vld [vmem:[%s9 + $0x8] sm:$0xff]
        %v5511 = vld [vmem:[%s9 + $0x10] sm:$0xff]
        %v5512 = vld [vmem:[%s9 + $0x18] sm:$0xff]
        %s5513 = scalar_lea.vmem %s9, 32
        %v5514 = vld [vmem:[%s5513] sm:$0xff]
        %v5515 = vld [vmem:[%s5513 + $0x8] sm:$0xff]
        %v5516 = vld [vmem:[%s5513 + $0x10] sm:$0xff]
        %v5517 = vld [vmem:[%s5513 + $0x18] sm:$0xff]
        %vm5518 = vcmask 261120
        %v5520 = vsel %vm5518, %v5414, 0
        %v5523 = vsel %vm5518, %v5416, 0
        %v5526 = vsel %vm5518, %v5418, 0
        %v5529 = vsel %vm5518, %v5420, 0
        %v5532 = vsel %vm5518, %v5422, 0
        %v5535 = vsel %vm5518, %v5424, 0
        %v5538 = vsel %vm5518, %v5426, 0
        %v5541 = vsel %vm5518, %v5428, 0
        %v5544 = vsel %vm5518, %v5430, 0
        %v5547 = vsel %vm5518, %v5432, 0
        %v5550 = vsel %vm5518, %v5434, 0
        %v5553 = vsel %vm5518, %v5436, 0
        %v5556 = vsel %vm5518, %v5438, 0
        %v5559 = vsel %vm5518, %v5440, 0
        %v5562 = vsel %vm5518, %v5442, 0
        %v5565 = vsel %vm5518, %v5444, 0
        %5567 = vmatprep.subr.mxu0 0.0
        %5568 = vmatpush1.msra.mxu0 %v5514
        %5569 = vmatprep.subr.mxu0 0.0
        %5570 = vmatpush1.msra.mxu0 %v5515
        %5571 = vmatprep.subr.mxu0 0.0
        %5572 = vmatpush1.msra.mxu0 %v5516
        %5573 = vmatprep.subr.mxu0 0.0
        %5574 = vmatpush1.msra.mxu0 %v5517
        %5575 = vmatprep.subr.mxu0 0.0
        %5576 = vmatpush1.msra.mxu0 0.0
        %5577 = vmatprep.subr.mxu0 0.0
        %5578 = vmatpush1.msra.mxu0 0.0
        %5579 = vmatprep.subr.mxu0 0.0
        %5580 = vmatpush1.msra.mxu0 0.0
        %5581 = vmatprep.subr.mxu0 0.0
        %5582 = vmatpush1.msra.mxu0 0.0
        %5583 = vmatprep.subr.mxu0 0.0
        %5584 = vmatpush1.msra.mxu0 0.0
        %5585 = vmatprep.subr.mxu0 0.0
        %5586 = vmatpush1.msra.mxu0 0.0
        %5587 = vmatprep.subr.mxu0 0.0
        %5588 = vmatpush1.msra.mxu0 0.0
        %5589 = vmatprep.subr.mxu0 0.0
        %5590 = vmatpush1.msra.mxu0 0.0
        %5591 = vmatprep.subr.mxu0 0.0
        %5592 = vmatpush1.msra.mxu0 0.0
        %5593 = vmatprep.subr.mxu0 0.0
        %5594 = vmatpush1.msra.mxu0 0.0
        %5595 = vmatprep.subr.mxu0 0.0
        %5596 = vmatpush1.msra.mxu0 0.0
        %5597 = vmatprep.subr.mxu0 0.0
        %5598 = vmatpush1.msra.mxu0 0.0
        %5599 = vmatprep.subr.mxu0 0.0
        %5600 = vmatpush1.msra.mxu0 0.0
        %5601 = vmatprep.subr.mxu0 0.0
        %5602 = vmatpush1.msra.mxu0 0.0
        %5603 = vmatprep.subr.mxu0 0.0
        %5604 = vmatpush1.msra.mxu0 0.0
        %5605 = vmatprep.subr.mxu0 0.0
        %5606 = vmatpush1.msra.mxu0 0.0
        %5607 = vmatprep.subr.mxu0 0.0
        %5608 = vmatpush1.msra.mxu0 0.0
        %5609 = vmatprep.subr.mxu0 0.0
        %5610 = vmatpush1.msra.mxu0 0.0
        %5611 = vmatprep.subr.mxu0 0.0
        %5612 = vmatpush1.msra.mxu0 0.0
        %5613 = vmatprep.subr.mxu0 0.0
        %5614 = vmatpush1.msra.mxu0 0.0
        %5615 = vmatprep.subr.mxu0 0.0
        %5616 = vmatpush1.msra.mxu0 0.0
        %5617 = vmatprep.subr.mxu0 0.0
        %5618 = vmatpush1.msra.mxu0 0.0
        %5619 = vmatprep.subr.mxu0 0.0
        %5620 = vmatpush1.msra.mxu0 0.0
        %5621 = vmatprep.subr.mxu0 0.0
        %5622 = vmatpush1.msra.mxu0 0.0
        %5623 = vmatprep.subr.mxu0 0.0
        %5624 = vmatpush1.msra.mxu0 0.0
        %5625 = vmatprep.subr.mxu0 0.0
        %5626 = vmatpush1.msra.mxu0 0.0
        %5627 = vmatprep.subr.mxu0 0.0
        %5628 = vmatpush1.msra.mxu0 0.0
        %5629 = vmatprep.subr.mxu0 0.0
        %5630 = vmatpush1.msra.mxu0 0.0
        %5631 = vmatprep.mubr.f32.mxu0 0.0
        %5632 = vmatmul.mubr.f32.gmra.mrb[0].mxu0 %v5520
        %v5633 = vpop.f32.mrb[0].mxu0
        %v5634 = vadd.f32 0.0, %v5633
        %v5635 = vpop.f32.mrb[0].mxu0
        %5636 = vmatprep.mubr.f32.mxu0 0.0
        %5637 = vmatmul.mubr.f32.gmra.mrb[0].mxu0 %v5523
        %v5638 = vpop.f32.mrb[0].mxu0
        %v5639 = vadd.f32 0.0, %v5638
        %v5640 = vpop.f32.mrb[0].mxu0
        %5641 = vmatprep.mubr.f32.mxu0 0.0
        %5642 = vmatmul.mubr.f32.gmra.mrb[0].mxu0 %v5526
        %v5643 = vpop.f32.mrb[0].mxu0
        %v5644 = vadd.f32 0.0, %v5643
        %v5645 = vpop.f32.mrb[0].mxu0
        %5646 = vmatprep.mubr.f32.mxu0 0.0
        %5647 = vmatmul.mubr.f32.gmra.mrb[0].mxu0 %v5529
        %v5648 = vpop.f32.mrb[0].mxu0
        %v5649 = vadd.f32 0.0, %v5648
        %v5650 = vpop.f32.mrb[0].mxu0
        %5651 = vmatprep.mubr.f32.mxu0 0.0
        %5652 = vmatmul.mubr.f32.gmra.mrb[0].mxu0 %v5532
        %v5653 = vpop.f32.mrb[0].mxu0
        %v5654 = vadd.f32 0.0, %v5653
        %v5655 = vpop.f32.mrb[0].mxu0
        %5656 = vmatprep.mubr.f32.mxu0 0.0
        %5657 = vmatmul.mubr.f32.gmra.mrb[0].mxu0 %v5535
        %v5658 = vpop.f32.mrb[0].mxu0
        %v5659 = vadd.f32 0.0, %v5658
        %v5660 = vpop.f32.mrb[0].mxu0
        %5661 = vmatprep.mubr.f32.mxu0 0.0
        %5662 = vmatmul.mubr.f32.gmra.mrb[0].mxu0 %v5538
        %v5663 = vpop.f32.mrb[0].mxu0
        %v5664 = vadd.f32 0.0, %v5663
        %v5665 = vpop.f32.mrb[0].mxu0
        %5666 = vmatprep.mubr.f32.mxu0 0.0
        %5667 = vmatmul.mubr.f32.gmra.mrb[0].mxu0 %v5541
        %v5668 = vpop.f32.mrb[0].mxu0
        %v5669 = vadd.f32 0.0, %v5668
        %v5670 = vpop.f32.mrb[0].mxu0
        %5671 = vmatprep.mubr.f32.mxu0 0.0
        %5672 = vmatmul.mubr.f32.gmra.mrb[0].mxu0 %v5544
        %v5673 = vpop.f32.mrb[0].mxu0
        %v5674 = vadd.f32 0.0, %v5673
        %v5675 = vpop.f32.mrb[0].mxu0
        %5676 = vmatprep.mubr.f32.mxu0 0.0
        %5677 = vmatmul.mubr.f32.gmra.mrb[0].mxu0 %v5547
        %v5678 = vpop.f32.mrb[0].mxu0
        %v5679 = vadd.f32 0.0, %v5678
        %v5680 = vpop.f32.mrb[0].mxu0
        %5681 = vmatprep.mubr.f32.mxu0 0.0
        %5682 = vmatmul.mubr.f32.gmra.mrb[0].mxu0 %v5550
        %v5683 = vpop.f32.mrb[0].mxu0
        %v5684 = vadd.f32 0.0, %v5683
        %v5685 = vpop.f32.mrb[0].mxu0
        %5686 = vmatprep.mubr.f32.mxu0 0.0
        %5687 = vmatmul.mubr.f32.gmra.mrb[0].mxu0 %v5553
        %v5688 = vpop.f32.mrb[0].mxu0
        %v5689 = vadd.f32 0.0, %v5688
        %v5690 = vpop.f32.mrb[0].mxu0
        %5691 = vmatprep.mubr.f32.mxu0 0.0
        %5692 = vmatmul.mubr.f32.gmra.mrb[0].mxu0 %v5556
        %v5693 = vpop.f32.mrb[0].mxu0
        %v5694 = vadd.f32 0.0, %v5693
        %v5695 = vpop.f32.mrb[0].mxu0
        %5696 = vmatprep.mubr.f32.mxu0 0.0
        %5697 = vmatmul.mubr.f32.gmra.mrb[0].mxu0 %v5559
        %v5698 = vpop.f32.mrb[0].mxu0
        %v5699 = vadd.f32 0.0, %v5698
        %v5700 = vpop.f32.mrb[0].mxu0
        %5701 = vmatprep.mubr.f32.mxu0 0.0
        %5702 = vmatmul.mubr.f32.gmra.mrb[0].mxu0 %v5562
        %v5703 = vpop.f32.mrb[0].mxu0
        %v5704 = vadd.f32 0.0, %v5703
        %v5705 = vpop.f32.mrb[0].mxu0
        %5706 = vmatprep.mubr.f32.mxu0 0.0
        %5707 = vmatmul.mubr.f32.gmra.mrb[0].mxu0 %v5565
        %v5708 = vpop.f32.mrb[0].mxu0
        %v5709 = vadd.f32 0.0, %v5708
        %v5710 = vpop.f32.mrb[0].mxu0
        %5711 = vdwg.mxu0
        %v5713 = vsel %vm5518, %v5382, 0
        %v5716 = vsel %vm5518, %v5384, 0
        %v5719 = vsel %vm5518, %v5386, 0
        %v5722 = vsel %vm5518, %v5388, 0
        %v5725 = vsel %vm5518, %v5390, 0
        %v5728 = vsel %vm5518, %v5392, 0
        %v5731 = vsel %vm5518, %v5394, 0
        %v5734 = vsel %vm5518, %v5396, 0
        %v5737 = vsel %vm5518, %v5398, 0
        %v5740 = vsel %vm5518, %v5400, 0
        %v5743 = vsel %vm5518, %v5402, 0
        %v5746 = vsel %vm5518, %v5404, 0
        %v5749 = vsel %vm5518, %v5406, 0
        %v5752 = vsel %vm5518, %v5408, 0
        %v5755 = vsel %vm5518, %v5410, 0
        %v5758 = vsel %vm5518, %v5412, 0
        %5760 = vmatprep.subr.mxu0 0.0
        %5761 = vmatpush1.msra.mxu0 %v5509
        %5762 = vmatprep.subr.mxu0 0.0
        %5763 = vmatpush1.msra.mxu0 %v5510
        %5764 = vmatprep.subr.mxu0 0.0
        %5765 = vmatpush1.msra.mxu0 %v5511
        %5766 = vmatprep.subr.mxu0 0.0
        %5767 = vmatpush1.msra.mxu0 %v5512
        %5768 = vmatprep.subr.mxu0 0.0
        %5769 = vmatpush1.msra.mxu0 0.0
        %5770 = vmatprep.subr.mxu0 0.0
        %5771 = vmatpush1.msra.mxu0 0.0
        %5772 = vmatprep.subr.mxu0 0.0
        %5773 = vmatpush1.msra.mxu0 0.0
        %5774 = vmatprep.subr.mxu0 0.0
        %5775 = vmatpush1.msra.mxu0 0.0
        %5776 = vmatprep.subr.mxu0 0.0
        %5777 = vmatpush1.msra.mxu0 0.0
        %5778 = vmatprep.subr.mxu0 0.0
        %5779 = vmatpush1.msra.mxu0 0.0
        %5780 = vmatprep.subr.mxu0 0.0
        %5781 = vmatpush1.msra.mxu0 0.0
        %5782 = vmatprep.subr.mxu0 0.0
        %5783 = vmatpush1.msra.mxu0 0.0
        %5784 = vmatprep.subr.mxu0 0.0
        %5785 = vmatpush1.msra.mxu0 0.0
        %5786 = vmatprep.subr.mxu0 0.0
        %5787 = vmatpush1.msra.mxu0 0.0
        %5788 = vmatprep.subr.mxu0 0.0
        %5789 = vmatpush1.msra.mxu0 0.0
        %5790 = vmatprep.subr.mxu0 0.0
        %5791 = vmatpush1.msra.mxu0 0.0
        %5792 = vmatprep.subr.mxu0 0.0
        %5793 = vmatpush1.msra.mxu0 0.0
        %5794 = vmatprep.subr.mxu0 0.0
        %5795 = vmatpush1.msra.mxu0 0.0
        %5796 = vmatprep.subr.mxu0 0.0
        %5797 = vmatpush1.msra.mxu0 0.0
        %5798 = vmatprep.subr.mxu0 0.0
        %5799 = vmatpush1.msra.mxu0 0.0
        %5800 = vmatprep.subr.mxu0 0.0
        %5801 = vmatpush1.msra.mxu0 0.0
        %5802 = vmatprep.subr.mxu0 0.0
        %5803 = vmatpush1.msra.mxu0 0.0
        %5804 = vmatprep.subr.mxu0 0.0
        %5805 = vmatpush1.msra.mxu0 0.0
        %5806 = vmatprep.subr.mxu0 0.0
        %5807 = vmatpush1.msra.mxu0 0.0
        %5808 = vmatprep.subr.mxu0 0.0
        %5809 = vmatpush1.msra.mxu0 0.0
        %5810 = vmatprep.subr.mxu0 0.0
        %5811 = vmatpush1.msra.mxu0 0.0
        %5812 = vmatprep.subr.mxu0 0.0
        %5813 = vmatpush1.msra.mxu0 0.0
        %5814 = vmatprep.subr.mxu0 0.0
        %5815 = vmatpush1.msra.mxu0 0.0
        %5816 = vmatprep.subr.mxu0 0.0
        %5817 = vmatpush1.msra.mxu0 0.0
        %5818 = vmatprep.subr.mxu0 0.0
        %5819 = vmatpush1.msra.mxu0 0.0
        %5820 = vmatprep.subr.mxu0 0.0
        %5821 = vmatpush1.msra.mxu0 0.0
        %5822 = vmatprep.subr.mxu0 0.0
        %5823 = vmatpush1.msra.mxu0 0.0
        %5824 = vmatprep.mubr.f32.mxu0 0.0
        %5825 = vmatmul.mubr.f32.gmra.mrb[0].mxu0 %v5713
        %v5826 = vpop.f32.mrb[0].mxu0
        %v5827 = vadd.f32 %v5634, %v5826
        %v5828 = vpop.f32.mrb[0].mxu0
        %5829 = vmatprep.mubr.f32.mxu0 0.0
        %5830 = vmatmul.mubr.f32.gmra.mrb[0].mxu0 %v5716
        %v5831 = vpop.f32.mrb[0].mxu0
        %v5832 = vadd.f32 %v5639, %v5831
        %v5833 = vpop.f32.mrb[0].mxu0
        %5834 = vmatprep.mubr.f32.mxu0 0.0
        %5835 = vmatmul.mubr.f32.gmra.mrb[0].mxu0 %v5719
        %v5836 = vpop.f32.mrb[0].mxu0
        %v5837 = vadd.f32 %v5644, %v5836
        %v5838 = vpop.f32.mrb[0].mxu0
        %5839 = vmatprep.mubr.f32.mxu0 0.0
        %5840 = vmatmul.mubr.f32.gmra.mrb[0].mxu0 %v5722
        %v5841 = vpop.f32.mrb[0].mxu0
        %v5842 = vadd.f32 %v5649, %v5841
        %v5843 = vpop.f32.mrb[0].mxu0
        %5844 = vmatprep.mubr.f32.mxu0 0.0
        %5845 = vmatmul.mubr.f32.gmra.mrb[0].mxu0 %v5725
        %v5846 = vpop.f32.mrb[0].mxu0
        %v5847 = vadd.f32 %v5654, %v5846
        %v5848 = vpop.f32.mrb[0].mxu0
        %5849 = vmatprep.mubr.f32.mxu0 0.0
        %5850 = vmatmul.mubr.f32.gmra.mrb[0].mxu0 %v5728
        %v5851 = vpop.f32.mrb[0].mxu0
        %v5852 = vadd.f32 %v5659, %v5851
        %v5853 = vpop.f32.mrb[0].mxu0
        %5854 = vmatprep.mubr.f32.mxu0 0.0
        %5855 = vmatmul.mubr.f32.gmra.mrb[0].mxu0 %v5731
        %v5856 = vpop.f32.mrb[0].mxu0
        %v5857 = vadd.f32 %v5664, %v5856
        %v5858 = vpop.f32.mrb[0].mxu0
        %5859 = vmatprep.mubr.f32.mxu0 0.0
        %5860 = vmatmul.mubr.f32.gmra.mrb[0].mxu0 %v5734
        %v5861 = vpop.f32.mrb[0].mxu0
        %v5862 = vadd.f32 %v5669, %v5861
        %v5863 = vpop.f32.mrb[0].mxu0
        %5864 = vmatprep.mubr.f32.mxu0 0.0
        %5865 = vmatmul.mubr.f32.gmra.mrb[0].mxu0 %v5737
        %v5866 = vpop.f32.mrb[0].mxu0
        %v5867 = vadd.f32 %v5674, %v5866
        %v5868 = vpop.f32.mrb[0].mxu0
        %5869 = vmatprep.mubr.f32.mxu0 0.0
        %5870 = vmatmul.mubr.f32.gmra.mrb[0].mxu0 %v5740
        %v5871 = vpop.f32.mrb[0].mxu0
        %v5872 = vadd.f32 %v5679, %v5871
        %v5873 = vpop.f32.mrb[0].mxu0
        %5874 = vmatprep.mubr.f32.mxu0 0.0
        %5875 = vmatmul.mubr.f32.gmra.mrb[0].mxu0 %v5743
        %v5876 = vpop.f32.mrb[0].mxu0
        %v5877 = vadd.f32 %v5684, %v5876
        %v5878 = vpop.f32.mrb[0].mxu0
        %5879 = vmatprep.mubr.f32.mxu0 0.0
        %5880 = vmatmul.mubr.f32.gmra.mrb[0].mxu0 %v5746
        %v5881 = vpop.f32.mrb[0].mxu0
        %v5882 = vadd.f32 %v5689, %v5881
        %v5883 = vpop.f32.mrb[0].mxu0
        %5884 = vmatprep.mubr.f32.mxu0 0.0
        %5885 = vmatmul.mubr.f32.gmra.mrb[0].mxu0 %v5749
        %v5886 = vpop.f32.mrb[0].mxu0
        %v5887 = vadd.f32 %v5694, %v5886
        %v5888 = vpop.f32.mrb[0].mxu0
        %5889 = vmatprep.mubr.f32.mxu0 0.0
        %5890 = vmatmul.mubr.f32.gmra.mrb[0].mxu0 %v5752
        %v5891 = vpop.f32.mrb[0].mxu0
        %v5892 = vadd.f32 %v5699, %v5891
        %v5893 = vpop.f32.mrb[0].mxu0
        %5894 = vmatprep.mubr.f32.mxu0 0.0
        %5895 = vmatmul.mubr.f32.gmra.mrb[0].mxu0 %v5755
        %v5896 = vpop.f32.mrb[0].mxu0
        %v5897 = vadd.f32 %v5704, %v5896
        %v5898 = vpop.f32.mrb[0].mxu0
        %5899 = vmatprep.mubr.f32.mxu0 0.0
        %5900 = vmatmul.mubr.f32.gmra.mrb[0].mxu0 %v5758
        %v5901 = vpop.f32.mrb[0].mxu0
        %v5902 = vadd.f32 %v5709, %v5901
        %v5903 = vpop.f32.mrb[0].mxu0
        %5904 = vdwg.mxu0
        %s5905 = scalar_lea.vmem %s9, 64
        %v5906 = vld [vmem:[%s5905] sm:$0xff]
        %v5907 = vld [vmem:[%s5905 + $0x8] sm:$0xff]
        %v5908 = vld [vmem:[%s5905 + $0x10] sm:$0xff]
        %v5909 = vld [vmem:[%s5905 + $0x18] sm:$0xff]
        %v5911 = vsel %vm5518, %v5446, 0
        %v5914 = vsel %vm5518, %v5448, 0
        %v5917 = vsel %vm5518, %v5450, 0
        %v5920 = vsel %vm5518, %v5452, 0
        %v5923 = vsel %vm5518, %v5454, 0
        %v5926 = vsel %vm5518, %v5456, 0
        %v5929 = vsel %vm5518, %v5458, 0
        %v5932 = vsel %vm5518, %v5460, 0
        %v5935 = vsel %vm5518, %v5462, 0
        %v5938 = vsel %vm5518, %v5464, 0
        %v5941 = vsel %vm5518, %v5466, 0
        %v5944 = vsel %vm5518, %v5468, 0
        %v5947 = vsel %vm5518, %v5470, 0
        %v5950 = vsel %vm5518, %v5472, 0
        %v5953 = vsel %vm5518, %v5474, 0
        %v5956 = vsel %vm5518, %v5476, 0
        %5958 = vmatprep.subr.mxu0 0.0
        %5959 = vmatpush1.msra.mxu0 %v5906
        %5960 = vmatprep.subr.mxu0 0.0
        %5961 = vmatpush1.msra.mxu0 %v5907
        %5962 = vmatprep.subr.mxu0 0.0
        %5963 = vmatpush1.msra.mxu0 %v5908
        %5964 = vmatprep.subr.mxu0 0.0
        %5965 = vmatpush1.msra.mxu0 %v5909
        %5966 = vmatprep.subr.mxu0 0.0
        %5967 = vmatpush1.msra.mxu0 0.0
        %5968 = vmatprep.subr.mxu0 0.0
        %5969 = vmatpush1.msra.mxu0 0.0
        %5970 = vmatprep.subr.mxu0 0.0
        %5971 = vmatpush1.msra.mxu0 0.0
        %5972 = vmatprep.subr.mxu0 0.0
        %5973 = vmatpush1.msra.mxu0 0.0
        %5974 = vmatprep.subr.mxu0 0.0
        %5975 = vmatpush1.msra.mxu0 0.0
        %5976 = vmatprep.subr.mxu0 0.0
        %5977 = vmatpush1.msra.mxu0 0.0
        %5978 = vmatprep.subr.mxu0 0.0
        %5979 = vmatpush1.msra.mxu0 0.0
        %5980 = vmatprep.subr.mxu0 0.0
        %5981 = vmatpush1.msra.mxu0 0.0
        %5982 = vmatprep.subr.mxu0 0.0
        %5983 = vmatpush1.msra.mxu0 0.0
        %5984 = vmatprep.subr.mxu0 0.0
        %5985 = vmatpush1.msra.mxu0 0.0
        %5986 = vmatprep.subr.mxu0 0.0
        %5987 = vmatpush1.msra.mxu0 0.0
        %5988 = vmatprep.subr.mxu0 0.0
        %5989 = vmatpush1.msra.mxu0 0.0
        %5990 = vmatprep.subr.mxu0 0.0
        %5991 = vmatpush1.msra.mxu0 0.0
        %5992 = vmatprep.subr.mxu0 0.0
        %5993 = vmatpush1.msra.mxu0 0.0
        %5994 = vmatprep.subr.mxu0 0.0
        %5995 = vmatpush1.msra.mxu0 0.0
        %5996 = vmatprep.subr.mxu0 0.0
        %5997 = vmatpush1.msra.mxu0 0.0
        %5998 = vmatprep.subr.mxu0 0.0
        %5999 = vmatpush1.msra.mxu0 0.0
        %6000 = vmatprep.subr.mxu0 0.0
        %6001 = vmatpush1.msra.mxu0 0.0
        %6002 = vmatprep.subr.mxu0 0.0
        %6003 = vmatpush1.msra.mxu0 0.0
        %6004 = vmatprep.subr.mxu0 0.0
        %6005 = vmatpush1.msra.mxu0 0.0
        %6006 = vmatprep.subr.mxu0 0.0
        %6007 = vmatpush1.msra.mxu0 0.0
        %6008 = vmatprep.subr.mxu0 0.0
        %6009 = vmatpush1.msra.mxu0 0.0
        %6010 = vmatprep.subr.mxu0 0.0
        %6011 = vmatpush1.msra.mxu0 0.0
        %6012 = vmatprep.subr.mxu0 0.0
        %6013 = vmatpush1.msra.mxu0 0.0
        %6014 = vmatprep.subr.mxu0 0.0
        %6015 = vmatpush1.msra.mxu0 0.0
        %6016 = vmatprep.subr.mxu0 0.0
        %6017 = vmatpush1.msra.mxu0 0.0
        %6018 = vmatprep.subr.mxu0 0.0
        %6019 = vmatpush1.msra.mxu0 0.0
        %6020 = vmatprep.subr.mxu0 0.0
        %6021 = vmatpush1.msra.mxu0 0.0
        %6022 = vmatprep.mubr.f32.mxu0 0.0
        %6023 = vmatmul.mubr.f32.gmra.mrb[0].mxu0 %v5911
        %v6024 = vpop.f32.mrb[0].mxu0
        %v6025 = vadd.f32 0.0, %v6024
        %v6026 = vpop.f32.mrb[0].mxu0
        %6027 = vmatprep.mubr.f32.mxu0 0.0
        %6028 = vmatmul.mubr.f32.gmra.mrb[0].mxu0 %v5914
        %v6029 = vpop.f32.mrb[0].mxu0
        %v6030 = vadd.f32 0.0, %v6029
        %v6031 = vpop.f32.mrb[0].mxu0
        %6032 = vmatprep.mubr.f32.mxu0 0.0
        %6033 = vmatmul.mubr.f32.gmra.mrb[0].mxu0 %v5917
        %v6034 = vpop.f32.mrb[0].mxu0
        %v6035 = vadd.f32 0.0, %v6034
        %v6036 = vpop.f32.mrb[0].mxu0
        %6037 = vmatprep.mubr.f32.mxu0 0.0
        %6038 = vmatmul.mubr.f32.gmra.mrb[0].mxu0 %v5920
        %v6039 = vpop.f32.mrb[0].mxu0
        %v6040 = vadd.f32 0.0, %v6039
        %v6041 = vpop.f32.mrb[0].mxu0
        %6042 = vmatprep.mubr.f32.mxu0 0.0
        %6043 = vmatmul.mubr.f32.gmra.mrb[0].mxu0 %v5923
        %v6044 = vpop.f32.mrb[0].mxu0
        %v6045 = vadd.f32 0.0, %v6044
        %v6046 = vpop.f32.mrb[0].mxu0
        %6047 = vmatprep.mubr.f32.mxu0 0.0
        %6048 = vmatmul.mubr.f32.gmra.mrb[0].mxu0 %v5926
        %v6049 = vpop.f32.mrb[0].mxu0
        %v6050 = vadd.f32 0.0, %v6049
        %v6051 = vpop.f32.mrb[0].mxu0
        %6052 = vmatprep.mubr.f32.mxu0 0.0
        %6053 = vmatmul.mubr.f32.gmra.mrb[0].mxu0 %v5929
        %v6054 = vpop.f32.mrb[0].mxu0
        %v6055 = vadd.f32 0.0, %v6054
        %v6056 = vpop.f32.mrb[0].mxu0
        %6057 = vmatprep.mubr.f32.mxu0 0.0
        %6058 = vmatmul.mubr.f32.gmra.mrb[0].mxu0 %v5932
        %v6059 = vpop.f32.mrb[0].mxu0
        %v6060 = vadd.f32 0.0, %v6059
        %v6061 = vpop.f32.mrb[0].mxu0
        %6062 = vmatprep.mubr.f32.mxu0 0.0
        %6063 = vmatmul.mubr.f32.gmra.mrb[0].mxu0 %v5935
        %v6064 = vpop.f32.mrb[0].mxu0
        %v6065 = vadd.f32 0.0, %v6064
        %v6066 = vpop.f32.mrb[0].mxu0
        %6067 = vmatprep.mubr.f32.mxu0 0.0
        %6068 = vmatmul.mubr.f32.gmra.mrb[0].mxu0 %v5938
        %v6069 = vpop.f32.mrb[0].mxu0
        %v6070 = vadd.f32 0.0, %v6069
        %v6071 = vpop.f32.mrb[0].mxu0
        %6072 = vmatprep.mubr.f32.mxu0 0.0
        %6073 = vmatmul.mubr.f32.gmra.mrb[0].mxu0 %v5941
        %v6074 = vpop.f32.mrb[0].mxu0
        %v6075 = vadd.f32 0.0, %v6074
        %v6076 = vpop.f32.mrb[0].mxu0
        %6077 = vmatprep.mubr.f32.mxu0 0.0
        %6078 = vmatmul.mubr.f32.gmra.mrb[0].mxu0 %v5944
        %v6079 = vpop.f32.mrb[0].mxu0
        %v6080 = vadd.f32 0.0, %v6079
        %v6081 = vpop.f32.mrb[0].mxu0
        %6082 = vmatprep.mubr.f32.mxu0 0.0
        %6083 = vmatmul.mubr.f32.gmra.mrb[0].mxu0 %v5947
        %v6084 = vpop.f32.mrb[0].mxu0
        %v6085 = vadd.f32 0.0, %v6084
        %v6086 = vpop.f32.mrb[0].mxu0
        %6087 = vmatprep.mubr.f32.mxu0 0.0
        %6088 = vmatmul.mubr.f32.gmra.mrb[0].mxu0 %v5950
        %v6089 = vpop.f32.mrb[0].mxu0
        %v6090 = vadd.f32 0.0, %v6089
        %v6091 = vpop.f32.mrb[0].mxu0
        %6092 = vmatprep.mubr.f32.mxu0 0.0
        %6093 = vmatmul.mubr.f32.gmra.mrb[0].mxu0 %v5953
        %v6094 = vpop.f32.mrb[0].mxu0
        %v6095 = vadd.f32 0.0, %v6094
        %v6096 = vpop.f32.mrb[0].mxu0
        %6097 = vmatprep.mubr.f32.mxu0 0.0
        %6098 = vmatmul.mubr.f32.gmra.mrb[0].mxu0 %v5956
        %v6099 = vpop.f32.mrb[0].mxu0
        %v6100 = vadd.f32 0.0, %v6099
        %v6101 = vpop.f32.mrb[0].mxu0
        %6102 = vdwg.mxu0
        %v6103 = vadd.f32 %v5827, %v6025
        %v6104 = vadd.f32 %v5832, %v6030
        %v6105 = vadd.f32 %v5837, %v6035
        %v6106 = vadd.f32 %v5842, %v6040
        %v6107 = vadd.f32 %v5847, %v6045
        %v6108 = vadd.f32 %v5852, %v6050
        %v6109 = vadd.f32 %v5857, %v6055
        %v6110 = vadd.f32 %v5862, %v6060
        %v6111 = vadd.f32 %v5867, %v6065
        %v6112 = vadd.f32 %v5872, %v6070
        %v6113 = vadd.f32 %v5877, %v6075
        %v6114 = vadd.f32 %v5882, %v6080
        %v6115 = vadd.f32 %v5887, %v6085
        %v6116 = vadd.f32 %v5892, %v6090
        %v6117 = vadd.f32 %v5897, %v6095
        %v6118 = vadd.f32 %v5902, %v6100
        %s6119 = scalar_lea.vmem %s9, 96
        %v6120 = vld [vmem:[%s6119] sm:$0xff]
        %v6121 = vld [vmem:[%s6119 + $0x8] sm:$0xff]
        %v6122 = vld [vmem:[%s6119 + $0x10] sm:$0xff]
        %v6123 = vld [vmem:[%s6119 + $0x18] sm:$0xff]
        %v6125 = vsel %vm5518, %v5478, 0
        %v6128 = vsel %vm5518, %v5480, 0
        %v6131 = vsel %vm5518, %v5482, 0
        %v6134 = vsel %vm5518, %v5484, 0
        %v6137 = vsel %vm5518, %v5486, 0
        %v6140 = vsel %vm5518, %v5488, 0
        %v6143 = vsel %vm5518, %v5490, 0
        %v6146 = vsel %vm5518, %v5492, 0
        %v6149 = vsel %vm5518, %v5494, 0
        %v6152 = vsel %vm5518, %v5496, 0
        %v6155 = vsel %vm5518, %v5498, 0
        %v6158 = vsel %vm5518, %v5500, 0
        %v6161 = vsel %vm5518, %v5502, 0
        %v6164 = vsel %vm5518, %v5504, 0
        %v6167 = vsel %vm5518, %v5506, 0
        %v6170 = vsel %vm5518, %v5508, 0
        %6172 = vmatprep.subr.mxu0 0.0
        %6173 = vmatpush1.msra.mxu0 %v6120
        %6174 = vmatprep.subr.mxu0 0.0
        %6175 = vmatpush1.msra.mxu0 %v6121
        %6176 = vmatprep.subr.mxu0 0.0
        %6177 = vmatpush1.msra.mxu0 %v6122
        %6178 = vmatprep.subr.mxu0 0.0
        %6179 = vmatpush1.msra.mxu0 %v6123
        %6180 = vmatprep.subr.mxu0 0.0
        %6181 = vmatpush1.msra.mxu0 0.0
        %6182 = vmatprep.subr.mxu0 0.0
        %6183 = vmatpush1.msra.mxu0 0.0
        %6184 = vmatprep.subr.mxu0 0.0
        %6185 = vmatpush1.msra.mxu0 0.0
        %6186 = vmatprep.subr.mxu0 0.0
        %6187 = vmatpush1.msra.mxu0 0.0
        %6188 = vmatprep.subr.mxu0 0.0
        %6189 = vmatpush1.msra.mxu0 0.0
        %6190 = vmatprep.subr.mxu0 0.0
        %6191 = vmatpush1.msra.mxu0 0.0
        %6192 = vmatprep.subr.mxu0 0.0
        %6193 = vmatpush1.msra.mxu0 0.0
        %6194 = vmatprep.subr.mxu0 0.0
        %6195 = vmatpush1.msra.mxu0 0.0
        %6196 = vmatprep.subr.mxu0 0.0
        %6197 = vmatpush1.msra.mxu0 0.0
        %6198 = vmatprep.subr.mxu0 0.0
        %6199 = vmatpush1.msra.mxu0 0.0
        %6200 = vmatprep.subr.mxu0 0.0
        %6201 = vmatpush1.msra.mxu0 0.0
        %6202 = vmatprep.subr.mxu0 0.0
        %6203 = vmatpush1.msra.mxu0 0.0
        %6204 = vmatprep.subr.mxu0 0.0
        %6205 = vmatpush1.msra.mxu0 0.0
        %6206 = vmatprep.subr.mxu0 0.0
        %6207 = vmatpush1.msra.mxu0 0.0
        %6208 = vmatprep.subr.mxu0 0.0
        %6209 = vmatpush1.msra.mxu0 0.0
        %6210 = vmatprep.subr.mxu0 0.0
        %6211 = vmatpush1.msra.mxu0 0.0
        %6212 = vmatprep.subr.mxu0 0.0
        %6213 = vmatpush1.msra.mxu0 0.0
        %6214 = vmatprep.subr.mxu0 0.0
        %6215 = vmatpush1.msra.mxu0 0.0
        %6216 = vmatprep.subr.mxu0 0.0
        %6217 = vmatpush1.msra.mxu0 0.0
        %6218 = vmatprep.subr.mxu0 0.0
        %6219 = vmatpush1.msra.mxu0 0.0
        %6220 = vmatprep.subr.mxu0 0.0
        %6221 = vmatpush1.msra.mxu0 0.0
        %6222 = vmatprep.subr.mxu0 0.0
        %6223 = vmatpush1.msra.mxu0 0.0
        %6224 = vmatprep.subr.mxu0 0.0
        %6225 = vmatpush1.msra.mxu0 0.0
        %6226 = vmatprep.subr.mxu0 0.0
        %6227 = vmatpush1.msra.mxu0 0.0
        %6228 = vmatprep.subr.mxu0 0.0
        %6229 = vmatpush1.msra.mxu0 0.0
        %6230 = vmatprep.subr.mxu0 0.0
        %6231 = vmatpush1.msra.mxu0 0.0
        %6232 = vmatprep.subr.mxu0 0.0
        %6233 = vmatpush1.msra.mxu0 0.0
        %6234 = vmatprep.subr.mxu0 0.0
        %6235 = vmatpush1.msra.mxu0 0.0
        %6236 = vmatprep.mubr.f32.mxu0 0.0
        %6237 = vmatmul.mubr.f32.gmra.mrb[0].mxu0 %v6125
        %v6238 = vpop.f32.mrb[0].mxu0
        %v6239 = vadd.f32 0.0, %v6238
        %v6240 = vpop.f32.mrb[0].mxu0
        %6241 = vmatprep.mubr.f32.mxu0 0.0
        %6242 = vmatmul.mubr.f32.gmra.mrb[0].mxu0 %v6128
        %v6243 = vpop.f32.mrb[0].mxu0
        %v6244 = vadd.f32 0.0, %v6243
        %v6245 = vpop.f32.mrb[0].mxu0
        %6246 = vmatprep.mubr.f32.mxu0 0.0
        %6247 = vmatmul.mubr.f32.gmra.mrb[0].mxu0 %v6131
        %v6248 = vpop.f32.mrb[0].mxu0
        %v6249 = vadd.f32 0.0, %v6248
        %v6250 = vpop.f32.mrb[0].mxu0
        %6251 = vmatprep.mubr.f32.mxu0 0.0
        %6252 = vmatmul.mubr.f32.gmra.mrb[0].mxu0 %v6134
        %v6253 = vpop.f32.mrb[0].mxu0
        %v6254 = vadd.f32 0.0, %v6253
        %v6255 = vpop.f32.mrb[0].mxu0
        %6256 = vmatprep.mubr.f32.mxu0 0.0
        %6257 = vmatmul.mubr.f32.gmra.mrb[0].mxu0 %v6137
        %v6258 = vpop.f32.mrb[0].mxu0
        %v6259 = vadd.f32 0.0, %v6258
        %v6260 = vpop.f32.mrb[0].mxu0
        %6261 = vmatprep.mubr.f32.mxu0 0.0
        %6262 = vmatmul.mubr.f32.gmra.mrb[0].mxu0 %v6140
        %v6263 = vpop.f32.mrb[0].mxu0
        %v6264 = vadd.f32 0.0, %v6263
        %v6265 = vpop.f32.mrb[0].mxu0
        %6266 = vmatprep.mubr.f32.mxu0 0.0
        %6267 = vmatmul.mubr.f32.gmra.mrb[0].mxu0 %v6143
        %v6268 = vpop.f32.mrb[0].mxu0
        %v6269 = vadd.f32 0.0, %v6268
        %v6270 = vpop.f32.mrb[0].mxu0
        %6271 = vmatprep.mubr.f32.mxu0 0.0
        %6272 = vmatmul.mubr.f32.gmra.mrb[0].mxu0 %v6146
        %v6273 = vpop.f32.mrb[0].mxu0
        %v6274 = vadd.f32 0.0, %v6273
        %v6275 = vpop.f32.mrb[0].mxu0
        %6276 = vmatprep.mubr.f32.mxu0 0.0
        %6277 = vmatmul.mubr.f32.gmra.mrb[0].mxu0 %v6149
        %v6278 = vpop.f32.mrb[0].mxu0
        %v6279 = vadd.f32 0.0, %v6278
        %v6280 = vpop.f32.mrb[0].mxu0
        %6281 = vmatprep.mubr.f32.mxu0 0.0
        %6282 = vmatmul.mubr.f32.gmra.mrb[0].mxu0 %v6152
        %v6283 = vpop.f32.mrb[0].mxu0
        %v6284 = vadd.f32 0.0, %v6283
        %v6285 = vpop.f32.mrb[0].mxu0
        %6286 = vmatprep.mubr.f32.mxu0 0.0
        %6287 = vmatmul.mubr.f32.gmra.mrb[0].mxu0 %v6155
        %v6288 = vpop.f32.mrb[0].mxu0
        %v6289 = vadd.f32 0.0, %v6288
        %v6290 = vpop.f32.mrb[0].mxu0
        %6291 = vmatprep.mubr.f32.mxu0 0.0
        %6292 = vmatmul.mubr.f32.gmra.mrb[0].mxu0 %v6158
        %v6293 = vpop.f32.mrb[0].mxu0
        %v6294 = vadd.f32 0.0, %v6293
        %v6295 = vpop.f32.mrb[0].mxu0
        %6296 = vmatprep.mubr.f32.mxu0 0.0
        %6297 = vmatmul.mubr.f32.gmra.mrb[0].mxu0 %v6161
        %v6298 = vpop.f32.mrb[0].mxu0
        %v6299 = vadd.f32 0.0, %v6298
        %v6300 = vpop.f32.mrb[0].mxu0
        %6301 = vmatprep.mubr.f32.mxu0 0.0
        %6302 = vmatmul.mubr.f32.gmra.mrb[0].mxu0 %v6164
        %v6303 = vpop.f32.mrb[0].mxu0
        %v6304 = vadd.f32 0.0, %v6303
        %v6305 = vpop.f32.mrb[0].mxu0
        %6306 = vmatprep.mubr.f32.mxu0 0.0
        %6307 = vmatmul.mubr.f32.gmra.mrb[0].mxu0 %v6167
        %v6308 = vpop.f32.mrb[0].mxu0
        %v6309 = vadd.f32 0.0, %v6308
        %v6310 = vpop.f32.mrb[0].mxu0
        %6311 = vmatprep.mubr.f32.mxu0 0.0
        %6312 = vmatmul.mubr.f32.gmra.mrb[0].mxu0 %v6170
        %v6313 = vpop.f32.mrb[0].mxu0
        %v6314 = vadd.f32 0.0, %v6313
        %v6315 = vpop.f32.mrb[0].mxu0
        %6316 = vdwg.mxu0
        %v6317 = vadd.f32 %v6103, %v6239
        %v6318 = vadd.f32 %v6104, %v6244
        %v6319 = vadd.f32 %v6105, %v6249
        %v6320 = vadd.f32 %v6106, %v6254
        %v6321 = vadd.f32 %v6107, %v6259
        %v6322 = vadd.f32 %v6108, %v6264
        %v6323 = vadd.f32 %v6109, %v6269
        %v6324 = vadd.f32 %v6110, %v6274
        %v6325 = vadd.f32 %v6111, %v6279
        %v6326 = vadd.f32 %v6112, %v6284
        %v6327 = vadd.f32 %v6113, %v6289
        %v6328 = vadd.f32 %v6114, %v6294
        %v6329 = vadd.f32 %v6115, %v6299
        %v6330 = vadd.f32 %v6116, %v6304
        %v6331 = vadd.f32 %v6117, %v6309
        %v6332 = vadd.f32 %v6118, %v6314
        %v6333 = vadd.f32 %v2116, %v6317
        %v6334 = vadd.f32 %v2117, %v6318
        %v6335 = vadd.f32 %v2118, %v6319
        %v6336 = vadd.f32 %v2119, %v6320
        %v6337 = vadd.f32 %v2120, %v6321
        %v6338 = vadd.f32 %v2121, %v6322
        %v6339 = vadd.f32 %v2122, %v6323
        %v6340 = vadd.f32 %v2123, %v6324
        %v6341 = vadd.f32 %v2124, %v6325
        %v6342 = vadd.f32 %v2125, %v6326
        %v6343 = vadd.f32 %v2126, %v6327
        %v6344 = vadd.f32 %v2127, %v6328
        %v6345 = vadd.f32 %v2128, %v6329
        %v6346 = vadd.f32 %v2129, %v6330
        %v6347 = vadd.f32 %v2130, %v6331
        %v6348 = vadd.f32 %v2131, %v6332
        %v6349 = vld [vmem:[%s10] sm:$0x1]
        %v6351 = vlaneseq
        %v6352 = vshrl.u32 %v6351, 7
        %v6353 = vsub.s32 0, %v6352
        %v6354 = vrot.slane %v6349, %v6353
        %v6356 = vadd.f32 %v6333, %v6354
        %v6357 = vadd.f32 %v6334, %v6354
        %v6358 = vadd.f32 %v6335, %v6354
        %v6359 = vadd.f32 %v6336, %v6354
        %v6360 = vadd.f32 %v6337, %v6354
        %v6361 = vadd.f32 %v6338, %v6354
        %v6362 = vadd.f32 %v6339, %v6354
        %v6363 = vadd.f32 %v6340, %v6354
        %v6364 = vadd.f32 %v6341, %v6354
        %v6365 = vadd.f32 %v6342, %v6354
        %v6366 = vadd.f32 %v6343, %v6354
        %v6367 = vadd.f32 %v6344, %v6354
        %v6368 = vadd.f32 %v6345, %v6354
        %v6369 = vadd.f32 %v6346, %v6354
        %v6370 = vadd.f32 %v6347, %v6354
        %v6371 = vadd.f32 %v6348, %v6354
        %v6372 = vld [vmem:[%s11] sm:$0x1]
        %v6373 = vld [vmem:[%s12] sm:$0x1]
        %6374 = vadd.xlane.f32.xlu0 %v6356
        %v6375 = vpop.xlane.xlu0 %6374
        %6376 = vadd.xlane.f32.xlu0 %v6357
        %v6377 = vpop.xlane.xlu0 %6376
        %6378 = vadd.xlane.f32.xlu0 %v6358
        %v6379 = vpop.xlane.xlu0 %6378
        %6380 = vadd.xlane.f32.xlu0 %v6359
        %v6381 = vpop.xlane.xlu0 %6380
        %6382 = vadd.xlane.f32.xlu0 %v6360
        %v6383 = vpop.xlane.xlu0 %6382
        %6384 = vadd.xlane.f32.xlu0 %v6361
        %v6385 = vpop.xlane.xlu0 %6384
        %6386 = vadd.xlane.f32.xlu0 %v6362
        %v6387 = vpop.xlane.xlu0 %6386
        %6388 = vadd.xlane.f32.xlu0 %v6363
        %v6389 = vpop.xlane.xlu0 %6388
        %6390 = vadd.xlane.f32.xlu0 %v6364
        %v6391 = vpop.xlane.xlu0 %6390
        %6392 = vadd.xlane.f32.xlu0 %v6365
        %v6393 = vpop.xlane.xlu0 %6392
        %6394 = vadd.xlane.f32.xlu0 %v6366
        %v6395 = vpop.xlane.xlu0 %6394
        %6396 = vadd.xlane.f32.xlu0 %v6367
        %v6397 = vpop.xlane.xlu0 %6396
        %6398 = vadd.xlane.f32.xlu0 %v6368
        %v6399 = vpop.xlane.xlu0 %6398
        %6400 = vadd.xlane.f32.xlu0 %v6369
        %v6401 = vpop.xlane.xlu0 %6400
        %6402 = vadd.xlane.f32.xlu0 %v6370
        %v6403 = vpop.xlane.xlu0 %6402
        %6404 = vadd.xlane.f32.xlu0 %v6371
        %v6405 = vpop.xlane.xlu0 %6404
        %v6406 = vmul.f32 %v6375, %v2166
        %v6407 = vmul.f32 %v6377, %v2166
        %v6408 = vmul.f32 %v6379, %v2166
        %v6409 = vmul.f32 %v6381, %v2166
        %v6410 = vmul.f32 %v6383, %v2166
        %v6411 = vmul.f32 %v6385, %v2166
        %v6412 = vmul.f32 %v6387, %v2166
        %v6413 = vmul.f32 %v6389, %v2166
        %v6414 = vmul.f32 %v6391, %v2166
        %v6415 = vmul.f32 %v6393, %v2166
        %v6416 = vmul.f32 %v6395, %v2166
        %v6417 = vmul.f32 %v6397, %v2166
        %v6418 = vmul.f32 %v6399, %v2166
        %v6419 = vmul.f32 %v6401, %v2166
        %v6420 = vmul.f32 %v6403, %v2166
        %v6421 = vmul.f32 %v6405, %v2166
        %v6422 = vsub.f32 %v6356, %v6406
        %v6423 = vsub.f32 %v6357, %v6407
        %v6424 = vsub.f32 %v6358, %v6408
        %v6425 = vsub.f32 %v6359, %v6409
        %v6426 = vsub.f32 %v6360, %v6410
        %v6427 = vsub.f32 %v6361, %v6411
        %v6428 = vsub.f32 %v6362, %v6412
        %v6429 = vsub.f32 %v6363, %v6413
        %v6430 = vsub.f32 %v6364, %v6414
        %v6431 = vsub.f32 %v6365, %v6415
        %v6432 = vsub.f32 %v6366, %v6416
        %v6433 = vsub.f32 %v6367, %v6417
        %v6434 = vsub.f32 %v6368, %v6418
        %v6435 = vsub.f32 %v6369, %v6419
        %v6436 = vsub.f32 %v6370, %v6420
        %v6437 = vsub.f32 %v6371, %v6421
        %v6438 = vmul.f32 %v6422, %v6422
        %v6439 = vmul.f32 %v6423, %v6423
        %v6440 = vmul.f32 %v6424, %v6424
        %v6441 = vmul.f32 %v6425, %v6425
        %v6442 = vmul.f32 %v6426, %v6426
        %v6443 = vmul.f32 %v6427, %v6427
        %v6444 = vmul.f32 %v6428, %v6428
        %v6445 = vmul.f32 %v6429, %v6429
        %v6446 = vmul.f32 %v6430, %v6430
        %v6447 = vmul.f32 %v6431, %v6431
        %v6448 = vmul.f32 %v6432, %v6432
        %v6449 = vmul.f32 %v6433, %v6433
        %v6450 = vmul.f32 %v6434, %v6434
        %v6451 = vmul.f32 %v6435, %v6435
        %v6452 = vmul.f32 %v6436, %v6436
        %v6453 = vmul.f32 %v6437, %v6437
        %6454 = vadd.xlane.f32.xlu0 %v6438
        %v6455 = vpop.xlane.xlu0 %6454
        %6456 = vadd.xlane.f32.xlu0 %v6439
        %v6457 = vpop.xlane.xlu0 %6456
        %6458 = vadd.xlane.f32.xlu0 %v6440
        %v6459 = vpop.xlane.xlu0 %6458
        %6460 = vadd.xlane.f32.xlu0 %v6441
        %v6461 = vpop.xlane.xlu0 %6460
        %6462 = vadd.xlane.f32.xlu0 %v6442
        %v6463 = vpop.xlane.xlu0 %6462
        %6464 = vadd.xlane.f32.xlu0 %v6443
        %v6465 = vpop.xlane.xlu0 %6464
        %6466 = vadd.xlane.f32.xlu0 %v6444
        %v6467 = vpop.xlane.xlu0 %6466
        %6468 = vadd.xlane.f32.xlu0 %v6445
        %v6469 = vpop.xlane.xlu0 %6468
        %6470 = vadd.xlane.f32.xlu0 %v6446
        %v6471 = vpop.xlane.xlu0 %6470
        %6472 = vadd.xlane.f32.xlu0 %v6447
        %v6473 = vpop.xlane.xlu0 %6472
        %6474 = vadd.xlane.f32.xlu0 %v6448
        %v6475 = vpop.xlane.xlu0 %6474
        %6476 = vadd.xlane.f32.xlu0 %v6449
        %v6477 = vpop.xlane.xlu0 %6476
        %6478 = vadd.xlane.f32.xlu0 %v6450
        %v6479 = vpop.xlane.xlu0 %6478
        %6480 = vadd.xlane.f32.xlu0 %v6451
        %v6481 = vpop.xlane.xlu0 %6480
        %6482 = vadd.xlane.f32.xlu0 %v6452
        %v6483 = vpop.xlane.xlu0 %6482
        %6484 = vadd.xlane.f32.xlu0 %v6453
        %v6485 = vpop.xlane.xlu0 %6484
        %v6486 = vmul.f32 %v6455, %v2166
        %v6487 = vmul.f32 %v6457, %v2166
        %v6488 = vmul.f32 %v6459, %v2166
        %v6489 = vmul.f32 %v6461, %v2166
        %v6490 = vmul.f32 %v6463, %v2166
        %v6491 = vmul.f32 %v6465, %v2166
        %v6492 = vmul.f32 %v6467, %v2166
        %v6493 = vmul.f32 %v6469, %v2166
        %v6494 = vmul.f32 %v6471, %v2166
        %v6495 = vmul.f32 %v6473, %v2166
        %v6496 = vmul.f32 %v6475, %v2166
        %v6497 = vmul.f32 %v6477, %v2166
        %v6498 = vmul.f32 %v6479, %v2166
        %v6499 = vmul.f32 %v6481, %v2166
        %v6500 = vmul.f32 %v6483, %v2166
        %v6501 = vmul.f32 %v6485, %v2166
        %v6502 = vadd.f32 %v6486, 1e-05
        %v6503 = vadd.f32 %v6487, 1e-05
        %v6504 = vadd.f32 %v6488, 1e-05
        %v6505 = vadd.f32 %v6489, 1e-05
        %v6506 = vadd.f32 %v6490, 1e-05
        %v6507 = vadd.f32 %v6491, 1e-05
        %v6508 = vadd.f32 %v6492, 1e-05
        %v6509 = vadd.f32 %v6493, 1e-05
        %v6510 = vadd.f32 %v6494, 1e-05
        %v6511 = vadd.f32 %v6495, 1e-05
        %v6512 = vadd.f32 %v6496, 1e-05
        %v6513 = vadd.f32 %v6497, 1e-05
        %v6514 = vadd.f32 %v6498, 1e-05
        %v6515 = vadd.f32 %v6499, 1e-05
        %v6516 = vadd.f32 %v6500, 1e-05
        %v6517 = vadd.f32 %v6501, 1e-05
        %v6518 = vrsqrt.pop %v6502
        %v6519 = vrsqrt.pop %v6503
        %v6520 = vrsqrt.pop %v6504
        %v6521 = vrsqrt.pop %v6505
        %v6522 = vrsqrt.pop %v6506
        %v6523 = vrsqrt.pop %v6507
        %v6524 = vrsqrt.pop %v6508
        %v6525 = vrsqrt.pop %v6509
        %v6526 = vrsqrt.pop %v6510
        %v6527 = vrsqrt.pop %v6511
        %v6528 = vrsqrt.pop %v6512
        %v6529 = vrsqrt.pop %v6513
        %v6530 = vrsqrt.pop %v6514
        %v6531 = vrsqrt.pop %v6515
        %v6532 = vrsqrt.pop %v6516
        %v6533 = vrsqrt.pop %v6517
        %v6534 = vmul.f32 %v6422, %v6518
        %v6535 = vmul.f32 %v6423, %v6519
        %v6536 = vmul.f32 %v6424, %v6520
        %v6537 = vmul.f32 %v6425, %v6521
        %v6538 = vmul.f32 %v6426, %v6522
        %v6539 = vmul.f32 %v6427, %v6523
        %v6540 = vmul.f32 %v6428, %v6524
        %v6541 = vmul.f32 %v6429, %v6525
        %v6542 = vmul.f32 %v6430, %v6526
        %v6543 = vmul.f32 %v6431, %v6527
        %v6544 = vmul.f32 %v6432, %v6528
        %v6545 = vmul.f32 %v6433, %v6529
        %v6546 = vmul.f32 %v6434, %v6530
        %v6547 = vmul.f32 %v6435, %v6531
        %v6548 = vmul.f32 %v6436, %v6532
        %v6549 = vmul.f32 %v6437, %v6533
        %v6551 = vlaneseq
        %v6552 = vshrl.u32 %v6551, 7
        %v6553 = vsub.s32 0, %v6552
        %v6554 = vrot.slane %v6372, %v6553
        %v6556 = vmul.f32 %v6534, %v6554
        %v6557 = vmul.f32 %v6535, %v6554
        %v6558 = vmul.f32 %v6536, %v6554
        %v6559 = vmul.f32 %v6537, %v6554
        %v6560 = vmul.f32 %v6538, %v6554
        %v6561 = vmul.f32 %v6539, %v6554
        %v6562 = vmul.f32 %v6540, %v6554
        %v6563 = vmul.f32 %v6541, %v6554
        %v6564 = vmul.f32 %v6542, %v6554
        %v6565 = vmul.f32 %v6543, %v6554
        %v6566 = vmul.f32 %v6544, %v6554
        %v6567 = vmul.f32 %v6545, %v6554
        %v6568 = vmul.f32 %v6546, %v6554
        %v6569 = vmul.f32 %v6547, %v6554
        %v6570 = vmul.f32 %v6548, %v6554
        %v6571 = vmul.f32 %v6549, %v6554
        %v6573 = vlaneseq
        %v6574 = vshrl.u32 %v6573, 7
        %v6575 = vsub.s32 0, %v6574
        %v6576 = vrot.slane %v6373, %v6575
        %v6578 = vadd.f32 %v6556, %v6576
        %v6579 = vadd.f32 %v6557, %v6576
        %v6580 = vadd.f32 %v6558, %v6576
        %v6581 = vadd.f32 %v6559, %v6576
        %v6582 = vadd.f32 %v6560, %v6576
        %v6583 = vadd.f32 %v6561, %v6576
        %v6584 = vadd.f32 %v6562, %v6576
        %v6585 = vadd.f32 %v6563, %v6576
        %v6586 = vadd.f32 %v6564, %v6576
        %v6587 = vadd.f32 %v6565, %v6576
        %v6588 = vadd.f32 %v6566, %v6576
        %v6589 = vadd.f32 %v6567, %v6576
        %v6590 = vadd.f32 %v6568, %v6576
        %v6591 = vadd.f32 %v6569, %v6576
        %v6592 = vadd.f32 %v6570, %v6576
        %v6593 = vadd.f32 %v6571, %v6576
        %v6594 = vld [vmem:[#allocation4] sm:$0xff]
        %v6595 = vld [vmem:[#allocation4 + $0x8] sm:$0xff]
        %v6596 = vld [vmem:[#allocation4 + $0x10] sm:$0xff]
        %v6597 = vld [vmem:[#allocation4 + $0x18] sm:$0xff]
        %v6598 = vld [vmem:[#allocation4 + $0x20] sm:$0xff]
        %v6599 = vld [vmem:[#allocation4 + $0x28] sm:$0xff]
        %v6600 = vld [vmem:[#allocation4 + $0x30] sm:$0xff]
        %v6601 = vld [vmem:[#allocation4 + $0x38] sm:$0xff]
        %v6602 = vld [vmem:[#allocation4 + $0x40] sm:$0xff]
        %v6603 = vld [vmem:[#allocation4 + $0x48] sm:$0xff]
        %v6604 = vld [vmem:[#allocation4 + $0x50] sm:$0xff]
        %v6605 = vld [vmem:[#allocation4 + $0x58] sm:$0xff]
        %v6606 = vld [vmem:[#allocation4 + $0x60] sm:$0xff]
        %v6607 = vld [vmem:[#allocation4 + $0x68] sm:$0xff]
        %v6608 = vld [vmem:[#allocation4 + $0x70] sm:$0xff]
        %v6609 = vld [vmem:[#allocation4 + $0x78] sm:$0xff]
        %v6610 = vld [vmem:[#allocation4 + $0x80] sm:$0xff]
        %v6611 = vld [vmem:[#allocation4 + $0x88] sm:$0xff]
        %v6612 = vld [vmem:[#allocation4 + $0x90] sm:$0xff]
        %v6613 = vld [vmem:[#allocation4 + $0x98] sm:$0xff]
        %v6614 = vld [vmem:[#allocation4 + $0xa0] sm:$0xff]
        %v6615 = vld [vmem:[#allocation4 + $0xa8] sm:$0xff]
        %v6616 = vld [vmem:[#allocation4 + $0xb0] sm:$0xff]
        %v6617 = vld [vmem:[#allocation4 + $0xb8] sm:$0xff]
        %v6618 = vld [vmem:[#allocation4 + $0xc0] sm:$0xff]
        %v6619 = vld [vmem:[#allocation4 + $0xc8] sm:$0xff]
        %v6620 = vld [vmem:[#allocation4 + $0xd0] sm:$0xff]
        %v6621 = vld [vmem:[#allocation4 + $0xd8] sm:$0xff]
        %v6622 = vld [vmem:[#allocation4 + $0xe0] sm:$0xff]
        %v6623 = vld [vmem:[#allocation4 + $0xe8] sm:$0xff]
        %v6624 = vld [vmem:[#allocation4 + $0xf0] sm:$0xff]
        %v6625 = vld [vmem:[#allocation4 + $0xf8] sm:$0xff]
        %v6626 = vld [vmem:[#allocation4 + $0x100] sm:$0xff]
        %v6627 = vld [vmem:[#allocation4 + $0x108] sm:$0xff]
        %v6628 = vld [vmem:[#allocation4 + $0x110] sm:$0xff]
        %v6629 = vld [vmem:[#allocation4 + $0x118] sm:$0xff]
        %v6630 = vld [vmem:[#allocation4 + $0x120] sm:$0xff]
        %v6631 = vld [vmem:[#allocation4 + $0x128] sm:$0xff]
        %v6632 = vld [vmem:[#allocation4 + $0x130] sm:$0xff]
        %v6633 = vld [vmem:[#allocation4 + $0x138] sm:$0xff]
        %v6634 = vld [vmem:[#allocation4 + $0x140] sm:$0xff]
        %v6635 = vld [vmem:[#allocation4 + $0x148] sm:$0xff]
        %v6636 = vld [vmem:[#allocation4 + $0x150] sm:$0xff]
        %v6637 = vld [vmem:[#allocation4 + $0x158] sm:$0xff]
        %v6638 = vld [vmem:[#allocation4 + $0x160] sm:$0xff]
        %v6639 = vld [vmem:[#allocation4 + $0x168] sm:$0xff]
        %v6640 = vld [vmem:[#allocation4 + $0x170] sm:$0xff]
        %v6641 = vld [vmem:[#allocation4 + $0x178] sm:$0xff]
        %v6642 = vld [vmem:[#allocation4 + $0x180] sm:$0xff]
        %v6643 = vld [vmem:[#allocation4 + $0x188] sm:$0xff]
        %v6644 = vld [vmem:[#allocation4 + $0x190] sm:$0xff]
        %v6645 = vld [vmem:[#allocation4 + $0x198] sm:$0xff]
        %v6646 = vld [vmem:[#allocation4 + $0x1a0] sm:$0xff]
        %v6647 = vld [vmem:[#allocation4 + $0x1a8] sm:$0xff]
        %v6648 = vld [vmem:[#allocation4 + $0x1b0] sm:$0xff]
        %v6649 = vld [vmem:[#allocation4 + $0x1b8] sm:$0xff]
        %v6650 = vld [vmem:[#allocation4 + $0x1c0] sm:$0xff]
        %v6651 = vld [vmem:[#allocation4 + $0x1c8] sm:$0xff]
        %v6652 = vld [vmem:[#allocation4 + $0x1d0] sm:$0xff]
        %v6653 = vld [vmem:[#allocation4 + $0x1d8] sm:$0xff]
        %v6654 = vld [vmem:[#allocation4 + $0x1e0] sm:$0xff]
        %v6655 = vld [vmem:[#allocation4 + $0x1e8] sm:$0xff]
        %v6656 = vld [vmem:[#allocation4 + $0x1f0] sm:$0xff]
        %v6657 = vld [vmem:[#allocation4 + $0x1f8] sm:$0xff]
        %v6658 = vld [vmem:[%s14] sm:$0xf]
        %v6660 = vlaneseq
        %v6661 = vshrl.u32 %v6660, 7
        %v6662 = vsub.s32 0, %v6661
        %v6663 = vrot.slane %v6658, %v6662
        %v6664 = vlaneseq
        %v6665 = vshrl.u32 %v6664, 7
        %v6666 = vsub.s32 1, %v6665
        %v6667 = vrot.slane %v6658, %v6666
        %v6668 = vlaneseq
        %v6669 = vshrl.u32 %v6668, 7
        %v6670 = vsub.s32 2, %v6669
        %v6671 = vrot.slane %v6658, %v6670
        %v6672 = vlaneseq
        %v6673 = vshrl.u32 %v6672, 7
        %v6674 = vsub.s32 3, %v6673
        %v6675 = vrot.slane %v6658, %v6674
        %6680 = vmatprep.subr.mxu0 %v6595
        %6681 = vmatpush1.msra.mxu0 %v6594
        %6682 = vmatprep.subr.mxu0 %v6599
        %6683 = vmatpush1.msra.mxu0 %v6598
        %6684 = vmatprep.subr.mxu0 %v6603
        %6685 = vmatpush1.msra.mxu0 %v6602
        %6686 = vmatprep.subr.mxu0 %v6607
        %6687 = vmatpush1.msra.mxu0 %v6606
        %6688 = vmatprep.subr.mxu0 %v6611
        %6689 = vmatpush1.msra.mxu0 %v6610
        %6690 = vmatprep.subr.mxu0 %v6615
        %6691 = vmatpush1.msra.mxu0 %v6614
        %6692 = vmatprep.subr.mxu0 %v6619
        %6693 = vmatpush1.msra.mxu0 %v6618
        %6694 = vmatprep.subr.mxu0 %v6623
        %6695 = vmatpush1.msra.mxu0 %v6622
        %6696 = vmatprep.subr.mxu0 %v6627
        %6697 = vmatpush1.msra.mxu0 %v6626
        %6698 = vmatprep.subr.mxu0 %v6631
        %6699 = vmatpush1.msra.mxu0 %v6630
        %6700 = vmatprep.subr.mxu0 %v6635
        %6701 = vmatpush1.msra.mxu0 %v6634
        %6702 = vmatprep.subr.mxu0 %v6639
        %6703 = vmatpush1.msra.mxu0 %v6638
        %6704 = vmatprep.subr.mxu0 %v6643
        %6705 = vmatpush1.msra.mxu0 %v6642
        %6706 = vmatprep.subr.mxu0 %v6647
        %6707 = vmatpush1.msra.mxu0 %v6646
        %6708 = vmatprep.subr.mxu0 %v6651
        %6709 = vmatpush1.msra.mxu0 %v6650
        %6710 = vmatprep.subr.mxu0 %v6655
        %6711 = vmatpush1.msra.mxu0 %v6654
        %6712 = vmatprep.subr.mxu0 0.0
        %6713 = vmatpush1.msra.mxu0 0.0
        %6714 = vmatprep.subr.mxu0 0.0
        %6715 = vmatpush1.msra.mxu0 0.0
        %6716 = vmatprep.subr.mxu0 0.0
        %6717 = vmatpush1.msra.mxu0 0.0
        %6718 = vmatprep.subr.mxu0 0.0
        %6719 = vmatpush1.msra.mxu0 0.0
        %6720 = vmatprep.subr.mxu0 0.0
        %6721 = vmatpush1.msra.mxu0 0.0
        %6722 = vmatprep.subr.mxu0 0.0
        %6723 = vmatpush1.msra.mxu0 0.0
        %6724 = vmatprep.subr.mxu0 0.0
        %6725 = vmatpush1.msra.mxu0 0.0
        %6726 = vmatprep.subr.mxu0 0.0
        %6727 = vmatpush1.msra.mxu0 0.0
        %6728 = vmatprep.subr.mxu0 0.0
        %6729 = vmatpush1.msra.mxu0 0.0
        %6730 = vmatprep.subr.mxu0 0.0
        %6731 = vmatpush1.msra.mxu0 0.0
        %6732 = vmatprep.subr.mxu0 0.0
        %6733 = vmatpush1.msra.mxu0 0.0
        %6734 = vmatprep.subr.mxu0 0.0
        %6735 = vmatpush1.msra.mxu0 0.0
        %6736 = vmatprep.subr.mxu0 0.0
        %6737 = vmatpush1.msra.mxu0 0.0
        %6738 = vmatprep.subr.mxu0 0.0
        %6739 = vmatpush1.msra.mxu0 0.0
        %6740 = vmatprep.subr.mxu0 0.0
        %6741 = vmatpush1.msra.mxu0 0.0
        %6742 = vmatprep.subr.mxu0 0.0
        %6743 = vmatpush1.msra.mxu0 0.0
        %6744 = vmatprep.mubr.f32.mxu0 0.0
        %6745 = vmatmul.mubr.f32.gmra.mrb[0].mxu0 %v6578
        %v6746 = vpop.f32.mrb[0].mxu0
        %v6747 = vadd.f32 %v6663, %v6746
        %v6748 = vpop.f32.mrb[0].mxu0
        %v6749 = vadd.f32 %v6667, %v6748
        %6750 = vmatprep.mubr.f32.mxu0 0.0
        %6751 = vmatmul.mubr.f32.gmra.mrb[0].mxu0 %v6579
        %v6752 = vpop.f32.mrb[0].mxu0
        %v6753 = vadd.f32 %v6663, %v6752
        %v6754 = vpop.f32.mrb[0].mxu0
        %v6755 = vadd.f32 %v6667, %v6754
        %6756 = vmatprep.mubr.f32.mxu0 0.0
        %6757 = vmatmul.mubr.f32.gmra.mrb[0].mxu0 %v6580
        %v6758 = vpop.f32.mrb[0].mxu0
        %v6759 = vadd.f32 %v6663, %v6758
        %v6760 = vpop.f32.mrb[0].mxu0
        %v6761 = vadd.f32 %v6667, %v6760
        %6762 = vmatprep.mubr.f32.mxu0 0.0
        %6763 = vmatmul.mubr.f32.gmra.mrb[0].mxu0 %v6581
        %v6764 = vpop.f32.mrb[0].mxu0
        %v6765 = vadd.f32 %v6663, %v6764
        %v6766 = vpop.f32.mrb[0].mxu0
        %v6767 = vadd.f32 %v6667, %v6766
        %6768 = vmatprep.mubr.f32.mxu0 0.0
        %6769 = vmatmul.mubr.f32.gmra.mrb[0].mxu0 %v6582
        %v6770 = vpop.f32.mrb[0].mxu0
        %v6771 = vadd.f32 %v6663, %v6770
        %v6772 = vpop.f32.mrb[0].mxu0
        %v6773 = vadd.f32 %v6667, %v6772
        %6774 = vmatprep.mubr.f32.mxu0 0.0
        %6775 = vmatmul.mubr.f32.gmra.mrb[0].mxu0 %v6583
        %v6776 = vpop.f32.mrb[0].mxu0
        %v6777 = vadd.f32 %v6663, %v6776
        %v6778 = vpop.f32.mrb[0].mxu0
        %v6779 = vadd.f32 %v6667, %v6778
        %6780 = vmatprep.mubr.f32.mxu0 0.0
        %6781 = vmatmul.mubr.f32.gmra.mrb[0].mxu0 %v6584
        %v6782 = vpop.f32.mrb[0].mxu0
        %v6783 = vadd.f32 %v6663, %v6782
        %v6784 = vpop.f32.mrb[0].mxu0
        %v6785 = vadd.f32 %v6667, %v6784
        %6786 = vmatprep.mubr.f32.mxu0 0.0
        %6787 = vmatmul.mubr.f32.gmra.mrb[0].mxu0 %v6585
        %v6788 = vpop.f32.mrb[0].mxu0
        %v6789 = vadd.f32 %v6663, %v6788
        %v6790 = vpop.f32.mrb[0].mxu0
        %v6791 = vadd.f32 %v6667, %v6790
        %6792 = vmatprep.mubr.f32.mxu0 0.0
        %6793 = vmatmul.mubr.f32.gmra.mrb[0].mxu0 %v6586
        %v6794 = vpop.f32.mrb[0].mxu0
        %v6795 = vadd.f32 %v6663, %v6794
        %v6796 = vpop.f32.mrb[0].mxu0
        %v6797 = vadd.f32 %v6667, %v6796
        %6798 = vmatprep.mubr.f32.mxu0 0.0
        %6799 = vmatmul.mubr.f32.gmra.mrb[0].mxu0 %v6587
        %v6800 = vpop.f32.mrb[0].mxu0
        %v6801 = vadd.f32 %v6663, %v6800
        %v6802 = vpop.f32.mrb[0].mxu0
        %v6803 = vadd.f32 %v6667, %v6802
        %6804 = vmatprep.mubr.f32.mxu0 0.0
        %6805 = vmatmul.mubr.f32.gmra.mrb[0].mxu0 %v6588
        %v6806 = vpop.f32.mrb[0].mxu0
        %v6807 = vadd.f32 %v6663, %v6806
        %v6808 = vpop.f32.mrb[0].mxu0
        %v6809 = vadd.f32 %v6667, %v6808
        %6810 = vmatprep.mubr.f32.mxu0 0.0
        %6811 = vmatmul.mubr.f32.gmra.mrb[0].mxu0 %v6589
        %v6812 = vpop.f32.mrb[0].mxu0
        %v6813 = vadd.f32 %v6663, %v6812
        %v6814 = vpop.f32.mrb[0].mxu0
        %v6815 = vadd.f32 %v6667, %v6814
        %6816 = vmatprep.mubr.f32.mxu0 0.0
        %6817 = vmatmul.mubr.f32.gmra.mrb[0].mxu0 %v6590
        %v6818 = vpop.f32.mrb[0].mxu0
        %v6819 = vadd.f32 %v6663, %v6818
        %v6820 = vpop.f32.mrb[0].mxu0
        %v6821 = vadd.f32 %v6667, %v6820
        %6822 = vmatprep.mubr.f32.mxu0 0.0
        %6823 = vmatmul.mubr.f32.gmra.mrb[0].mxu0 %v6591
        %v6824 = vpop.f32.mrb[0].mxu0
        %v6825 = vadd.f32 %v6663, %v6824
        %v6826 = vpop.f32.mrb[0].mxu0
        %v6827 = vadd.f32 %v6667, %v6826
        %6828 = vmatprep.mubr.f32.mxu0 0.0
        %6829 = vmatmul.mubr.f32.gmra.mrb[0].mxu0 %v6592
        %v6830 = vpop.f32.mrb[0].mxu0
        %v6831 = vadd.f32 %v6663, %v6830
        %v6832 = vpop.f32.mrb[0].mxu0
        %v6833 = vadd.f32 %v6667, %v6832
        %6834 = vmatprep.mubr.f32.mxu0 0.0
        %6835 = vmatmul.mubr.f32.gmra.mrb[0].mxu0 %v6593
        %v6836 = vpop.f32.mrb[0].mxu0
        %v6837 = vadd.f32 %v6663, %v6836
        %v6838 = vpop.f32.mrb[0].mxu0
        %v6839 = vadd.f32 %v6667, %v6838
        %6840 = vdwg.mxu0
        %6841 = vmatprep.subr.mxu0 %v6597
        %6842 = vmatpush1.msra.mxu0 %v6596
        %6843 = vmatprep.subr.mxu0 %v6601
        %6844 = vmatpush1.msra.mxu0 %v6600
        %6845 = vmatprep.subr.mxu0 %v6605
        %6846 = vmatpush1.msra.mxu0 %v6604
        %6847 = vmatprep.subr.mxu0 %v6609
        %6848 = vmatpush1.msra.mxu0 %v6608
        %6849 = vmatprep.subr.mxu0 %v6613
        %6850 = vmatpush1.msra.mxu0 %v6612
        %6851 = vmatprep.subr.mxu0 %v6617
        %6852 = vmatpush1.msra.mxu0 %v6616
        %6853 = vmatprep.subr.mxu0 %v6621
        %6854 = vmatpush1.msra.mxu0 %v6620
        %6855 = vmatprep.subr.mxu0 %v6625
        %6856 = vmatpush1.msra.mxu0 %v6624
        %6857 = vmatprep.subr.mxu0 %v6629
        %6858 = vmatpush1.msra.mxu0 %v6628
        %6859 = vmatprep.subr.mxu0 %v6633
        %6860 = vmatpush1.msra.mxu0 %v6632
        %6861 = vmatprep.subr.mxu0 %v6637
        %6862 = vmatpush1.msra.mxu0 %v6636
        %6863 = vmatprep.subr.mxu0 %v6641
        %6864 = vmatpush1.msra.mxu0 %v6640
        %6865 = vmatprep.subr.mxu0 %v6645
        %6866 = vmatpush1.msra.mxu0 %v6644
        %6867 = vmatprep.subr.mxu0 %v6649
        %6868 = vmatpush1.msra.mxu0 %v6648
        %6869 = vmatprep.subr.mxu0 %v6653
        %6870 = vmatpush1.msra.mxu0 %v6652
        %6871 = vmatprep.subr.mxu0 %v6657
        %6872 = vmatpush1.msra.mxu0 %v6656
        %6873 = vmatprep.subr.mxu0 0.0
        %6874 = vmatpush1.msra.mxu0 0.0
        %6875 = vmatprep.subr.mxu0 0.0
        %6876 = vmatpush1.msra.mxu0 0.0
        %6877 = vmatprep.subr.mxu0 0.0
        %6878 = vmatpush1.msra.mxu0 0.0
        %6879 = vmatprep.subr.mxu0 0.0
        %6880 = vmatpush1.msra.mxu0 0.0
        %6881 = vmatprep.subr.mxu0 0.0
        %6882 = vmatpush1.msra.mxu0 0.0
        %6883 = vmatprep.subr.mxu0 0.0
        %6884 = vmatpush1.msra.mxu0 0.0
        %6885 = vmatprep.subr.mxu0 0.0
        %6886 = vmatpush1.msra.mxu0 0.0
        %6887 = vmatprep.subr.mxu0 0.0
        %6888 = vmatpush1.msra.mxu0 0.0
        %6889 = vmatprep.subr.mxu0 0.0
        %6890 = vmatpush1.msra.mxu0 0.0
        %6891 = vmatprep.subr.mxu0 0.0
        %6892 = vmatpush1.msra.mxu0 0.0
        %6893 = vmatprep.subr.mxu0 0.0
        %6894 = vmatpush1.msra.mxu0 0.0
        %6895 = vmatprep.subr.mxu0 0.0
        %6896 = vmatpush1.msra.mxu0 0.0
        %6897 = vmatprep.subr.mxu0 0.0
        %6898 = vmatpush1.msra.mxu0 0.0
        %6899 = vmatprep.subr.mxu0 0.0
        %6900 = vmatpush1.msra.mxu0 0.0
        %6901 = vmatprep.subr.mxu0 0.0
        %6902 = vmatpush1.msra.mxu0 0.0
        %6903 = vmatprep.subr.mxu0 0.0
        %6904 = vmatpush1.msra.mxu0 0.0
        %6905 = vmatprep.mubr.f32.mxu0 0.0
        %6906 = vmatmul.mubr.f32.gmra.mrb[0].mxu0 %v6578
        %v6907 = vpop.f32.mrb[0].mxu0
        %v6908 = vadd.f32 %v6671, %v6907
        %v6909 = vpop.f32.mrb[0].mxu0
        %v6910 = vadd.f32 %v6675, %v6909
        %6911 = vmatprep.mubr.f32.mxu0 0.0
        %6912 = vmatmul.mubr.f32.gmra.mrb[0].mxu0 %v6579
        %v6913 = vpop.f32.mrb[0].mxu0
        %v6914 = vadd.f32 %v6671, %v6913
        %v6915 = vpop.f32.mrb[0].mxu0
        %v6916 = vadd.f32 %v6675, %v6915
        %6917 = vmatprep.mubr.f32.mxu0 0.0
        %6918 = vmatmul.mubr.f32.gmra.mrb[0].mxu0 %v6580
        %v6919 = vpop.f32.mrb[0].mxu0
        %v6920 = vadd.f32 %v6671, %v6919
        %v6921 = vpop.f32.mrb[0].mxu0
        %v6922 = vadd.f32 %v6675, %v6921
        %6923 = vmatprep.mubr.f32.mxu0 0.0
        %6924 = vmatmul.mubr.f32.gmra.mrb[0].mxu0 %v6581
        %v6925 = vpop.f32.mrb[0].mxu0
        %v6926 = vadd.f32 %v6671, %v6925
        %v6927 = vpop.f32.mrb[0].mxu0
        %v6928 = vadd.f32 %v6675, %v6927
        %6929 = vmatprep.mubr.f32.mxu0 0.0
        %6930 = vmatmul.mubr.f32.gmra.mrb[0].mxu0 %v6582
        %v6931 = vpop.f32.mrb[0].mxu0
        %v6932 = vadd.f32 %v6671, %v6931
        %v6933 = vpop.f32.mrb[0].mxu0
        %v6934 = vadd.f32 %v6675, %v6933
        %6935 = vmatprep.mubr.f32.mxu0 0.0
        %6936 = vmatmul.mubr.f32.gmra.mrb[0].mxu0 %v6583
        %v6937 = vpop.f32.mrb[0].mxu0
        %v6938 = vadd.f32 %v6671, %v6937
        %v6939 = vpop.f32.mrb[0].mxu0
        %v6940 = vadd.f32 %v6675, %v6939
        %6941 = vmatprep.mubr.f32.mxu0 0.0
        %6942 = vmatmul.mubr.f32.gmra.mrb[0].mxu0 %v6584
        %v6943 = vpop.f32.mrb[0].mxu0
        %v6944 = vadd.f32 %v6671, %v6943
        %v6945 = vpop.f32.mrb[0].mxu0
        %v6946 = vadd.f32 %v6675, %v6945
        %6947 = vmatprep.mubr.f32.mxu0 0.0
        %6948 = vmatmul.mubr.f32.gmra.mrb[0].mxu0 %v6585
        %v6949 = vpop.f32.mrb[0].mxu0
        %v6950 = vadd.f32 %v6671, %v6949
        %v6951 = vpop.f32.mrb[0].mxu0
        %v6952 = vadd.f32 %v6675, %v6951
        %6953 = vmatprep.mubr.f32.mxu0 0.0
        %6954 = vmatmul.mubr.f32.gmra.mrb[0].mxu0 %v6586
        %v6955 = vpop.f32.mrb[0].mxu0
        %v6956 = vadd.f32 %v6671, %v6955
        %v6957 = vpop.f32.mrb[0].mxu0
        %v6958 = vadd.f32 %v6675, %v6957
        %6959 = vmatprep.mubr.f32.mxu0 0.0
        %6960 = vmatmul.mubr.f32.gmra.mrb[0].mxu0 %v6587
        %v6961 = vpop.f32.mrb[0].mxu0
        %v6962 = vadd.f32 %v6671, %v6961
        %v6963 = vpop.f32.mrb[0].mxu0
        %v6964 = vadd.f32 %v6675, %v6963
        %6965 = vmatprep.mubr.f32.mxu0 0.0
        %6966 = vmatmul.mubr.f32.gmra.mrb[0].mxu0 %v6588
        %v6967 = vpop.f32.mrb[0].mxu0
        %v6968 = vadd.f32 %v6671, %v6967
        %v6969 = vpop.f32.mrb[0].mxu0
        %v6970 = vadd.f32 %v6675, %v6969
        %6971 = vmatprep.mubr.f32.mxu0 0.0
        %6972 = vmatmul.mubr.f32.gmra.mrb[0].mxu0 %v6589
        %v6973 = vpop.f32.mrb[0].mxu0
        %v6974 = vadd.f32 %v6671, %v6973
        %v6975 = vpop.f32.mrb[0].mxu0
        %v6976 = vadd.f32 %v6675, %v6975
        %6977 = vmatprep.mubr.f32.mxu0 0.0
        %6978 = vmatmul.mubr.f32.gmra.mrb[0].mxu0 %v6590
        %v6979 = vpop.f32.mrb[0].mxu0
        %v6980 = vadd.f32 %v6671, %v6979
        %v6981 = vpop.f32.mrb[0].mxu0
        %v6982 = vadd.f32 %v6675, %v6981
        %6983 = vmatprep.mubr.f32.mxu0 0.0
        %6984 = vmatmul.mubr.f32.gmra.mrb[0].mxu0 %v6591
        %v6985 = vpop.f32.mrb[0].mxu0
        %v6986 = vadd.f32 %v6671, %v6985
        %v6987 = vpop.f32.mrb[0].mxu0
        %v6988 = vadd.f32 %v6675, %v6987
        %6989 = vmatprep.mubr.f32.mxu0 0.0
        %6990 = vmatmul.mubr.f32.gmra.mrb[0].mxu0 %v6592
        %v6991 = vpop.f32.mrb[0].mxu0
        %v6992 = vadd.f32 %v6671, %v6991
        %v6993 = vpop.f32.mrb[0].mxu0
        %v6994 = vadd.f32 %v6675, %v6993
        %6995 = vmatprep.mubr.f32.mxu0 0.0
        %6996 = vmatmul.mubr.f32.gmra.mrb[0].mxu0 %v6593
        %v6997 = vpop.f32.mrb[0].mxu0
        %v6998 = vadd.f32 %v6671, %v6997
        %v6999 = vpop.f32.mrb[0].mxu0
        %v7000 = vadd.f32 %v6675, %v6999
        %7001 = vdwg.mxu0
        %v7002 = vmul.f32 %v6747, 0.5
        %v7003 = vmul.f32 %v6749, 0.5
        %v7004 = vmul.f32 %v6908, 0.5
        %v7005 = vmul.f32 %v6910, 0.5
        %v7006 = vmul.f32 %v6753, 0.5
        %v7007 = vmul.f32 %v6755, 0.5
        %v7008 = vmul.f32 %v6914, 0.5
        %v7009 = vmul.f32 %v6916, 0.5
        %v7010 = vmul.f32 %v6759, 0.5
        %v7011 = vmul.f32 %v6761, 0.5
        %v7012 = vmul.f32 %v6920, 0.5
        %v7013 = vmul.f32 %v6922, 0.5
        %v7014 = vmul.f32 %v6765, 0.5
        %v7015 = vmul.f32 %v6767, 0.5
        %v7016 = vmul.f32 %v6926, 0.5
        %v7017 = vmul.f32 %v6928, 0.5
        %v7018 = vmul.f32 %v6771, 0.5
        %v7019 = vmul.f32 %v6773, 0.5
        %v7020 = vmul.f32 %v6932, 0.5
        %v7021 = vmul.f32 %v6934, 0.5
        %v7022 = vmul.f32 %v6777, 0.5
        %v7023 = vmul.f32 %v6779, 0.5
        %v7024 = vmul.f32 %v6938, 0.5
        %v7025 = vmul.f32 %v6940, 0.5
        %v7026 = vmul.f32 %v6783, 0.5
        %v7027 = vmul.f32 %v6785, 0.5
        %v7028 = vmul.f32 %v6944, 0.5
        %v7029 = vmul.f32 %v6946, 0.5
        %v7030 = vmul.f32 %v6789, 0.5
        %v7031 = vmul.f32 %v6791, 0.5
        %v7032 = vmul.f32 %v6950, 0.5
        %v7033 = vmul.f32 %v6952, 0.5
        %v7034 = vmul.f32 %v6795, 0.5
        %v7035 = vmul.f32 %v6797, 0.5
        %v7036 = vmul.f32 %v6956, 0.5
        %v7037 = vmul.f32 %v6958, 0.5
        %v7038 = vmul.f32 %v6801, 0.5
        %v7039 = vmul.f32 %v6803, 0.5
        %v7040 = vmul.f32 %v6962, 0.5
        %v7041 = vmul.f32 %v6964, 0.5
        %v7042 = vmul.f32 %v6807, 0.5
        %v7043 = vmul.f32 %v6809, 0.5
        %v7044 = vmul.f32 %v6968, 0.5
        %v7045 = vmul.f32 %v6970, 0.5
        %v7046 = vmul.f32 %v6813, 0.5
        %v7047 = vmul.f32 %v6815, 0.5
        %v7048 = vmul.f32 %v6974, 0.5
        %v7049 = vmul.f32 %v6976, 0.5
        %v7050 = vmul.f32 %v6819, 0.5
        %v7051 = vmul.f32 %v6821, 0.5
        %v7052 = vmul.f32 %v6980, 0.5
        %v7053 = vmul.f32 %v6982, 0.5
        %v7054 = vmul.f32 %v6825, 0.5
        %v7055 = vmul.f32 %v6827, 0.5
        %v7056 = vmul.f32 %v6986, 0.5
        %v7057 = vmul.f32 %v6988, 0.5
        %v7058 = vmul.f32 %v6831, 0.5
        %v7059 = vmul.f32 %v6833, 0.5
        %v7060 = vmul.f32 %v6992, 0.5
        %v7061 = vmul.f32 %v6994, 0.5
        %v7062 = vmul.f32 %v6837, 0.5
        %v7063 = vmul.f32 %v6839, 0.5
        %v7064 = vmul.f32 %v6998, 0.5
        %v7065 = vmul.f32 %v7000, 0.5
        %v7066 = vmul.f32 %v6747, 0.044715
        %v7067 = vmul.f32 %v6749, 0.044715
        %v7068 = vmul.f32 %v6908, 0.044715
        %v7069 = vmul.f32 %v6910, 0.044715
        %v7070 = vmul.f32 %v6753, 0.044715
        %v7071 = vmul.f32 %v6755, 0.044715
        %v7072 = vmul.f32 %v6914, 0.044715
        %v7073 = vmul.f32 %v6916, 0.044715
        %v7074 = vmul.f32 %v6759, 0.044715
        %v7075 = vmul.f32 %v6761, 0.044715
        %v7076 = vmul.f32 %v6920, 0.044715
        %v7077 = vmul.f32 %v6922, 0.044715
        %v7078 = vmul.f32 %v6765, 0.044715
        %v7079 = vmul.f32 %v6767, 0.044715
        %v7080 = vmul.f32 %v6926, 0.044715
        %v7081 = vmul.f32 %v6928, 0.044715
        %v7082 = vmul.f32 %v6771, 0.044715
        %v7083 = vmul.f32 %v6773, 0.044715
        %v7084 = vmul.f32 %v6932, 0.044715
        %v7085 = vmul.f32 %v6934, 0.044715
        %v7086 = vmul.f32 %v6777, 0.044715
        %v7087 = vmul.f32 %v6779, 0.044715
        %v7088 = vmul.f32 %v6938, 0.044715
        %v7089 = vmul.f32 %v6940, 0.044715
        %v7090 = vmul.f32 %v6783, 0.044715
        %v7091 = vmul.f32 %v6785, 0.044715
        %v7092 = vmul.f32 %v6944, 0.044715
        %v7093 = vmul.f32 %v6946, 0.044715
        %v7094 = vmul.f32 %v6789, 0.044715
        %v7095 = vmul.f32 %v6791, 0.044715
        %v7096 = vmul.f32 %v6950, 0.044715
        %v7097 = vmul.f32 %v6952, 0.044715
        %v7098 = vmul.f32 %v6795, 0.044715
        %v7099 = vmul.f32 %v6797, 0.044715
        %v7100 = vmul.f32 %v6956, 0.044715
        %v7101 = vmul.f32 %v6958, 0.044715
        %v7102 = vmul.f32 %v6801, 0.044715
        %v7103 = vmul.f32 %v6803, 0.044715
        %v7104 = vmul.f32 %v6962, 0.044715
        %v7105 = vmul.f32 %v6964, 0.044715
        %v7106 = vmul.f32 %v6807, 0.044715
        %v7107 = vmul.f32 %v6809, 0.044715
        %v7108 = vmul.f32 %v6968, 0.044715
        %v7109 = vmul.f32 %v6970, 0.044715
        %v7110 = vmul.f32 %v6813, 0.044715
        %v7111 = vmul.f32 %v6815, 0.044715
        %v7112 = vmul.f32 %v6974, 0.044715
        %v7113 = vmul.f32 %v6976, 0.044715
        %v7114 = vmul.f32 %v6819, 0.044715
        %v7115 = vmul.f32 %v6821, 0.044715
        %v7116 = vmul.f32 %v6980, 0.044715
        %v7117 = vmul.f32 %v6982, 0.044715
        %v7118 = vmul.f32 %v6825, 0.044715
        %v7119 = vmul.f32 %v6827, 0.044715
        %v7120 = vmul.f32 %v6986, 0.044715
        %v7121 = vmul.f32 %v6988, 0.044715
        %v7122 = vmul.f32 %v6831, 0.044715
        %v7123 = vmul.f32 %v6833, 0.044715
        %v7124 = vmul.f32 %v6992, 0.044715
        %v7125 = vmul.f32 %v6994, 0.044715
        %v7126 = vmul.f32 %v6837, 0.044715
        %v7127 = vmul.f32 %v6839, 0.044715
        %v7128 = vmul.f32 %v6998, 0.044715
        %v7129 = vmul.f32 %v7000, 0.044715
        %v7130 = vmul.f32 %v7066, %v6747
        %v7131 = vmul.f32 %v7067, %v6749
        %v7132 = vmul.f32 %v7068, %v6908
        %v7133 = vmul.f32 %v7069, %v6910
        %v7134 = vmul.f32 %v7070, %v6753
        %v7135 = vmul.f32 %v7071, %v6755
        %v7136 = vmul.f32 %v7072, %v6914
        %v7137 = vmul.f32 %v7073, %v6916
        %v7138 = vmul.f32 %v7074, %v6759
        %v7139 = vmul.f32 %v7075, %v6761
        %v7140 = vmul.f32 %v7076, %v6920
        %v7141 = vmul.f32 %v7077, %v6922
        %v7142 = vmul.f32 %v7078, %v6765
        %v7143 = vmul.f32 %v7079, %v6767
        %v7144 = vmul.f32 %v7080, %v6926
        %v7145 = vmul.f32 %v7081, %v6928
        %v7146 = vmul.f32 %v7082, %v6771
        %v7147 = vmul.f32 %v7083, %v6773
        %v7148 = vmul.f32 %v7084, %v6932
        %v7149 = vmul.f32 %v7085, %v6934
        %v7150 = vmul.f32 %v7086, %v6777
        %v7151 = vmul.f32 %v7087, %v6779
        %v7152 = vmul.f32 %v7088, %v6938
        %v7153 = vmul.f32 %v7089, %v6940
        %v7154 = vmul.f32 %v7090, %v6783
        %v7155 = vmul.f32 %v7091, %v6785
        %v7156 = vmul.f32 %v7092, %v6944
        %v7157 = vmul.f32 %v7093, %v6946
        %v7158 = vmul.f32 %v7094, %v6789
        %v7159 = vmul.f32 %v7095, %v6791
        %v7160 = vmul.f32 %v7096, %v6950
        %v7161 = vmul.f32 %v7097, %v6952
        %v7162 = vmul.f32 %v7098, %v6795
        %v7163 = vmul.f32 %v7099, %v6797
        %v7164 = vmul.f32 %v7100, %v6956
        %v7165 = vmul.f32 %v7101, %v6958
        %v7166 = vmul.f32 %v7102, %v6801
        %v7167 = vmul.f32 %v7103, %v6803
        %v7168 = vmul.f32 %v7104, %v6962
        %v7169 = vmul.f32 %v7105, %v6964
        %v7170 = vmul.f32 %v7106, %v6807
        %v7171 = vmul.f32 %v7107, %v6809
        %v7172 = vmul.f32 %v7108, %v6968
        %v7173 = vmul.f32 %v7109, %v6970
        %v7174 = vmul.f32 %v7110, %v6813
        %v7175 = vmul.f32 %v7111, %v6815
        %v7176 = vmul.f32 %v7112, %v6974
        %v7177 = vmul.f32 %v7113, %v6976
        %v7178 = vmul.f32 %v7114, %v6819
        %v7179 = vmul.f32 %v7115, %v6821
        %v7180 = vmul.f32 %v7116, %v6980
        %v7181 = vmul.f32 %v7117, %v6982
        %v7182 = vmul.f32 %v7118, %v6825
        %v7183 = vmul.f32 %v7119, %v6827
        %v7184 = vmul.f32 %v7120, %v6986
        %v7185 = vmul.f32 %v7121, %v6988
        %v7186 = vmul.f32 %v7122, %v6831
        %v7187 = vmul.f32 %v7123, %v6833
        %v7188 = vmul.f32 %v7124, %v6992
        %v7189 = vmul.f32 %v7125, %v6994
        %v7190 = vmul.f32 %v7126, %v6837
        %v7191 = vmul.f32 %v7127, %v6839
        %v7192 = vmul.f32 %v7128, %v6998
        %v7193 = vmul.f32 %v7129, %v7000
        %v7194 = vmul.f32 %v7130, %v6747
        %v7195 = vmul.f32 %v7131, %v6749
        %v7196 = vmul.f32 %v7132, %v6908
        %v7197 = vmul.f32 %v7133, %v6910
        %v7198 = vmul.f32 %v7134, %v6753
        %v7199 = vmul.f32 %v7135, %v6755
        %v7200 = vmul.f32 %v7136, %v6914
        %v7201 = vmul.f32 %v7137, %v6916
        %v7202 = vmul.f32 %v7138, %v6759
        %v7203 = vmul.f32 %v7139, %v6761
        %v7204 = vmul.f32 %v7140, %v6920
        %v7205 = vmul.f32 %v7141, %v6922
        %v7206 = vmul.f32 %v7142, %v6765
        %v7207 = vmul.f32 %v7143, %v6767
        %v7208 = vmul.f32 %v7144, %v6926
        %v7209 = vmul.f32 %v7145, %v6928
        %v7210 = vmul.f32 %v7146, %v6771
        %v7211 = vmul.f32 %v7147, %v6773
        %v7212 = vmul.f32 %v7148, %v6932
        %v7213 = vmul.f32 %v7149, %v6934
        %v7214 = vmul.f32 %v7150, %v6777
        %v7215 = vmul.f32 %v7151, %v6779
        %v7216 = vmul.f32 %v7152, %v6938
        %v7217 = vmul.f32 %v7153, %v6940
        %v7218 = vmul.f32 %v7154, %v6783
        %v7219 = vmul.f32 %v7155, %v6785
        %v7220 = vmul.f32 %v7156, %v6944
        %v7221 = vmul.f32 %v7157, %v6946
        %v7222 = vmul.f32 %v7158, %v6789
        %v7223 = vmul.f32 %v7159, %v6791
        %v7224 = vmul.f32 %v7160, %v6950
        %v7225 = vmul.f32 %v7161, %v6952
        %v7226 = vmul.f32 %v7162, %v6795
        %v7227 = vmul.f32 %v7163, %v6797
        %v7228 = vmul.f32 %v7164, %v6956
        %v7229 = vmul.f32 %v7165, %v6958
        %v7230 = vmul.f32 %v7166, %v6801
        %v7231 = vmul.f32 %v7167, %v6803
        %v7232 = vmul.f32 %v7168, %v6962
        %v7233 = vmul.f32 %v7169, %v6964
        %v7234 = vmul.f32 %v7170, %v6807
        %v7235 = vmul.f32 %v7171, %v6809
        %v7236 = vmul.f32 %v7172, %v6968
        %v7237 = vmul.f32 %v7173, %v6970
        %v7238 = vmul.f32 %v7174, %v6813
        %v7239 = vmul.f32 %v7175, %v6815
        %v7240 = vmul.f32 %v7176, %v6974
        %v7241 = vmul.f32 %v7177, %v6976
        %v7242 = vmul.f32 %v7178, %v6819
        %v7243 = vmul.f32 %v7179, %v6821
        %v7244 = vmul.f32 %v7180, %v6980
        %v7245 = vmul.f32 %v7181, %v6982
        %v7246 = vmul.f32 %v7182, %v6825
        %v7247 = vmul.f32 %v7183, %v6827
        %v7248 = vmul.f32 %v7184, %v6986
        %v7249 = vmul.f32 %v7185, %v6988
        %v7250 = vmul.f32 %v7186, %v6831
        %v7251 = vmul.f32 %v7187, %v6833
        %v7252 = vmul.f32 %v7188, %v6992
        %v7253 = vmul.f32 %v7189, %v6994
        %v7254 = vmul.f32 %v7190, %v6837
        %v7255 = vmul.f32 %v7191, %v6839
        %v7256 = vmul.f32 %v7192, %v6998
        %v7257 = vmul.f32 %v7193, %v7000
        %v7258 = vadd.f32 %v6747, %v7194
        %v7259 = vadd.f32 %v6749, %v7195
        %v7260 = vadd.f32 %v6908, %v7196
        %v7261 = vadd.f32 %v6910, %v7197
        %v7262 = vadd.f32 %v6753, %v7198
        %v7263 = vadd.f32 %v6755, %v7199
        %v7264 = vadd.f32 %v6914, %v7200
        %v7265 = vadd.f32 %v6916, %v7201
        %v7266 = vadd.f32 %v6759, %v7202
        %v7267 = vadd.f32 %v6761, %v7203
        %v7268 = vadd.f32 %v6920, %v7204
        %v7269 = vadd.f32 %v6922, %v7205
        %v7270 = vadd.f32 %v6765, %v7206
        %v7271 = vadd.f32 %v6767, %v7207
        %v7272 = vadd.f32 %v6926, %v7208
        %v7273 = vadd.f32 %v6928, %v7209
        %v7274 = vadd.f32 %v6771, %v7210
        %v7275 = vadd.f32 %v6773, %v7211
        %v7276 = vadd.f32 %v6932, %v7212
        %v7277 = vadd.f32 %v6934, %v7213
        %v7278 = vadd.f32 %v6777, %v7214
        %v7279 = vadd.f32 %v6779, %v7215
        %v7280 = vadd.f32 %v6938, %v7216
        %v7281 = vadd.f32 %v6940, %v7217
        %v7282 = vadd.f32 %v6783, %v7218
        %v7283 = vadd.f32 %v6785, %v7219
        %v7284 = vadd.f32 %v6944, %v7220
        %v7285 = vadd.f32 %v6946, %v7221
        %v7286 = vadd.f32 %v6789, %v7222
        %v7287 = vadd.f32 %v6791, %v7223
        %v7288 = vadd.f32 %v6950, %v7224
        %v7289 = vadd.f32 %v6952, %v7225
        %v7290 = vadd.f32 %v6795, %v7226
        %v7291 = vadd.f32 %v6797, %v7227
        %v7292 = vadd.f32 %v6956, %v7228
        %v7293 = vadd.f32 %v6958, %v7229
        %v7294 = vadd.f32 %v6801, %v7230
        %v7295 = vadd.f32 %v6803, %v7231
        %v7296 = vadd.f32 %v6962, %v7232
        %v7297 = vadd.f32 %v6964, %v7233
        %v7298 = vadd.f32 %v6807, %v7234
        %v7299 = vadd.f32 %v6809, %v7235
        %v7300 = vadd.f32 %v6968, %v7236
        %v7301 = vadd.f32 %v6970, %v7237
        %v7302 = vadd.f32 %v6813, %v7238
        %v7303 = vadd.f32 %v6815, %v7239
        %v7304 = vadd.f32 %v6974, %v7240
        %v7305 = vadd.f32 %v6976, %v7241
        %v7306 = vadd.f32 %v6819, %v7242
        %v7307 = vadd.f32 %v6821, %v7243
        %v7308 = vadd.f32 %v6980, %v7244
        %v7309 = vadd.f32 %v6982, %v7245
        %v7310 = vadd.f32 %v6825, %v7246
        %v7311 = vadd.f32 %v6827, %v7247
        %v7312 = vadd.f32 %v6986, %v7248
        %v7313 = vadd.f32 %v6988, %v7249
        %v7314 = vadd.f32 %v6831, %v7250
        %v7315 = vadd.f32 %v6833, %v7251
        %v7316 = vadd.f32 %v6992, %v7252
        %v7317 = vadd.f32 %v6994, %v7253
        %v7318 = vadd.f32 %v6837, %v7254
        %v7319 = vadd.f32 %v6839, %v7255
        %v7320 = vadd.f32 %v6998, %v7256
        %v7321 = vadd.f32 %v7000, %v7257
        %v7322 = vmul.f32 %v7258, 0.7978846
        %v7323 = vmul.f32 %v7259, 0.7978846
        %v7324 = vmul.f32 %v7260, 0.7978846
        %v7325 = vmul.f32 %v7261, 0.7978846
        %v7326 = vmul.f32 %v7262, 0.7978846
        %v7327 = vmul.f32 %v7263, 0.7978846
        %v7328 = vmul.f32 %v7264, 0.7978846
        %v7329 = vmul.f32 %v7265, 0.7978846
        %v7330 = vmul.f32 %v7266, 0.7978846
        %v7331 = vmul.f32 %v7267, 0.7978846
        %v7332 = vmul.f32 %v7268, 0.7978846
        %v7333 = vmul.f32 %v7269, 0.7978846
        %v7334 = vmul.f32 %v7270, 0.7978846
        %v7335 = vmul.f32 %v7271, 0.7978846
        %v7336 = vmul.f32 %v7272, 0.7978846
        %v7337 = vmul.f32 %v7273, 0.7978846
        %v7338 = vmul.f32 %v7274, 0.7978846
        %v7339 = vmul.f32 %v7275, 0.7978846
        %v7340 = vmul.f32 %v7276, 0.7978846
        %v7341 = vmul.f32 %v7277, 0.7978846
        %v7342 = vmul.f32 %v7278, 0.7978846
        %v7343 = vmul.f32 %v7279, 0.7978846
        %v7344 = vmul.f32 %v7280, 0.7978846
        %v7345 = vmul.f32 %v7281, 0.7978846
        %v7346 = vmul.f32 %v7282, 0.7978846
        %v7347 = vmul.f32 %v7283, 0.7978846
        %v7348 = vmul.f32 %v7284, 0.7978846
        %v7349 = vmul.f32 %v7285, 0.7978846
        %v7350 = vmul.f32 %v7286, 0.7978846
        %v7351 = vmul.f32 %v7287, 0.7978846
        %v7352 = vmul.f32 %v7288, 0.7978846
        %v7353 = vmul.f32 %v7289, 0.7978846
        %v7354 = vmul.f32 %v7290, 0.7978846
        %v7355 = vmul.f32 %v7291, 0.7978846
        %v7356 = vmul.f32 %v7292, 0.7978846
        %v7357 = vmul.f32 %v7293, 0.7978846
        %v7358 = vmul.f32 %v7294, 0.7978846
        %v7359 = vmul.f32 %v7295, 0.7978846
        %v7360 = vmul.f32 %v7296, 0.7978846
        %v7361 = vmul.f32 %v7297, 0.7978846
        %v7362 = vmul.f32 %v7298, 0.7978846
        %v7363 = vmul.f32 %v7299, 0.7978846
        %v7364 = vmul.f32 %v7300, 0.7978846
        %v7365 = vmul.f32 %v7301, 0.7978846
        %v7366 = vmul.f32 %v7302, 0.7978846
        %v7367 = vmul.f32 %v7303, 0.7978846
        %v7368 = vmul.f32 %v7304, 0.7978846
        %v7369 = vmul.f32 %v7305, 0.7978846
        %v7370 = vmul.f32 %v7306, 0.7978846
        %v7371 = vmul.f32 %v7307, 0.7978846
        %v7372 = vmul.f32 %v7308, 0.7978846
        %v7373 = vmul.f32 %v7309, 0.7978846
        %v7374 = vmul.f32 %v7310, 0.7978846
        %v7375 = vmul.f32 %v7311, 0.7978846
        %v7376 = vmul.f32 %v7312, 0.7978846
        %v7377 = vmul.f32 %v7313, 0.7978846
        %v7378 = vmul.f32 %v7314, 0.7978846
        %v7379 = vmul.f32 %v7315, 0.7978846
        %v7380 = vmul.f32 %v7316, 0.7978846
        %v7381 = vmul.f32 %v7317, 0.7978846
        %v7382 = vmul.f32 %v7318, 0.7978846
        %v7383 = vmul.f32 %v7319, 0.7978846
        %v7384 = vmul.f32 %v7320, 0.7978846
        %v7385 = vmul.f32 %v7321, 0.7978846
        %v7386 = vtanh.pop %v7322
        %v7387 = vtanh.pop %v7323
        %v7388 = vtanh.pop %v7324
        %v7389 = vtanh.pop %v7325
        %v7390 = vtanh.pop %v7326
        %v7391 = vtanh.pop %v7327
        %v7392 = vtanh.pop %v7328
        %v7393 = vtanh.pop %v7329
        %v7394 = vtanh.pop %v7330
        %v7395 = vtanh.pop %v7331
        %v7396 = vtanh.pop %v7332
        %v7397 = vtanh.pop %v7333
        %v7398 = vtanh.pop %v7334
        %v7399 = vtanh.pop %v7335
        %v7400 = vtanh.pop %v7336
        %v7401 = vtanh.pop %v7337
        %v7402 = vtanh.pop %v7338
        %v7403 = vtanh.pop %v7339
        %v7404 = vtanh.pop %v7340
        %v7405 = vtanh.pop %v7341
        %v7406 = vtanh.pop %v7342
        %v7407 = vtanh.pop %v7343
        %v7408 = vtanh.pop %v7344
        %v7409 = vtanh.pop %v7345
        %v7410 = vtanh.pop %v7346
        %v7411 = vtanh.pop %v7347
        %v7412 = vtanh.pop %v7348
        %v7413 = vtanh.pop %v7349
        %v7414 = vtanh.pop %v7350
        %v7415 = vtanh.pop %v7351
        %v7416 = vtanh.pop %v7352
        %v7417 = vtanh.pop %v7353
        %v7418 = vtanh.pop %v7354
        %v7419 = vtanh.pop %v7355
        %v7420 = vtanh.pop %v7356
        %v7421 = vtanh.pop %v7357
        %v7422 = vtanh.pop %v7358
        %v7423 = vtanh.pop %v7359
        %v7424 = vtanh.pop %v7360
        %v7425 = vtanh.pop %v7361
        %v7426 = vtanh.pop %v7362
        %v7427 = vtanh.pop %v7363
        %v7428 = vtanh.pop %v7364
        %v7429 = vtanh.pop %v7365
        %v7430 = vtanh.pop %v7366
        %v7431 = vtanh.pop %v7367
        %v7432 = vtanh.pop %v7368
        %v7433 = vtanh.pop %v7369
        %v7434 = vtanh.pop %v7370
        %v7435 = vtanh.pop %v7371
        %v7436 = vtanh.pop %v7372
        %v7437 = vtanh.pop %v7373
        %v7438 = vtanh.pop %v7374
        %v7439 = vtanh.pop %v7375
        %v7440 = vtanh.pop %v7376
        %v7441 = vtanh.pop %v7377
        %v7442 = vtanh.pop %v7378
        %v7443 = vtanh.pop %v7379
        %v7444 = vtanh.pop %v7380
        %v7445 = vtanh.pop %v7381
        %v7446 = vtanh.pop %v7382
        %v7447 = vtanh.pop %v7383
        %v7448 = vtanh.pop %v7384
        %v7449 = vtanh.pop %v7385
        %v7450 = vadd.f32 %v7386, 1.0
        %v7451 = vadd.f32 %v7387, 1.0
        %v7452 = vadd.f32 %v7388, 1.0
        %v7453 = vadd.f32 %v7389, 1.0
        %v7454 = vadd.f32 %v7390, 1.0
        %v7455 = vadd.f32 %v7391, 1.0
        %v7456 = vadd.f32 %v7392, 1.0
        %v7457 = vadd.f32 %v7393, 1.0
        %v7458 = vadd.f32 %v7394, 1.0
        %v7459 = vadd.f32 %v7395, 1.0
        %v7460 = vadd.f32 %v7396, 1.0
        %v7461 = vadd.f32 %v7397, 1.0
        %v7462 = vadd.f32 %v7398, 1.0
        %v7463 = vadd.f32 %v7399, 1.0
        %v7464 = vadd.f32 %v7400, 1.0
        %v7465 = vadd.f32 %v7401, 1.0
        %v7466 = vadd.f32 %v7402, 1.0
        %v7467 = vadd.f32 %v7403, 1.0
        %v7468 = vadd.f32 %v7404, 1.0
        %v7469 = vadd.f32 %v7405, 1.0
        %v7470 = vadd.f32 %v7406, 1.0
        %v7471 = vadd.f32 %v7407, 1.0
        %v7472 = vadd.f32 %v7408, 1.0
        %v7473 = vadd.f32 %v7409, 1.0
        %v7474 = vadd.f32 %v7410, 1.0
        %v7475 = vadd.f32 %v7411, 1.0
        %v7476 = vadd.f32 %v7412, 1.0
        %v7477 = vadd.f32 %v7413, 1.0
        %v7478 = vadd.f32 %v7414, 1.0
        %v7479 = vadd.f32 %v7415, 1.0
        %v7480 = vadd.f32 %v7416, 1.0
        %v7481 = vadd.f32 %v7417, 1.0
        %v7482 = vadd.f32 %v7418, 1.0
        %v7483 = vadd.f32 %v7419, 1.0
        %v7484 = vadd.f32 %v7420, 1.0
        %v7485 = vadd.f32 %v7421, 1.0
        %v7486 = vadd.f32 %v7422, 1.0
        %v7487 = vadd.f32 %v7423, 1.0
        %v7488 = vadd.f32 %v7424, 1.0
        %v7489 = vadd.f32 %v7425, 1.0
        %v7490 = vadd.f32 %v7426, 1.0
        %v7491 = vadd.f32 %v7427, 1.0
        %v7492 = vadd.f32 %v7428, 1.0
        %v7493 = vadd.f32 %v7429, 1.0
        %v7494 = vadd.f32 %v7430, 1.0
        %v7495 = vadd.f32 %v7431, 1.0
        %v7496 = vadd.f32 %v7432, 1.0
        %v7497 = vadd.f32 %v7433, 1.0
        %v7498 = vadd.f32 %v7434, 1.0
        %v7499 = vadd.f32 %v7435, 1.0
        %v7500 = vadd.f32 %v7436, 1.0
        %v7501 = vadd.f32 %v7437, 1.0
        %v7502 = vadd.f32 %v7438, 1.0
        %v7503 = vadd.f32 %v7439, 1.0
        %v7504 = vadd.f32 %v7440, 1.0
        %v7505 = vadd.f32 %v7441, 1.0
        %v7506 = vadd.f32 %v7442, 1.0
        %v7507 = vadd.f32 %v7443, 1.0
        %v7508 = vadd.f32 %v7444, 1.0
        %v7509 = vadd.f32 %v7445, 1.0
        %v7510 = vadd.f32 %v7446, 1.0
        %v7511 = vadd.f32 %v7447, 1.0
        %v7512 = vadd.f32 %v7448, 1.0
        %v7513 = vadd.f32 %v7449, 1.0
        %v7514 = vmul.f32 %v7002, %v7450
        %v7515 = vmul.f32 %v7003, %v7451
        %v7516 = vmul.f32 %v7004, %v7452
        %v7517 = vmul.f32 %v7005, %v7453
        %v7518 = vmul.f32 %v7006, %v7454
        %v7519 = vmul.f32 %v7007, %v7455
        %v7520 = vmul.f32 %v7008, %v7456
        %v7521 = vmul.f32 %v7009, %v7457
        %v7522 = vmul.f32 %v7010, %v7458
        %v7523 = vmul.f32 %v7011, %v7459
        %v7524 = vmul.f32 %v7012, %v7460
        %v7525 = vmul.f32 %v7013, %v7461
        %v7526 = vmul.f32 %v7014, %v7462
        %v7527 = vmul.f32 %v7015, %v7463
        %v7528 = vmul.f32 %v7016, %v7464
        %v7529 = vmul.f32 %v7017, %v7465
        %v7530 = vmul.f32 %v7018, %v7466
        %v7531 = vmul.f32 %v7019, %v7467
        %v7532 = vmul.f32 %v7020, %v7468
        %v7533 = vmul.f32 %v7021, %v7469
        %v7534 = vmul.f32 %v7022, %v7470
        %v7535 = vmul.f32 %v7023, %v7471
        %v7536 = vmul.f32 %v7024, %v7472
        %v7537 = vmul.f32 %v7025, %v7473
        %v7538 = vmul.f32 %v7026, %v7474
        %v7539 = vmul.f32 %v7027, %v7475
        %v7540 = vmul.f32 %v7028, %v7476
        %v7541 = vmul.f32 %v7029, %v7477
        %v7542 = vmul.f32 %v7030, %v7478
        %v7543 = vmul.f32 %v7031, %v7479
        %v7544 = vmul.f32 %v7032, %v7480
        %v7545 = vmul.f32 %v7033, %v7481
        %v7546 = vmul.f32 %v7034, %v7482
        %v7547 = vmul.f32 %v7035, %v7483
        %v7548 = vmul.f32 %v7036, %v7484
        %v7549 = vmul.f32 %v7037, %v7485
        %v7550 = vmul.f32 %v7038, %v7486
        %v7551 = vmul.f32 %v7039, %v7487
        %v7552 = vmul.f32 %v7040, %v7488
        %v7553 = vmul.f32 %v7041, %v7489
        %v7554 = vmul.f32 %v7042, %v7490
        %v7555 = vmul.f32 %v7043, %v7491
        %v7556 = vmul.f32 %v7044, %v7492
        %v7557 = vmul.f32 %v7045, %v7493
        %v7558 = vmul.f32 %v7046, %v7494
        %v7559 = vmul.f32 %v7047, %v7495
        %v7560 = vmul.f32 %v7048, %v7496
        %v7561 = vmul.f32 %v7049, %v7497
        %v7562 = vmul.f32 %v7050, %v7498
        %v7563 = vmul.f32 %v7051, %v7499
        %v7564 = vmul.f32 %v7052, %v7500
        %v7565 = vmul.f32 %v7053, %v7501
        %v7566 = vmul.f32 %v7054, %v7502
        %v7567 = vmul.f32 %v7055, %v7503
        %v7568 = vmul.f32 %v7056, %v7504
        %v7569 = vmul.f32 %v7057, %v7505
        %v7570 = vmul.f32 %v7058, %v7506
        %v7571 = vmul.f32 %v7059, %v7507
        %v7572 = vmul.f32 %v7060, %v7508
        %v7573 = vmul.f32 %v7061, %v7509
        %v7574 = vmul.f32 %v7062, %v7510
        %v7575 = vmul.f32 %v7063, %v7511
        %v7576 = vmul.f32 %v7064, %v7512
        %v7577 = vmul.f32 %v7065, %v7513
        %v7578 = vld [vmem:[#allocation7] sm:$0xff]
        %v7579 = vld [vmem:[#allocation7 + $0x8] sm:$0xff]
        %v7580 = vld [vmem:[#allocation7 + $0x10] sm:$0xff]
        %v7581 = vld [vmem:[#allocation7 + $0x18] sm:$0xff]
        %v7582 = vld [vmem:[#allocation7 + $0x20] sm:$0xff]
        %v7583 = vld [vmem:[#allocation7 + $0x28] sm:$0xff]
        %v7584 = vld [vmem:[#allocation7 + $0x30] sm:$0xff]
        %v7585 = vld [vmem:[#allocation7 + $0x38] sm:$0xff]
        %v7586 = vld [vmem:[#allocation7 + $0x40] sm:$0xff]
        %v7587 = vld [vmem:[#allocation7 + $0x48] sm:$0xff]
        %v7588 = vld [vmem:[#allocation7 + $0x50] sm:$0xff]
        %v7589 = vld [vmem:[#allocation7 + $0x58] sm:$0xff]
        %v7590 = vld [vmem:[#allocation7 + $0x60] sm:$0xff]
        %v7591 = vld [vmem:[#allocation7 + $0x68] sm:$0xff]
        %v7592 = vld [vmem:[#allocation7 + $0x70] sm:$0xff]
        %v7593 = vld [vmem:[#allocation7 + $0x78] sm:$0xff]
        %v7594 = vld [vmem:[#allocation7 + $0x80] sm:$0xff]
        %v7595 = vld [vmem:[#allocation7 + $0x88] sm:$0xff]
        %v7596 = vld [vmem:[#allocation7 + $0x90] sm:$0xff]
        %v7597 = vld [vmem:[#allocation7 + $0x98] sm:$0xff]
        %v7598 = vld [vmem:[#allocation7 + $0xa0] sm:$0xff]
        %v7599 = vld [vmem:[#allocation7 + $0xa8] sm:$0xff]
        %v7600 = vld [vmem:[#allocation7 + $0xb0] sm:$0xff]
        %v7601 = vld [vmem:[#allocation7 + $0xb8] sm:$0xff]
        %v7602 = vld [vmem:[#allocation7 + $0xc0] sm:$0xff]
        %v7603 = vld [vmem:[#allocation7 + $0xc8] sm:$0xff]
        %v7604 = vld [vmem:[#allocation7 + $0xd0] sm:$0xff]
        %v7605 = vld [vmem:[#allocation7 + $0xd8] sm:$0xff]
        %v7606 = vld [vmem:[#allocation7 + $0xe0] sm:$0xff]
        %v7607 = vld [vmem:[#allocation7 + $0xe8] sm:$0xff]
        %v7608 = vld [vmem:[#allocation7 + $0xf0] sm:$0xff]
        %v7609 = vld [vmem:[#allocation7 + $0xf8] sm:$0xff]
        %v7610 = vld [vmem:[#allocation7 + $0x100] sm:$0xff]
        %v7611 = vld [vmem:[#allocation7 + $0x108] sm:$0xff]
        %v7612 = vld [vmem:[#allocation7 + $0x110] sm:$0xff]
        %v7613 = vld [vmem:[#allocation7 + $0x118] sm:$0xff]
        %v7614 = vld [vmem:[#allocation7 + $0x120] sm:$0xff]
        %v7615 = vld [vmem:[#allocation7 + $0x128] sm:$0xff]
        %v7616 = vld [vmem:[#allocation7 + $0x130] sm:$0xff]
        %v7617 = vld [vmem:[#allocation7 + $0x138] sm:$0xff]
        %v7618 = vld [vmem:[#allocation7 + $0x140] sm:$0xff]
        %v7619 = vld [vmem:[#allocation7 + $0x148] sm:$0xff]
        %v7620 = vld [vmem:[#allocation7 + $0x150] sm:$0xff]
        %v7621 = vld [vmem:[#allocation7 + $0x158] sm:$0xff]
        %v7622 = vld [vmem:[#allocation7 + $0x160] sm:$0xff]
        %v7623 = vld [vmem:[#allocation7 + $0x168] sm:$0xff]
        %v7624 = vld [vmem:[#allocation7 + $0x170] sm:$0xff]
        %v7625 = vld [vmem:[#allocation7 + $0x178] sm:$0xff]
        %v7626 = vld [vmem:[#allocation7 + $0x180] sm:$0xff]
        %v7627 = vld [vmem:[#allocation7 + $0x188] sm:$0xff]
        %v7628 = vld [vmem:[#allocation7 + $0x190] sm:$0xff]
        %v7629 = vld [vmem:[#allocation7 + $0x198] sm:$0xff]
        %v7630 = vld [vmem:[#allocation7 + $0x1a0] sm:$0xff]
        %v7631 = vld [vmem:[#allocation7 + $0x1a8] sm:$0xff]
        %v7632 = vld [vmem:[#allocation7 + $0x1b0] sm:$0xff]
        %v7633 = vld [vmem:[#allocation7 + $0x1b8] sm:$0xff]
        %v7634 = vld [vmem:[#allocation7 + $0x1c0] sm:$0xff]
        %v7635 = vld [vmem:[#allocation7 + $0x1c8] sm:$0xff]
        %v7636 = vld [vmem:[#allocation7 + $0x1d0] sm:$0xff]
        %v7637 = vld [vmem:[#allocation7 + $0x1d8] sm:$0xff]
        %v7638 = vld [vmem:[#allocation7 + $0x1e0] sm:$0xff]
        %v7639 = vld [vmem:[#allocation7 + $0x1e8] sm:$0xff]
        %v7640 = vld [vmem:[#allocation7 + $0x1f0] sm:$0xff]
        %v7641 = vld [vmem:[#allocation7 + $0x1f8] sm:$0xff]
        %v7642 = vld [vmem:[%s16] sm:$0x1]
        %v7644 = vlaneseq
        %v7645 = vshrl.u32 %v7644, 7
        %v7646 = vsub.s32 0, %v7645
        %v7647 = vrot.slane %v7642, %v7646
        %7649 = vmatprep.subr.mxu0 0.0
        %7650 = vmatpush1.msra.mxu0 %v7578
        %7651 = vmatprep.subr.mxu0 0.0
        %7652 = vmatpush1.msra.mxu0 %v7579
        %7653 = vmatprep.subr.mxu0 0.0
        %7654 = vmatpush1.msra.mxu0 %v7580
        %7655 = vmatprep.subr.mxu0 0.0
        %7656 = vmatpush1.msra.mxu0 %v7581
        %7657 = vmatprep.subr.mxu0 0.0
        %7658 = vmatpush1.msra.mxu0 %v7582
        %7659 = vmatprep.subr.mxu0 0.0
        %7660 = vmatpush1.msra.mxu0 %v7583
        %7661 = vmatprep.subr.mxu0 0.0
        %7662 = vmatpush1.msra.mxu0 %v7584
        %7663 = vmatprep.subr.mxu0 0.0
        %7664 = vmatpush1.msra.mxu0 %v7585
        %7665 = vmatprep.subr.mxu0 0.0
        %7666 = vmatpush1.msra.mxu0 %v7586
        %7667 = vmatprep.subr.mxu0 0.0
        %7668 = vmatpush1.msra.mxu0 %v7587
        %7669 = vmatprep.subr.mxu0 0.0
        %7670 = vmatpush1.msra.mxu0 %v7588
        %7671 = vmatprep.subr.mxu0 0.0
        %7672 = vmatpush1.msra.mxu0 %v7589
        %7673 = vmatprep.subr.mxu0 0.0
        %7674 = vmatpush1.msra.mxu0 %v7590
        %7675 = vmatprep.subr.mxu0 0.0
        %7676 = vmatpush1.msra.mxu0 %v7591
        %7677 = vmatprep.subr.mxu0 0.0
        %7678 = vmatpush1.msra.mxu0 %v7592
        %7679 = vmatprep.subr.mxu0 0.0
        %7680 = vmatpush1.msra.mxu0 %v7593
        %7681 = vmatprep.subr.mxu0 0.0
        %7682 = vmatpush1.msra.mxu0 %v7594
        %7683 = vmatprep.subr.mxu0 0.0
        %7684 = vmatpush1.msra.mxu0 %v7595
        %7685 = vmatprep.subr.mxu0 0.0
        %7686 = vmatpush1.msra.mxu0 %v7596
        %7687 = vmatprep.subr.mxu0 0.0
        %7688 = vmatpush1.msra.mxu0 %v7597
        %7689 = vmatprep.subr.mxu0 0.0
        %7690 = vmatpush1.msra.mxu0 %v7598
        %7691 = vmatprep.subr.mxu0 0.0
        %7692 = vmatpush1.msra.mxu0 %v7599
        %7693 = vmatprep.subr.mxu0 0.0
        %7694 = vmatpush1.msra.mxu0 %v7600
        %7695 = vmatprep.subr.mxu0 0.0
        %7696 = vmatpush1.msra.mxu0 %v7601
        %7697 = vmatprep.subr.mxu0 0.0
        %7698 = vmatpush1.msra.mxu0 %v7602
        %7699 = vmatprep.subr.mxu0 0.0
        %7700 = vmatpush1.msra.mxu0 %v7603
        %7701 = vmatprep.subr.mxu0 0.0
        %7702 = vmatpush1.msra.mxu0 %v7604
        %7703 = vmatprep.subr.mxu0 0.0
        %7704 = vmatpush1.msra.mxu0 %v7605
        %7705 = vmatprep.subr.mxu0 0.0
        %7706 = vmatpush1.msra.mxu0 %v7606
        %7707 = vmatprep.subr.mxu0 0.0
        %7708 = vmatpush1.msra.mxu0 %v7607
        %7709 = vmatprep.subr.mxu0 0.0
        %7710 = vmatpush1.msra.mxu0 %v7608
        %7711 = vmatprep.subr.mxu0 0.0
        %7712 = vmatpush1.msra.mxu0 %v7609
        %7713 = vmatprep.mubr.f32.mxu0 %v7515
        %7714 = vmatmul.mubr.f32.gmra.mrb[0].mxu0 %v7514
        %v7715 = vpop.f32.mrb[0].mxu0
        %v7716 = vadd.f32 %v7647, %v7715
        %v7717 = vpop.f32.mrb[0].mxu0
        %7718 = vmatprep.mubr.f32.mxu0 %v7519
        %7719 = vmatmul.mubr.f32.gmra.mrb[0].mxu0 %v7518
        %v7720 = vpop.f32.mrb[0].mxu0
        %v7721 = vadd.f32 %v7647, %v7720
        %v7722 = vpop.f32.mrb[0].mxu0
        %7723 = vmatprep.mubr.f32.mxu0 %v7523
        %7724 = vmatmul.mubr.f32.gmra.mrb[0].mxu0 %v7522
        %v7725 = vpop.f32.mrb[0].mxu0
        %v7726 = vadd.f32 %v7647, %v7725
        %v7727 = vpop.f32.mrb[0].mxu0
        %7728 = vmatprep.mubr.f32.mxu0 %v7527
        %7729 = vmatmul.mubr.f32.gmra.mrb[0].mxu0 %v7526
        %v7730 = vpop.f32.mrb[0].mxu0
        %v7731 = vadd.f32 %v7647, %v7730
        %v7732 = vpop.f32.mrb[0].mxu0
        %7733 = vmatprep.mubr.f32.mxu0 %v7531
        %7734 = vmatmul.mubr.f32.gmra.mrb[0].mxu0 %v7530
        %v7735 = vpop.f32.mrb[0].mxu0
        %v7736 = vadd.f32 %v7647, %v7735
        %v7737 = vpop.f32.mrb[0].mxu0
        %7738 = vmatprep.mubr.f32.mxu0 %v7535
        %7739 = vmatmul.mubr.f32.gmra.mrb[0].mxu0 %v7534
        %v7740 = vpop.f32.mrb[0].mxu0
        %v7741 = vadd.f32 %v7647, %v7740
        %v7742 = vpop.f32.mrb[0].mxu0
        %7743 = vmatprep.mubr.f32.mxu0 %v7539
        %7744 = vmatmul.mubr.f32.gmra.mrb[0].mxu0 %v7538
        %v7745 = vpop.f32.mrb[0].mxu0
        %v7746 = vadd.f32 %v7647, %v7745
        %v7747 = vpop.f32.mrb[0].mxu0
        %7748 = vmatprep.mubr.f32.mxu0 %v7543
        %7749 = vmatmul.mubr.f32.gmra.mrb[0].mxu0 %v7542
        %v7750 = vpop.f32.mrb[0].mxu0
        %v7751 = vadd.f32 %v7647, %v7750
        %v7752 = vpop.f32.mrb[0].mxu0
        %7753 = vmatprep.mubr.f32.mxu0 %v7547
        %7754 = vmatmul.mubr.f32.gmra.mrb[0].mxu0 %v7546
        %v7755 = vpop.f32.mrb[0].mxu0
        %v7756 = vadd.f32 %v7647, %v7755
        %v7757 = vpop.f32.mrb[0].mxu0
        %7758 = vmatprep.mubr.f32.mxu0 %v7551
        %7759 = vmatmul.mubr.f32.gmra.mrb[0].mxu0 %v7550
        %v7760 = vpop.f32.mrb[0].mxu0
        %v7761 = vadd.f32 %v7647, %v7760
        %v7762 = vpop.f32.mrb[0].mxu0
        %7763 = vmatprep.mubr.f32.mxu0 %v7555
        %7764 = vmatmul.mubr.f32.gmra.mrb[0].mxu0 %v7554
        %v7765 = vpop.f32.mrb[0].mxu0
        %v7766 = vadd.f32 %v7647, %v7765
        %v7767 = vpop.f32.mrb[0].mxu0
        %7768 = vmatprep.mubr.f32.mxu0 %v7559
        %7769 = vmatmul.mubr.f32.gmra.mrb[0].mxu0 %v7558
        %v7770 = vpop.f32.mrb[0].mxu0
        %v7771 = vadd.f32 %v7647, %v7770
        %v7772 = vpop.f32.mrb[0].mxu0
        %7773 = vmatprep.mubr.f32.mxu0 %v7563
        %7774 = vmatmul.mubr.f32.gmra.mrb[0].mxu0 %v7562
        %v7775 = vpop.f32.mrb[0].mxu0
        %v7776 = vadd.f32 %v7647, %v7775
        %v7777 = vpop.f32.mrb[0].mxu0
        %7778 = vmatprep.mubr.f32.mxu0 %v7567
        %7779 = vmatmul.mubr.f32.gmra.mrb[0].mxu0 %v7566
        %v7780 = vpop.f32.mrb[0].mxu0
        %v7781 = vadd.f32 %v7647, %v7780
        %v7782 = vpop.f32.mrb[0].mxu0
        %7783 = vmatprep.mubr.f32.mxu0 %v7571
        %7784 = vmatmul.mubr.f32.gmra.mrb[0].mxu0 %v7570
        %v7785 = vpop.f32.mrb[0].mxu0
        %v7786 = vadd.f32 %v7647, %v7785
        %v7787 = vpop.f32.mrb[0].mxu0
        %7788 = vmatprep.mubr.f32.mxu0 %v7575
        %7789 = vmatmul.mubr.f32.gmra.mrb[0].mxu0 %v7574
        %v7790 = vpop.f32.mrb[0].mxu0
        %v7791 = vadd.f32 %v7647, %v7790
        %v7792 = vpop.f32.mrb[0].mxu0
        %7793 = vdwg.mxu0
        %7794 = vmatprep.subr.mxu0 0.0
        %7795 = vmatpush1.msra.mxu0 %v7610
        %7796 = vmatprep.subr.mxu0 0.0
        %7797 = vmatpush1.msra.mxu0 %v7611
        %7798 = vmatprep.subr.mxu0 0.0
        %7799 = vmatpush1.msra.mxu0 %v7612
        %7800 = vmatprep.subr.mxu0 0.0
        %7801 = vmatpush1.msra.mxu0 %v7613
        %7802 = vmatprep.subr.mxu0 0.0
        %7803 = vmatpush1.msra.mxu0 %v7614
        %7804 = vmatprep.subr.mxu0 0.0
        %7805 = vmatpush1.msra.mxu0 %v7615
        %7806 = vmatprep.subr.mxu0 0.0
        %7807 = vmatpush1.msra.mxu0 %v7616
        %7808 = vmatprep.subr.mxu0 0.0
        %7809 = vmatpush1.msra.mxu0 %v7617
        %7810 = vmatprep.subr.mxu0 0.0
        %7811 = vmatpush1.msra.mxu0 %v7618
        %7812 = vmatprep.subr.mxu0 0.0
        %7813 = vmatpush1.msra.mxu0 %v7619
        %7814 = vmatprep.subr.mxu0 0.0
        %7815 = vmatpush1.msra.mxu0 %v7620
        %7816 = vmatprep.subr.mxu0 0.0
        %7817 = vmatpush1.msra.mxu0 %v7621
        %7818 = vmatprep.subr.mxu0 0.0
        %7819 = vmatpush1.msra.mxu0 %v7622
        %7820 = vmatprep.subr.mxu0 0.0
        %7821 = vmatpush1.msra.mxu0 %v7623
        %7822 = vmatprep.subr.mxu0 0.0
        %7823 = vmatpush1.msra.mxu0 %v7624
        %7824 = vmatprep.subr.mxu0 0.0
        %7825 = vmatpush1.msra.mxu0 %v7625
        %7826 = vmatprep.subr.mxu0 0.0
        %7827 = vmatpush1.msra.mxu0 %v7626
        %7828 = vmatprep.subr.mxu0 0.0
        %7829 = vmatpush1.msra.mxu0 %v7627
        %7830 = vmatprep.subr.mxu0 0.0
        %7831 = vmatpush1.msra.mxu0 %v7628
        %7832 = vmatprep.subr.mxu0 0.0
        %7833 = vmatpush1.msra.mxu0 %v7629
        %7834 = vmatprep.subr.mxu0 0.0
        %7835 = vmatpush1.msra.mxu0 %v7630
        %7836 = vmatprep.subr.mxu0 0.0
        %7837 = vmatpush1.msra.mxu0 %v7631
        %7838 = vmatprep.subr.mxu0 0.0
        %7839 = vmatpush1.msra.mxu0 %v7632
        %7840 = vmatprep.subr.mxu0 0.0
        %7841 = vmatpush1.msra.mxu0 %v7633
        %7842 = vmatprep.subr.mxu0 0.0
        %7843 = vmatpush1.msra.mxu0 %v7634
        %7844 = vmatprep.subr.mxu0 0.0
        %7845 = vmatpush1.msra.mxu0 %v7635
        %7846 = vmatprep.subr.mxu0 0.0
        %7847 = vmatpush1.msra.mxu0 %v7636
        %7848 = vmatprep.subr.mxu0 0.0
        %7849 = vmatpush1.msra.mxu0 %v7637
        %7850 = vmatprep.subr.mxu0 0.0
        %7851 = vmatpush1.msra.mxu0 %v7638
        %7852 = vmatprep.subr.mxu0 0.0
        %7853 = vmatpush1.msra.mxu0 %v7639
        %7854 = vmatprep.subr.mxu0 0.0
        %7855 = vmatpush1.msra.mxu0 %v7640
        %7856 = vmatprep.subr.mxu0 0.0
        %7857 = vmatpush1.msra.mxu0 %v7641
        %7858 = vmatprep.mubr.f32.mxu0 %v7517
        %7859 = vmatmul.mubr.f32.gmra.mrb[0].mxu0 %v7516
        %v7860 = vpop.f32.mrb[0].mxu0
        %v7861 = vadd.f32 %v7716, %v7860
        %v7862 = vpop.f32.mrb[0].mxu0
        %7863 = vmatprep.mubr.f32.mxu0 %v7521
        %7864 = vmatmul.mubr.f32.gmra.mrb[0].mxu0 %v7520
        %v7865 = vpop.f32.mrb[0].mxu0
        %v7866 = vadd.f32 %v7721, %v7865
        %v7867 = vpop.f32.mrb[0].mxu0
        %7868 = vmatprep.mubr.f32.mxu0 %v7525
        %7869 = vmatmul.mubr.f32.gmra.mrb[0].mxu0 %v7524
        %v7870 = vpop.f32.mrb[0].mxu0
        %v7871 = vadd.f32 %v7726, %v7870
        %v7872 = vpop.f32.mrb[0].mxu0
        %7873 = vmatprep.mubr.f32.mxu0 %v7529
        %7874 = vmatmul.mubr.f32.gmra.mrb[0].mxu0 %v7528
        %v7875 = vpop.f32.mrb[0].mxu0
        %v7876 = vadd.f32 %v7731, %v7875
        %v7877 = vpop.f32.mrb[0].mxu0
        %7878 = vmatprep.mubr.f32.mxu0 %v7533
        %7879 = vmatmul.mubr.f32.gmra.mrb[0].mxu0 %v7532
        %v7880 = vpop.f32.mrb[0].mxu0
        %v7881 = vadd.f32 %v7736, %v7880
        %v7882 = vpop.f32.mrb[0].mxu0
        %7883 = vmatprep.mubr.f32.mxu0 %v7537
        %7884 = vmatmul.mubr.f32.gmra.mrb[0].mxu0 %v7536
        %v7885 = vpop.f32.mrb[0].mxu0
        %v7886 = vadd.f32 %v7741, %v7885
        %v7887 = vpop.f32.mrb[0].mxu0
        %7888 = vmatprep.mubr.f32.mxu0 %v7541
        %7889 = vmatmul.mubr.f32.gmra.mrb[0].mxu0 %v7540
        %v7890 = vpop.f32.mrb[0].mxu0
        %v7891 = vadd.f32 %v7746, %v7890
        %v7892 = vpop.f32.mrb[0].mxu0
        %7893 = vmatprep.mubr.f32.mxu0 %v7545
        %7894 = vmatmul.mubr.f32.gmra.mrb[0].mxu0 %v7544
        %v7895 = vpop.f32.mrb[0].mxu0
        %v7896 = vadd.f32 %v7751, %v7895
        %v7897 = vpop.f32.mrb[0].mxu0
        %7898 = vmatprep.mubr.f32.mxu0 %v7549
        %7899 = vmatmul.mubr.f32.gmra.mrb[0].mxu0 %v7548
        %v7900 = vpop.f32.mrb[0].mxu0
        %v7901 = vadd.f32 %v7756, %v7900
        %v7902 = vpop.f32.mrb[0].mxu0
        %7903 = vmatprep.mubr.f32.mxu0 %v7553
        %7904 = vmatmul.mubr.f32.gmra.mrb[0].mxu0 %v7552
        %v7905 = vpop.f32.mrb[0].mxu0
        %v7906 = vadd.f32 %v7761, %v7905
        %v7907 = vpop.f32.mrb[0].mxu0
        %7908 = vmatprep.mubr.f32.mxu0 %v7557
        %7909 = vmatmul.mubr.f32.gmra.mrb[0].mxu0 %v7556
        %v7910 = vpop.f32.mrb[0].mxu0
        %v7911 = vadd.f32 %v7766, %v7910
        %v7912 = vpop.f32.mrb[0].mxu0
        %7913 = vmatprep.mubr.f32.mxu0 %v7561
        %7914 = vmatmul.mubr.f32.gmra.mrb[0].mxu0 %v7560
        %v7915 = vpop.f32.mrb[0].mxu0
        %v7916 = vadd.f32 %v7771, %v7915
        %v7917 = vpop.f32.mrb[0].mxu0
        %7918 = vmatprep.mubr.f32.mxu0 %v7565
        %7919 = vmatmul.mubr.f32.gmra.mrb[0].mxu0 %v7564
        %v7920 = vpop.f32.mrb[0].mxu0
        %v7921 = vadd.f32 %v7776, %v7920
        %v7922 = vpop.f32.mrb[0].mxu0
        %7923 = vmatprep.mubr.f32.mxu0 %v7569
        %7924 = vmatmul.mubr.f32.gmra.mrb[0].mxu0 %v7568
        %v7925 = vpop.f32.mrb[0].mxu0
        %v7926 = vadd.f32 %v7781, %v7925
        %v7927 = vpop.f32.mrb[0].mxu0
        %7928 = vmatprep.mubr.f32.mxu0 %v7573
        %7929 = vmatmul.mubr.f32.gmra.mrb[0].mxu0 %v7572
        %v7930 = vpop.f32.mrb[0].mxu0
        %v7931 = vadd.f32 %v7786, %v7930
        %v7932 = vpop.f32.mrb[0].mxu0
        %7933 = vmatprep.mubr.f32.mxu0 %v7577
        %7934 = vmatmul.mubr.f32.gmra.mrb[0].mxu0 %v7576
        %v7935 = vpop.f32.mrb[0].mxu0
        %v7936 = vadd.f32 %v7791, %v7935
        %v7937 = vpop.f32.mrb[0].mxu0
        %7938 = vdwg.mxu0
        %v7939 = vadd.f32 %v6356, %v7861
        %v7940 = vadd.f32 %v6357, %v7866
        %v7941 = vadd.f32 %v6358, %v7871
        %v7942 = vadd.f32 %v6359, %v7876
        %v7943 = vadd.f32 %v6360, %v7881
        %v7944 = vadd.f32 %v6361, %v7886
        %v7945 = vadd.f32 %v6362, %v7891
        %v7946 = vadd.f32 %v6363, %v7896
        %v7947 = vadd.f32 %v6364, %v7901
        %v7948 = vadd.f32 %v6365, %v7906
        %v7949 = vadd.f32 %v6366, %v7911
        %v7950 = vadd.f32 %v6367, %v7916
        %v7951 = vadd.f32 %v6368, %v7921
        %v7952 = vadd.f32 %v6369, %v7926
        %v7953 = vadd.f32 %v6370, %v7931
        %v7954 = vadd.f32 %v6371, %v7936
        %7955 = vst [vmem:[%s585] sm:$0xff] %v7939
        %7956 = vst [vmem:[%s585 + $0x8] sm:$0xff] %v7940
        %7957 = vst [vmem:[%s585 + $0x10] sm:$0xff] %v7941
        %7958 = vst [vmem:[%s585 + $0x18] sm:$0xff] %v7942
        %7959 = vst [vmem:[%s585 + $0x20] sm:$0xff] %v7943
        %7960 = vst [vmem:[%s585 + $0x28] sm:$0xff] %v7944
        %7961 = vst [vmem:[%s585 + $0x30] sm:$0xff] %v7945
        %7962 = vst [vmem:[%s585 + $0x38] sm:$0xff] %v7946
        %7963 = vst [vmem:[%s585 + $0x40] sm:$0xff] %v7947
        %7964 = vst [vmem:[%s585 + $0x48] sm:$0xff] %v7948
        %7965 = vst [vmem:[%s585 + $0x50] sm:$0xff] %v7949
        %7966 = vst [vmem:[%s585 + $0x58] sm:$0xff] %v7950
        %7967 = vst [vmem:[%s585 + $0x60] sm:$0xff] %v7951
        %7968 = vst [vmem:[%s585 + $0x68] sm:$0xff] %v7952
        %7969 = vst [vmem:[%s585 + $0x70] sm:$0xff] %v7953
        %7970 = vst [vmem:[%s585 + $0x78] sm:$0xff] %v7954
        %s7971 = sand.u32 %s417, 1
        %s7972 = scalar_lea.sflag [#allocation6], %s7971
        %s7973 = sand.u32 %s417, 1
        %s7974 = smul.addr %s7973, 128
        %s7975 = scalar_lea.vmem [#allocation9], %s7974
        // Predicated region
        $region108: #{gpt2_block.1} parent=87 // pred_check
          %p7976 = pneg %p427
        $region109: #{gpt2_block.1} parent=87 // pred_check_branch
          %7978 = sbr.rel (%p7976) target = $region111
        $region110: #{gpt2_block.1} parent=87 // pred_region
          %s7979 = smul.u32 16, %s38
          %s7981 = ssub.s32 2048, 2048
          %7982 = vsyncadd %s7972, %s7981
          %s7983 = smul.addr %s37, 32
          %s7984 = sadd.s32 %s7979, %s7983
          %s7985 = smul.addr %s7984, 128
          %s7986 = scalar_lea.hbm %s17, %s7985
          %s7987 = sshll.u32 %s7975, 4
          %s7988 = int_to_ptr.vmem [resolvable:$true] %s7987
          %7993 = dma.vmem_to_hbm [thread:$0]  %s7988, 2048, %s7986, %s7972, 128, 128, 8
        $region111: #{gpt2_block.1} parent=87 // pred_fallthru
          _
      $region88: #{gpt2_block.1} parent=5 // pred_fallthru
        _
      %p7994 = scmp.le.s32.totalorder 2, %s28
      // Predicated region
      $region112: #{gpt2_block.1} parent=5 // pred_check
        %p7995 = pneg %p7994
      $region113: #{gpt2_block.1} parent=5 // pred_check_branch
        %7997 = sbr.rel (%p7995) target = $region115
      $region114: #{gpt2_block.1} parent=5 // pred_region
        %s7998 = ssub.s32 %s28, 2
        // Predicated region
        $region116: #{gpt2_block.1} parent=114 // pred_check
          %p7999 = pneg %p433
        $region117: #{gpt2_block.1} parent=114 // pred_check_branch
          %8001 = sbr.rel (%p7999) target = $region119
        $region118: #{gpt2_block.1} parent=114 // pred_region
          %s8002 = sand.u32 %s418, 1
          %s8003 = scalar_lea.sflag [#allocation6], %s8002
          %s8004 = sand.u32 %s418, 1
          %s8005 = smul.addr %s8004, 128
          %s8006 = scalar_lea.vmem [#allocation9], %s8005
          %8007 = dma.done %s8003, 2048
        $region119: #{gpt2_block.1} parent=114 // pred_fallthru
          _
      $region115: #{gpt2_block.1} parent=5 // pred_fallthru
        _
    $region6: #{gpt2_block.1} parent=1 // loop_footer
      %s32 = sadd.s32 1, %s28
    $region7: #{gpt2_block.1} parent=1 // loop_footer_branch
      %27 = sbr.rel target = $region3
    $region8: #{gpt2_block.1} parent=1 // loop_exit
      _
    %8008 = vsyncpa [#allocation5], 1
    %s8009 = scalar_lea.sflag [#allocation5], 1
    %8010 = vsyncpa %s8009, 1
    %8011 = vsyncpa [#allocation8], 1
    %8012 = vsyncpa [#allocation6], 1
    %s8013 = scalar_lea.sflag [#allocation6], 1
    %8014 = vsyncpa %s8013, 1

</llo_original>
